<compile_context>
chip_gen: v7x
topology: tpu7x:2x2x1
jax: 0.10.0
libtpu: 0.0.40
codegen_flags: <defaults>
</compile_context>

<pallas_src>
import numpy as np
import jax
import jax.numpy as jnp
from jax.experimental import pallas as pl
from jax.experimental.pallas import tpu as pltpu

LANE = 128


# --------------------------------------------------------------- utilities --

def _pad_lanes(a, mult=LANE):
    """Pad the last (lane) dim up to a multiple of `mult`."""
    t = a.shape[-1]
    tp = ((t + mult - 1) // mult) * mult
    if tp == t:
        return a
    pad = [(0, 0)] * (a.ndim - 1) + [(0, tp - t)]
    return jnp.pad(a, pad)


def _lane_tile(total, max_tile=8192):
    """Largest lane tile (multiple of 128) dividing `total`, up to max_tile."""
    if total <= max_tile:
        return total
    t = max_tile - (max_tile % LANE)
    while total % t:
        t -= LANE
    return t


def _to_cf_lanes(x_nchw):
    """(N, C, H, W) -> (C, N*H*W): channels on sublanes, batch*spatial on lanes."""
    N, C, H, W = x_nchw.shape
    return jnp.transpose(x_nchw, (1, 0, 2, 3)).reshape(C, N * H * W)


# ------------------------------------------------ in-kernel 3x3 conv helper --

def _tap_conv3x3(x, get_w, taps, xc, yc, H, W):
    """sum_t roll(W_t @ x, -(ddy*W+ddx)) with zero-pad boundary masking.

    x: (Cin, T) value (lane index = n*H*W + y*W + x); get_w(j) -> (Cout, Cin);
    taps: list of (j, ddy, ddx); xc/yc: (1, T) int32 per-lane coordinates.
    Rolls that would cross a row / image / batch boundary are exactly the
    masked positions, so batch-merged lanes and tail padding are safe.
    """
    T = x.shape[-1]
    acc = None
    for j, ddy, ddx in taps:
        p = jnp.dot(get_w(j), x, preferred_element_type=jnp.float32)
        off = ddy * W + ddx
        if off:
            p = pltpu.roll(p, (-off) % T, axis=1)     # result[s] = p[s + off]
        if ddy or ddx:
            valid = ((xc + ddx >= 0) & (xc + ddx < W) &
                     (yc + ddy >= 0) & (yc + ddy < H))
            p = jnp.where(valid, p, 0.0)
        acc = p if acc is None else acc + p
    return acc


# ------------------------------------------------------------ Proto kernel --

def _make_proto_kernel(H, W, cv1_taps, parity_taps):
    def kernel(x_ref, xc_ref, yc_ref, w1_ref, s1_ref, b1_ref,
               w2_ref, s2_ref, b2_ref, w3_ref, s3_ref, b3_ref, o_ref):
        xc = xc_ref[...]
        yc = yc_ref[...]
        x = x_ref[...]

        # cv1: 3x3 conv + BN + SiLU (roll-based; no im2col, no HBM round-trip)
        c1 = _tap_conv3x3(x, lambda j: w1_ref[j], cv1_taps, xc, yc, H, W)
        c1 = c1 * s1_ref[...] + b1_ref[...]
        c1 = c1 * jax.nn.sigmoid(c1)

        # nearest-2x upsample folded into cv2: one effective 2x2 conv per
        # output parity (py, px) on the un-upsampled c1, then cv3 (1x1);
        # the intermediate feature maps never leave VMEM.
        for pidx in range(4):
            c2 = _tap_conv3x3(c1, lambda j, _p=pidx: w2_ref[_p, j],
                              parity_taps[pidx], xc, yc, H, W)
            c2 = c2 * s2_ref[...] + b2_ref[...]
            c2 = c2 * jax.nn.sigmoid(c2)
            c3 = jnp.dot(w3_ref[...], c2, preferred_element_type=jnp.float32)
            c3 = c3 * s3_ref[...] + b3_ref[...]
            o_ref[pidx] = c3 * jax.nn.sigmoid(c3)

    return kernel


def proto_forward(x_nchw, w1_hwio, s1, b1, w2_hwio, s2, b2, w3_io, s3, b3):
    """Fully fused Proto. Returns (N, nm, 2H, 2W)."""
    N, Cin, H, W = x_nchw.shape
    Cmid = w1_hwio.shape[-1]
    nm = w3_io.shape[-1]
    HW = H * W
    NHW = N * HW

    xt = _pad_lanes(_to_cf_lanes(x_nchw))                       # (Cin, Tp)
    Tp = xt.shape[-1]

    # per-lane coordinates (small constant rows; avoids in-kernel int div/mod)
    j = np.arange(Tp)
    xc = jnp.asarray((j % W).astype(np.int32)).reshape(1, Tp)
    yc = jnp.asarray(((j % HW) // W).astype(np.int32)).reshape(1, Tp)

    # cv1 taps: tap j = dy*3+dx, offsets (dy-1, dx-1); w1t[j] = w1[dy, dx].T
    cv1_taps = [(dy * 3 + dx, dy - 1, dx - 1)
                for dy in range(3) for dx in range(3)]
    w1t = jnp.transpose(w1_hwio, (0, 1, 3, 2)).reshape(9, Cmid, Cin)

    # Upsample folded into cv2: output row Y=2*yo+py of the upsampled map reads
    # source rows {yo-1, yo} (py=0) or {yo, yo+1} (py=1); the 3x3 rows that hit
    # the same source row are summed into one effective tap.  Same in x.
    KSETS = {0: ((-1, (0,)), (0, (1, 2))),
             1: ((0, (0, 1)), (1, (2,)))}
    parity_taps, w2_mats = [], []
    for py in range(2):
        for px in range(2):
            taps, mats = [], []
            jt = 0
            for ey, kys in KSETS[py]:
                for ex, kxs in KSETS[px]:
                    wsum = sum(w2_hwio[ky, kx] for ky in kys for kx in kxs)
                    mats.append(jnp.transpose(wsum, (1, 0)))     # (Cout, Cin)
                    taps.append((jt, ey, ex))
                    jt += 1
            parity_taps.append(taps)
            w2_mats.append(jnp.stack(mats))                      # (4, Cmid, Cmid)
    w2e = jnp.stack(w2_mats)                                     # (4, 4, Cmid, Cmid)

    w3 = jnp.transpose(w3_io, (1, 0))                            # (nm, Cmid)

    out = pl.pallas_call(
        _make_proto_kernel(H, W, cv1_taps, parity_taps),
        out_shape=jax.ShapeDtypeStruct((4, nm, Tp), jnp.float32),
    )(xt, xc, yc,
      w1t, s1.reshape(Cmid, 1), b1.reshape(Cmid, 1),
      w2e, s2.reshape(Cmid, 1), b2.reshape(Cmid, 1),
      w3, s3.reshape(nm, 1), b3.reshape(nm, 1))

    # interleave the four parity maps -> (N, nm, 2H, 2W) (small XLA transpose)
    out = out[:, :, :NHW].reshape(2, 2, nm, N, H, W)
    out = jnp.transpose(out, (3, 2, 4, 0, 5, 1)).reshape(N, nm, 2 * H, 2 * W)
    return out


# ----------------------------------------------------------- Detect kernel --

def _make_detect_kernel(two_stride):
    def kernel(x_ref, w_ref, b_ref, gx_ref, gy_ref,
               sxy_ref, swh_ref, ssig_ref, gsx_ref, anc4_ref,
               raw_ref, dec_ref):
        # fused 1x1 detect conv + YOLO decode; batch*spatial on lanes.
        y = jnp.dot(w_ref[...], x_ref[...],
                    preferred_element_type=jnp.float32) + b_ref[...]
        raw_ref[...] = y

        sig = jax.nn.sigmoid(y)
        sxy = sxy_ref[...]
        swh = swh_ref[...]
        ssig = ssig_ref[...]
        gsx = gsx_ref[...]
        # stride is pre-folded into gx/gy, two_stride and anc4
        gval = gsx * gx_ref[...] + (sxy - gsx) * gy_ref[...]
        xy = sig * two_stride + gval
        wh = sig * sig * anc4_ref[...]
        dec_ref[...] = (sxy * xy + swh * wh + ssig * sig
                        + (1.0 - sxy - swh - ssig) * y)

    return kernel


def detect_level(x_nchw, w_io, bias, anchors_i, stride, na, no, nc,
                 *, max_tile=8192):
    """Fused 1x1 detect conv + YOLO decode for one pyramid level.
    Returns (raw, dec), each (na*no, N*H*W) channels-first / lane-dense."""
    N, Cin, H, W = x_nchw.shape
    HW = H * W
    NHW = N * HW
    rows = na * no

    xt = _pad_lanes(_to_cf_lanes(x_nchw))                        # (Cin, Tp)
    Tp = xt.shape[-1]
    T = _lane_tile(Tp, max_tile)
    w = jnp.transpose(w_io, (1, 0))                              # (rows, Cin)

    # tiny per-row constants (channel type within `no`)
    c_idx = np.arange(rows) % no
    a_idx = np.arange(rows) // no

    def col(v):
        return jnp.asarray(np.asarray(v, np.float32).reshape(rows, 1))

    sel_xy = col(c_idx < 2)
    sel_wh = col((c_idx >= 2) & (c_idx < 4))
    sel_sig = col((c_idx >= 4) & (c_idx < 5 + nc))
    gsel_x = col(c_idx == 0)
    anc4 = (4.0 * float(stride)
            * anchors_i[a_idx, np.clip(c_idx - 2, 0, 1)]).astype(jnp.float32)
    anc4 = anc4.reshape(rows, 1)

    # tiny per-column grid coordinates, pre-scaled by stride (incl. the -0.5)
    j = np.arange(Tp)
    gx = jnp.asarray((((j % W) - 0.5) * float(stride))
                     .astype(np.float32)).reshape(1, Tp)
    gy = jnp.asarray(((((j % HW) // W) - 0.5) * float(stride))
                     .astype(np.float32)).reshape(1, Tp)

    rcol = pl.BlockSpec((rows, 1), lambda s: (0, 0))
    grow = pl.BlockSpec((1, T), lambda s: (0, s))
    raw, dec = pl.pallas_call(
        _make_detect_kernel(2.0 * float(stride)),
        out_shape=(jax.ShapeDtypeStruct((rows, Tp), jnp.float32),
                   jax.ShapeDtypeStruct((rows, Tp), jnp.float32)),
        grid=(Tp // T,),
        in_specs=[
            pl.BlockSpec((Cin, T), lambda s: (0, s)),
            pl.BlockSpec((rows, Cin), lambda s: (0, 0)),
            rcol,                                   # bias
            grow, grow,                             # grid x / y (pre-scaled)
            rcol, rcol, rcol, rcol, rcol,           # sel_xy, sel_wh, sel_sig, gsel_x, anc4
        ],
        out_specs=(pl.BlockSpec((rows, T), lambda s: (0, s)),
                   pl.BlockSpec((rows, T), lambda s: (0, s))),
        compiler_params=pltpu.CompilerParams(
            dimension_semantics=("parallel",)),
    )(xt, w, bias.reshape(rows, 1), gx, gy,
      sel_xy, sel_wh, sel_sig, gsel_x, anc4)
    return raw[:, :NHW], dec[:, :NHW]


# ------------------------------------------------------------------- params --

def init_params(key):
    nc, nm, npr = 3, 4, 8
    anchors = jnp.array([[10., 13., 16., 30., 33., 23.],
                         [30., 61., 62., 45., 59., 119.]], jnp.float32)
    nl = anchors.shape[0]
    na = anchors.shape[1] // 2
    no = 5 + nc + nm
    ch = (8, 16)
    stride = [8.0, 16.0]

    ks = jax.random.split(key, 10)

    def bn(k, c):
        k1, k2 = jax.random.split(k)
        return (1.0 + 0.1 * jax.random.normal(k1, (c,), jnp.float32),
                0.1 * jax.random.normal(k2, (c,), jnp.float32))

    det = []
    for i, c in enumerate(ch):
        kw, kb = jax.random.split(ks[i])
        det.append((0.05 * jax.random.normal(kw, (c, na * no), jnp.float32),
                    0.05 * jax.random.normal(kb, (na * no,), jnp.float32)))

    cv1_w = 0.05 * jax.random.normal(ks[2], (3, 3, ch[0], npr), jnp.float32)
    cv1_s, cv1_b = bn(ks[3], npr)
    cv2_w = 0.05 * jax.random.normal(ks[4], (3, 3, npr, npr), jnp.float32)
    cv2_s, cv2_b = bn(ks[5], npr)
    cv3_w = 0.05 * jax.random.normal(ks[6], (npr, nm), jnp.float32)
    cv3_s, cv3_b = bn(ks[7], nm)

    return dict(nc=nc, nm=nm, npr=npr, na=na, no=no, nl=nl, ch=ch,
                stride=stride, anchors=anchors.reshape(nl, na, 2), det=det,
                cv1_w=cv1_w, cv1_s=cv1_s, cv1_b=cv1_b,
                cv2_w=cv2_w, cv2_s=cv2_s, cv2_b=cv2_b,
                cv3_w=cv3_w, cv3_s=cv3_s, cv3_b=cv3_b)


# ------------------------------------------------------------------ forward --

def segment_forward(xs_nchw, pr):
    """Inference-mode Segment.forward -> (cat(z,1), proto, raw_per_level)."""
    nc, na, no, nl = pr['nc'], pr['na'], pr['no'], pr['nl']

    # Proto(ch[0], npr, nm) fully fused in one kernel
    p = proto_forward(xs_nchw[0], pr['cv1_w'], pr['cv1_s'], pr['cv1_b'],
                      pr['cv2_w'], pr['cv2_s'], pr['cv2_b'],
                      pr['cv3_w'], pr['cv3_s'], pr['cv3_b'])

    # Detect head: fused 1x1 conv + decode per level
    z, raws = [], []
    for i in range(nl):
        N, Cin, H, W = xs_nchw[i].shape
        w, b = pr['det'][i]
        raw, dec = detect_level(xs_nchw[i], w, b, pr['anchors'][i],
                                float(pr['stride'][i]), na, no, nc)
        # small XLA transposes to the PyTorch (bs, na, ny, nx, no) view
        raw5 = raw.reshape(na, no, N, H, W).transpose(2, 0, 3, 4, 1)
        dec5 = dec.reshape(na, no, N, H, W).transpose(2, 0, 3, 4, 1)
        raws.append(raw5)
        z.append(dec5.reshape(N, na * H * W, no))
    return jnp.concatenate(z, axis=1), p, raws


# ------------------------------------------------------- pure-JAX reference --

def ref_forward(xs_nchw, pr):
    def silu(v):
        return v * jax.nn.sigmoid(v)

    def conv(x, w, pad):
        return jax.lax.conv_general_dilated(
            x, w, (1, 1), pad, dimension_numbers=('NHWC', 'HWIO', 'NHWC'))

    nc, na, no, nl = pr['nc'], pr['na'], pr['no'], pr['nl']
    xs = [jnp.transpose(x, (0, 2, 3, 1)) for x in xs_nchw]
    p = silu(conv(xs[0], pr['cv1_w'], ((1, 1), (1, 1))) * pr['cv1_s'] + pr['cv1_b'])
    p = jnp.repeat(jnp.repeat(p, 2, 1), 2, 2)
    p = silu(conv(p, pr['cv2_w'], ((1, 1), (1, 1))) * pr['cv2_s'] + pr['cv2_b'])
    p = silu(jnp.einsum('nhwc,co->nhwo', p, pr['cv3_w']) * pr['cv3_s'] + pr['cv3_b'])
    p = jnp.transpose(p, (0, 3, 1, 2))

    z, raws = [], []
    for i in range(nl):
        N, H, W, _ = xs[i].shape
        w, b = pr['det'][i]
        out = jnp.einsum('nhwc,co->nhwo', xs[i], w) + b
        raw = out.reshape(N, H, W, na, no).transpose(0, 3, 1, 2, 4)
        raws.append(raw)
        yv, xv = jnp.meshgrid(jnp.arange(H, dtype=jnp.float32),
                              jnp.arange(W, dtype=jnp.float32), indexing='ij')
        grid = jnp.broadcast_to(jnp.stack((xv, yv), -1)[None, None] - 0.5,
                                (1, na, H, W, 2))
        ag = jnp.broadcast_to((pr['anchors'][i] * pr['stride'][i])
                              .reshape(1, na, 1, 1, 2), (1, na, H, W, 2))
        sig = jax.nn.sigmoid(raw)
        xy = (sig[..., :2] * 2 + grid) * pr['stride'][i]
        wh = (sig[..., 2:4] * 2) ** 2 * ag
        conf = sig[..., 4:5 + nc]
        mask = raw[..., 5 + nc:]
        y = jnp.concatenate([xy, wh, conf, mask], -1)
        z.append(y.reshape(N, na * H * W, no))
    return jnp.concatenate(z, 1), p, raws


# --------------------------------------------------------------------- main --

if __name__ == "__main__":
    key = jax.random.PRNGKey(0)
    kp, k0, k1 = jax.random.split(key, 3)
    params = init_params(kp)

    # two pyramid levels (NCHW, like the PyTorch module): strides 8 and 16
    x0 = jax.random.normal(k0, (2, 8, 16, 16), jnp.float32)
    x1 = jax.random.normal(k1, (2, 16, 8, 8), jnp.float32)

    z, p, raws = segment_forward([x0, x1], params)
    jax.block_until_ready((z, p, raws))

    zr, pref, rawsr = ref_forward([x0, x1], params)
    assert z.shape == (2, 3 * 16 * 16 + 3 * 8 * 8, params['no'])
    assert p.shape == (2, params['nm'], 32, 32)
    assert np.allclose(np.asarray(z), np.asarray(zr), atol=2e-3), "detect mismatch"
    assert np.allclose(np.asarray(p), np.asarray(pref), atol=2e-3), "proto mismatch"
    for a, b in zip(raws, rawsr):
        assert np.allclose(np.asarray(a), np.asarray(b), atol=2e-3), "raw mismatch"

    print("KERNEL_OK")
</pallas_src>

<mosaic_0001>
module attributes {stable_mosaic.version = 11 : i64} {
  func.func @kernel(%arg0: memref<8x512xf32, #tpu.memory_space<vmem>>, %arg1: memref<1x512xi32, #tpu.memory_space<vmem>>, %arg2: memref<1x512xi32, #tpu.memory_space<vmem>>, %arg3: memref<9x8x8xf32, #tpu.memory_space<vmem>>, %arg4: memref<8x1xf32, #tpu.memory_space<vmem>>, %arg5: memref<8x1xf32, #tpu.memory_space<vmem>>, %arg6: memref<4x4x8x8xf32, #tpu.memory_space<vmem>>, %arg7: memref<8x1xf32, #tpu.memory_space<vmem>>, %arg8: memref<8x1xf32, #tpu.memory_space<vmem>>, %arg9: memref<4x8xf32, #tpu.memory_space<vmem>>, %arg10: memref<4x1xf32, #tpu.memory_space<vmem>>, %arg11: memref<4x1xf32, #tpu.memory_space<vmem>>, %arg12: memref<4x4x512xf32, #tpu.memory_space<vmem>>) attributes {dimension_semantics = [], scalar_prefetch = 0 : i64, scratch_operands = 0 : i64, tpu.core_type = #tpu.core_type<tc>} {
    %c0 = arith.constant 0 : index
    %c0_0 = arith.constant 0 : index
    %0 = vector.load %arg1[%c0, %c0_0] : memref<1x512xi32, #tpu.memory_space<vmem>>, vector<1x512xi32>
    %c0_1 = arith.constant 0 : index
    %c0_2 = arith.constant 0 : index
    %1 = vector.load %arg2[%c0_1, %c0_2] : memref<1x512xi32, #tpu.memory_space<vmem>>, vector<1x512xi32>
    %c0_3 = arith.constant 0 : index
    %c0_4 = arith.constant 0 : index
    %2 = vector.load %arg0[%c0_3, %c0_4] : memref<8x512xf32, #tpu.memory_space<vmem>>, vector<8x512xf32>
    %c0_5 = arith.constant 0 : index
    %c0_6 = arith.constant 0 : index
    %c0_7 = arith.constant 0 : index
    %3 = vector.load %arg3[%c0_5, %c0_6, %c0_7] : memref<9x8x8xf32, #tpu.memory_space<vmem>>, vector<1x8x8xf32>
    %4 = vector.shape_cast %3 : vector<1x8x8xf32> to vector<8x8xf32>
    %cst = arith.constant dense<0.000000e+00> : vector<8x512xf32>
    %5 = tpu.matmul %4, %2, %cst {dimension_numbers = #tpu.dot_dimension_numbers<[1], [0], [0], [1], [0, 0, 1, 1], [], []>} : vector<8x8xf32>, vector<8x512xf32>, vector<8x512xf32> -> vector<8x512xf32>
    %c17_i32 = arith.constant 17 : i32
    %6 = tpu.dynamic_rotate %5 by %c17_i32 dim 1 : vector<8x512xf32>, i32 -> vector<8x512xf32>
    %c-1_i32 = arith.constant -1 : i32
    %7 = vector.broadcast %c-1_i32 : i32 to vector<1x512xi32>
    %8 = arith.addi %0, %7 : vector<1x512xi32>
    %c0_i32 = arith.constant 0 : i32
    %9 = vector.broadcast %c0_i32 : i32 to vector<1x512xi32>
    %10 = arith.cmpi sge, %8, %9 : vector<1x512xi32>
    %c-1_i32_8 = arith.constant -1 : i32
    %11 = vector.broadcast %c-1_i32_8 : i32 to vector<1x512xi32>
    %12 = arith.addi %0, %11 : vector<1x512xi32>
    %c16_i32 = arith.constant 16 : i32
    %13 = vector.broadcast %c16_i32 : i32 to vector<1x512xi32>
    %14 = arith.cmpi slt, %12, %13 : vector<1x512xi32>
    %15 = arith.andi %10, %14 : vector<1x512xi1>
    %c-1_i32_9 = arith.constant -1 : i32
    %16 = vector.broadcast %c-1_i32_9 : i32 to vector<1x512xi32>
    %17 = arith.addi %1, %16 : vector<1x512xi32>
    %c0_i32_10 = arith.constant 0 : i32
    %18 = vector.broadcast %c0_i32_10 : i32 to vector<1x512xi32>
    %19 = arith.cmpi sge, %17, %18 : vector<1x512xi32>
    %20 = arith.andi %15, %19 : vector<1x512xi1>
    %c-1_i32_11 = arith.constant -1 : i32
    %21 = vector.broadcast %c-1_i32_11 : i32 to vector<1x512xi32>
    %22 = arith.addi %1, %21 : vector<1x512xi32>
    %c16_i32_12 = arith.constant 16 : i32
    %23 = vector.broadcast %c16_i32_12 : i32 to vector<1x512xi32>
    %24 = arith.cmpi slt, %22, %23 : vector<1x512xi32>
    %25 = arith.andi %20, %24 : vector<1x512xi1>
    %cst_13 = arith.constant 0.000000e+00 : f32
    %26 = vector.shape_cast %25 : vector<1x512xi1> to vector<1x512xi1>
    %27 = vector.broadcast %26 : vector<1x512xi1> to vector<8x512xi1>
    %28 = vector.broadcast %cst_13 : f32 to vector<8x512xf32>
    %29 = arith.select %27, %6, %28 : vector<8x512xi1>, vector<8x512xf32>
    %c1 = arith.constant 1 : index
    %c0_14 = arith.constant 0 : index
    %c0_15 = arith.constant 0 : index
    %30 = vector.load %arg3[%c1, %c0_14, %c0_15] : memref<9x8x8xf32, #tpu.memory_space<vmem>>, vector<1x8x8xf32>
    %31 = vector.shape_cast %30 : vector<1x8x8xf32> to vector<8x8xf32>
    %cst_16 = arith.constant dense<0.000000e+00> : vector<8x512xf32>
    %32 = tpu.matmul %31, %2, %cst_16 {dimension_numbers = #tpu.dot_dimension_numbers<[1], [0], [0], [1], [0, 0, 1, 1], [], []>} : vector<8x8xf32>, vector<8x512xf32>, vector<8x512xf32> -> vector<8x512xf32>
    %c16_i32_17 = arith.constant 16 : i32
    %33 = tpu.dynamic_rotate %32 by %c16_i32_17 dim 1 : vector<8x512xf32>, i32 -> vector<8x512xf32>
    %c0_i32_18 = arith.constant 0 : i32
    %34 = vector.broadcast %c0_i32_18 : i32 to vector<1x512xi32>
    %35 = arith.addi %0, %34 : vector<1x512xi32>
    %c0_i32_19 = arith.constant 0 : i32
    %36 = vector.broadcast %c0_i32_19 : i32 to vector<1x512xi32>
    %37 = arith.cmpi sge, %35, %36 : vector<1x512xi32>
    %c0_i32_20 = arith.constant 0 : i32
    %38 = vector.broadcast %c0_i32_20 : i32 to vector<1x512xi32>
    %39 = arith.addi %0, %38 : vector<1x512xi32>
    %c16_i32_21 = arith.constant 16 : i32
    %40 = vector.broadcast %c16_i32_21 : i32 to vector<1x512xi32>
    %41 = arith.cmpi slt, %39, %40 : vector<1x512xi32>
    %42 = arith.andi %37, %41 : vector<1x512xi1>
    %c-1_i32_22 = arith.constant -1 : i32
    %43 = vector.broadcast %c-1_i32_22 : i32 to vector<1x512xi32>
    %44 = arith.addi %1, %43 : vector<1x512xi32>
    %c0_i32_23 = arith.constant 0 : i32
    %45 = vector.broadcast %c0_i32_23 : i32 to vector<1x512xi32>
    %46 = arith.cmpi sge, %44, %45 : vector<1x512xi32>
    %47 = arith.andi %42, %46 : vector<1x512xi1>
    %c-1_i32_24 = arith.constant -1 : i32
    %48 = vector.broadcast %c-1_i32_24 : i32 to vector<1x512xi32>
    %49 = arith.addi %1, %48 : vector<1x512xi32>
    %c16_i32_25 = arith.constant 16 : i32
    %50 = vector.broadcast %c16_i32_25 : i32 to vector<1x512xi32>
    %51 = arith.cmpi slt, %49, %50 : vector<1x512xi32>
    %52 = arith.andi %47, %51 : vector<1x512xi1>
    %cst_26 = arith.constant 0.000000e+00 : f32
    %53 = vector.shape_cast %52 : vector<1x512xi1> to vector<1x512xi1>
    %54 = vector.broadcast %53 : vector<1x512xi1> to vector<8x512xi1>
    %55 = vector.broadcast %cst_26 : f32 to vector<8x512xf32>
    %56 = arith.select %54, %33, %55 : vector<8x512xi1>, vector<8x512xf32>
    %57 = arith.addf %29, %56 : vector<8x512xf32>
    %c2 = arith.constant 2 : index
    %c0_27 = arith.constant 0 : index
    %c0_28 = arith.constant 0 : index
    %58 = vector.load %arg3[%c2, %c0_27, %c0_28] : memref<9x8x8xf32, #tpu.memory_space<vmem>>, vector<1x8x8xf32>
    %59 = vector.shape_cast %58 : vector<1x8x8xf32> to vector<8x8xf32>
    %cst_29 = arith.constant dense<0.000000e+00> : vector<8x512xf32>
    %60 = tpu.matmul %59, %2, %cst_29 {dimension_numbers = #tpu.dot_dimension_numbers<[1], [0], [0], [1], [0, 0, 1, 1], [], []>} : vector<8x8xf32>, vector<8x512xf32>, vector<8x512xf32> -> vector<8x512xf32>
    %c15_i32 = arith.constant 15 : i32
    %61 = tpu.dynamic_rotate %60 by %c15_i32 dim 1 : vector<8x512xf32>, i32 -> vector<8x512xf32>
    %c1_i32 = arith.constant 1 : i32
    %62 = vector.broadcast %c1_i32 : i32 to vector<1x512xi32>
    %63 = arith.addi %0, %62 : vector<1x512xi32>
    %c0_i32_30 = arith.constant 0 : i32
    %64 = vector.broadcast %c0_i32_30 : i32 to vector<1x512xi32>
    %65 = arith.cmpi sge, %63, %64 : vector<1x512xi32>
    %c1_i32_31 = arith.constant 1 : i32
    %66 = vector.broadcast %c1_i32_31 : i32 to vector<1x512xi32>
    %67 = arith.addi %0, %66 : vector<1x512xi32>
    %c16_i32_32 = arith.constant 16 : i32
    %68 = vector.broadcast %c16_i32_32 : i32 to vector<1x512xi32>
    %69 = arith.cmpi slt, %67, %68 : vector<1x512xi32>
    %70 = arith.andi %65, %69 : vector<1x512xi1>
    %c-1_i32_33 = arith.constant -1 : i32
    %71 = vector.broadcast %c-1_i32_33 : i32 to vector<1x512xi32>
    %72 = arith.addi %1, %71 : vector<1x512xi32>
    %c0_i32_34 = arith.constant 0 : i32
    %73 = vector.broadcast %c0_i32_34 : i32 to vector<1x512xi32>
    %74 = arith.cmpi sge, %72, %73 : vector<1x512xi32>
    %75 = arith.andi %70, %74 : vector<1x512xi1>
    %c-1_i32_35 = arith.constant -1 : i32
    %76 = vector.broadcast %c-1_i32_35 : i32 to vector<1x512xi32>
    %77 = arith.addi %1, %76 : vector<1x512xi32>
    %c16_i32_36 = arith.constant 16 : i32
    %78 = vector.broadcast %c16_i32_36 : i32 to vector<1x512xi32>
    %79 = arith.cmpi slt, %77, %78 : vector<1x512xi32>
    %80 = arith.andi %75, %79 : vector<1x512xi1>
    %cst_37 = arith.constant 0.000000e+00 : f32
    %81 = vector.shape_cast %80 : vector<1x512xi1> to vector<1x512xi1>
    %82 = vector.broadcast %81 : vector<1x512xi1> to vector<8x512xi1>
    %83 = vector.broadcast %cst_37 : f32 to vector<8x512xf32>
    %84 = arith.select %82, %61, %83 : vector<8x512xi1>, vector<8x512xf32>
    %85 = arith.addf %57, %84 : vector<8x512xf32>
    %c3 = arith.constant 3 : index
    %c0_38 = arith.constant 0 : index
    %c0_39 = arith.constant 0 : index
    %86 = vector.load %arg3[%c3, %c0_38, %c0_39] : memref<9x8x8xf32, #tpu.memory_space<vmem>>, vector<1x8x8xf32>
    %87 = vector.shape_cast %86 : vector<1x8x8xf32> to vector<8x8xf32>
    %cst_40 = arith.constant dense<0.000000e+00> : vector<8x512xf32>
    %88 = tpu.matmul %87, %2, %cst_40 {dimension_numbers = #tpu.dot_dimension_numbers<[1], [0], [0], [1], [0, 0, 1, 1], [], []>} : vector<8x8xf32>, vector<8x512xf32>, vector<8x512xf32> -> vector<8x512xf32>
    %c1_i32_41 = arith.constant 1 : i32
    %89 = tpu.dynamic_rotate %88 by %c1_i32_41 dim 1 : vector<8x512xf32>, i32 -> vector<8x512xf32>
    %c-1_i32_42 = arith.constant -1 : i32
    %90 = vector.broadcast %c-1_i32_42 : i32 to vector<1x512xi32>
    %91 = arith.addi %0, %90 : vector<1x512xi32>
    %c0_i32_43 = arith.constant 0 : i32
    %92 = vector.broadcast %c0_i32_43 : i32 to vector<1x512xi32>
    %93 = arith.cmpi sge, %91, %92 : vector<1x512xi32>
    %c-1_i32_44 = arith.constant -1 : i32
    %94 = vector.broadcast %c-1_i32_44 : i32 to vector<1x512xi32>
    %95 = arith.addi %0, %94 : vector<1x512xi32>
    %c16_i32_45 = arith.constant 16 : i32
    %96 = vector.broadcast %c16_i32_45 : i32 to vector<1x512xi32>
    %97 = arith.cmpi slt, %95, %96 : vector<1x512xi32>
    %98 = arith.andi %93, %97 : vector<1x512xi1>
    %c0_i32_46 = arith.constant 0 : i32
    %99 = vector.broadcast %c0_i32_46 : i32 to vector<1x512xi32>
    %100 = arith.addi %1, %99 : vector<1x512xi32>
    %c0_i32_47 = arith.constant 0 : i32
    %101 = vector.broadcast %c0_i32_47 : i32 to vector<1x512xi32>
    %102 = arith.cmpi sge, %100, %101 : vector<1x512xi32>
    %103 = arith.andi %98, %102 : vector<1x512xi1>
    %c0_i32_48 = arith.constant 0 : i32
    %104 = vector.broadcast %c0_i32_48 : i32 to vector<1x512xi32>
    %105 = arith.addi %1, %104 : vector<1x512xi32>
    %c16_i32_49 = arith.constant 16 : i32
    %106 = vector.broadcast %c16_i32_49 : i32 to vector<1x512xi32>
    %107 = arith.cmpi slt, %105, %106 : vector<1x512xi32>
    %108 = arith.andi %103, %107 : vector<1x512xi1>
    %cst_50 = arith.constant 0.000000e+00 : f32
    %109 = vector.shape_cast %108 : vector<1x512xi1> to vector<1x512xi1>
    %110 = vector.broadcast %109 : vector<1x512xi1> to vector<8x512xi1>
    %111 = vector.broadcast %cst_50 : f32 to vector<8x512xf32>
    %112 = arith.select %110, %89, %111 : vector<8x512xi1>, vector<8x512xf32>
    %113 = arith.addf %85, %112 : vector<8x512xf32>
    %c4 = arith.constant 4 : index
    %c0_51 = arith.constant 0 : index
    %c0_52 = arith.constant 0 : index
    %114 = vector.load %arg3[%c4, %c0_51, %c0_52] : memref<9x8x8xf32, #tpu.memory_space<vmem>>, vector<1x8x8xf32>
    %115 = vector.shape_cast %114 : vector<1x8x8xf32> to vector<8x8xf32>
    %cst_53 = arith.constant dense<0.000000e+00> : vector<8x512xf32>
    %116 = tpu.matmul %115, %2, %cst_53 {dimension_numbers = #tpu.dot_dimension_numbers<[1], [0], [0], [1], [0, 0, 1, 1], [], []>} : vector<8x8xf32>, vector<8x512xf32>, vector<8x512xf32> -> vector<8x512xf32>
    %117 = arith.addf %113, %116 : vector<8x512xf32>
    %c5 = arith.constant 5 : index
    %c0_54 = arith.constant 0 : index
    %c0_55 = arith.constant 0 : index
    %118 = vector.load %arg3[%c5, %c0_54, %c0_55] : memref<9x8x8xf32, #tpu.memory_space<vmem>>, vector<1x8x8xf32>
    %119 = vector.shape_cast %118 : vector<1x8x8xf32> to vector<8x8xf32>
    %cst_56 = arith.constant dense<0.000000e+00> : vector<8x512xf32>
    %120 = tpu.matmul %119, %2, %cst_56 {dimension_numbers = #tpu.dot_dimension_numbers<[1], [0], [0], [1], [0, 0, 1, 1], [], []>} : vector<8x8xf32>, vector<8x512xf32>, vector<8x512xf32> -> vector<8x512xf32>
    %c511_i32 = arith.constant 511 : i32
    %121 = tpu.dynamic_rotate %120 by %c511_i32 dim 1 : vector<8x512xf32>, i32 -> vector<8x512xf32>
    %c1_i32_57 = arith.constant 1 : i32
    %122 = vector.broadcast %c1_i32_57 : i32 to vector<1x512xi32>
    %123 = arith.addi %0, %122 : vector<1x512xi32>
    %c0_i32_58 = arith.constant 0 : i32
    %124 = vector.broadcast %c0_i32_58 : i32 to vector<1x512xi32>
    %125 = arith.cmpi sge, %123, %124 : vector<1x512xi32>
    %c1_i32_59 = arith.constant 1 : i32
    %126 = vector.broadcast %c1_i32_59 : i32 to vector<1x512xi32>
    %127 = arith.addi %0, %126 : vector<1x512xi32>
    %c16_i32_60 = arith.constant 16 : i32
    %128 = vector.broadcast %c16_i32_60 : i32 to vector<1x512xi32>
    %129 = arith.cmpi slt, %127, %128 : vector<1x512xi32>
    %130 = arith.andi %125, %129 : vector<1x512xi1>
    %c0_i32_61 = arith.constant 0 : i32
    %131 = vector.broadcast %c0_i32_61 : i32 to vector<1x512xi32>
    %132 = arith.addi %1, %131 : vector<1x512xi32>
    %c0_i32_62 = arith.constant 0 : i32
    %133 = vector.broadcast %c0_i32_62 : i32 to vector<1x512xi32>
    %134 = arith.cmpi sge, %132, %133 : vector<1x512xi32>
    %135 = arith.andi %130, %134 : vector<1x512xi1>
    %c0_i32_63 = arith.constant 0 : i32
    %136 = vector.broadcast %c0_i32_63 : i32 to vector<1x512xi32>
    %137 = arith.addi %1, %136 : vector<1x512xi32>
    %c16_i32_64 = arith.constant 16 : i32
    %138 = vector.broadcast %c16_i32_64 : i32 to vector<1x512xi32>
    %139 = arith.cmpi slt, %137, %138 : vector<1x512xi32>
    %140 = arith.andi %135, %139 : vector<1x512xi1>
    %cst_65 = arith.constant 0.000000e+00 : f32
    %141 = vector.shape_cast %140 : vector<1x512xi1> to vector<1x512xi1>
    %142 = vector.broadcast %141 : vector<1x512xi1> to vector<8x512xi1>
    %143 = vector.broadcast %cst_65 : f32 to vector<8x512xf32>
    %144 = arith.select %142, %121, %143 : vector<8x512xi1>, vector<8x512xf32>
    %145 = arith.addf %117, %144 : vector<8x512xf32>
    %c6 = arith.constant 6 : index
    %c0_66 = arith.constant 0 : index
    %c0_67 = arith.constant 0 : index
    %146 = vector.load %arg3[%c6, %c0_66, %c0_67] : memref<9x8x8xf32, #tpu.memory_space<vmem>>, vector<1x8x8xf32>
    %147 = vector.shape_cast %146 : vector<1x8x8xf32> to vector<8x8xf32>
    %cst_68 = arith.constant dense<0.000000e+00> : vector<8x512xf32>
    %148 = tpu.matmul %147, %2, %cst_68 {dimension_numbers = #tpu.dot_dimension_numbers<[1], [0], [0], [1], [0, 0, 1, 1], [], []>} : vector<8x8xf32>, vector<8x512xf32>, vector<8x512xf32> -> vector<8x512xf32>
    %c497_i32 = arith.constant 497 : i32
    %149 = tpu.dynamic_rotate %148 by %c497_i32 dim 1 : vector<8x512xf32>, i32 -> vector<8x512xf32>
    %c-1_i32_69 = arith.constant -1 : i32
    %150 = vector.broadcast %c-1_i32_69 : i32 to vector<1x512xi32>
    %151 = arith.addi %0, %150 : vector<1x512xi32>
    %c0_i32_70 = arith.constant 0 : i32
    %152 = vector.broadcast %c0_i32_70 : i32 to vector<1x512xi32>
    %153 = arith.cmpi sge, %151, %152 : vector<1x512xi32>
    %c-1_i32_71 = arith.constant -1 : i32
    %154 = vector.broadcast %c-1_i32_71 : i32 to vector<1x512xi32>
    %155 = arith.addi %0, %154 : vector<1x512xi32>
    %c16_i32_72 = arith.constant 16 : i32
    %156 = vector.broadcast %c16_i32_72 : i32 to vector<1x512xi32>
    %157 = arith.cmpi slt, %155, %156 : vector<1x512xi32>
    %158 = arith.andi %153, %157 : vector<1x512xi1>
    %c1_i32_73 = arith.constant 1 : i32
    %159 = vector.broadcast %c1_i32_73 : i32 to vector<1x512xi32>
    %160 = arith.addi %1, %159 : vector<1x512xi32>
    %c0_i32_74 = arith.constant 0 : i32
    %161 = vector.broadcast %c0_i32_74 : i32 to vector<1x512xi32>
    %162 = arith.cmpi sge, %160, %161 : vector<1x512xi32>
    %163 = arith.andi %158, %162 : vector<1x512xi1>
    %c1_i32_75 = arith.constant 1 : i32
    %164 = vector.broadcast %c1_i32_75 : i32 to vector<1x512xi32>
    %165 = arith.addi %1, %164 : vector<1x512xi32>
    %c16_i32_76 = arith.constant 16 : i32
    %166 = vector.broadcast %c16_i32_76 : i32 to vector<1x512xi32>
    %167 = arith.cmpi slt, %165, %166 : vector<1x512xi32>
    %168 = arith.andi %163, %167 : vector<1x512xi1>
    %cst_77 = arith.constant 0.000000e+00 : f32
    %169 = vector.shape_cast %168 : vector<1x512xi1> to vector<1x512xi1>
    %170 = vector.broadcast %169 : vector<1x512xi1> to vector<8x512xi1>
    %171 = vector.broadcast %cst_77 : f32 to vector<8x512xf32>
    %172 = arith.select %170, %149, %171 : vector<8x512xi1>, vector<8x512xf32>
    %173 = arith.addf %145, %172 : vector<8x512xf32>
    %c7 = arith.constant 7 : index
    %c0_78 = arith.constant 0 : index
    %c0_79 = arith.constant 0 : index
    %174 = vector.load %arg3[%c7, %c0_78, %c0_79] : memref<9x8x8xf32, #tpu.memory_space<vmem>>, vector<1x8x8xf32>
    %175 = vector.shape_cast %174 : vector<1x8x8xf32> to vector<8x8xf32>
    %cst_80 = arith.constant dense<0.000000e+00> : vector<8x512xf32>
    %176 = tpu.matmul %175, %2, %cst_80 {dimension_numbers = #tpu.dot_dimension_numbers<[1], [0], [0], [1], [0, 0, 1, 1], [], []>} : vector<8x8xf32>, vector<8x512xf32>, vector<8x512xf32> -> vector<8x512xf32>
    %c496_i32 = arith.constant 496 : i32
    %177 = tpu.dynamic_rotate %176 by %c496_i32 dim 1 : vector<8x512xf32>, i32 -> vector<8x512xf32>
    %c0_i32_81 = arith.constant 0 : i32
    %178 = vector.broadcast %c0_i32_81 : i32 to vector<1x512xi32>
    %179 = arith.addi %0, %178 : vector<1x512xi32>
    %c0_i32_82 = arith.constant 0 : i32
    %180 = vector.broadcast %c0_i32_82 : i32 to vector<1x512xi32>
    %181 = arith.cmpi sge, %179, %180 : vector<1x512xi32>
    %c0_i32_83 = arith.constant 0 : i32
    %182 = vector.broadcast %c0_i32_83 : i32 to vector<1x512xi32>
    %183 = arith.addi %0, %182 : vector<1x512xi32>
    %c16_i32_84 = arith.constant 16 : i32
    %184 = vector.broadcast %c16_i32_84 : i32 to vector<1x512xi32>
    %185 = arith.cmpi slt, %183, %184 : vector<1x512xi32>
    %186 = arith.andi %181, %185 : vector<1x512xi1>
    %c1_i32_85 = arith.constant 1 : i32
    %187 = vector.broadcast %c1_i32_85 : i32 to vector<1x512xi32>
    %188 = arith.addi %1, %187 : vector<1x512xi32>
    %c0_i32_86 = arith.constant 0 : i32
    %189 = vector.broadcast %c0_i32_86 : i32 to vector<1x512xi32>
    %190 = arith.cmpi sge, %188, %189 : vector<1x512xi32>
    %191 = arith.andi %186, %190 : vector<1x512xi1>
    %c1_i32_87 = arith.constant 1 : i32
    %192 = vector.broadcast %c1_i32_87 : i32 to vector<1x512xi32>
    %193 = arith.addi %1, %192 : vector<1x512xi32>
    %c16_i32_88 = arith.constant 16 : i32
    %194 = vector.broadcast %c16_i32_88 : i32 to vector<1x512xi32>
    %195 = arith.cmpi slt, %193, %194 : vector<1x512xi32>
    %196 = arith.andi %191, %195 : vector<1x512xi1>
    %cst_89 = arith.constant 0.000000e+00 : f32
    %197 = vector.shape_cast %196 : vector<1x512xi1> to vector<1x512xi1>
    %198 = vector.broadcast %197 : vector<1x512xi1> to vector<8x512xi1>
    %199 = vector.broadcast %cst_89 : f32 to vector<8x512xf32>
    %200 = arith.select %198, %177, %199 : vector<8x512xi1>, vector<8x512xf32>
    %201 = arith.addf %173, %200 : vector<8x512xf32>
    %c8 = arith.constant 8 : index
    %c0_90 = arith.constant 0 : index
    %c0_91 = arith.constant 0 : index
    %202 = vector.load %arg3[%c8, %c0_90, %c0_91] : memref<9x8x8xf32, #tpu.memory_space<vmem>>, vector<1x8x8xf32>
    %203 = vector.shape_cast %202 : vector<1x8x8xf32> to vector<8x8xf32>
    %cst_92 = arith.constant dense<0.000000e+00> : vector<8x512xf32>
    %204 = tpu.matmul %203, %2, %cst_92 {dimension_numbers = #tpu.dot_dimension_numbers<[1], [0], [0], [1], [0, 0, 1, 1], [], []>} : vector<8x8xf32>, vector<8x512xf32>, vector<8x512xf32> -> vector<8x512xf32>
    %c495_i32 = arith.constant 495 : i32
    %205 = tpu.dynamic_rotate %204 by %c495_i32 dim 1 : vector<8x512xf32>, i32 -> vector<8x512xf32>
    %c1_i32_93 = arith.constant 1 : i32
    %206 = vector.broadcast %c1_i32_93 : i32 to vector<1x512xi32>
    %207 = arith.addi %0, %206 : vector<1x512xi32>
    %c0_i32_94 = arith.constant 0 : i32
    %208 = vector.broadcast %c0_i32_94 : i32 to vector<1x512xi32>
    %209 = arith.cmpi sge, %207, %208 : vector<1x512xi32>
    %c1_i32_95 = arith.constant 1 : i32
    %210 = vector.broadcast %c1_i32_95 : i32 to vector<1x512xi32>
    %211 = arith.addi %0, %210 : vector<1x512xi32>
    %c16_i32_96 = arith.constant 16 : i32
    %212 = vector.broadcast %c16_i32_96 : i32 to vector<1x512xi32>
    %213 = arith.cmpi slt, %211, %212 : vector<1x512xi32>
    %214 = arith.andi %209, %213 : vector<1x512xi1>
    %c1_i32_97 = arith.constant 1 : i32
    %215 = vector.broadcast %c1_i32_97 : i32 to vector<1x512xi32>
    %216 = arith.addi %1, %215 : vector<1x512xi32>
    %c0_i32_98 = arith.constant 0 : i32
    %217 = vector.broadcast %c0_i32_98 : i32 to vector<1x512xi32>
    %218 = arith.cmpi sge, %216, %217 : vector<1x512xi32>
    %219 = arith.andi %214, %218 : vector<1x512xi1>
    %c1_i32_99 = arith.constant 1 : i32
    %220 = vector.broadcast %c1_i32_99 : i32 to vector<1x512xi32>
    %221 = arith.addi %1, %220 : vector<1x512xi32>
    %c16_i32_100 = arith.constant 16 : i32
    %222 = vector.broadcast %c16_i32_100 : i32 to vector<1x512xi32>
    %223 = arith.cmpi slt, %221, %222 : vector<1x512xi32>
    %224 = arith.andi %219, %223 : vector<1x512xi1>
    %cst_101 = arith.constant 0.000000e+00 : f32
    %225 = vector.shape_cast %224 : vector<1x512xi1> to vector<1x512xi1>
    %226 = vector.broadcast %225 : vector<1x512xi1> to vector<8x512xi1>
    %227 = vector.broadcast %cst_101 : f32 to vector<8x512xf32>
    %228 = arith.select %226, %205, %227 : vector<8x512xi1>, vector<8x512xf32>
    %229 = arith.addf %201, %228 : vector<8x512xf32>
    %c0_102 = arith.constant 0 : index
    %c0_103 = arith.constant 0 : index
    %230 = vector.load %arg4[%c0_102, %c0_103] : memref<8x1xf32, #tpu.memory_space<vmem>>, vector<8x1xf32>
    %231 = vector.broadcast %230 : vector<8x1xf32> to vector<8x512xf32>
    %232 = arith.mulf %229, %231 : vector<8x512xf32>
    %c0_104 = arith.constant 0 : index
    %c0_105 = arith.constant 0 : index
    %233 = vector.load %arg5[%c0_104, %c0_105] : memref<8x1xf32, #tpu.memory_space<vmem>>, vector<8x1xf32>
    %234 = vector.broadcast %233 : vector<8x1xf32> to vector<8x512xf32>
    %235 = arith.addf %232, %234 : vector<8x512xf32>
    %236 = arith.negf %235 : vector<8x512xf32>
    %237 = math.exp %236 : vector<8x512xf32>
    %cst_106 = arith.constant 1.000000e+00 : f32
    %238 = vector.broadcast %cst_106 : f32 to vector<8x512xf32>
    %239 = arith.addf %238, %237 : vector<8x512xf32>
    %240 = arith.divf %238, %239 : vector<8x512xf32>
    %241 = arith.mulf %235, %240 : vector<8x512xf32>
    %c0_107 = arith.constant 0 : index
    %c0_108 = arith.constant 0 : index
    %c0_109 = arith.constant 0 : index
    %c0_110 = arith.constant 0 : index
    %242 = vector.load %arg6[%c0_107, %c0_108, %c0_109, %c0_110] : memref<4x4x8x8xf32, #tpu.memory_space<vmem>>, vector<1x1x8x8xf32>
    %243 = vector.shape_cast %242 : vector<1x1x8x8xf32> to vector<8x8xf32>
    %cst_111 = arith.constant dense<0.000000e+00> : vector<8x512xf32>
    %244 = tpu.matmul %243, %241, %cst_111 {dimension_numbers = #tpu.dot_dimension_numbers<[1], [0], [0], [1], [0, 0, 1, 1], [], []>} : vector<8x8xf32>, vector<8x512xf32>, vector<8x512xf32> -> vector<8x512xf32>
    %c17_i32_112 = arith.constant 17 : i32
    %245 = tpu.dynamic_rotate %244 by %c17_i32_112 dim 1 : vector<8x512xf32>, i32 -> vector<8x512xf32>
    %c-1_i32_113 = arith.constant -1 : i32
    %246 = vector.broadcast %c-1_i32_113 : i32 to vector<1x512xi32>
    %247 = arith.addi %0, %246 : vector<1x512xi32>
    %c0_i32_114 = arith.constant 0 : i32
    %248 = vector.broadcast %c0_i32_114 : i32 to vector<1x512xi32>
    %249 = arith.cmpi sge, %247, %248 : vector<1x512xi32>
    %c-1_i32_115 = arith.constant -1 : i32
    %250 = vector.broadcast %c-1_i32_115 : i32 to vector<1x512xi32>
    %251 = arith.addi %0, %250 : vector<1x512xi32>
    %c16_i32_116 = arith.constant 16 : i32
    %252 = vector.broadcast %c16_i32_116 : i32 to vector<1x512xi32>
    %253 = arith.cmpi slt, %251, %252 : vector<1x512xi32>
    %254 = arith.andi %249, %253 : vector<1x512xi1>
    %c-1_i32_117 = arith.constant -1 : i32
    %255 = vector.broadcast %c-1_i32_117 : i32 to vector<1x512xi32>
    %256 = arith.addi %1, %255 : vector<1x512xi32>
    %c0_i32_118 = arith.constant 0 : i32
    %257 = vector.broadcast %c0_i32_118 : i32 to vector<1x512xi32>
    %258 = arith.cmpi sge, %256, %257 : vector<1x512xi32>
    %259 = arith.andi %254, %258 : vector<1x512xi1>
    %c-1_i32_119 = arith.constant -1 : i32
    %260 = vector.broadcast %c-1_i32_119 : i32 to vector<1x512xi32>
    %261 = arith.addi %1, %260 : vector<1x512xi32>
    %c16_i32_120 = arith.constant 16 : i32
    %262 = vector.broadcast %c16_i32_120 : i32 to vector<1x512xi32>
    %263 = arith.cmpi slt, %261, %262 : vector<1x512xi32>
    %264 = arith.andi %259, %263 : vector<1x512xi1>
    %cst_121 = arith.constant 0.000000e+00 : f32
    %265 = vector.shape_cast %264 : vector<1x512xi1> to vector<1x512xi1>
    %266 = vector.broadcast %265 : vector<1x512xi1> to vector<8x512xi1>
    %267 = vector.broadcast %cst_121 : f32 to vector<8x512xf32>
    %268 = arith.select %266, %245, %267 : vector<8x512xi1>, vector<8x512xf32>
    %c0_122 = arith.constant 0 : index
    %c1_123 = arith.constant 1 : index
    %c0_124 = arith.constant 0 : index
    %c0_125 = arith.constant 0 : index
    %269 = vector.load %arg6[%c0_122, %c1_123, %c0_124, %c0_125] : memref<4x4x8x8xf32, #tpu.memory_space<vmem>>, vector<1x1x8x8xf32>
    %270 = vector.shape_cast %269 : vector<1x1x8x8xf32> to vector<8x8xf32>
    %cst_126 = arith.constant dense<0.000000e+00> : vector<8x512xf32>
    %271 = tpu.matmul %270, %241, %cst_126 {dimension_numbers = #tpu.dot_dimension_numbers<[1], [0], [0], [1], [0, 0, 1, 1], [], []>} : vector<8x8xf32>, vector<8x512xf32>, vector<8x512xf32> -> vector<8x512xf32>
    %c16_i32_127 = arith.constant 16 : i32
    %272 = tpu.dynamic_rotate %271 by %c16_i32_127 dim 1 : vector<8x512xf32>, i32 -> vector<8x512xf32>
    %c0_i32_128 = arith.constant 0 : i32
    %273 = vector.broadcast %c0_i32_128 : i32 to vector<1x512xi32>
    %274 = arith.addi %0, %273 : vector<1x512xi32>
    %c0_i32_129 = arith.constant 0 : i32
    %275 = vector.broadcast %c0_i32_129 : i32 to vector<1x512xi32>
    %276 = arith.cmpi sge, %274, %275 : vector<1x512xi32>
    %c0_i32_130 = arith.constant 0 : i32
    %277 = vector.broadcast %c0_i32_130 : i32 to vector<1x512xi32>
    %278 = arith.addi %0, %277 : vector<1x512xi32>
    %c16_i32_131 = arith.constant 16 : i32
    %279 = vector.broadcast %c16_i32_131 : i32 to vector<1x512xi32>
    %280 = arith.cmpi slt, %278, %279 : vector<1x512xi32>
    %281 = arith.andi %276, %280 : vector<1x512xi1>
    %c-1_i32_132 = arith.constant -1 : i32
    %282 = vector.broadcast %c-1_i32_132 : i32 to vector<1x512xi32>
    %283 = arith.addi %1, %282 : vector<1x512xi32>
    %c0_i32_133 = arith.constant 0 : i32
    %284 = vector.broadcast %c0_i32_133 : i32 to vector<1x512xi32>
    %285 = arith.cmpi sge, %283, %284 : vector<1x512xi32>
    %286 = arith.andi %281, %285 : vector<1x512xi1>
    %c-1_i32_134 = arith.constant -1 : i32
    %287 = vector.broadcast %c-1_i32_134 : i32 to vector<1x512xi32>
    %288 = arith.addi %1, %287 : vector<1x512xi32>
    %c16_i32_135 = arith.constant 16 : i32
    %289 = vector.broadcast %c16_i32_135 : i32 to vector<1x512xi32>
    %290 = arith.cmpi slt, %288, %289 : vector<1x512xi32>
    %291 = arith.andi %286, %290 : vector<1x512xi1>
    %cst_136 = arith.constant 0.000000e+00 : f32
    %292 = vector.shape_cast %291 : vector<1x512xi1> to vector<1x512xi1>
    %293 = vector.broadcast %292 : vector<1x512xi1> to vector<8x512xi1>
    %294 = vector.broadcast %cst_136 : f32 to vector<8x512xf32>
    %295 = arith.select %293, %272, %294 : vector<8x512xi1>, vector<8x512xf32>
    %296 = arith.addf %268, %295 : vector<8x512xf32>
    %c0_137 = arith.constant 0 : index
    %c2_138 = arith.constant 2 : index
    %c0_139 = arith.constant 0 : index
    %c0_140 = arith.constant 0 : index
    %297 = vector.load %arg6[%c0_137, %c2_138, %c0_139, %c0_140] : memref<4x4x8x8xf32, #tpu.memory_space<vmem>>, vector<1x1x8x8xf32>
    %298 = vector.shape_cast %297 : vector<1x1x8x8xf32> to vector<8x8xf32>
    %cst_141 = arith.constant dense<0.000000e+00> : vector<8x512xf32>
    %299 = tpu.matmul %298, %241, %cst_141 {dimension_numbers = #tpu.dot_dimension_numbers<[1], [0], [0], [1], [0, 0, 1, 1], [], []>} : vector<8x8xf32>, vector<8x512xf32>, vector<8x512xf32> -> vector<8x512xf32>
    %c1_i32_142 = arith.constant 1 : i32
    %300 = tpu.dynamic_rotate %299 by %c1_i32_142 dim 1 : vector<8x512xf32>, i32 -> vector<8x512xf32>
    %c-1_i32_143 = arith.constant -1 : i32
    %301 = vector.broadcast %c-1_i32_143 : i32 to vector<1x512xi32>
    %302 = arith.addi %0, %301 : vector<1x512xi32>
    %c0_i32_144 = arith.constant 0 : i32
    %303 = vector.broadcast %c0_i32_144 : i32 to vector<1x512xi32>
    %304 = arith.cmpi sge, %302, %303 : vector<1x512xi32>
    %c-1_i32_145 = arith.constant -1 : i32
    %305 = vector.broadcast %c-1_i32_145 : i32 to vector<1x512xi32>
    %306 = arith.addi %0, %305 : vector<1x512xi32>
    %c16_i32_146 = arith.constant 16 : i32
    %307 = vector.broadcast %c16_i32_146 : i32 to vector<1x512xi32>
    %308 = arith.cmpi slt, %306, %307 : vector<1x512xi32>
    %309 = arith.andi %304, %308 : vector<1x512xi1>
    %c0_i32_147 = arith.constant 0 : i32
    %310 = vector.broadcast %c0_i32_147 : i32 to vector<1x512xi32>
    %311 = arith.addi %1, %310 : vector<1x512xi32>
    %c0_i32_148 = arith.constant 0 : i32
    %312 = vector.broadcast %c0_i32_148 : i32 to vector<1x512xi32>
    %313 = arith.cmpi sge, %311, %312 : vector<1x512xi32>
    %314 = arith.andi %309, %313 : vector<1x512xi1>
    %c0_i32_149 = arith.constant 0 : i32
    %315 = vector.broadcast %c0_i32_149 : i32 to vector<1x512xi32>
    %316 = arith.addi %1, %315 : vector<1x512xi32>
    %c16_i32_150 = arith.constant 16 : i32
    %317 = vector.broadcast %c16_i32_150 : i32 to vector<1x512xi32>
    %318 = arith.cmpi slt, %316, %317 : vector<1x512xi32>
    %319 = arith.andi %314, %318 : vector<1x512xi1>
    %cst_151 = arith.constant 0.000000e+00 : f32
    %320 = vector.shape_cast %319 : vector<1x512xi1> to vector<1x512xi1>
    %321 = vector.broadcast %320 : vector<1x512xi1> to vector<8x512xi1>
    %322 = vector.broadcast %cst_151 : f32 to vector<8x512xf32>
    %323 = arith.select %321, %300, %322 : vector<8x512xi1>, vector<8x512xf32>
    %324 = arith.addf %296, %323 : vector<8x512xf32>
    %c0_152 = arith.constant 0 : index
    %c3_153 = arith.constant 3 : index
    %c0_154 = arith.constant 0 : index
    %c0_155 = arith.constant 0 : index
    %325 = vector.load %arg6[%c0_152, %c3_153, %c0_154, %c0_155] : memref<4x4x8x8xf32, #tpu.memory_space<vmem>>, vector<1x1x8x8xf32>
    %326 = vector.shape_cast %325 : vector<1x1x8x8xf32> to vector<8x8xf32>
    %cst_156 = arith.constant dense<0.000000e+00> : vector<8x512xf32>
    %327 = tpu.matmul %326, %241, %cst_156 {dimension_numbers = #tpu.dot_dimension_numbers<[1], [0], [0], [1], [0, 0, 1, 1], [], []>} : vector<8x8xf32>, vector<8x512xf32>, vector<8x512xf32> -> vector<8x512xf32>
    %328 = arith.addf %324, %327 : vector<8x512xf32>
    %c0_157 = arith.constant 0 : index
    %c0_158 = arith.constant 0 : index
    %329 = vector.load %arg7[%c0_157, %c0_158] : memref<8x1xf32, #tpu.memory_space<vmem>>, vector<8x1xf32>
    %330 = vector.broadcast %329 : vector<8x1xf32> to vector<8x512xf32>
    %331 = arith.mulf %328, %330 : vector<8x512xf32>
    %c0_159 = arith.constant 0 : index
    %c0_160 = arith.constant 0 : index
    %332 = vector.load %arg8[%c0_159, %c0_160] : memref<8x1xf32, #tpu.memory_space<vmem>>, vector<8x1xf32>
    %333 = vector.broadcast %332 : vector<8x1xf32> to vector<8x512xf32>
    %334 = arith.addf %331, %333 : vector<8x512xf32>
    %335 = arith.negf %334 : vector<8x512xf32>
    %336 = math.exp %335 : vector<8x512xf32>
    %cst_161 = arith.constant 1.000000e+00 : f32
    %337 = vector.broadcast %cst_161 : f32 to vector<8x512xf32>
    %338 = arith.addf %337, %336 : vector<8x512xf32>
    %339 = arith.divf %337, %338 : vector<8x512xf32>
    %340 = arith.mulf %334, %339 : vector<8x512xf32>
    %c0_162 = arith.constant 0 : index
    %c0_163 = arith.constant 0 : index
    %341 = vector.load %arg9[%c0_162, %c0_163] : memref<4x8xf32, #tpu.memory_space<vmem>>, vector<4x8xf32>
    %cst_164 = arith.constant dense<0.000000e+00> : vector<4x512xf32>
    %342 = tpu.matmul %341, %340, %cst_164 {dimension_numbers = #tpu.dot_dimension_numbers<[1], [0], [0], [1], [0, 0, 1, 1], [], []>} : vector<4x8xf32>, vector<8x512xf32>, vector<4x512xf32> -> vector<4x512xf32>
    %c0_165 = arith.constant 0 : index
    %c0_166 = arith.constant 0 : index
    %343 = vector.load %arg10[%c0_165, %c0_166] : memref<4x1xf32, #tpu.memory_space<vmem>>, vector<4x1xf32>
    %344 = vector.broadcast %343 : vector<4x1xf32> to vector<4x512xf32>
    %345 = arith.mulf %342, %344 : vector<4x512xf32>
    %c0_167 = arith.constant 0 : index
    %c0_168 = arith.constant 0 : index
    %346 = vector.load %arg11[%c0_167, %c0_168] : memref<4x1xf32, #tpu.memory_space<vmem>>, vector<4x1xf32>
    %347 = vector.broadcast %346 : vector<4x1xf32> to vector<4x512xf32>
    %348 = arith.addf %345, %347 : vector<4x512xf32>
    %349 = arith.negf %348 : vector<4x512xf32>
    %350 = math.exp %349 : vector<4x512xf32>
    %cst_169 = arith.constant 1.000000e+00 : f32
    %351 = vector.broadcast %cst_169 : f32 to vector<4x512xf32>
    %352 = arith.addf %351, %350 : vector<4x512xf32>
    %353 = arith.divf %351, %352 : vector<4x512xf32>
    %354 = arith.mulf %348, %353 : vector<4x512xf32>
    %c0_170 = arith.constant 0 : index
    %c0_171 = arith.constant 0 : index
    %c0_172 = arith.constant 0 : index
    %355 = vector.load %arg12[%c0_170, %c0_171, %c0_172] : memref<4x4x512xf32, #tpu.memory_space<vmem>>, vector<1x4x512xf32>
    %356 = vector.shape_cast %355 : vector<1x4x512xf32> to vector<4x512xf32>
    %357 = vector.shape_cast %354 : vector<4x512xf32> to vector<1x4x512xf32>
    tpu.vector_store %arg12[%c0_170, %c0_171, %c0_172], %357 {strides = array<i32>} : memref<4x4x512xf32, #tpu.memory_space<vmem>>, vector<1x4x512xf32>,
    %c1_173 = arith.constant 1 : index
    %c0_174 = arith.constant 0 : index
    %c0_175 = arith.constant 0 : index
    %c0_176 = arith.constant 0 : index
    %358 = vector.load %arg6[%c1_173, %c0_174, %c0_175, %c0_176] : memref<4x4x8x8xf32, #tpu.memory_space<vmem>>, vector<1x1x8x8xf32>
    %359 = vector.shape_cast %358 : vector<1x1x8x8xf32> to vector<8x8xf32>
    %cst_177 = arith.constant dense<0.000000e+00> : vector<8x512xf32>
    %360 = tpu.matmul %359, %241, %cst_177 {dimension_numbers = #tpu.dot_dimension_numbers<[1], [0], [0], [1], [0, 0, 1, 1], [], []>} : vector<8x8xf32>, vector<8x512xf32>, vector<8x512xf32> -> vector<8x512xf32>
    %c16_i32_178 = arith.constant 16 : i32
    %361 = tpu.dynamic_rotate %360 by %c16_i32_178 dim 1 : vector<8x512xf32>, i32 -> vector<8x512xf32>
    %c0_i32_179 = arith.constant 0 : i32
    %362 = vector.broadcast %c0_i32_179 : i32 to vector<1x512xi32>
    %363 = arith.addi %0, %362 : vector<1x512xi32>
    %c0_i32_180 = arith.constant 0 : i32
    %364 = vector.broadcast %c0_i32_180 : i32 to vector<1x512xi32>
    %365 = arith.cmpi sge, %363, %364 : vector<1x512xi32>
    %c0_i32_181 = arith.constant 0 : i32
    %366 = vector.broadcast %c0_i32_181 : i32 to vector<1x512xi32>
    %367 = arith.addi %0, %366 : vector<1x512xi32>
    %c16_i32_182 = arith.constant 16 : i32
    %368 = vector.broadcast %c16_i32_182 : i32 to vector<1x512xi32>
    %369 = arith.cmpi slt, %367, %368 : vector<1x512xi32>
    %370 = arith.andi %365, %369 : vector<1x512xi1>
    %c-1_i32_183 = arith.constant -1 : i32
    %371 = vector.broadcast %c-1_i32_183 : i32 to vector<1x512xi32>
    %372 = arith.addi %1, %371 : vector<1x512xi32>
    %c0_i32_184 = arith.constant 0 : i32
    %373 = vector.broadcast %c0_i32_184 : i32 to vector<1x512xi32>
    %374 = arith.cmpi sge, %372, %373 : vector<1x512xi32>
    %375 = arith.andi %370, %374 : vector<1x512xi1>
    %c-1_i32_185 = arith.constant -1 : i32
    %376 = vector.broadcast %c-1_i32_185 : i32 to vector<1x512xi32>
    %377 = arith.addi %1, %376 : vector<1x512xi32>
    %c16_i32_186 = arith.constant 16 : i32
    %378 = vector.broadcast %c16_i32_186 : i32 to vector<1x512xi32>
    %379 = arith.cmpi slt, %377, %378 : vector<1x512xi32>
    %380 = arith.andi %375, %379 : vector<1x512xi1>
    %cst_187 = arith.constant 0.000000e+00 : f32
    %381 = vector.shape_cast %380 : vector<1x512xi1> to vector<1x512xi1>
    %382 = vector.broadcast %381 : vector<1x512xi1> to vector<8x512xi1>
    %383 = vector.broadcast %cst_187 : f32 to vector<8x512xf32>
    %384 = arith.select %382, %361, %383 : vector<8x512xi1>, vector<8x512xf32>
    %c1_188 = arith.constant 1 : index
    %c1_189 = arith.constant 1 : index
    %c0_190 = arith.constant 0 : index
    %c0_191 = arith.constant 0 : index
    %385 = vector.load %arg6[%c1_188, %c1_189, %c0_190, %c0_191] : memref<4x4x8x8xf32, #tpu.memory_space<vmem>>, vector<1x1x8x8xf32>
    %386 = vector.shape_cast %385 : vector<1x1x8x8xf32> to vector<8x8xf32>
    %cst_192 = arith.constant dense<0.000000e+00> : vector<8x512xf32>
    %387 = tpu.matmul %386, %241, %cst_192 {dimension_numbers = #tpu.dot_dimension_numbers<[1], [0], [0], [1], [0, 0, 1, 1], [], []>} : vector<8x8xf32>, vector<8x512xf32>, vector<8x512xf32> -> vector<8x512xf32>
    %c15_i32_193 = arith.constant 15 : i32
    %388 = tpu.dynamic_rotate %387 by %c15_i32_193 dim 1 : vector<8x512xf32>, i32 -> vector<8x512xf32>
    %c1_i32_194 = arith.constant 1 : i32
    %389 = vector.broadcast %c1_i32_194 : i32 to vector<1x512xi32>
    %390 = arith.addi %0, %389 : vector<1x512xi32>
    %c0_i32_195 = arith.constant 0 : i32
    %391 = vector.broadcast %c0_i32_195 : i32 to vector<1x512xi32>
    %392 = arith.cmpi sge, %390, %391 : vector<1x512xi32>
    %c1_i32_196 = arith.constant 1 : i32
    %393 = vector.broadcast %c1_i32_196 : i32 to vector<1x512xi32>
    %394 = arith.addi %0, %393 : vector<1x512xi32>
    %c16_i32_197 = arith.constant 16 : i32
    %395 = vector.broadcast %c16_i32_197 : i32 to vector<1x512xi32>
    %396 = arith.cmpi slt, %394, %395 : vector<1x512xi32>
    %397 = arith.andi %392, %396 : vector<1x512xi1>
    %c-1_i32_198 = arith.constant -1 : i32
    %398 = vector.broadcast %c-1_i32_198 : i32 to vector<1x512xi32>
    %399 = arith.addi %1, %398 : vector<1x512xi32>
    %c0_i32_199 = arith.constant 0 : i32
    %400 = vector.broadcast %c0_i32_199 : i32 to vector<1x512xi32>
    %401 = arith.cmpi sge, %399, %400 : vector<1x512xi32>
    %402 = arith.andi %397, %401 : vector<1x512xi1>
    %c-1_i32_200 = arith.constant -1 : i32
    %403 = vector.broadcast %c-1_i32_200 : i32 to vector<1x512xi32>
    %404 = arith.addi %1, %403 : vector<1x512xi32>
    %c16_i32_201 = arith.constant 16 : i32
    %405 = vector.broadcast %c16_i32_201 : i32 to vector<1x512xi32>
    %406 = arith.cmpi slt, %404, %405 : vector<1x512xi32>
    %407 = arith.andi %402, %406 : vector<1x512xi1>
    %cst_202 = arith.constant 0.000000e+00 : f32
    %408 = vector.shape_cast %407 : vector<1x512xi1> to vector<1x512xi1>
    %409 = vector.broadcast %408 : vector<1x512xi1> to vector<8x512xi1>
    %410 = vector.broadcast %cst_202 : f32 to vector<8x512xf32>
    %411 = arith.select %409, %388, %410 : vector<8x512xi1>, vector<8x512xf32>
    %412 = arith.addf %384, %411 : vector<8x512xf32>
    %c1_203 = arith.constant 1 : index
    %c2_204 = arith.constant 2 : index
    %c0_205 = arith.constant 0 : index
    %c0_206 = arith.constant 0 : index
    %413 = vector.load %arg6[%c1_203, %c2_204, %c0_205, %c0_206] : memref<4x4x8x8xf32, #tpu.memory_space<vmem>>, vector<1x1x8x8xf32>
    %414 = vector.shape_cast %413 : vector<1x1x8x8xf32> to vector<8x8xf32>
    %cst_207 = arith.constant dense<0.000000e+00> : vector<8x512xf32>
    %415 = tpu.matmul %414, %241, %cst_207 {dimension_numbers = #tpu.dot_dimension_numbers<[1], [0], [0], [1], [0, 0, 1, 1], [], []>} : vector<8x8xf32>, vector<8x512xf32>, vector<8x512xf32> -> vector<8x512xf32>
    %416 = arith.addf %412, %415 : vector<8x512xf32>
    %c1_208 = arith.constant 1 : index
    %c3_209 = arith.constant 3 : index
    %c0_210 = arith.constant 0 : index
    %c0_211 = arith.constant 0 : index
    %417 = vector.load %arg6[%c1_208, %c3_209, %c0_210, %c0_211] : memref<4x4x8x8xf32, #tpu.memory_space<vmem>>, vector<1x1x8x8xf32>
    %418 = vector.shape_cast %417 : vector<1x1x8x8xf32> to vector<8x8xf32>
    %cst_212 = arith.constant dense<0.000000e+00> : vector<8x512xf32>
    %419 = tpu.matmul %418, %241, %cst_212 {dimension_numbers = #tpu.dot_dimension_numbers<[1], [0], [0], [1], [0, 0, 1, 1], [], []>} : vector<8x8xf32>, vector<8x512xf32>, vector<8x512xf32> -> vector<8x512xf32>
    %c511_i32_213 = arith.constant 511 : i32
    %420 = tpu.dynamic_rotate %419 by %c511_i32_213 dim 1 : vector<8x512xf32>, i32 -> vector<8x512xf32>
    %c1_i32_214 = arith.constant 1 : i32
    %421 = vector.broadcast %c1_i32_214 : i32 to vector<1x512xi32>
    %422 = arith.addi %0, %421 : vector<1x512xi32>
    %c0_i32_215 = arith.constant 0 : i32
    %423 = vector.broadcast %c0_i32_215 : i32 to vector<1x512xi32>
    %424 = arith.cmpi sge, %422, %423 : vector<1x512xi32>
    %c1_i32_216 = arith.constant 1 : i32
    %425 = vector.broadcast %c1_i32_216 : i32 to vector<1x512xi32>
    %426 = arith.addi %0, %425 : vector<1x512xi32>
    %c16_i32_217 = arith.constant 16 : i32
    %427 = vector.broadcast %c16_i32_217 : i32 to vector<1x512xi32>
    %428 = arith.cmpi slt, %426, %427 : vector<1x512xi32>
    %429 = arith.andi %424, %428 : vector<1x512xi1>
    %c0_i32_218 = arith.constant 0 : i32
    %430 = vector.broadcast %c0_i32_218 : i32 to vector<1x512xi32>
    %431 = arith.addi %1, %430 : vector<1x512xi32>
    %c0_i32_219 = arith.constant 0 : i32
    %432 = vector.broadcast %c0_i32_219 : i32 to vector<1x512xi32>
    %433 = arith.cmpi sge, %431, %432 : vector<1x512xi32>
    %434 = arith.andi %429, %433 : vector<1x512xi1>
    %c0_i32_220 = arith.constant 0 : i32
    %435 = vector.broadcast %c0_i32_220 : i32 to vector<1x512xi32>
    %436 = arith.addi %1, %435 : vector<1x512xi32>
    %c16_i32_221 = arith.constant 16 : i32
    %437 = vector.broadcast %c16_i32_221 : i32 to vector<1x512xi32>
    %438 = arith.cmpi slt, %436, %437 : vector<1x512xi32>
    %439 = arith.andi %434, %438 : vector<1x512xi1>
    %cst_222 = arith.constant 0.000000e+00 : f32
    %440 = vector.shape_cast %439 : vector<1x512xi1> to vector<1x512xi1>
    %441 = vector.broadcast %440 : vector<1x512xi1> to vector<8x512xi1>
    %442 = vector.broadcast %cst_222 : f32 to vector<8x512xf32>
    %443 = arith.select %441, %420, %442 : vector<8x512xi1>, vector<8x512xf32>
    %444 = arith.addf %416, %443 : vector<8x512xf32>
    %c0_223 = arith.constant 0 : index
    %c0_224 = arith.constant 0 : index
    %445 = vector.load %arg7[%c0_223, %c0_224] : memref<8x1xf32, #tpu.memory_space<vmem>>, vector<8x1xf32>
    %446 = vector.broadcast %445 : vector<8x1xf32> to vector<8x512xf32>
    %447 = arith.mulf %444, %446 : vector<8x512xf32>
    %c0_225 = arith.constant 0 : index
    %c0_226 = arith.constant 0 : index
    %448 = vector.load %arg8[%c0_225, %c0_226] : memref<8x1xf32, #tpu.memory_space<vmem>>, vector<8x1xf32>
    %449 = vector.broadcast %448 : vector<8x1xf32> to vector<8x512xf32>
    %450 = arith.addf %447, %449 : vector<8x512xf32>
    %451 = arith.negf %450 : vector<8x512xf32>
    %452 = math.exp %451 : vector<8x512xf32>
    %cst_227 = arith.constant 1.000000e+00 : f32
    %453 = vector.broadcast %cst_227 : f32 to vector<8x512xf32>
    %454 = arith.addf %453, %452 : vector<8x512xf32>
    %455 = arith.divf %453, %454 : vector<8x512xf32>
    %456 = arith.mulf %450, %455 : vector<8x512xf32>
    %c0_228 = arith.constant 0 : index
    %c0_229 = arith.constant 0 : index
    %457 = vector.load %arg9[%c0_228, %c0_229] : memref<4x8xf32, #tpu.memory_space<vmem>>, vector<4x8xf32>
    %cst_230 = arith.constant dense<0.000000e+00> : vector<4x512xf32>
    %458 = tpu.matmul %457, %456, %cst_230 {dimension_numbers = #tpu.dot_dimension_numbers<[1], [0], [0], [1], [0, 0, 1, 1], [], []>} : vector<4x8xf32>, vector<8x512xf32>, vector<4x512xf32> -> vector<4x512xf32>
    %c0_231 = arith.constant 0 : index
    %c0_232 = arith.constant 0 : index
    %459 = vector.load %arg10[%c0_231, %c0_232] : memref<4x1xf32, #tpu.memory_space<vmem>>, vector<4x1xf32>
    %460 = vector.broadcast %459 : vector<4x1xf32> to vector<4x512xf32>
    %461 = arith.mulf %458, %460 : vector<4x512xf32>
    %c0_233 = arith.constant 0 : index
    %c0_234 = arith.constant 0 : index
    %462 = vector.load %arg11[%c0_233, %c0_234] : memref<4x1xf32, #tpu.memory_space<vmem>>, vector<4x1xf32>
    %463 = vector.broadcast %462 : vector<4x1xf32> to vector<4x512xf32>
    %464 = arith.addf %461, %463 : vector<4x512xf32>
    %465 = arith.negf %464 : vector<4x512xf32>
    %466 = math.exp %465 : vector<4x512xf32>
    %cst_235 = arith.constant 1.000000e+00 : f32
    %467 = vector.broadcast %cst_235 : f32 to vector<4x512xf32>
    %468 = arith.addf %467, %466 : vector<4x512xf32>
    %469 = arith.divf %467, %468 : vector<4x512xf32>
    %470 = arith.mulf %464, %469 : vector<4x512xf32>
    %c1_236 = arith.constant 1 : index
    %c0_237 = arith.constant 0 : index
    %c0_238 = arith.constant 0 : index
    %471 = vector.load %arg12[%c1_236, %c0_237, %c0_238] : memref<4x4x512xf32, #tpu.memory_space<vmem>>, vector<1x4x512xf32>
    %472 = vector.shape_cast %471 : vector<1x4x512xf32> to vector<4x512xf32>
    %473 = vector.shape_cast %470 : vector<4x512xf32> to vector<1x4x512xf32>
    tpu.vector_store %arg12[%c1_236, %c0_237, %c0_238], %473 {strides = array<i32>} : memref<4x4x512xf32, #tpu.memory_space<vmem>>, vector<1x4x512xf32>,
    %c2_239 = arith.constant 2 : index
    %c0_240 = arith.constant 0 : index
    %c0_241 = arith.constant 0 : index
    %c0_242 = arith.constant 0 : index
    %474 = vector.load %arg6[%c2_239, %c0_240, %c0_241, %c0_242] : memref<4x4x8x8xf32, #tpu.memory_space<vmem>>, vector<1x1x8x8xf32>
    %475 = vector.shape_cast %474 : vector<1x1x8x8xf32> to vector<8x8xf32>
    %cst_243 = arith.constant dense<0.000000e+00> : vector<8x512xf32>
    %476 = tpu.matmul %475, %241, %cst_243 {dimension_numbers = #tpu.dot_dimension_numbers<[1], [0], [0], [1], [0, 0, 1, 1], [], []>} : vector<8x8xf32>, vector<8x512xf32>, vector<8x512xf32> -> vector<8x512xf32>
    %c1_i32_244 = arith.constant 1 : i32
    %477 = tpu.dynamic_rotate %476 by %c1_i32_244 dim 1 : vector<8x512xf32>, i32 -> vector<8x512xf32>
    %c-1_i32_245 = arith.constant -1 : i32
    %478 = vector.broadcast %c-1_i32_245 : i32 to vector<1x512xi32>
    %479 = arith.addi %0, %478 : vector<1x512xi32>
    %c0_i32_246 = arith.constant 0 : i32
    %480 = vector.broadcast %c0_i32_246 : i32 to vector<1x512xi32>
    %481 = arith.cmpi sge, %479, %480 : vector<1x512xi32>
    %c-1_i32_247 = arith.constant -1 : i32
    %482 = vector.broadcast %c-1_i32_247 : i32 to vector<1x512xi32>
    %483 = arith.addi %0, %482 : vector<1x512xi32>
    %c16_i32_248 = arith.constant 16 : i32
    %484 = vector.broadcast %c16_i32_248 : i32 to vector<1x512xi32>
    %485 = arith.cmpi slt, %483, %484 : vector<1x512xi32>
    %486 = arith.andi %481, %485 : vector<1x512xi1>
    %c0_i32_249 = arith.constant 0 : i32
    %487 = vector.broadcast %c0_i32_249 : i32 to vector<1x512xi32>
    %488 = arith.addi %1, %487 : vector<1x512xi32>
    %c0_i32_250 = arith.constant 0 : i32
    %489 = vector.broadcast %c0_i32_250 : i32 to vector<1x512xi32>
    %490 = arith.cmpi sge, %488, %489 : vector<1x512xi32>
    %491 = arith.andi %486, %490 : vector<1x512xi1>
    %c0_i32_251 = arith.constant 0 : i32
    %492 = vector.broadcast %c0_i32_251 : i32 to vector<1x512xi32>
    %493 = arith.addi %1, %492 : vector<1x512xi32>
    %c16_i32_252 = arith.constant 16 : i32
    %494 = vector.broadcast %c16_i32_252 : i32 to vector<1x512xi32>
    %495 = arith.cmpi slt, %493, %494 : vector<1x512xi32>
    %496 = arith.andi %491, %495 : vector<1x512xi1>
    %cst_253 = arith.constant 0.000000e+00 : f32
    %497 = vector.shape_cast %496 : vector<1x512xi1> to vector<1x512xi1>
    %498 = vector.broadcast %497 : vector<1x512xi1> to vector<8x512xi1>
    %499 = vector.broadcast %cst_253 : f32 to vector<8x512xf32>
    %500 = arith.select %498, %477, %499 : vector<8x512xi1>, vector<8x512xf32>
    %c2_254 = arith.constant 2 : index
    %c1_255 = arith.constant 1 : index
    %c0_256 = arith.constant 0 : index
    %c0_257 = arith.constant 0 : index
    %501 = vector.load %arg6[%c2_254, %c1_255, %c0_256, %c0_257] : memref<4x4x8x8xf32, #tpu.memory_space<vmem>>, vector<1x1x8x8xf32>
    %502 = vector.shape_cast %501 : vector<1x1x8x8xf32> to vector<8x8xf32>
    %cst_258 = arith.constant dense<0.000000e+00> : vector<8x512xf32>
    %503 = tpu.matmul %502, %241, %cst_258 {dimension_numbers = #tpu.dot_dimension_numbers<[1], [0], [0], [1], [0, 0, 1, 1], [], []>} : vector<8x8xf32>, vector<8x512xf32>, vector<8x512xf32> -> vector<8x512xf32>
    %504 = arith.addf %500, %503 : vector<8x512xf32>
    %c2_259 = arith.constant 2 : index
    %c2_260 = arith.constant 2 : index
    %c0_261 = arith.constant 0 : index
    %c0_262 = arith.constant 0 : index
    %505 = vector.load %arg6[%c2_259, %c2_260, %c0_261, %c0_262] : memref<4x4x8x8xf32, #tpu.memory_space<vmem>>, vector<1x1x8x8xf32>
    %506 = vector.shape_cast %505 : vector<1x1x8x8xf32> to vector<8x8xf32>
    %cst_263 = arith.constant dense<0.000000e+00> : vector<8x512xf32>
    %507 = tpu.matmul %506, %241, %cst_263 {dimension_numbers = #tpu.dot_dimension_numbers<[1], [0], [0], [1], [0, 0, 1, 1], [], []>} : vector<8x8xf32>, vector<8x512xf32>, vector<8x512xf32> -> vector<8x512xf32>
    %c497_i32_264 = arith.constant 497 : i32
    %508 = tpu.dynamic_rotate %507 by %c497_i32_264 dim 1 : vector<8x512xf32>, i32 -> vector<8x512xf32>
    %c-1_i32_265 = arith.constant -1 : i32
    %509 = vector.broadcast %c-1_i32_265 : i32 to vector<1x512xi32>
    %510 = arith.addi %0, %509 : vector<1x512xi32>
    %c0_i32_266 = arith.constant 0 : i32
    %511 = vector.broadcast %c0_i32_266 : i32 to vector<1x512xi32>
    %512 = arith.cmpi sge, %510, %511 : vector<1x512xi32>
    %c-1_i32_267 = arith.constant -1 : i32
    %513 = vector.broadcast %c-1_i32_267 : i32 to vector<1x512xi32>
    %514 = arith.addi %0, %513 : vector<1x512xi32>
    %c16_i32_268 = arith.constant 16 : i32
    %515 = vector.broadcast %c16_i32_268 : i32 to vector<1x512xi32>
    %516 = arith.cmpi slt, %514, %515 : vector<1x512xi32>
    %517 = arith.andi %512, %516 : vector<1x512xi1>
    %c1_i32_269 = arith.constant 1 : i32
    %518 = vector.broadcast %c1_i32_269 : i32 to vector<1x512xi32>
    %519 = arith.addi %1, %518 : vector<1x512xi32>
    %c0_i32_270 = arith.constant 0 : i32
    %520 = vector.broadcast %c0_i32_270 : i32 to vector<1x512xi32>
    %521 = arith.cmpi sge, %519, %520 : vector<1x512xi32>
    %522 = arith.andi %517, %521 : vector<1x512xi1>
    %c1_i32_271 = arith.constant 1 : i32
    %523 = vector.broadcast %c1_i32_271 : i32 to vector<1x512xi32>
    %524 = arith.addi %1, %523 : vector<1x512xi32>
    %c16_i32_272 = arith.constant 16 : i32
    %525 = vector.broadcast %c16_i32_272 : i32 to vector<1x512xi32>
    %526 = arith.cmpi slt, %524, %525 : vector<1x512xi32>
    %527 = arith.andi %522, %526 : vector<1x512xi1>
    %cst_273 = arith.constant 0.000000e+00 : f32
    %528 = vector.shape_cast %527 : vector<1x512xi1> to vector<1x512xi1>
    %529 = vector.broadcast %528 : vector<1x512xi1> to vector<8x512xi1>
    %530 = vector.broadcast %cst_273 : f32 to vector<8x512xf32>
    %531 = arith.select %529, %508, %530 : vector<8x512xi1>, vector<8x512xf32>
    %532 = arith.addf %504, %531 : vector<8x512xf32>
    %c2_274 = arith.constant 2 : index
    %c3_275 = arith.constant 3 : index
    %c0_276 = arith.constant 0 : index
    %c0_277 = arith.constant 0 : index
    %533 = vector.load %arg6[%c2_274, %c3_275, %c0_276, %c0_277] : memref<4x4x8x8xf32, #tpu.memory_space<vmem>>, vector<1x1x8x8xf32>
    %534 = vector.shape_cast %533 : vector<1x1x8x8xf32> to vector<8x8xf32>
    %cst_278 = arith.constant dense<0.000000e+00> : vector<8x512xf32>
    %535 = tpu.matmul %534, %241, %cst_278 {dimension_numbers = #tpu.dot_dimension_numbers<[1], [0], [0], [1], [0, 0, 1, 1], [], []>} : vector<8x8xf32>, vector<8x512xf32>, vector<8x512xf32> -> vector<8x512xf32>
    %c496_i32_279 = arith.constant 496 : i32
    %536 = tpu.dynamic_rotate %535 by %c496_i32_279 dim 1 : vector<8x512xf32>, i32 -> vector<8x512xf32>
    %c0_i32_280 = arith.constant 0 : i32
    %537 = vector.broadcast %c0_i32_280 : i32 to vector<1x512xi32>
    %538 = arith.addi %0, %537 : vector<1x512xi32>
    %c0_i32_281 = arith.constant 0 : i32
    %539 = vector.broadcast %c0_i32_281 : i32 to vector<1x512xi32>
    %540 = arith.cmpi sge, %538, %539 : vector<1x512xi32>
    %c0_i32_282 = arith.constant 0 : i32
    %541 = vector.broadcast %c0_i32_282 : i32 to vector<1x512xi32>
    %542 = arith.addi %0, %541 : vector<1x512xi32>
    %c16_i32_283 = arith.constant 16 : i32
    %543 = vector.broadcast %c16_i32_283 : i32 to vector<1x512xi32>
    %544 = arith.cmpi slt, %542, %543 : vector<1x512xi32>
    %545 = arith.andi %540, %544 : vector<1x512xi1>
    %c1_i32_284 = arith.constant 1 : i32
    %546 = vector.broadcast %c1_i32_284 : i32 to vector<1x512xi32>
    %547 = arith.addi %1, %546 : vector<1x512xi32>
    %c0_i32_285 = arith.constant 0 : i32
    %548 = vector.broadcast %c0_i32_285 : i32 to vector<1x512xi32>
    %549 = arith.cmpi sge, %547, %548 : vector<1x512xi32>
    %550 = arith.andi %545, %549 : vector<1x512xi1>
    %c1_i32_286 = arith.constant 1 : i32
    %551 = vector.broadcast %c1_i32_286 : i32 to vector<1x512xi32>
    %552 = arith.addi %1, %551 : vector<1x512xi32>
    %c16_i32_287 = arith.constant 16 : i32
    %553 = vector.broadcast %c16_i32_287 : i32 to vector<1x512xi32>
    %554 = arith.cmpi slt, %552, %553 : vector<1x512xi32>
    %555 = arith.andi %550, %554 : vector<1x512xi1>
    %cst_288 = arith.constant 0.000000e+00 : f32
    %556 = vector.shape_cast %555 : vector<1x512xi1> to vector<1x512xi1>
    %557 = vector.broadcast %556 : vector<1x512xi1> to vector<8x512xi1>
    %558 = vector.broadcast %cst_288 : f32 to vector<8x512xf32>
    %559 = arith.select %557, %536, %558 : vector<8x512xi1>, vector<8x512xf32>
    %560 = arith.addf %532, %559 : vector<8x512xf32>
    %c0_289 = arith.constant 0 : index
    %c0_290 = arith.constant 0 : index
    %561 = vector.load %arg7[%c0_289, %c0_290] : memref<8x1xf32, #tpu.memory_space<vmem>>, vector<8x1xf32>
    %562 = vector.broadcast %561 : vector<8x1xf32> to vector<8x512xf32>
    %563 = arith.mulf %560, %562 : vector<8x512xf32>
    %c0_291 = arith.constant 0 : index
    %c0_292 = arith.constant 0 : index
    %564 = vector.load %arg8[%c0_291, %c0_292] : memref<8x1xf32, #tpu.memory_space<vmem>>, vector<8x1xf32>
    %565 = vector.broadcast %564 : vector<8x1xf32> to vector<8x512xf32>
    %566 = arith.addf %563, %565 : vector<8x512xf32>
    %567 = arith.negf %566 : vector<8x512xf32>
    %568 = math.exp %567 : vector<8x512xf32>
    %cst_293 = arith.constant 1.000000e+00 : f32
    %569 = vector.broadcast %cst_293 : f32 to vector<8x512xf32>
    %570 = arith.addf %569, %568 : vector<8x512xf32>
    %571 = arith.divf %569, %570 : vector<8x512xf32>
    %572 = arith.mulf %566, %571 : vector<8x512xf32>
    %c0_294 = arith.constant 0 : index
    %c0_295 = arith.constant 0 : index
    %573 = vector.load %arg9[%c0_294, %c0_295] : memref<4x8xf32, #tpu.memory_space<vmem>>, vector<4x8xf32>
    %cst_296 = arith.constant dense<0.000000e+00> : vector<4x512xf32>
    %574 = tpu.matmul %573, %572, %cst_296 {dimension_numbers = #tpu.dot_dimension_numbers<[1], [0], [0], [1], [0, 0, 1, 1], [], []>} : vector<4x8xf32>, vector<8x512xf32>, vector<4x512xf32> -> vector<4x512xf32>
    %c0_297 = arith.constant 0 : index
    %c0_298 = arith.constant 0 : index
    %575 = vector.load %arg10[%c0_297, %c0_298] : memref<4x1xf32, #tpu.memory_space<vmem>>, vector<4x1xf32>
    %576 = vector.broadcast %575 : vector<4x1xf32> to vector<4x512xf32>
    %577 = arith.mulf %574, %576 : vector<4x512xf32>
    %c0_299 = arith.constant 0 : index
    %c0_300 = arith.constant 0 : index
    %578 = vector.load %arg11[%c0_299, %c0_300] : memref<4x1xf32, #tpu.memory_space<vmem>>, vector<4x1xf32>
    %579 = vector.broadcast %578 : vector<4x1xf32> to vector<4x512xf32>
    %580 = arith.addf %577, %579 : vector<4x512xf32>
    %581 = arith.negf %580 : vector<4x512xf32>
    %582 = math.exp %581 : vector<4x512xf32>
    %cst_301 = arith.constant 1.000000e+00 : f32
    %583 = vector.broadcast %cst_301 : f32 to vector<4x512xf32>
    %584 = arith.addf %583, %582 : vector<4x512xf32>
    %585 = arith.divf %583, %584 : vector<4x512xf32>
    %586 = arith.mulf %580, %585 : vector<4x512xf32>
    %c2_302 = arith.constant 2 : index
    %c0_303 = arith.constant 0 : index
    %c0_304 = arith.constant 0 : index
    %587 = vector.load %arg12[%c2_302, %c0_303, %c0_304] : memref<4x4x512xf32, #tpu.memory_space<vmem>>, vector<1x4x512xf32>
    %588 = vector.shape_cast %587 : vector<1x4x512xf32> to vector<4x512xf32>
    %589 = vector.shape_cast %586 : vector<4x512xf32> to vector<1x4x512xf32>
    tpu.vector_store %arg12[%c2_302, %c0_303, %c0_304], %589 {strides = array<i32>} : memref<4x4x512xf32, #tpu.memory_space<vmem>>, vector<1x4x512xf32>,
    %c3_305 = arith.constant 3 : index
    %c0_306 = arith.constant 0 : index
    %c0_307 = arith.constant 0 : index
    %c0_308 = arith.constant 0 : index
    %590 = vector.load %arg6[%c3_305, %c0_306, %c0_307, %c0_308] : memref<4x4x8x8xf32, #tpu.memory_space<vmem>>, vector<1x1x8x8xf32>
    %591 = vector.shape_cast %590 : vector<1x1x8x8xf32> to vector<8x8xf32>
    %cst_309 = arith.constant dense<0.000000e+00> : vector<8x512xf32>
    %592 = tpu.matmul %591, %241, %cst_309 {dimension_numbers = #tpu.dot_dimension_numbers<[1], [0], [0], [1], [0, 0, 1, 1], [], []>} : vector<8x8xf32>, vector<8x512xf32>, vector<8x512xf32> -> vector<8x512xf32>
    %c3_310 = arith.constant 3 : index
    %c1_311 = arith.constant 1 : index
    %c0_312 = arith.constant 0 : index
    %c0_313 = arith.constant 0 : index
    %593 = vector.load %arg6[%c3_310, %c1_311, %c0_312, %c0_313] : memref<4x4x8x8xf32, #tpu.memory_space<vmem>>, vector<1x1x8x8xf32>
    %594 = vector.shape_cast %593 : vector<1x1x8x8xf32> to vector<8x8xf32>
    %cst_314 = arith.constant dense<0.000000e+00> : vector<8x512xf32>
    %595 = tpu.matmul %594, %241, %cst_314 {dimension_numbers = #tpu.dot_dimension_numbers<[1], [0], [0], [1], [0, 0, 1, 1], [], []>} : vector<8x8xf32>, vector<8x512xf32>, vector<8x512xf32> -> vector<8x512xf32>
    %c511_i32_315 = arith.constant 511 : i32
    %596 = tpu.dynamic_rotate %595 by %c511_i32_315 dim 1 : vector<8x512xf32>, i32 -> vector<8x512xf32>
    %c1_i32_316 = arith.constant 1 : i32
    %597 = vector.broadcast %c1_i32_316 : i32 to vector<1x512xi32>
    %598 = arith.addi %0, %597 : vector<1x512xi32>
    %c0_i32_317 = arith.constant 0 : i32
    %599 = vector.broadcast %c0_i32_317 : i32 to vector<1x512xi32>
    %600 = arith.cmpi sge, %598, %599 : vector<1x512xi32>
    %c1_i32_318 = arith.constant 1 : i32
    %601 = vector.broadcast %c1_i32_318 : i32 to vector<1x512xi32>
    %602 = arith.addi %0, %601 : vector<1x512xi32>
    %c16_i32_319 = arith.constant 16 : i32
    %603 = vector.broadcast %c16_i32_319 : i32 to vector<1x512xi32>
    %604 = arith.cmpi slt, %602, %603 : vector<1x512xi32>
    %605 = arith.andi %600, %604 : vector<1x512xi1>
    %c0_i32_320 = arith.constant 0 : i32
    %606 = vector.broadcast %c0_i32_320 : i32 to vector<1x512xi32>
    %607 = arith.addi %1, %606 : vector<1x512xi32>
    %c0_i32_321 = arith.constant 0 : i32
    %608 = vector.broadcast %c0_i32_321 : i32 to vector<1x512xi32>
    %609 = arith.cmpi sge, %607, %608 : vector<1x512xi32>
    %610 = arith.andi %605, %609 : vector<1x512xi1>
    %c0_i32_322 = arith.constant 0 : i32
    %611 = vector.broadcast %c0_i32_322 : i32 to vector<1x512xi32>
    %612 = arith.addi %1, %611 : vector<1x512xi32>
    %c16_i32_323 = arith.constant 16 : i32
    %613 = vector.broadcast %c16_i32_323 : i32 to vector<1x512xi32>
    %614 = arith.cmpi slt, %612, %613 : vector<1x512xi32>
    %615 = arith.andi %610, %614 : vector<1x512xi1>
    %cst_324 = arith.constant 0.000000e+00 : f32
    %616 = vector.shape_cast %615 : vector<1x512xi1> to vector<1x512xi1>
    %617 = vector.broadcast %616 : vector<1x512xi1> to vector<8x512xi1>
    %618 = vector.broadcast %cst_324 : f32 to vector<8x512xf32>
    %619 = arith.select %617, %596, %618 : vector<8x512xi1>, vector<8x512xf32>
    %620 = arith.addf %592, %619 : vector<8x512xf32>
    %c3_325 = arith.constant 3 : index
    %c2_326 = arith.constant 2 : index
    %c0_327 = arith.constant 0 : index
    %c0_328 = arith.constant 0 : index
    %621 = vector.load %arg6[%c3_325, %c2_326, %c0_327, %c0_328] : memref<4x4x8x8xf32, #tpu.memory_space<vmem>>, vector<1x1x8x8xf32>
    %622 = vector.shape_cast %621 : vector<1x1x8x8xf32> to vector<8x8xf32>
    %cst_329 = arith.constant dense<0.000000e+00> : vector<8x512xf32>
    %623 = tpu.matmul %622, %241, %cst_329 {dimension_numbers = #tpu.dot_dimension_numbers<[1], [0], [0], [1], [0, 0, 1, 1], [], []>} : vector<8x8xf32>, vector<8x512xf32>, vector<8x512xf32> -> vector<8x512xf32>
    %c496_i32_330 = arith.constant 496 : i32
    %624 = tpu.dynamic_rotate %623 by %c496_i32_330 dim 1 : vector<8x512xf32>, i32 -> vector<8x512xf32>
    %c0_i32_331 = arith.constant 0 : i32
    %625 = vector.broadcast %c0_i32_331 : i32 to vector<1x512xi32>
    %626 = arith.addi %0, %625 : vector<1x512xi32>
    %c0_i32_332 = arith.constant 0 : i32
    %627 = vector.broadcast %c0_i32_332 : i32 to vector<1x512xi32>
    %628 = arith.cmpi sge, %626, %627 : vector<1x512xi32>
    %c0_i32_333 = arith.constant 0 : i32
    %629 = vector.broadcast %c0_i32_333 : i32 to vector<1x512xi32>
    %630 = arith.addi %0, %629 : vector<1x512xi32>
    %c16_i32_334 = arith.constant 16 : i32
    %631 = vector.broadcast %c16_i32_334 : i32 to vector<1x512xi32>
    %632 = arith.cmpi slt, %630, %631 : vector<1x512xi32>
    %633 = arith.andi %628, %632 : vector<1x512xi1>
    %c1_i32_335 = arith.constant 1 : i32
    %634 = vector.broadcast %c1_i32_335 : i32 to vector<1x512xi32>
    %635 = arith.addi %1, %634 : vector<1x512xi32>
    %c0_i32_336 = arith.constant 0 : i32
    %636 = vector.broadcast %c0_i32_336 : i32 to vector<1x512xi32>
    %637 = arith.cmpi sge, %635, %636 : vector<1x512xi32>
    %638 = arith.andi %633, %637 : vector<1x512xi1>
    %c1_i32_337 = arith.constant 1 : i32
    %639 = vector.broadcast %c1_i32_337 : i32 to vector<1x512xi32>
    %640 = arith.addi %1, %639 : vector<1x512xi32>
    %c16_i32_338 = arith.constant 16 : i32
    %641 = vector.broadcast %c16_i32_338 : i32 to vector<1x512xi32>
    %642 = arith.cmpi slt, %640, %641 : vector<1x512xi32>
    %643 = arith.andi %638, %642 : vector<1x512xi1>
    %cst_339 = arith.constant 0.000000e+00 : f32
    %644 = vector.shape_cast %643 : vector<1x512xi1> to vector<1x512xi1>
    %645 = vector.broadcast %644 : vector<1x512xi1> to vector<8x512xi1>
    %646 = vector.broadcast %cst_339 : f32 to vector<8x512xf32>
    %647 = arith.select %645, %624, %646 : vector<8x512xi1>, vector<8x512xf32>
    %648 = arith.addf %620, %647 : vector<8x512xf32>
    %c3_340 = arith.constant 3 : index
    %c3_341 = arith.constant 3 : index
    %c0_342 = arith.constant 0 : index
    %c0_343 = arith.constant 0 : index
    %649 = vector.load %arg6[%c3_340, %c3_341, %c0_342, %c0_343] : memref<4x4x8x8xf32, #tpu.memory_space<vmem>>, vector<1x1x8x8xf32>
    %650 = vector.shape_cast %649 : vector<1x1x8x8xf32> to vector<8x8xf32>
    %cst_344 = arith.constant dense<0.000000e+00> : vector<8x512xf32>
    %651 = tpu.matmul %650, %241, %cst_344 {dimension_numbers = #tpu.dot_dimension_numbers<[1], [0], [0], [1], [0, 0, 1, 1], [], []>} : vector<8x8xf32>, vector<8x512xf32>, vector<8x512xf32> -> vector<8x512xf32>
    %c495_i32_345 = arith.constant 495 : i32
    %652 = tpu.dynamic_rotate %651 by %c495_i32_345 dim 1 : vector<8x512xf32>, i32 -> vector<8x512xf32>
    %c1_i32_346 = arith.constant 1 : i32
    %653 = vector.broadcast %c1_i32_346 : i32 to vector<1x512xi32>
    %654 = arith.addi %0, %653 : vector<1x512xi32>
    %c0_i32_347 = arith.constant 0 : i32
    %655 = vector.broadcast %c0_i32_347 : i32 to vector<1x512xi32>
    %656 = arith.cmpi sge, %654, %655 : vector<1x512xi32>
    %c1_i32_348 = arith.constant 1 : i32
    %657 = vector.broadcast %c1_i32_348 : i32 to vector<1x512xi32>
    %658 = arith.addi %0, %657 : vector<1x512xi32>
    %c16_i32_349 = arith.constant 16 : i32
    %659 = vector.broadcast %c16_i32_349 : i32 to vector<1x512xi32>
    %660 = arith.cmpi slt, %658, %659 : vector<1x512xi32>
    %661 = arith.andi %656, %660 : vector<1x512xi1>
    %c1_i32_350 = arith.constant 1 : i32
    %662 = vector.broadcast %c1_i32_350 : i32 to vector<1x512xi32>
    %663 = arith.addi %1, %662 : vector<1x512xi32>
    %c0_i32_351 = arith.constant 0 : i32
    %664 = vector.broadcast %c0_i32_351 : i32 to vector<1x512xi32>
    %665 = arith.cmpi sge, %663, %664 : vector<1x512xi32>
    %666 = arith.andi %661, %665 : vector<1x512xi1>
    %c1_i32_352 = arith.constant 1 : i32
    %667 = vector.broadcast %c1_i32_352 : i32 to vector<1x512xi32>
    %668 = arith.addi %1, %667 : vector<1x512xi32>
    %c16_i32_353 = arith.constant 16 : i32
    %669 = vector.broadcast %c16_i32_353 : i32 to vector<1x512xi32>
    %670 = arith.cmpi slt, %668, %669 : vector<1x512xi32>
    %671 = arith.andi %666, %670 : vector<1x512xi1>
    %cst_354 = arith.constant 0.000000e+00 : f32
    %672 = vector.shape_cast %671 : vector<1x512xi1> to vector<1x512xi1>
    %673 = vector.broadcast %672 : vector<1x512xi1> to vector<8x512xi1>
    %674 = vector.broadcast %cst_354 : f32 to vector<8x512xf32>
    %675 = arith.select %673, %652, %674 : vector<8x512xi1>, vector<8x512xf32>
    %676 = arith.addf %648, %675 : vector<8x512xf32>
    %c0_355 = arith.constant 0 : index
    %c0_356 = arith.constant 0 : index
    %677 = vector.load %arg7[%c0_355, %c0_356] : memref<8x1xf32, #tpu.memory_space<vmem>>, vector<8x1xf32>
    %678 = vector.broadcast %677 : vector<8x1xf32> to vector<8x512xf32>
    %679 = arith.mulf %676, %678 : vector<8x512xf32>
    %c0_357 = arith.constant 0 : index
    %c0_358 = arith.constant 0 : index
    %680 = vector.load %arg8[%c0_357, %c0_358] : memref<8x1xf32, #tpu.memory_space<vmem>>, vector<8x1xf32>
    %681 = vector.broadcast %680 : vector<8x1xf32> to vector<8x512xf32>
    %682 = arith.addf %679, %681 : vector<8x512xf32>
    %683 = arith.negf %682 : vector<8x512xf32>
    %684 = math.exp %683 : vector<8x512xf32>
    %cst_359 = arith.constant 1.000000e+00 : f32
    %685 = vector.broadcast %cst_359 : f32 to vector<8x512xf32>
    %686 = arith.addf %685, %684 : vector<8x512xf32>
    %687 = arith.divf %685, %686 : vector<8x512xf32>
    %688 = arith.mulf %682, %687 : vector<8x512xf32>
    %c0_360 = arith.constant 0 : index
    %c0_361 = arith.constant 0 : index
    %689 = vector.load %arg9[%c0_360, %c0_361] : memref<4x8xf32, #tpu.memory_space<vmem>>, vector<4x8xf32>
    %cst_362 = arith.constant dense<0.000000e+00> : vector<4x512xf32>
    %690 = tpu.matmul %689, %688, %cst_362 {dimension_numbers = #tpu.dot_dimension_numbers<[1], [0], [0], [1], [0, 0, 1, 1], [], []>} : vector<4x8xf32>, vector<8x512xf32>, vector<4x512xf32> -> vector<4x512xf32>
    %c0_363 = arith.constant 0 : index
    %c0_364 = arith.constant 0 : index
    %691 = vector.load %arg10[%c0_363, %c0_364] : memref<4x1xf32, #tpu.memory_space<vmem>>, vector<4x1xf32>
    %692 = vector.broadcast %691 : vector<4x1xf32> to vector<4x512xf32>
    %693 = arith.mulf %690, %692 : vector<4x512xf32>
    %c0_365 = arith.constant 0 : index
    %c0_366 = arith.constant 0 : index
    %694 = vector.load %arg11[%c0_365, %c0_366] : memref<4x1xf32, #tpu.memory_space<vmem>>, vector<4x1xf32>
    %695 = vector.broadcast %694 : vector<4x1xf32> to vector<4x512xf32>
    %696 = arith.addf %693, %695 : vector<4x512xf32>
    %697 = arith.negf %696 : vector<4x512xf32>
    %698 = math.exp %697 : vector<4x512xf32>
    %cst_367 = arith.constant 1.000000e+00 : f32
    %699 = vector.broadcast %cst_367 : f32 to vector<4x512xf32>
    %700 = arith.addf %699, %698 : vector<4x512xf32>
    %701 = arith.divf %699, %700 : vector<4x512xf32>
    %702 = arith.mulf %696, %701 : vector<4x512xf32>
    %c3_368 = arith.constant 3 : index
    %c0_369 = arith.constant 0 : index
    %c0_370 = arith.constant 0 : index
    %703 = vector.load %arg12[%c3_368, %c0_369, %c0_370] : memref<4x4x512xf32, #tpu.memory_space<vmem>>, vector<1x4x512xf32>
    %704 = vector.shape_cast %703 : vector<1x4x512xf32> to vector<4x512xf32>
    %705 = vector.shape_cast %702 : vector<4x512xf32> to vector<1x4x512xf32>
    tpu.vector_store %arg12[%c3_368, %c0_369, %c0_370], %705 {strides = array<i32>} : memref<4x4x512xf32, #tpu.memory_space<vmem>>, vector<1x4x512xf32>,
    return
  }
}

</mosaic_0001>

<llo_original>
// kernel: tpu_custom_call.1
$region0: #{tpu_custom_call.1}
  #allocation0 [shape = 'u32[]', space=smem, size = 0x4, offset = 0x4, fixed_abs, tag = 'smem constant byte address 0x4 - core index']
  #allocation1 [shape = 'u32[144,128]{1,0:T(1,128)}', space=vmem, size = 0x12000, scoped, tag = 'internal scratch']
  %s0 = inlined_call_operand.vmem [shape: f32[8,512], index: 0, kind: input, shape index: {}]
  %s1 = inlined_call_operand.vmem [shape: s32[1,512], index: 1, kind: input, shape index: {}]
  %s2 = inlined_call_operand.vmem [shape: s32[1,512], index: 2, kind: input, shape index: {}]
  %s3 = inlined_call_operand.vmem [shape: f32[9,8,8], index: 3, kind: input, shape index: {}]
  %s4 = inlined_call_operand.vmem [shape: f32[8,1], index: 4, kind: input, shape index: {}]
  %s5 = inlined_call_operand.vmem [shape: f32[8,1], index: 5, kind: input, shape index: {}]
  %s6 = inlined_call_operand.vmem [shape: f32[4,4,8,8], index: 6, kind: input, shape index: {}]
  %s7 = inlined_call_operand.vmem [shape: f32[8,1], index: 7, kind: input, shape index: {}]
  %s8 = inlined_call_operand.vmem [shape: f32[8,1], index: 8, kind: input, shape index: {}]
  %s9 = inlined_call_operand.vmem [shape: f32[4,8], index: 9, kind: input, shape index: {}]
  %s10 = inlined_call_operand.vmem [shape: f32[4,1], index: 10, kind: input, shape index: {}]
  %s11 = inlined_call_operand.vmem [shape: f32[4,1], index: 11, kind: input, shape index: {}]
  %s12 = inlined_call_operand.hbm [shape: f32[4,4,512], index: 12, kind: output, shape index: {}]
  %s13 = sld [smem:[#allocation0]]
  $region58: #{tpu_custom_call.1} parent=0
    _
  %s15 = ssub.s32 1, %s13
  %s16 = scalar_select 0, %s15, %s13
  $region1: #{tpu_custom_call.1} parent=0
    #allocation2 [shape = 'u8[32768]{0}', space=vmem, size = 0x8000, scoped, tag = 'output window, operand 0, single buffered']
    #allocation3 [shape = 's32[1]{0}', space=sflag, size = 0x4, scoped, tag = 'scoped memory for tpu_custom_call.1']
    %17 = vsyncpa [#allocation3], 0
    // Predicated region
    $region2: #{tpu_custom_call.1} parent=1 // pred_check
      _
    $region3: #{tpu_custom_call.1} parent=1 // pred_check_branch
      %19 = sbr.rel (0) target = $region5
    $region4: #{tpu_custom_call.1} parent=1 // pred_region
      _
    $region5: #{tpu_custom_call.1} parent=1 // pred_fallthru
      _
    // Predicated region
    $region6: #{tpu_custom_call.1} parent=1 // pred_check
      _
    $region7: #{tpu_custom_call.1} parent=1 // pred_check_branch
      %21 = sbr.rel (0) target = $region9
    $region8: #{tpu_custom_call.1} parent=1 // pred_region
      _
    $region9: #{tpu_custom_call.1} parent=1 // pred_fallthru
      _
    // Predicated region
    $region10: #{tpu_custom_call.1} parent=1 // pred_check
      _
    $region11: #{tpu_custom_call.1} parent=1 // pred_check_branch
      %23 = sbr.rel (0) target = $region13
    $region12: #{tpu_custom_call.1} parent=1 // pred_region
      _
    $region13: #{tpu_custom_call.1} parent=1 // pred_fallthru
      _
    // Predicated region
    $region14: #{tpu_custom_call.1} parent=1 // pred_check
      _
    $region15: #{tpu_custom_call.1} parent=1 // pred_check_branch
      %25 = sbr.rel (0) target = $region17
    $region16: #{tpu_custom_call.1} parent=1 // pred_region
      _
    $region17: #{tpu_custom_call.1} parent=1 // pred_fallthru
      _
    // Predicated region
    $region18: #{tpu_custom_call.1} parent=1 // pred_check
      _
    $region19: #{tpu_custom_call.1} parent=1 // pred_check_branch
      %27 = sbr.rel (0) target = $region21
    $region20: #{tpu_custom_call.1} parent=1 // pred_region
      _
    $region21: #{tpu_custom_call.1} parent=1 // pred_fallthru
      _
    // Predicated region
    $region22: #{tpu_custom_call.1} parent=1 // pred_check
      _
    $region23: #{tpu_custom_call.1} parent=1 // pred_check_branch
      %29 = sbr.rel (0) target = $region25
    $region24: #{tpu_custom_call.1} parent=1 // pred_region
      _
    $region25: #{tpu_custom_call.1} parent=1 // pred_fallthru
      _
    // Predicated region
    $region26: #{tpu_custom_call.1} parent=1 // pred_check
      _
    $region27: #{tpu_custom_call.1} parent=1 // pred_check_branch
      %31 = sbr.rel (0) target = $region29
    $region28: #{tpu_custom_call.1} parent=1 // pred_region
      _
    $region29: #{tpu_custom_call.1} parent=1 // pred_fallthru
      _
    // Predicated region
    $region30: #{tpu_custom_call.1} parent=1 // pred_check
      _
    $region31: #{tpu_custom_call.1} parent=1 // pred_check_branch
      %33 = sbr.rel (0) target = $region33
    $region32: #{tpu_custom_call.1} parent=1 // pred_region
      _
    $region33: #{tpu_custom_call.1} parent=1 // pred_fallthru
      _
    // Predicated region
    $region34: #{tpu_custom_call.1} parent=1 // pred_check
      _
    $region35: #{tpu_custom_call.1} parent=1 // pred_check_branch
      %35 = sbr.rel (0) target = $region37
    $region36: #{tpu_custom_call.1} parent=1 // pred_region
      _
    $region37: #{tpu_custom_call.1} parent=1 // pred_fallthru
      _
    // Predicated region
    $region38: #{tpu_custom_call.1} parent=1 // pred_check
      _
    $region39: #{tpu_custom_call.1} parent=1 // pred_check_branch
      %37 = sbr.rel (0) target = $region41
    $region40: #{tpu_custom_call.1} parent=1 // pred_region
      _
    $region41: #{tpu_custom_call.1} parent=1 // pred_fallthru
      _
    // Predicated region
    $region42: #{tpu_custom_call.1} parent=1 // pred_check
      _
    $region43: #{tpu_custom_call.1} parent=1 // pred_check_branch
      %39 = sbr.rel (0) target = $region45
    $region44: #{tpu_custom_call.1} parent=1 // pred_region
      _
    $region45: #{tpu_custom_call.1} parent=1 // pred_fallthru
      _
    // Predicated region
    $region46: #{tpu_custom_call.1} parent=1 // pred_check
      _
    $region47: #{tpu_custom_call.1} parent=1 // pred_check_branch
      %41 = sbr.rel (0) target = $region49
    $region48: #{tpu_custom_call.1} parent=1 // pred_region
      _
    $region49: #{tpu_custom_call.1} parent=1 // pred_fallthru
      _
    %v42 = vld [vmem:[%s1] sm:$0xf]
    %v43 = vld [vmem:[%s2] sm:$0xf]
    %v44 = vld [vmem:[%s0] sm:$0xff]
    %v45 = vld [vmem:[%s0 + $0x8] sm:$0xff]
    %v46 = vld [vmem:[%s0 + $0x10] sm:$0xff]
    %v47 = vld [vmem:[%s0 + $0x18] sm:$0xff]
    %v48 = vld [vmem:[%s3] sm:$0xff]
    %vm49 = vcmask 64512
    %v51 = vsel %vm49, %v48, 0
    %53 = vmatprep.subr.mxu0 %v45
    %54 = vmatpush1.msra.mxu0 %v44
    %55 = vmatprep.subr.mxu0 0.0
    %56 = vmatpush1.msra.mxu0 0.0
    %57 = vmatprep.subr.mxu0 0.0
    %58 = vmatpush1.msra.mxu0 0.0
    %59 = vmatprep.subr.mxu0 0.0
    %60 = vmatpush1.msra.mxu0 0.0
    %61 = vmatprep.subr.mxu0 0.0
    %62 = vmatpush1.msra.mxu0 0.0
    %63 = vmatprep.subr.mxu0 0.0
    %64 = vmatpush1.msra.mxu0 0.0
    %65 = vmatprep.subr.mxu0 0.0
    %66 = vmatpush1.msra.mxu0 0.0
    %67 = vmatprep.subr.mxu0 0.0
    %68 = vmatpush1.msra.mxu0 0.0
    %69 = vmatprep.subr.mxu0 0.0
    %70 = vmatpush1.msra.mxu0 0.0
    %71 = vmatprep.subr.mxu0 0.0
    %72 = vmatpush1.msra.mxu0 0.0
    %73 = vmatprep.subr.mxu0 0.0
    %74 = vmatpush1.msra.mxu0 0.0
    %75 = vmatprep.subr.mxu0 0.0
    %76 = vmatpush1.msra.mxu0 0.0
    %77 = vmatprep.subr.mxu0 0.0
    %78 = vmatpush1.msra.mxu0 0.0
    %79 = vmatprep.subr.mxu0 0.0
    %80 = vmatpush1.msra.mxu0 0.0
    %81 = vmatprep.subr.mxu0 0.0
    %82 = vmatpush1.msra.mxu0 0.0
    %83 = vmatprep.subr.mxu0 0.0
    %84 = vmatpush1.msra.mxu0 0.0
    %85 = vmatprep.subr.mxu0 0.0
    %86 = vmatpush1.msra.mxu0 0.0
    %87 = vmatprep.subr.mxu0 0.0
    %88 = vmatpush1.msra.mxu0 0.0
    %89 = vmatprep.subr.mxu0 0.0
    %90 = vmatpush1.msra.mxu0 0.0
    %91 = vmatprep.subr.mxu0 0.0
    %92 = vmatpush1.msra.mxu0 0.0
    %93 = vmatprep.subr.mxu0 0.0
    %94 = vmatpush1.msra.mxu0 0.0
    %95 = vmatprep.subr.mxu0 0.0
    %96 = vmatpush1.msra.mxu0 0.0
    %97 = vmatprep.subr.mxu0 0.0
    %98 = vmatpush1.msra.mxu0 0.0
    %99 = vmatprep.subr.mxu0 0.0
    %100 = vmatpush1.msra.mxu0 0.0
    %101 = vmatprep.subr.mxu0 0.0
    %102 = vmatpush1.msra.mxu0 0.0
    %103 = vmatprep.subr.mxu0 0.0
    %104 = vmatpush1.msra.mxu0 0.0
    %105 = vmatprep.subr.mxu0 0.0
    %106 = vmatpush1.msra.mxu0 0.0
    %107 = vmatprep.subr.mxu0 0.0
    %108 = vmatpush1.msra.mxu0 0.0
    %109 = vmatprep.subr.mxu0 0.0
    %110 = vmatpush1.msra.mxu0 0.0
    %111 = vmatprep.subr.mxu0 0.0
    %112 = vmatpush1.msra.mxu0 0.0
    %113 = vmatprep.subr.mxu0 0.0
    %114 = vmatpush1.msra.mxu0 0.0
    %115 = vmatprep.subr.mxu0 0.0
    %116 = vmatpush1.msra.mxu0 0.0
    %117 = vmatprep.mubr.f32.mxu0 0.0
    %118 = vmatmul.mubr.f32.gmra.mrb[0].mxu0 %v51
    %v119 = vpop.f32.mrb[0].mxu0
    %v120 = vadd.f32 0.0, %v119
    %v121 = vpop.f32.mrb[0].mxu0
    %v122 = vadd.f32 0.0, %v121
    %123 = vdwg.mxu0
    %124 = vmatprep.subr.mxu0 %v47
    %125 = vmatpush1.msra.mxu0 %v46
    %126 = vmatprep.subr.mxu0 0.0
    %127 = vmatpush1.msra.mxu0 0.0
    %128 = vmatprep.subr.mxu0 0.0
    %129 = vmatpush1.msra.mxu0 0.0
    %130 = vmatprep.subr.mxu0 0.0
    %131 = vmatpush1.msra.mxu0 0.0
    %132 = vmatprep.subr.mxu0 0.0
    %133 = vmatpush1.msra.mxu0 0.0
    %134 = vmatprep.subr.mxu0 0.0
    %135 = vmatpush1.msra.mxu0 0.0
    %136 = vmatprep.subr.mxu0 0.0
    %137 = vmatpush1.msra.mxu0 0.0
    %138 = vmatprep.subr.mxu0 0.0
    %139 = vmatpush1.msra.mxu0 0.0
    %140 = vmatprep.subr.mxu0 0.0
    %141 = vmatpush1.msra.mxu0 0.0
    %142 = vmatprep.subr.mxu0 0.0
    %143 = vmatpush1.msra.mxu0 0.0
    %144 = vmatprep.subr.mxu0 0.0
    %145 = vmatpush1.msra.mxu0 0.0
    %146 = vmatprep.subr.mxu0 0.0
    %147 = vmatpush1.msra.mxu0 0.0
    %148 = vmatprep.subr.mxu0 0.0
    %149 = vmatpush1.msra.mxu0 0.0
    %150 = vmatprep.subr.mxu0 0.0
    %151 = vmatpush1.msra.mxu0 0.0
    %152 = vmatprep.subr.mxu0 0.0
    %153 = vmatpush1.msra.mxu0 0.0
    %154 = vmatprep.subr.mxu0 0.0
    %155 = vmatpush1.msra.mxu0 0.0
    %156 = vmatprep.subr.mxu0 0.0
    %157 = vmatpush1.msra.mxu0 0.0
    %158 = vmatprep.subr.mxu0 0.0
    %159 = vmatpush1.msra.mxu0 0.0
    %160 = vmatprep.subr.mxu0 0.0
    %161 = vmatpush1.msra.mxu0 0.0
    %162 = vmatprep.subr.mxu0 0.0
    %163 = vmatpush1.msra.mxu0 0.0
    %164 = vmatprep.subr.mxu0 0.0
    %165 = vmatpush1.msra.mxu0 0.0
    %166 = vmatprep.subr.mxu0 0.0
    %167 = vmatpush1.msra.mxu0 0.0
    %168 = vmatprep.subr.mxu0 0.0
    %169 = vmatpush1.msra.mxu0 0.0
    %170 = vmatprep.subr.mxu0 0.0
    %171 = vmatpush1.msra.mxu0 0.0
    %172 = vmatprep.subr.mxu0 0.0
    %173 = vmatpush1.msra.mxu0 0.0
    %174 = vmatprep.subr.mxu0 0.0
    %175 = vmatpush1.msra.mxu0 0.0
    %176 = vmatprep.subr.mxu0 0.0
    %177 = vmatpush1.msra.mxu0 0.0
    %178 = vmatprep.subr.mxu0 0.0
    %179 = vmatpush1.msra.mxu0 0.0
    %180 = vmatprep.subr.mxu0 0.0
    %181 = vmatpush1.msra.mxu0 0.0
    %182 = vmatprep.subr.mxu0 0.0
    %183 = vmatpush1.msra.mxu0 0.0
    %184 = vmatprep.subr.mxu0 0.0
    %185 = vmatpush1.msra.mxu0 0.0
    %186 = vmatprep.subr.mxu0 0.0
    %187 = vmatpush1.msra.mxu0 0.0
    %188 = vmatprep.mubr.f32.mxu0 0.0
    %189 = vmatmul.mubr.f32.gmra.mrb[0].mxu0 %v51
    %v190 = vpop.f32.mrb[0].mxu0
    %v191 = vadd.f32 0.0, %v190
    %v192 = vpop.f32.mrb[0].mxu0
    %v193 = vadd.f32 0.0, %v192
    %194 = vdwg.mxu0
    %195 = vrot.lane.b32.xlu0 %v120, 17
    %v196 = vpop.permute.xlu0 %195
    %197 = vrot.lane.b32.xlu0 %v122, 17
    %v198 = vpop.permute.xlu0 %197
    %199 = vrot.lane.b32.xlu0 %v191, 17
    %v200 = vpop.permute.xlu0 %199
    %201 = vrot.lane.b32.xlu0 %v193, 17
    %v202 = vpop.permute.xlu0 %201
    %v203 = vlaneseq
    %v204 = vand.u32 %v203, 127
    %vm205 = vcmp.lt.s32.totalorder %v204, 17
    %v206 = vsel %vm205, %v200, %v202
    %v207 = vsel %vm205, %v198, %v200
    %v208 = vsel %vm205, %v196, %v198
    %v209 = vsel %vm205, %v202, %v196
    %v210 = vadd.s32 %v42, 4294967295
    %vm211 = vcmp.ge.s32.totalorder %v210, 0
    %vm212 = vcmp.lt.s32.totalorder %v210, 16
    %vm213 = vmand %vm211, %vm212
    %v214 = vadd.s32 %v43, 4294967295
    %vm215 = vcmp.ge.s32.totalorder %v214, 0
    %vm216 = vmand %vm213, %vm215
    %vm217 = vcmp.lt.s32.totalorder %v214, 16
    %vm218 = vmand %vm216, %vm217
    %v219 = vsel %vm218, 1, 0
    %v220 = vlaneseq
    %v221 = vshrl.u32 %v220, 7
    %v222 = vsub.s32 0, %v221
    %v223 = vrot.slane %v219, %v222
    %v224 = vlaneseq
    %v225 = vshrl.u32 %v224, 7
    %v226 = vsub.s32 1, %v225
    %v227 = vrot.slane %v219, %v226
    %v228 = vlaneseq
    %v229 = vshrl.u32 %v228, 7
    %v230 = vsub.s32 2, %v229
    %v231 = vrot.slane %v219, %v230
    %v232 = vlaneseq
    %v233 = vshrl.u32 %v232, 7
    %v234 = vsub.s32 3, %v233
    %v235 = vrot.slane %v219, %v234
    %vm236 = vcmp.eq.s32.totalorder %v223, 1
    %vm237 = vcmp.eq.s32.totalorder %v227, 1
    %vm238 = vcmp.eq.s32.totalorder %v231, 1
    %vm239 = vcmp.eq.s32.totalorder %v235, 1
    %v240 = vsel %vm236, %v209, 0.0
    %v241 = vsel %vm237, %v208, 0.0
    %v242 = vsel %vm238, %v207, 0.0
    %v243 = vsel %vm239, %v206, 0.0
    %s244 = scalar_lea.vmem %s3, 8
    %v245 = vld [vmem:[%s244] sm:$0xff]
    %v247 = vsel %vm49, %v245, 0
    %249 = vmatprep.subr.mxu0 %v45
    %250 = vmatpush1.msra.mxu0 %v44
    %251 = vmatprep.subr.mxu0 0.0
    %252 = vmatpush1.msra.mxu0 0.0
    %253 = vmatprep.subr.mxu0 0.0
    %254 = vmatpush1.msra.mxu0 0.0
    %255 = vmatprep.subr.mxu0 0.0
    %256 = vmatpush1.msra.mxu0 0.0
    %257 = vmatprep.subr.mxu0 0.0
    %258 = vmatpush1.msra.mxu0 0.0
    %259 = vmatprep.subr.mxu0 0.0
    %260 = vmatpush1.msra.mxu0 0.0
    %261 = vmatprep.subr.mxu0 0.0
    %262 = vmatpush1.msra.mxu0 0.0
    %263 = vmatprep.subr.mxu0 0.0
    %264 = vmatpush1.msra.mxu0 0.0
    %265 = vmatprep.subr.mxu0 0.0
    %266 = vmatpush1.msra.mxu0 0.0
    %267 = vmatprep.subr.mxu0 0.0
    %268 = vmatpush1.msra.mxu0 0.0
    %269 = vmatprep.subr.mxu0 0.0
    %270 = vmatpush1.msra.mxu0 0.0
    %271 = vmatprep.subr.mxu0 0.0
    %272 = vmatpush1.msra.mxu0 0.0
    %273 = vmatprep.subr.mxu0 0.0
    %274 = vmatpush1.msra.mxu0 0.0
    %275 = vmatprep.subr.mxu0 0.0
    %276 = vmatpush1.msra.mxu0 0.0
    %277 = vmatprep.subr.mxu0 0.0
    %278 = vmatpush1.msra.mxu0 0.0
    %279 = vmatprep.subr.mxu0 0.0
    %280 = vmatpush1.msra.mxu0 0.0
    %281 = vmatprep.subr.mxu0 0.0
    %282 = vmatpush1.msra.mxu0 0.0
    %283 = vmatprep.subr.mxu0 0.0
    %284 = vmatpush1.msra.mxu0 0.0
    %285 = vmatprep.subr.mxu0 0.0
    %286 = vmatpush1.msra.mxu0 0.0
    %287 = vmatprep.subr.mxu0 0.0
    %288 = vmatpush1.msra.mxu0 0.0
    %289 = vmatprep.subr.mxu0 0.0
    %290 = vmatpush1.msra.mxu0 0.0
    %291 = vmatprep.subr.mxu0 0.0
    %292 = vmatpush1.msra.mxu0 0.0
    %293 = vmatprep.subr.mxu0 0.0
    %294 = vmatpush1.msra.mxu0 0.0
    %295 = vmatprep.subr.mxu0 0.0
    %296 = vmatpush1.msra.mxu0 0.0
    %297 = vmatprep.subr.mxu0 0.0
    %298 = vmatpush1.msra.mxu0 0.0
    %299 = vmatprep.subr.mxu0 0.0
    %300 = vmatpush1.msra.mxu0 0.0
    %301 = vmatprep.subr.mxu0 0.0
    %302 = vmatpush1.msra.mxu0 0.0
    %303 = vmatprep.subr.mxu0 0.0
    %304 = vmatpush1.msra.mxu0 0.0
    %305 = vmatprep.subr.mxu0 0.0
    %306 = vmatpush1.msra.mxu0 0.0
    %307 = vmatprep.subr.mxu0 0.0
    %308 = vmatpush1.msra.mxu0 0.0
    %309 = vmatprep.subr.mxu0 0.0
    %310 = vmatpush1.msra.mxu0 0.0
    %311 = vmatprep.subr.mxu0 0.0
    %312 = vmatpush1.msra.mxu0 0.0
    %313 = vmatprep.mubr.f32.mxu0 0.0
    %314 = vmatmul.mubr.f32.gmra.mrb[0].mxu0 %v247
    %v315 = vpop.f32.mrb[0].mxu0
    %v316 = vadd.f32 0.0, %v315
    %v317 = vpop.f32.mrb[0].mxu0
    %v318 = vadd.f32 0.0, %v317
    %319 = vdwg.mxu0
    %320 = vmatprep.subr.mxu0 %v47
    %321 = vmatpush1.msra.mxu0 %v46
    %322 = vmatprep.subr.mxu0 0.0
    %323 = vmatpush1.msra.mxu0 0.0
    %324 = vmatprep.subr.mxu0 0.0
    %325 = vmatpush1.msra.mxu0 0.0
    %326 = vmatprep.subr.mxu0 0.0
    %327 = vmatpush1.msra.mxu0 0.0
    %328 = vmatprep.subr.mxu0 0.0
    %329 = vmatpush1.msra.mxu0 0.0
    %330 = vmatprep.subr.mxu0 0.0
    %331 = vmatpush1.msra.mxu0 0.0
    %332 = vmatprep.subr.mxu0 0.0
    %333 = vmatpush1.msra.mxu0 0.0
    %334 = vmatprep.subr.mxu0 0.0
    %335 = vmatpush1.msra.mxu0 0.0
    %336 = vmatprep.subr.mxu0 0.0
    %337 = vmatpush1.msra.mxu0 0.0
    %338 = vmatprep.subr.mxu0 0.0
    %339 = vmatpush1.msra.mxu0 0.0
    %340 = vmatprep.subr.mxu0 0.0
    %341 = vmatpush1.msra.mxu0 0.0
    %342 = vmatprep.subr.mxu0 0.0
    %343 = vmatpush1.msra.mxu0 0.0
    %344 = vmatprep.subr.mxu0 0.0
    %345 = vmatpush1.msra.mxu0 0.0
    %346 = vmatprep.subr.mxu0 0.0
    %347 = vmatpush1.msra.mxu0 0.0
    %348 = vmatprep.subr.mxu0 0.0
    %349 = vmatpush1.msra.mxu0 0.0
    %350 = vmatprep.subr.mxu0 0.0
    %351 = vmatpush1.msra.mxu0 0.0
    %352 = vmatprep.subr.mxu0 0.0
    %353 = vmatpush1.msra.mxu0 0.0
    %354 = vmatprep.subr.mxu0 0.0
    %355 = vmatpush1.msra.mxu0 0.0
    %356 = vmatprep.subr.mxu0 0.0
    %357 = vmatpush1.msra.mxu0 0.0
    %358 = vmatprep.subr.mxu0 0.0
    %359 = vmatpush1.msra.mxu0 0.0
    %360 = vmatprep.subr.mxu0 0.0
    %361 = vmatpush1.msra.mxu0 0.0
    %362 = vmatprep.subr.mxu0 0.0
    %363 = vmatpush1.msra.mxu0 0.0
    %364 = vmatprep.subr.mxu0 0.0
    %365 = vmatpush1.msra.mxu0 0.0
    %366 = vmatprep.subr.mxu0 0.0
    %367 = vmatpush1.msra.mxu0 0.0
    %368 = vmatprep.subr.mxu0 0.0
    %369 = vmatpush1.msra.mxu0 0.0
    %370 = vmatprep.subr.mxu0 0.0
    %371 = vmatpush1.msra.mxu0 0.0
    %372 = vmatprep.subr.mxu0 0.0
    %373 = vmatpush1.msra.mxu0 0.0
    %374 = vmatprep.subr.mxu0 0.0
    %375 = vmatpush1.msra.mxu0 0.0
    %376 = vmatprep.subr.mxu0 0.0
    %377 = vmatpush1.msra.mxu0 0.0
    %378 = vmatprep.subr.mxu0 0.0
    %379 = vmatpush1.msra.mxu0 0.0
    %380 = vmatprep.subr.mxu0 0.0
    %381 = vmatpush1.msra.mxu0 0.0
    %382 = vmatprep.subr.mxu0 0.0
    %383 = vmatpush1.msra.mxu0 0.0
    %384 = vmatprep.mubr.f32.mxu0 0.0
    %385 = vmatmul.mubr.f32.gmra.mrb[0].mxu0 %v247
    %v386 = vpop.f32.mrb[0].mxu0
    %v387 = vadd.f32 0.0, %v386
    %v388 = vpop.f32.mrb[0].mxu0
    %v389 = vadd.f32 0.0, %v388
    %390 = vdwg.mxu0
    %391 = vrot.lane.b32.xlu0 %v316, 16
    %v392 = vpop.permute.xlu0 %391
    %393 = vrot.lane.b32.xlu0 %v318, 16
    %v394 = vpop.permute.xlu0 %393
    %395 = vrot.lane.b32.xlu0 %v387, 16
    %v396 = vpop.permute.xlu0 %395
    %397 = vrot.lane.b32.xlu0 %v389, 16
    %v398 = vpop.permute.xlu0 %397
    %vm399 = vcmp.lt.s32.totalorder %v204, 16
    %v400 = vsel %vm399, %v396, %v398
    %v401 = vsel %vm399, %v394, %v396
    %v402 = vsel %vm399, %v392, %v394
    %v403 = vsel %vm399, %v398, %v392
    %vm404 = vcmp.ge.s32.totalorder %v42, 0
    %vm405 = vcmp.lt.s32.totalorder %v42, 16
    %vm406 = vmand %vm404, %vm405
    %vm407 = vmand %vm406, %vm215
    %vm408 = vmand %vm407, %vm217
    %v409 = vsel %vm408, 1, 0
    %v410 = vlaneseq
    %v411 = vshrl.u32 %v410, 7
    %v412 = vsub.s32 0, %v411
    %v413 = vrot.slane %v409, %v412
    %v414 = vlaneseq
    %v415 = vshrl.u32 %v414, 7
    %v416 = vsub.s32 1, %v415
    %v417 = vrot.slane %v409, %v416
    %v418 = vlaneseq
    %v419 = vshrl.u32 %v418, 7
    %v420 = vsub.s32 2, %v419
    %v421 = vrot.slane %v409, %v420
    %v422 = vlaneseq
    %v423 = vshrl.u32 %v422, 7
    %v424 = vsub.s32 3, %v423
    %v425 = vrot.slane %v409, %v424
    %vm426 = vcmp.eq.s32.totalorder %v413, 1
    %vm427 = vcmp.eq.s32.totalorder %v417, 1
    %vm428 = vcmp.eq.s32.totalorder %v421, 1
    %vm429 = vcmp.eq.s32.totalorder %v425, 1
    %v430 = vsel %vm426, %v403, 0.0
    %v431 = vsel %vm427, %v402, 0.0
    %v432 = vsel %vm428, %v401, 0.0
    %v433 = vsel %vm429, %v400, 0.0
    %v434 = vadd.f32 %v240, %v430
    %v435 = vadd.f32 %v241, %v431
    %v436 = vadd.f32 %v242, %v432
    %v437 = vadd.f32 %v243, %v433
    %s438 = scalar_lea.vmem %s3, 16
    %v439 = vld [vmem:[%s438] sm:$0xff]
    %v441 = vsel %vm49, %v439, 0
    %443 = vmatprep.subr.mxu0 %v45
    %444 = vmatpush1.msra.mxu0 %v44
    %445 = vmatprep.subr.mxu0 0.0
    %446 = vmatpush1.msra.mxu0 0.0
    %447 = vmatprep.subr.mxu0 0.0
    %448 = vmatpush1.msra.mxu0 0.0
    %449 = vmatprep.subr.mxu0 0.0
    %450 = vmatpush1.msra.mxu0 0.0
    %451 = vmatprep.subr.mxu0 0.0
    %452 = vmatpush1.msra.mxu0 0.0
    %453 = vmatprep.subr.mxu0 0.0
    %454 = vmatpush1.msra.mxu0 0.0
    %455 = vmatprep.subr.mxu0 0.0
    %456 = vmatpush1.msra.mxu0 0.0
    %457 = vmatprep.subr.mxu0 0.0
    %458 = vmatpush1.msra.mxu0 0.0
    %459 = vmatprep.subr.mxu0 0.0
    %460 = vmatpush1.msra.mxu0 0.0
    %461 = vmatprep.subr.mxu0 0.0
    %462 = vmatpush1.msra.mxu0 0.0
    %463 = vmatprep.subr.mxu0 0.0
    %464 = vmatpush1.msra.mxu0 0.0
    %465 = vmatprep.subr.mxu0 0.0
    %466 = vmatpush1.msra.mxu0 0.0
    %467 = vmatprep.subr.mxu0 0.0
    %468 = vmatpush1.msra.mxu0 0.0
    %469 = vmatprep.subr.mxu0 0.0
    %470 = vmatpush1.msra.mxu0 0.0
    %471 = vmatprep.subr.mxu0 0.0
    %472 = vmatpush1.msra.mxu0 0.0
    %473 = vmatprep.subr.mxu0 0.0
    %474 = vmatpush1.msra.mxu0 0.0
    %475 = vmatprep.subr.mxu0 0.0
    %476 = vmatpush1.msra.mxu0 0.0
    %477 = vmatprep.subr.mxu0 0.0
    %478 = vmatpush1.msra.mxu0 0.0
    %479 = vmatprep.subr.mxu0 0.0
    %480 = vmatpush1.msra.mxu0 0.0
    %481 = vmatprep.subr.mxu0 0.0
    %482 = vmatpush1.msra.mxu0 0.0
    %483 = vmatprep.subr.mxu0 0.0
    %484 = vmatpush1.msra.mxu0 0.0
    %485 = vmatprep.subr.mxu0 0.0
    %486 = vmatpush1.msra.mxu0 0.0
    %487 = vmatprep.subr.mxu0 0.0
    %488 = vmatpush1.msra.mxu0 0.0
    %489 = vmatprep.subr.mxu0 0.0
    %490 = vmatpush1.msra.mxu0 0.0
    %491 = vmatprep.subr.mxu0 0.0
    %492 = vmatpush1.msra.mxu0 0.0
    %493 = vmatprep.subr.mxu0 0.0
    %494 = vmatpush1.msra.mxu0 0.0
    %495 = vmatprep.subr.mxu0 0.0
    %496 = vmatpush1.msra.mxu0 0.0
    %497 = vmatprep.subr.mxu0 0.0
    %498 = vmatpush1.msra.mxu0 0.0
    %499 = vmatprep.subr.mxu0 0.0
    %500 = vmatpush1.msra.mxu0 0.0
    %501 = vmatprep.subr.mxu0 0.0
    %502 = vmatpush1.msra.mxu0 0.0
    %503 = vmatprep.subr.mxu0 0.0
    %504 = vmatpush1.msra.mxu0 0.0
    %505 = vmatprep.subr.mxu0 0.0
    %506 = vmatpush1.msra.mxu0 0.0
    %507 = vmatprep.mubr.f32.mxu0 0.0
    %508 = vmatmul.mubr.f32.gmra.mrb[0].mxu0 %v441
    %v509 = vpop.f32.mrb[0].mxu0
    %v510 = vadd.f32 0.0, %v509
    %v511 = vpop.f32.mrb[0].mxu0
    %v512 = vadd.f32 0.0, %v511
    %513 = vdwg.mxu0
    %514 = vmatprep.subr.mxu0 %v47
    %515 = vmatpush1.msra.mxu0 %v46
    %516 = vmatprep.subr.mxu0 0.0
    %517 = vmatpush1.msra.mxu0 0.0
    %518 = vmatprep.subr.mxu0 0.0
    %519 = vmatpush1.msra.mxu0 0.0
    %520 = vmatprep.subr.mxu0 0.0
    %521 = vmatpush1.msra.mxu0 0.0
    %522 = vmatprep.subr.mxu0 0.0
    %523 = vmatpush1.msra.mxu0 0.0
    %524 = vmatprep.subr.mxu0 0.0
    %525 = vmatpush1.msra.mxu0 0.0
    %526 = vmatprep.subr.mxu0 0.0
    %527 = vmatpush1.msra.mxu0 0.0
    %528 = vmatprep.subr.mxu0 0.0
    %529 = vmatpush1.msra.mxu0 0.0
    %530 = vmatprep.subr.mxu0 0.0
    %531 = vmatpush1.msra.mxu0 0.0
    %532 = vmatprep.subr.mxu0 0.0
    %533 = vmatpush1.msra.mxu0 0.0
    %534 = vmatprep.subr.mxu0 0.0
    %535 = vmatpush1.msra.mxu0 0.0
    %536 = vmatprep.subr.mxu0 0.0
    %537 = vmatpush1.msra.mxu0 0.0
    %538 = vmatprep.subr.mxu0 0.0
    %539 = vmatpush1.msra.mxu0 0.0
    %540 = vmatprep.subr.mxu0 0.0
    %541 = vmatpush1.msra.mxu0 0.0
    %542 = vmatprep.subr.mxu0 0.0
    %543 = vmatpush1.msra.mxu0 0.0
    %544 = vmatprep.subr.mxu0 0.0
    %545 = vmatpush1.msra.mxu0 0.0
    %546 = vmatprep.subr.mxu0 0.0
    %547 = vmatpush1.msra.mxu0 0.0
    %548 = vmatprep.subr.mxu0 0.0
    %549 = vmatpush1.msra.mxu0 0.0
    %550 = vmatprep.subr.mxu0 0.0
    %551 = vmatpush1.msra.mxu0 0.0
    %552 = vmatprep.subr.mxu0 0.0
    %553 = vmatpush1.msra.mxu0 0.0
    %554 = vmatprep.subr.mxu0 0.0
    %555 = vmatpush1.msra.mxu0 0.0
    %556 = vmatprep.subr.mxu0 0.0
    %557 = vmatpush1.msra.mxu0 0.0
    %558 = vmatprep.subr.mxu0 0.0
    %559 = vmatpush1.msra.mxu0 0.0
    %560 = vmatprep.subr.mxu0 0.0
    %561 = vmatpush1.msra.mxu0 0.0
    %562 = vmatprep.subr.mxu0 0.0
    %563 = vmatpush1.msra.mxu0 0.0
    %564 = vmatprep.subr.mxu0 0.0
    %565 = vmatpush1.msra.mxu0 0.0
    %566 = vmatprep.subr.mxu0 0.0
    %567 = vmatpush1.msra.mxu0 0.0
    %568 = vmatprep.subr.mxu0 0.0
    %569 = vmatpush1.msra.mxu0 0.0
    %570 = vmatprep.subr.mxu0 0.0
    %571 = vmatpush1.msra.mxu0 0.0
    %572 = vmatprep.subr.mxu0 0.0
    %573 = vmatpush1.msra.mxu0 0.0
    %574 = vmatprep.subr.mxu0 0.0
    %575 = vmatpush1.msra.mxu0 0.0
    %576 = vmatprep.subr.mxu0 0.0
    %577 = vmatpush1.msra.mxu0 0.0
    %578 = vmatprep.mubr.f32.mxu0 0.0
    %579 = vmatmul.mubr.f32.gmra.mrb[0].mxu0 %v441
    %v580 = vpop.f32.mrb[0].mxu0
    %v581 = vadd.f32 0.0, %v580
    %v582 = vpop.f32.mrb[0].mxu0
    %v583 = vadd.f32 0.0, %v582
    %584 = vdwg.mxu0
    %585 = vrot.lane.b32.xlu0 %v510, 15
    %v586 = vpop.permute.xlu0 %585
    %587 = vrot.lane.b32.xlu0 %v512, 15
    %v588 = vpop.permute.xlu0 %587
    %589 = vrot.lane.b32.xlu0 %v581, 15
    %v590 = vpop.permute.xlu0 %589
    %591 = vrot.lane.b32.xlu0 %v583, 15
    %v592 = vpop.permute.xlu0 %591
    %vm593 = vcmp.lt.s32.totalorder %v204, 15
    %v594 = vsel %vm593, %v590, %v592
    %v595 = vsel %vm593, %v588, %v590
    %v596 = vsel %vm593, %v586, %v588
    %v597 = vsel %vm593, %v592, %v586
    %v598 = vadd.s32 %v42, 1
    %vm599 = vcmp.ge.s32.totalorder %v598, 0
    %vm600 = vcmp.lt.s32.totalorder %v598, 16
    %vm601 = vmand %vm599, %vm600
    %vm602 = vmand %vm601, %vm215
    %vm603 = vmand %vm602, %vm217
    %v604 = vsel %vm603, 1, 0
    %v605 = vlaneseq
    %v606 = vshrl.u32 %v605, 7
    %v607 = vsub.s32 0, %v606
    %v608 = vrot.slane %v604, %v607
    %v609 = vlaneseq
    %v610 = vshrl.u32 %v609, 7
    %v611 = vsub.s32 1, %v610
    %v612 = vrot.slane %v604, %v611
    %v613 = vlaneseq
    %v614 = vshrl.u32 %v613, 7
    %v615 = vsub.s32 2, %v614
    %v616 = vrot.slane %v604, %v615
    %v617 = vlaneseq
    %v618 = vshrl.u32 %v617, 7
    %v619 = vsub.s32 3, %v618
    %v620 = vrot.slane %v604, %v619
    %vm621 = vcmp.eq.s32.totalorder %v608, 1
    %vm622 = vcmp.eq.s32.totalorder %v612, 1
    %vm623 = vcmp.eq.s32.totalorder %v616, 1
    %vm624 = vcmp.eq.s32.totalorder %v620, 1
    %v625 = vsel %vm621, %v597, 0.0
    %v626 = vsel %vm622, %v596, 0.0
    %v627 = vsel %vm623, %v595, 0.0
    %v628 = vsel %vm624, %v594, 0.0
    %v629 = vadd.f32 %v434, %v625
    %v630 = vadd.f32 %v435, %v626
    %v631 = vadd.f32 %v436, %v627
    %v632 = vadd.f32 %v437, %v628
    %s633 = scalar_lea.vmem %s3, 24
    %v634 = vld [vmem:[%s633] sm:$0xff]
    %v636 = vsel %vm49, %v634, 0
    %638 = vmatprep.subr.mxu0 %v45
    %639 = vmatpush1.msra.mxu0 %v44
    %640 = vmatprep.subr.mxu0 0.0
    %641 = vmatpush1.msra.mxu0 0.0
    %642 = vmatprep.subr.mxu0 0.0
    %643 = vmatpush1.msra.mxu0 0.0
    %644 = vmatprep.subr.mxu0 0.0
    %645 = vmatpush1.msra.mxu0 0.0
    %646 = vmatprep.subr.mxu0 0.0
    %647 = vmatpush1.msra.mxu0 0.0
    %648 = vmatprep.subr.mxu0 0.0
    %649 = vmatpush1.msra.mxu0 0.0
    %650 = vmatprep.subr.mxu0 0.0
    %651 = vmatpush1.msra.mxu0 0.0
    %652 = vmatprep.subr.mxu0 0.0
    %653 = vmatpush1.msra.mxu0 0.0
    %654 = vmatprep.subr.mxu0 0.0
    %655 = vmatpush1.msra.mxu0 0.0
    %656 = vmatprep.subr.mxu0 0.0
    %657 = vmatpush1.msra.mxu0 0.0
    %658 = vmatprep.subr.mxu0 0.0
    %659 = vmatpush1.msra.mxu0 0.0
    %660 = vmatprep.subr.mxu0 0.0
    %661 = vmatpush1.msra.mxu0 0.0
    %662 = vmatprep.subr.mxu0 0.0
    %663 = vmatpush1.msra.mxu0 0.0
    %664 = vmatprep.subr.mxu0 0.0
    %665 = vmatpush1.msra.mxu0 0.0
    %666 = vmatprep.subr.mxu0 0.0
    %667 = vmatpush1.msra.mxu0 0.0
    %668 = vmatprep.subr.mxu0 0.0
    %669 = vmatpush1.msra.mxu0 0.0
    %670 = vmatprep.subr.mxu0 0.0
    %671 = vmatpush1.msra.mxu0 0.0
    %672 = vmatprep.subr.mxu0 0.0
    %673 = vmatpush1.msra.mxu0 0.0
    %674 = vmatprep.subr.mxu0 0.0
    %675 = vmatpush1.msra.mxu0 0.0
    %676 = vmatprep.subr.mxu0 0.0
    %677 = vmatpush1.msra.mxu0 0.0
    %678 = vmatprep.subr.mxu0 0.0
    %679 = vmatpush1.msra.mxu0 0.0
    %680 = vmatprep.subr.mxu0 0.0
    %681 = vmatpush1.msra.mxu0 0.0
    %682 = vmatprep.subr.mxu0 0.0
    %683 = vmatpush1.msra.mxu0 0.0
    %684 = vmatprep.subr.mxu0 0.0
    %685 = vmatpush1.msra.mxu0 0.0
    %686 = vmatprep.subr.mxu0 0.0
    %687 = vmatpush1.msra.mxu0 0.0
    %688 = vmatprep.subr.mxu0 0.0
    %689 = vmatpush1.msra.mxu0 0.0
    %690 = vmatprep.subr.mxu0 0.0
    %691 = vmatpush1.msra.mxu0 0.0
    %692 = vmatprep.subr.mxu0 0.0
    %693 = vmatpush1.msra.mxu0 0.0
    %694 = vmatprep.subr.mxu0 0.0
    %695 = vmatpush1.msra.mxu0 0.0
    %696 = vmatprep.subr.mxu0 0.0
    %697 = vmatpush1.msra.mxu0 0.0
    %698 = vmatprep.subr.mxu0 0.0
    %699 = vmatpush1.msra.mxu0 0.0
    %700 = vmatprep.subr.mxu0 0.0
    %701 = vmatpush1.msra.mxu0 0.0
    %702 = vmatprep.mubr.f32.mxu0 0.0
    %703 = vmatmul.mubr.f32.gmra.mrb[0].mxu0 %v636
    %v704 = vpop.f32.mrb[0].mxu0
    %v705 = vadd.f32 0.0, %v704
    %v706 = vpop.f32.mrb[0].mxu0
    %v707 = vadd.f32 0.0, %v706
    %708 = vdwg.mxu0
    %709 = vmatprep.subr.mxu0 %v47
    %710 = vmatpush1.msra.mxu0 %v46
    %711 = vmatprep.subr.mxu0 0.0
    %712 = vmatpush1.msra.mxu0 0.0
    %713 = vmatprep.subr.mxu0 0.0
    %714 = vmatpush1.msra.mxu0 0.0
    %715 = vmatprep.subr.mxu0 0.0
    %716 = vmatpush1.msra.mxu0 0.0
    %717 = vmatprep.subr.mxu0 0.0
    %718 = vmatpush1.msra.mxu0 0.0
    %719 = vmatprep.subr.mxu0 0.0
    %720 = vmatpush1.msra.mxu0 0.0
    %721 = vmatprep.subr.mxu0 0.0
    %722 = vmatpush1.msra.mxu0 0.0
    %723 = vmatprep.subr.mxu0 0.0
    %724 = vmatpush1.msra.mxu0 0.0
    %725 = vmatprep.subr.mxu0 0.0
    %726 = vmatpush1.msra.mxu0 0.0
    %727 = vmatprep.subr.mxu0 0.0
    %728 = vmatpush1.msra.mxu0 0.0
    %729 = vmatprep.subr.mxu0 0.0
    %730 = vmatpush1.msra.mxu0 0.0
    %731 = vmatprep.subr.mxu0 0.0
    %732 = vmatpush1.msra.mxu0 0.0
    %733 = vmatprep.subr.mxu0 0.0
    %734 = vmatpush1.msra.mxu0 0.0
    %735 = vmatprep.subr.mxu0 0.0
    %736 = vmatpush1.msra.mxu0 0.0
    %737 = vmatprep.subr.mxu0 0.0
    %738 = vmatpush1.msra.mxu0 0.0
    %739 = vmatprep.subr.mxu0 0.0
    %740 = vmatpush1.msra.mxu0 0.0
    %741 = vmatprep.subr.mxu0 0.0
    %742 = vmatpush1.msra.mxu0 0.0
    %743 = vmatprep.subr.mxu0 0.0
    %744 = vmatpush1.msra.mxu0 0.0
    %745 = vmatprep.subr.mxu0 0.0
    %746 = vmatpush1.msra.mxu0 0.0
    %747 = vmatprep.subr.mxu0 0.0
    %748 = vmatpush1.msra.mxu0 0.0
    %749 = vmatprep.subr.mxu0 0.0
    %750 = vmatpush1.msra.mxu0 0.0
    %751 = vmatprep.subr.mxu0 0.0
    %752 = vmatpush1.msra.mxu0 0.0
    %753 = vmatprep.subr.mxu0 0.0
    %754 = vmatpush1.msra.mxu0 0.0
    %755 = vmatprep.subr.mxu0 0.0
    %756 = vmatpush1.msra.mxu0 0.0
    %757 = vmatprep.subr.mxu0 0.0
    %758 = vmatpush1.msra.mxu0 0.0
    %759 = vmatprep.subr.mxu0 0.0
    %760 = vmatpush1.msra.mxu0 0.0
    %761 = vmatprep.subr.mxu0 0.0
    %762 = vmatpush1.msra.mxu0 0.0
    %763 = vmatprep.subr.mxu0 0.0
    %764 = vmatpush1.msra.mxu0 0.0
    %765 = vmatprep.subr.mxu0 0.0
    %766 = vmatpush1.msra.mxu0 0.0
    %767 = vmatprep.subr.mxu0 0.0
    %768 = vmatpush1.msra.mxu0 0.0
    %769 = vmatprep.subr.mxu0 0.0
    %770 = vmatpush1.msra.mxu0 0.0
    %771 = vmatprep.subr.mxu0 0.0
    %772 = vmatpush1.msra.mxu0 0.0
    %773 = vmatprep.mubr.f32.mxu0 0.0
    %774 = vmatmul.mubr.f32.gmra.mrb[0].mxu0 %v636
    %v775 = vpop.f32.mrb[0].mxu0
    %v776 = vadd.f32 0.0, %v775
    %v777 = vpop.f32.mrb[0].mxu0
    %v778 = vadd.f32 0.0, %v777
    %779 = vdwg.mxu0
    %780 = vrot.lane.b32.xlu0 %v705, 1
    %v781 = vpop.permute.xlu0 %780
    %782 = vrot.lane.b32.xlu0 %v707, 1
    %v783 = vpop.permute.xlu0 %782
    %784 = vrot.lane.b32.xlu0 %v776, 1
    %v785 = vpop.permute.xlu0 %784
    %786 = vrot.lane.b32.xlu0 %v778, 1
    %v787 = vpop.permute.xlu0 %786
    %vm788 = vcmp.lt.s32.totalorder %v204, 1
    %v789 = vsel %vm788, %v785, %v787
    %v790 = vsel %vm788, %v783, %v785
    %v791 = vsel %vm788, %v781, %v783
    %v792 = vsel %vm788, %v787, %v781
    %vm793 = vcmp.ge.s32.totalorder %v43, 0
    %vm794 = vmand %vm213, %vm793
    %vm795 = vcmp.lt.s32.totalorder %v43, 16
    %vm796 = vmand %vm794, %vm795
    %v797 = vsel %vm796, 1, 0
    %v798 = vlaneseq
    %v799 = vshrl.u32 %v798, 7
    %v800 = vsub.s32 0, %v799
    %v801 = vrot.slane %v797, %v800
    %v802 = vlaneseq
    %v803 = vshrl.u32 %v802, 7
    %v804 = vsub.s32 1, %v803
    %v805 = vrot.slane %v797, %v804
    %v806 = vlaneseq
    %v807 = vshrl.u32 %v806, 7
    %v808 = vsub.s32 2, %v807
    %v809 = vrot.slane %v797, %v808
    %v810 = vlaneseq
    %v811 = vshrl.u32 %v810, 7
    %v812 = vsub.s32 3, %v811
    %v813 = vrot.slane %v797, %v812
    %vm814 = vcmp.eq.s32.totalorder %v801, 1
    %vm815 = vcmp.eq.s32.totalorder %v805, 1
    %vm816 = vcmp.eq.s32.totalorder %v809, 1
    %vm817 = vcmp.eq.s32.totalorder %v813, 1
    %v818 = vsel %vm814, %v792, 0.0
    %v819 = vsel %vm815, %v791, 0.0
    %v820 = vsel %vm816, %v790, 0.0
    %v821 = vsel %vm817, %v789, 0.0
    %v822 = vadd.f32 %v629, %v818
    %v823 = vadd.f32 %v630, %v819
    %v824 = vadd.f32 %v631, %v820
    %v825 = vadd.f32 %v632, %v821
    %s826 = scalar_lea.vmem %s3, 32
    %v827 = vld [vmem:[%s826] sm:$0xff]
    %v829 = vsel %vm49, %v827, 0
    %831 = vmatprep.subr.mxu0 %v45
    %832 = vmatpush1.msra.mxu0 %v44
    %833 = vmatprep.subr.mxu0 0.0
    %834 = vmatpush1.msra.mxu0 0.0
    %835 = vmatprep.subr.mxu0 0.0
    %836 = vmatpush1.msra.mxu0 0.0
    %837 = vmatprep.subr.mxu0 0.0
    %838 = vmatpush1.msra.mxu0 0.0
    %839 = vmatprep.subr.mxu0 0.0
    %840 = vmatpush1.msra.mxu0 0.0
    %841 = vmatprep.subr.mxu0 0.0
    %842 = vmatpush1.msra.mxu0 0.0
    %843 = vmatprep.subr.mxu0 0.0
    %844 = vmatpush1.msra.mxu0 0.0
    %845 = vmatprep.subr.mxu0 0.0
    %846 = vmatpush1.msra.mxu0 0.0
    %847 = vmatprep.subr.mxu0 0.0
    %848 = vmatpush1.msra.mxu0 0.0
    %849 = vmatprep.subr.mxu0 0.0
    %850 = vmatpush1.msra.mxu0 0.0
    %851 = vmatprep.subr.mxu0 0.0
    %852 = vmatpush1.msra.mxu0 0.0
    %853 = vmatprep.subr.mxu0 0.0
    %854 = vmatpush1.msra.mxu0 0.0
    %855 = vmatprep.subr.mxu0 0.0
    %856 = vmatpush1.msra.mxu0 0.0
    %857 = vmatprep.subr.mxu0 0.0
    %858 = vmatpush1.msra.mxu0 0.0
    %859 = vmatprep.subr.mxu0 0.0
    %860 = vmatpush1.msra.mxu0 0.0
    %861 = vmatprep.subr.mxu0 0.0
    %862 = vmatpush1.msra.mxu0 0.0
    %863 = vmatprep.subr.mxu0 0.0
    %864 = vmatpush1.msra.mxu0 0.0
    %865 = vmatprep.subr.mxu0 0.0
    %866 = vmatpush1.msra.mxu0 0.0
    %867 = vmatprep.subr.mxu0 0.0
    %868 = vmatpush1.msra.mxu0 0.0
    %869 = vmatprep.subr.mxu0 0.0
    %870 = vmatpush1.msra.mxu0 0.0
    %871 = vmatprep.subr.mxu0 0.0
    %872 = vmatpush1.msra.mxu0 0.0
    %873 = vmatprep.subr.mxu0 0.0
    %874 = vmatpush1.msra.mxu0 0.0
    %875 = vmatprep.subr.mxu0 0.0
    %876 = vmatpush1.msra.mxu0 0.0
    %877 = vmatprep.subr.mxu0 0.0
    %878 = vmatpush1.msra.mxu0 0.0
    %879 = vmatprep.subr.mxu0 0.0
    %880 = vmatpush1.msra.mxu0 0.0
    %881 = vmatprep.subr.mxu0 0.0
    %882 = vmatpush1.msra.mxu0 0.0
    %883 = vmatprep.subr.mxu0 0.0
    %884 = vmatpush1.msra.mxu0 0.0
    %885 = vmatprep.subr.mxu0 0.0
    %886 = vmatpush1.msra.mxu0 0.0
    %887 = vmatprep.subr.mxu0 0.0
    %888 = vmatpush1.msra.mxu0 0.0
    %889 = vmatprep.subr.mxu0 0.0
    %890 = vmatpush1.msra.mxu0 0.0
    %891 = vmatprep.subr.mxu0 0.0
    %892 = vmatpush1.msra.mxu0 0.0
    %893 = vmatprep.subr.mxu0 0.0
    %894 = vmatpush1.msra.mxu0 0.0
    %895 = vmatprep.mubr.f32.mxu0 0.0
    %896 = vmatmul.mubr.f32.gmra.mrb[0].mxu0 %v829
    %v897 = vpop.f32.mrb[0].mxu0
    %v898 = vadd.f32 0.0, %v897
    %v899 = vpop.f32.mrb[0].mxu0
    %v900 = vadd.f32 0.0, %v899
    %901 = vdwg.mxu0
    %902 = vmatprep.subr.mxu0 %v47
    %903 = vmatpush1.msra.mxu0 %v46
    %904 = vmatprep.subr.mxu0 0.0
    %905 = vmatpush1.msra.mxu0 0.0
    %906 = vmatprep.subr.mxu0 0.0
    %907 = vmatpush1.msra.mxu0 0.0
    %908 = vmatprep.subr.mxu0 0.0
    %909 = vmatpush1.msra.mxu0 0.0
    %910 = vmatprep.subr.mxu0 0.0
    %911 = vmatpush1.msra.mxu0 0.0
    %912 = vmatprep.subr.mxu0 0.0
    %913 = vmatpush1.msra.mxu0 0.0
    %914 = vmatprep.subr.mxu0 0.0
    %915 = vmatpush1.msra.mxu0 0.0
    %916 = vmatprep.subr.mxu0 0.0
    %917 = vmatpush1.msra.mxu0 0.0
    %918 = vmatprep.subr.mxu0 0.0
    %919 = vmatpush1.msra.mxu0 0.0
    %920 = vmatprep.subr.mxu0 0.0
    %921 = vmatpush1.msra.mxu0 0.0
    %922 = vmatprep.subr.mxu0 0.0
    %923 = vmatpush1.msra.mxu0 0.0
    %924 = vmatprep.subr.mxu0 0.0
    %925 = vmatpush1.msra.mxu0 0.0
    %926 = vmatprep.subr.mxu0 0.0
    %927 = vmatpush1.msra.mxu0 0.0
    %928 = vmatprep.subr.mxu0 0.0
    %929 = vmatpush1.msra.mxu0 0.0
    %930 = vmatprep.subr.mxu0 0.0
    %931 = vmatpush1.msra.mxu0 0.0
    %932 = vmatprep.subr.mxu0 0.0
    %933 = vmatpush1.msra.mxu0 0.0
    %934 = vmatprep.subr.mxu0 0.0
    %935 = vmatpush1.msra.mxu0 0.0
    %936 = vmatprep.subr.mxu0 0.0
    %937 = vmatpush1.msra.mxu0 0.0
    %938 = vmatprep.subr.mxu0 0.0
    %939 = vmatpush1.msra.mxu0 0.0
    %940 = vmatprep.subr.mxu0 0.0
    %941 = vmatpush1.msra.mxu0 0.0
    %942 = vmatprep.subr.mxu0 0.0
    %943 = vmatpush1.msra.mxu0 0.0
    %944 = vmatprep.subr.mxu0 0.0
    %945 = vmatpush1.msra.mxu0 0.0
    %946 = vmatprep.subr.mxu0 0.0
    %947 = vmatpush1.msra.mxu0 0.0
    %948 = vmatprep.subr.mxu0 0.0
    %949 = vmatpush1.msra.mxu0 0.0
    %950 = vmatprep.subr.mxu0 0.0
    %951 = vmatpush1.msra.mxu0 0.0
    %952 = vmatprep.subr.mxu0 0.0
    %953 = vmatpush1.msra.mxu0 0.0
    %954 = vmatprep.subr.mxu0 0.0
    %955 = vmatpush1.msra.mxu0 0.0
    %956 = vmatprep.subr.mxu0 0.0
    %957 = vmatpush1.msra.mxu0 0.0
    %958 = vmatprep.subr.mxu0 0.0
    %959 = vmatpush1.msra.mxu0 0.0
    %960 = vmatprep.subr.mxu0 0.0
    %961 = vmatpush1.msra.mxu0 0.0
    %962 = vmatprep.subr.mxu0 0.0
    %963 = vmatpush1.msra.mxu0 0.0
    %964 = vmatprep.subr.mxu0 0.0
    %965 = vmatpush1.msra.mxu0 0.0
    %966 = vmatprep.mubr.f32.mxu0 0.0
    %967 = vmatmul.mubr.f32.gmra.mrb[0].mxu0 %v829
    %v968 = vpop.f32.mrb[0].mxu0
    %v969 = vadd.f32 0.0, %v968
    %v970 = vpop.f32.mrb[0].mxu0
    %v971 = vadd.f32 0.0, %v970
    %972 = vdwg.mxu0
    %v973 = vadd.f32 %v822, %v898
    %v974 = vadd.f32 %v823, %v900
    %v975 = vadd.f32 %v824, %v969
    %v976 = vadd.f32 %v825, %v971
    %s977 = scalar_lea.vmem %s3, 40
    %v978 = vld [vmem:[%s977] sm:$0xff]
    %v980 = vsel %vm49, %v978, 0
    %982 = vmatprep.subr.mxu0 %v45
    %983 = vmatpush1.msra.mxu0 %v44
    %984 = vmatprep.subr.mxu0 0.0
    %985 = vmatpush1.msra.mxu0 0.0
    %986 = vmatprep.subr.mxu0 0.0
    %987 = vmatpush1.msra.mxu0 0.0
    %988 = vmatprep.subr.mxu0 0.0
    %989 = vmatpush1.msra.mxu0 0.0
    %990 = vmatprep.subr.mxu0 0.0
    %991 = vmatpush1.msra.mxu0 0.0
    %992 = vmatprep.subr.mxu0 0.0
    %993 = vmatpush1.msra.mxu0 0.0
    %994 = vmatprep.subr.mxu0 0.0
    %995 = vmatpush1.msra.mxu0 0.0
    %996 = vmatprep.subr.mxu0 0.0
    %997 = vmatpush1.msra.mxu0 0.0
    %998 = vmatprep.subr.mxu0 0.0
    %999 = vmatpush1.msra.mxu0 0.0
    %1000 = vmatprep.subr.mxu0 0.0
    %1001 = vmatpush1.msra.mxu0 0.0
    %1002 = vmatprep.subr.mxu0 0.0
    %1003 = vmatpush1.msra.mxu0 0.0
    %1004 = vmatprep.subr.mxu0 0.0
    %1005 = vmatpush1.msra.mxu0 0.0
    %1006 = vmatprep.subr.mxu0 0.0
    %1007 = vmatpush1.msra.mxu0 0.0
    %1008 = vmatprep.subr.mxu0 0.0
    %1009 = vmatpush1.msra.mxu0 0.0
    %1010 = vmatprep.subr.mxu0 0.0
    %1011 = vmatpush1.msra.mxu0 0.0
    %1012 = vmatprep.subr.mxu0 0.0
    %1013 = vmatpush1.msra.mxu0 0.0
    %1014 = vmatprep.subr.mxu0 0.0
    %1015 = vmatpush1.msra.mxu0 0.0
    %1016 = vmatprep.subr.mxu0 0.0
    %1017 = vmatpush1.msra.mxu0 0.0
    %1018 = vmatprep.subr.mxu0 0.0
    %1019 = vmatpush1.msra.mxu0 0.0
    %1020 = vmatprep.subr.mxu0 0.0
    %1021 = vmatpush1.msra.mxu0 0.0
    %1022 = vmatprep.subr.mxu0 0.0
    %1023 = vmatpush1.msra.mxu0 0.0
    %1024 = vmatprep.subr.mxu0 0.0
    %1025 = vmatpush1.msra.mxu0 0.0
    %1026 = vmatprep.subr.mxu0 0.0
    %1027 = vmatpush1.msra.mxu0 0.0
    %1028 = vmatprep.subr.mxu0 0.0
    %1029 = vmatpush1.msra.mxu0 0.0
    %1030 = vmatprep.subr.mxu0 0.0
    %1031 = vmatpush1.msra.mxu0 0.0
    %1032 = vmatprep.subr.mxu0 0.0
    %1033 = vmatpush1.msra.mxu0 0.0
    %1034 = vmatprep.subr.mxu0 0.0
    %1035 = vmatpush1.msra.mxu0 0.0
    %1036 = vmatprep.subr.mxu0 0.0
    %1037 = vmatpush1.msra.mxu0 0.0
    %1038 = vmatprep.subr.mxu0 0.0
    %1039 = vmatpush1.msra.mxu0 0.0
    %1040 = vmatprep.subr.mxu0 0.0
    %1041 = vmatpush1.msra.mxu0 0.0
    %1042 = vmatprep.subr.mxu0 0.0
    %1043 = vmatpush1.msra.mxu0 0.0
    %1044 = vmatprep.subr.mxu0 0.0
    %1045 = vmatpush1.msra.mxu0 0.0
    %1046 = vmatprep.mubr.f32.mxu0 0.0
    %1047 = vmatmul.mubr.f32.gmra.mrb[0].mxu0 %v980
    %v1048 = vpop.f32.mrb[0].mxu0
    %v1049 = vadd.f32 0.0, %v1048
    %v1050 = vpop.f32.mrb[0].mxu0
    %v1051 = vadd.f32 0.0, %v1050
    %1052 = vdwg.mxu0
    %1053 = vmatprep.subr.mxu0 %v47
    %1054 = vmatpush1.msra.mxu0 %v46
    %1055 = vmatprep.subr.mxu0 0.0
    %1056 = vmatpush1.msra.mxu0 0.0
    %1057 = vmatprep.subr.mxu0 0.0
    %1058 = vmatpush1.msra.mxu0 0.0
    %1059 = vmatprep.subr.mxu0 0.0
    %1060 = vmatpush1.msra.mxu0 0.0
    %1061 = vmatprep.subr.mxu0 0.0
    %1062 = vmatpush1.msra.mxu0 0.0
    %1063 = vmatprep.subr.mxu0 0.0
    %1064 = vmatpush1.msra.mxu0 0.0
    %1065 = vmatprep.subr.mxu0 0.0
    %1066 = vmatpush1.msra.mxu0 0.0
    %1067 = vmatprep.subr.mxu0 0.0
    %1068 = vmatpush1.msra.mxu0 0.0
    %1069 = vmatprep.subr.mxu0 0.0
    %1070 = vmatpush1.msra.mxu0 0.0
    %1071 = vmatprep.subr.mxu0 0.0
    %1072 = vmatpush1.msra.mxu0 0.0
    %1073 = vmatprep.subr.mxu0 0.0
    %1074 = vmatpush1.msra.mxu0 0.0
    %1075 = vmatprep.subr.mxu0 0.0
    %1076 = vmatpush1.msra.mxu0 0.0
    %1077 = vmatprep.subr.mxu0 0.0
    %1078 = vmatpush1.msra.mxu0 0.0
    %1079 = vmatprep.subr.mxu0 0.0
    %1080 = vmatpush1.msra.mxu0 0.0
    %1081 = vmatprep.subr.mxu0 0.0
    %1082 = vmatpush1.msra.mxu0 0.0
    %1083 = vmatprep.subr.mxu0 0.0
    %1084 = vmatpush1.msra.mxu0 0.0
    %1085 = vmatprep.subr.mxu0 0.0
    %1086 = vmatpush1.msra.mxu0 0.0
    %1087 = vmatprep.subr.mxu0 0.0
    %1088 = vmatpush1.msra.mxu0 0.0
    %1089 = vmatprep.subr.mxu0 0.0
    %1090 = vmatpush1.msra.mxu0 0.0
    %1091 = vmatprep.subr.mxu0 0.0
    %1092 = vmatpush1.msra.mxu0 0.0
    %1093 = vmatprep.subr.mxu0 0.0
    %1094 = vmatpush1.msra.mxu0 0.0
    %1095 = vmatprep.subr.mxu0 0.0
    %1096 = vmatpush1.msra.mxu0 0.0
    %1097 = vmatprep.subr.mxu0 0.0
    %1098 = vmatpush1.msra.mxu0 0.0
    %1099 = vmatprep.subr.mxu0 0.0
    %1100 = vmatpush1.msra.mxu0 0.0
    %1101 = vmatprep.subr.mxu0 0.0
    %1102 = vmatpush1.msra.mxu0 0.0
    %1103 = vmatprep.subr.mxu0 0.0
    %1104 = vmatpush1.msra.mxu0 0.0
    %1105 = vmatprep.subr.mxu0 0.0
    %1106 = vmatpush1.msra.mxu0 0.0
    %1107 = vmatprep.subr.mxu0 0.0
    %1108 = vmatpush1.msra.mxu0 0.0
    %1109 = vmatprep.subr.mxu0 0.0
    %1110 = vmatpush1.msra.mxu0 0.0
    %1111 = vmatprep.subr.mxu0 0.0
    %1112 = vmatpush1.msra.mxu0 0.0
    %1113 = vmatprep.subr.mxu0 0.0
    %1114 = vmatpush1.msra.mxu0 0.0
    %1115 = vmatprep.subr.mxu0 0.0
    %1116 = vmatpush1.msra.mxu0 0.0
    %1117 = vmatprep.mubr.f32.mxu0 0.0
    %1118 = vmatmul.mubr.f32.gmra.mrb[0].mxu0 %v980
    %v1119 = vpop.f32.mrb[0].mxu0
    %v1120 = vadd.f32 0.0, %v1119
    %v1121 = vpop.f32.mrb[0].mxu0
    %v1122 = vadd.f32 0.0, %v1121
    %1123 = vdwg.mxu0
    %1124 = vrot.lane.b32.xlu0 %v1049, 127
    %v1125 = vpop.permute.xlu0 %1124
    %1126 = vrot.lane.b32.xlu0 %v1051, 127
    %v1127 = vpop.permute.xlu0 %1126
    %1128 = vrot.lane.b32.xlu0 %v1120, 127
    %v1129 = vpop.permute.xlu0 %1128
    %1130 = vrot.lane.b32.xlu0 %v1122, 127
    %v1131 = vpop.permute.xlu0 %1130
    %vm1132 = vcmp.lt.s32.totalorder %v204, 127
    %v1133 = vsel %vm1132, %v1129, %v1131
    %v1134 = vsel %vm1132, %v1127, %v1129
    %v1135 = vsel %vm1132, %v1125, %v1127
    %v1136 = vsel %vm1132, %v1131, %v1125
    %vm1137 = vmand %vm601, %vm793
    %vm1138 = vmand %vm1137, %vm795
    %v1139 = vsel %vm1138, 1, 0
    %v1140 = vlaneseq
    %v1141 = vshrl.u32 %v1140, 7
    %v1142 = vsub.s32 0, %v1141
    %v1143 = vrot.slane %v1139, %v1142
    %v1144 = vlaneseq
    %v1145 = vshrl.u32 %v1144, 7
    %v1146 = vsub.s32 1, %v1145
    %v1147 = vrot.slane %v1139, %v1146
    %v1148 = vlaneseq
    %v1149 = vshrl.u32 %v1148, 7
    %v1150 = vsub.s32 2, %v1149
    %v1151 = vrot.slane %v1139, %v1150
    %v1152 = vlaneseq
    %v1153 = vshrl.u32 %v1152, 7
    %v1154 = vsub.s32 3, %v1153
    %v1155 = vrot.slane %v1139, %v1154
    %vm1156 = vcmp.eq.s32.totalorder %v1143, 1
    %vm1157 = vcmp.eq.s32.totalorder %v1147, 1
    %vm1158 = vcmp.eq.s32.totalorder %v1151, 1
    %vm1159 = vcmp.eq.s32.totalorder %v1155, 1
    %v1160 = vsel %vm1156, %v1135, 0.0
    %v1161 = vsel %vm1157, %v1134, 0.0
    %v1162 = vsel %vm1158, %v1133, 0.0
    %v1163 = vsel %vm1159, %v1136, 0.0
    %v1164 = vadd.f32 %v973, %v1160
    %v1165 = vadd.f32 %v974, %v1161
    %v1166 = vadd.f32 %v975, %v1162
    %v1167 = vadd.f32 %v976, %v1163
    %s1168 = scalar_lea.vmem %s3, 48
    %v1169 = vld [vmem:[%s1168] sm:$0xff]
    %v1171 = vsel %vm49, %v1169, 0
    %1173 = vmatprep.subr.mxu0 %v45
    %1174 = vmatpush1.msra.mxu0 %v44
    %1175 = vmatprep.subr.mxu0 0.0
    %1176 = vmatpush1.msra.mxu0 0.0
    %1177 = vmatprep.subr.mxu0 0.0
    %1178 = vmatpush1.msra.mxu0 0.0
    %1179 = vmatprep.subr.mxu0 0.0
    %1180 = vmatpush1.msra.mxu0 0.0
    %1181 = vmatprep.subr.mxu0 0.0
    %1182 = vmatpush1.msra.mxu0 0.0
    %1183 = vmatprep.subr.mxu0 0.0
    %1184 = vmatpush1.msra.mxu0 0.0
    %1185 = vmatprep.subr.mxu0 0.0
    %1186 = vmatpush1.msra.mxu0 0.0
    %1187 = vmatprep.subr.mxu0 0.0
    %1188 = vmatpush1.msra.mxu0 0.0
    %1189 = vmatprep.subr.mxu0 0.0
    %1190 = vmatpush1.msra.mxu0 0.0
    %1191 = vmatprep.subr.mxu0 0.0
    %1192 = vmatpush1.msra.mxu0 0.0
    %1193 = vmatprep.subr.mxu0 0.0
    %1194 = vmatpush1.msra.mxu0 0.0
    %1195 = vmatprep.subr.mxu0 0.0
    %1196 = vmatpush1.msra.mxu0 0.0
    %1197 = vmatprep.subr.mxu0 0.0
    %1198 = vmatpush1.msra.mxu0 0.0
    %1199 = vmatprep.subr.mxu0 0.0
    %1200 = vmatpush1.msra.mxu0 0.0
    %1201 = vmatprep.subr.mxu0 0.0
    %1202 = vmatpush1.msra.mxu0 0.0
    %1203 = vmatprep.subr.mxu0 0.0
    %1204 = vmatpush1.msra.mxu0 0.0
    %1205 = vmatprep.subr.mxu0 0.0
    %1206 = vmatpush1.msra.mxu0 0.0
    %1207 = vmatprep.subr.mxu0 0.0
    %1208 = vmatpush1.msra.mxu0 0.0
    %1209 = vmatprep.subr.mxu0 0.0
    %1210 = vmatpush1.msra.mxu0 0.0
    %1211 = vmatprep.subr.mxu0 0.0
    %1212 = vmatpush1.msra.mxu0 0.0
    %1213 = vmatprep.subr.mxu0 0.0
    %1214 = vmatpush1.msra.mxu0 0.0
    %1215 = vmatprep.subr.mxu0 0.0
    %1216 = vmatpush1.msra.mxu0 0.0
    %1217 = vmatprep.subr.mxu0 0.0
    %1218 = vmatpush1.msra.mxu0 0.0
    %1219 = vmatprep.subr.mxu0 0.0
    %1220 = vmatpush1.msra.mxu0 0.0
    %1221 = vmatprep.subr.mxu0 0.0
    %1222 = vmatpush1.msra.mxu0 0.0
    %1223 = vmatprep.subr.mxu0 0.0
    %1224 = vmatpush1.msra.mxu0 0.0
    %1225 = vmatprep.subr.mxu0 0.0
    %1226 = vmatpush1.msra.mxu0 0.0
    %1227 = vmatprep.subr.mxu0 0.0
    %1228 = vmatpush1.msra.mxu0 0.0
    %1229 = vmatprep.subr.mxu0 0.0
    %1230 = vmatpush1.msra.mxu0 0.0
    %1231 = vmatprep.subr.mxu0 0.0
    %1232 = vmatpush1.msra.mxu0 0.0
    %1233 = vmatprep.subr.mxu0 0.0
    %1234 = vmatpush1.msra.mxu0 0.0
    %1235 = vmatprep.subr.mxu0 0.0
    %1236 = vmatpush1.msra.mxu0 0.0
    %1237 = vmatprep.mubr.f32.mxu0 0.0
    %1238 = vmatmul.mubr.f32.gmra.mrb[0].mxu0 %v1171
    %v1239 = vpop.f32.mrb[0].mxu0
    %v1240 = vadd.f32 0.0, %v1239
    %v1241 = vpop.f32.mrb[0].mxu0
    %v1242 = vadd.f32 0.0, %v1241
    %1243 = vdwg.mxu0
    %1244 = vmatprep.subr.mxu0 %v47
    %1245 = vmatpush1.msra.mxu0 %v46
    %1246 = vmatprep.subr.mxu0 0.0
    %1247 = vmatpush1.msra.mxu0 0.0
    %1248 = vmatprep.subr.mxu0 0.0
    %1249 = vmatpush1.msra.mxu0 0.0
    %1250 = vmatprep.subr.mxu0 0.0
    %1251 = vmatpush1.msra.mxu0 0.0
    %1252 = vmatprep.subr.mxu0 0.0
    %1253 = vmatpush1.msra.mxu0 0.0
    %1254 = vmatprep.subr.mxu0 0.0
    %1255 = vmatpush1.msra.mxu0 0.0
    %1256 = vmatprep.subr.mxu0 0.0
    %1257 = vmatpush1.msra.mxu0 0.0
    %1258 = vmatprep.subr.mxu0 0.0
    %1259 = vmatpush1.msra.mxu0 0.0
    %1260 = vmatprep.subr.mxu0 0.0
    %1261 = vmatpush1.msra.mxu0 0.0
    %1262 = vmatprep.subr.mxu0 0.0
    %1263 = vmatpush1.msra.mxu0 0.0
    %1264 = vmatprep.subr.mxu0 0.0
    %1265 = vmatpush1.msra.mxu0 0.0
    %1266 = vmatprep.subr.mxu0 0.0
    %1267 = vmatpush1.msra.mxu0 0.0
    %1268 = vmatprep.subr.mxu0 0.0
    %1269 = vmatpush1.msra.mxu0 0.0
    %1270 = vmatprep.subr.mxu0 0.0
    %1271 = vmatpush1.msra.mxu0 0.0
    %1272 = vmatprep.subr.mxu0 0.0
    %1273 = vmatpush1.msra.mxu0 0.0
    %1274 = vmatprep.subr.mxu0 0.0
    %1275 = vmatpush1.msra.mxu0 0.0
    %1276 = vmatprep.subr.mxu0 0.0
    %1277 = vmatpush1.msra.mxu0 0.0
    %1278 = vmatprep.subr.mxu0 0.0
    %1279 = vmatpush1.msra.mxu0 0.0
    %1280 = vmatprep.subr.mxu0 0.0
    %1281 = vmatpush1.msra.mxu0 0.0
    %1282 = vmatprep.subr.mxu0 0.0
    %1283 = vmatpush1.msra.mxu0 0.0
    %1284 = vmatprep.subr.mxu0 0.0
    %1285 = vmatpush1.msra.mxu0 0.0
    %1286 = vmatprep.subr.mxu0 0.0
    %1287 = vmatpush1.msra.mxu0 0.0
    %1288 = vmatprep.subr.mxu0 0.0
    %1289 = vmatpush1.msra.mxu0 0.0
    %1290 = vmatprep.subr.mxu0 0.0
    %1291 = vmatpush1.msra.mxu0 0.0
    %1292 = vmatprep.subr.mxu0 0.0
    %1293 = vmatpush1.msra.mxu0 0.0
    %1294 = vmatprep.subr.mxu0 0.0
    %1295 = vmatpush1.msra.mxu0 0.0
    %1296 = vmatprep.subr.mxu0 0.0
    %1297 = vmatpush1.msra.mxu0 0.0
    %1298 = vmatprep.subr.mxu0 0.0
    %1299 = vmatpush1.msra.mxu0 0.0
    %1300 = vmatprep.subr.mxu0 0.0
    %1301 = vmatpush1.msra.mxu0 0.0
    %1302 = vmatprep.subr.mxu0 0.0
    %1303 = vmatpush1.msra.mxu0 0.0
    %1304 = vmatprep.subr.mxu0 0.0
    %1305 = vmatpush1.msra.mxu0 0.0
    %1306 = vmatprep.subr.mxu0 0.0
    %1307 = vmatpush1.msra.mxu0 0.0
    %1308 = vmatprep.mubr.f32.mxu0 0.0
    %1309 = vmatmul.mubr.f32.gmra.mrb[0].mxu0 %v1171
    %v1310 = vpop.f32.mrb[0].mxu0
    %v1311 = vadd.f32 0.0, %v1310
    %v1312 = vpop.f32.mrb[0].mxu0
    %v1313 = vadd.f32 0.0, %v1312
    %1314 = vdwg.mxu0
    %1315 = vrot.lane.b32.xlu0 %v1240, 113
    %v1316 = vpop.permute.xlu0 %1315
    %1317 = vrot.lane.b32.xlu0 %v1242, 113
    %v1318 = vpop.permute.xlu0 %1317
    %1319 = vrot.lane.b32.xlu0 %v1311, 113
    %v1320 = vpop.permute.xlu0 %1319
    %1321 = vrot.lane.b32.xlu0 %v1313, 113
    %v1322 = vpop.permute.xlu0 %1321
    %vm1323 = vcmp.lt.s32.totalorder %v204, 113
    %v1324 = vsel %vm1323, %v1320, %v1322
    %v1325 = vsel %vm1323, %v1318, %v1320
    %v1326 = vsel %vm1323, %v1316, %v1318
    %v1327 = vsel %vm1323, %v1322, %v1316
    %v1328 = vadd.s32 %v43, 1
    %vm1329 = vcmp.ge.s32.totalorder %v1328, 0
    %vm1330 = vmand %vm213, %vm1329
    %vm1331 = vcmp.lt.s32.totalorder %v1328, 16
    %vm1332 = vmand %vm1330, %vm1331
    %v1333 = vsel %vm1332, 1, 0
    %v1334 = vlaneseq
    %v1335 = vshrl.u32 %v1334, 7
    %v1336 = vsub.s32 0, %v1335
    %v1337 = vrot.slane %v1333, %v1336
    %v1338 = vlaneseq
    %v1339 = vshrl.u32 %v1338, 7
    %v1340 = vsub.s32 1, %v1339
    %v1341 = vrot.slane %v1333, %v1340
    %v1342 = vlaneseq
    %v1343 = vshrl.u32 %v1342, 7
    %v1344 = vsub.s32 2, %v1343
    %v1345 = vrot.slane %v1333, %v1344
    %v1346 = vlaneseq
    %v1347 = vshrl.u32 %v1346, 7
    %v1348 = vsub.s32 3, %v1347
    %v1349 = vrot.slane %v1333, %v1348
    %vm1350 = vcmp.eq.s32.totalorder %v1337, 1
    %vm1351 = vcmp.eq.s32.totalorder %v1341, 1
    %vm1352 = vcmp.eq.s32.totalorder %v1345, 1
    %vm1353 = vcmp.eq.s32.totalorder %v1349, 1
    %v1354 = vsel %vm1350, %v1326, 0.0
    %v1355 = vsel %vm1351, %v1325, 0.0
    %v1356 = vsel %vm1352, %v1324, 0.0
    %v1357 = vsel %vm1353, %v1327, 0.0
    %v1358 = vadd.f32 %v1164, %v1354
    %v1359 = vadd.f32 %v1165, %v1355
    %v1360 = vadd.f32 %v1166, %v1356
    %v1361 = vadd.f32 %v1167, %v1357
    %s1362 = scalar_lea.vmem %s3, 56
    %v1363 = vld [vmem:[%s1362] sm:$0xff]
    %v1365 = vsel %vm49, %v1363, 0
    %1367 = vmatprep.subr.mxu0 %v45
    %1368 = vmatpush1.msra.mxu0 %v44
    %1369 = vmatprep.subr.mxu0 0.0
    %1370 = vmatpush1.msra.mxu0 0.0
    %1371 = vmatprep.subr.mxu0 0.0
    %1372 = vmatpush1.msra.mxu0 0.0
    %1373 = vmatprep.subr.mxu0 0.0
    %1374 = vmatpush1.msra.mxu0 0.0
    %1375 = vmatprep.subr.mxu0 0.0
    %1376 = vmatpush1.msra.mxu0 0.0
    %1377 = vmatprep.subr.mxu0 0.0
    %1378 = vmatpush1.msra.mxu0 0.0
    %1379 = vmatprep.subr.mxu0 0.0
    %1380 = vmatpush1.msra.mxu0 0.0
    %1381 = vmatprep.subr.mxu0 0.0
    %1382 = vmatpush1.msra.mxu0 0.0
    %1383 = vmatprep.subr.mxu0 0.0
    %1384 = vmatpush1.msra.mxu0 0.0
    %1385 = vmatprep.subr.mxu0 0.0
    %1386 = vmatpush1.msra.mxu0 0.0
    %1387 = vmatprep.subr.mxu0 0.0
    %1388 = vmatpush1.msra.mxu0 0.0
    %1389 = vmatprep.subr.mxu0 0.0
    %1390 = vmatpush1.msra.mxu0 0.0
    %1391 = vmatprep.subr.mxu0 0.0
    %1392 = vmatpush1.msra.mxu0 0.0
    %1393 = vmatprep.subr.mxu0 0.0
    %1394 = vmatpush1.msra.mxu0 0.0
    %1395 = vmatprep.subr.mxu0 0.0
    %1396 = vmatpush1.msra.mxu0 0.0
    %1397 = vmatprep.subr.mxu0 0.0
    %1398 = vmatpush1.msra.mxu0 0.0
    %1399 = vmatprep.subr.mxu0 0.0
    %1400 = vmatpush1.msra.mxu0 0.0
    %1401 = vmatprep.subr.mxu0 0.0
    %1402 = vmatpush1.msra.mxu0 0.0
    %1403 = vmatprep.subr.mxu0 0.0
    %1404 = vmatpush1.msra.mxu0 0.0
    %1405 = vmatprep.subr.mxu0 0.0
    %1406 = vmatpush1.msra.mxu0 0.0
    %1407 = vmatprep.subr.mxu0 0.0
    %1408 = vmatpush1.msra.mxu0 0.0
    %1409 = vmatprep.subr.mxu0 0.0
    %1410 = vmatpush1.msra.mxu0 0.0
    %1411 = vmatprep.subr.mxu0 0.0
    %1412 = vmatpush1.msra.mxu0 0.0
    %1413 = vmatprep.subr.mxu0 0.0
    %1414 = vmatpush1.msra.mxu0 0.0
    %1415 = vmatprep.subr.mxu0 0.0
    %1416 = vmatpush1.msra.mxu0 0.0
    %1417 = vmatprep.subr.mxu0 0.0
    %1418 = vmatpush1.msra.mxu0 0.0
    %1419 = vmatprep.subr.mxu0 0.0
    %1420 = vmatpush1.msra.mxu0 0.0
    %1421 = vmatprep.subr.mxu0 0.0
    %1422 = vmatpush1.msra.mxu0 0.0
    %1423 = vmatprep.subr.mxu0 0.0
    %1424 = vmatpush1.msra.mxu0 0.0
    %1425 = vmatprep.subr.mxu0 0.0
    %1426 = vmatpush1.msra.mxu0 0.0
    %1427 = vmatprep.subr.mxu0 0.0
    %1428 = vmatpush1.msra.mxu0 0.0
    %1429 = vmatprep.subr.mxu0 0.0
    %1430 = vmatpush1.msra.mxu0 0.0
    %1431 = vmatprep.mubr.f32.mxu0 0.0
    %1432 = vmatmul.mubr.f32.gmra.mrb[0].mxu0 %v1365
    %v1433 = vpop.f32.mrb[0].mxu0
    %v1434 = vadd.f32 0.0, %v1433
    %v1435 = vpop.f32.mrb[0].mxu0
    %v1436 = vadd.f32 0.0, %v1435
    %1437 = vdwg.mxu0
    %1438 = vmatprep.subr.mxu0 %v47
    %1439 = vmatpush1.msra.mxu0 %v46
    %1440 = vmatprep.subr.mxu0 0.0
    %1441 = vmatpush1.msra.mxu0 0.0
    %1442 = vmatprep.subr.mxu0 0.0
    %1443 = vmatpush1.msra.mxu0 0.0
    %1444 = vmatprep.subr.mxu0 0.0
    %1445 = vmatpush1.msra.mxu0 0.0
    %1446 = vmatprep.subr.mxu0 0.0
    %1447 = vmatpush1.msra.mxu0 0.0
    %1448 = vmatprep.subr.mxu0 0.0
    %1449 = vmatpush1.msra.mxu0 0.0
    %1450 = vmatprep.subr.mxu0 0.0
    %1451 = vmatpush1.msra.mxu0 0.0
    %1452 = vmatprep.subr.mxu0 0.0
    %1453 = vmatpush1.msra.mxu0 0.0
    %1454 = vmatprep.subr.mxu0 0.0
    %1455 = vmatpush1.msra.mxu0 0.0
    %1456 = vmatprep.subr.mxu0 0.0
    %1457 = vmatpush1.msra.mxu0 0.0
    %1458 = vmatprep.subr.mxu0 0.0
    %1459 = vmatpush1.msra.mxu0 0.0
    %1460 = vmatprep.subr.mxu0 0.0
    %1461 = vmatpush1.msra.mxu0 0.0
    %1462 = vmatprep.subr.mxu0 0.0
    %1463 = vmatpush1.msra.mxu0 0.0
    %1464 = vmatprep.subr.mxu0 0.0
    %1465 = vmatpush1.msra.mxu0 0.0
    %1466 = vmatprep.subr.mxu0 0.0
    %1467 = vmatpush1.msra.mxu0 0.0
    %1468 = vmatprep.subr.mxu0 0.0
    %1469 = vmatpush1.msra.mxu0 0.0
    %1470 = vmatprep.subr.mxu0 0.0
    %1471 = vmatpush1.msra.mxu0 0.0
    %1472 = vmatprep.subr.mxu0 0.0
    %1473 = vmatpush1.msra.mxu0 0.0
    %1474 = vmatprep.subr.mxu0 0.0
    %1475 = vmatpush1.msra.mxu0 0.0
    %1476 = vmatprep.subr.mxu0 0.0
    %1477 = vmatpush1.msra.mxu0 0.0
    %1478 = vmatprep.subr.mxu0 0.0
    %1479 = vmatpush1.msra.mxu0 0.0
    %1480 = vmatprep.subr.mxu0 0.0
    %1481 = vmatpush1.msra.mxu0 0.0
    %1482 = vmatprep.subr.mxu0 0.0
    %1483 = vmatpush1.msra.mxu0 0.0
    %1484 = vmatprep.subr.mxu0 0.0
    %1485 = vmatpush1.msra.mxu0 0.0
    %1486 = vmatprep.subr.mxu0 0.0
    %1487 = vmatpush1.msra.mxu0 0.0
    %1488 = vmatprep.subr.mxu0 0.0
    %1489 = vmatpush1.msra.mxu0 0.0
    %1490 = vmatprep.subr.mxu0 0.0
    %1491 = vmatpush1.msra.mxu0 0.0
    %1492 = vmatprep.subr.mxu0 0.0
    %1493 = vmatpush1.msra.mxu0 0.0
    %1494 = vmatprep.subr.mxu0 0.0
    %1495 = vmatpush1.msra.mxu0 0.0
    %1496 = vmatprep.subr.mxu0 0.0
    %1497 = vmatpush1.msra.mxu0 0.0
    %1498 = vmatprep.subr.mxu0 0.0
    %1499 = vmatpush1.msra.mxu0 0.0
    %1500 = vmatprep.subr.mxu0 0.0
    %1501 = vmatpush1.msra.mxu0 0.0
    %1502 = vmatprep.mubr.f32.mxu0 0.0
    %1503 = vmatmul.mubr.f32.gmra.mrb[0].mxu0 %v1365
    %v1504 = vpop.f32.mrb[0].mxu0
    %v1505 = vadd.f32 0.0, %v1504
    %v1506 = vpop.f32.mrb[0].mxu0
    %v1507 = vadd.f32 0.0, %v1506
    %1508 = vdwg.mxu0
    %1509 = vrot.lane.b32.xlu0 %v1434, 112
    %v1510 = vpop.permute.xlu0 %1509
    %1511 = vrot.lane.b32.xlu0 %v1436, 112
    %v1512 = vpop.permute.xlu0 %1511
    %1513 = vrot.lane.b32.xlu0 %v1505, 112
    %v1514 = vpop.permute.xlu0 %1513
    %1515 = vrot.lane.b32.xlu0 %v1507, 112
    %v1516 = vpop.permute.xlu0 %1515
    %vm1517 = vcmp.lt.s32.totalorder %v204, 112
    %v1518 = vsel %vm1517, %v1514, %v1516
    %v1519 = vsel %vm1517, %v1512, %v1514
    %v1520 = vsel %vm1517, %v1510, %v1512
    %v1521 = vsel %vm1517, %v1516, %v1510
    %vm1522 = vmand %vm406, %vm1329
    %vm1523 = vmand %vm1522, %vm1331
    %v1524 = vsel %vm1523, 1, 0
    %v1525 = vlaneseq
    %v1526 = vshrl.u32 %v1525, 7
    %v1527 = vsub.s32 0, %v1526
    %v1528 = vrot.slane %v1524, %v1527
    %v1529 = vlaneseq
    %v1530 = vshrl.u32 %v1529, 7
    %v1531 = vsub.s32 1, %v1530
    %v1532 = vrot.slane %v1524, %v1531
    %v1533 = vlaneseq
    %v1534 = vshrl.u32 %v1533, 7
    %v1535 = vsub.s32 2, %v1534
    %v1536 = vrot.slane %v1524, %v1535
    %v1537 = vlaneseq
    %v1538 = vshrl.u32 %v1537, 7
    %v1539 = vsub.s32 3, %v1538
    %v1540 = vrot.slane %v1524, %v1539
    %vm1541 = vcmp.eq.s32.totalorder %v1528, 1
    %vm1542 = vcmp.eq.s32.totalorder %v1532, 1
    %vm1543 = vcmp.eq.s32.totalorder %v1536, 1
    %vm1544 = vcmp.eq.s32.totalorder %v1540, 1
    %v1545 = vsel %vm1541, %v1520, 0.0
    %v1546 = vsel %vm1542, %v1519, 0.0
    %v1547 = vsel %vm1543, %v1518, 0.0
    %v1548 = vsel %vm1544, %v1521, 0.0
    %v1549 = vadd.f32 %v1358, %v1545
    %v1550 = vadd.f32 %v1359, %v1546
    %v1551 = vadd.f32 %v1360, %v1547
    %v1552 = vadd.f32 %v1361, %v1548
    %s1553 = scalar_lea.vmem %s3, 64
    %v1554 = vld [vmem:[%s1553] sm:$0xff]
    %v1556 = vsel %vm49, %v1554, 0
    %1558 = vmatprep.subr.mxu0 %v45
    %1559 = vmatpush1.msra.mxu0 %v44
    %1560 = vmatprep.subr.mxu0 0.0
    %1561 = vmatpush1.msra.mxu0 0.0
    %1562 = vmatprep.subr.mxu0 0.0
    %1563 = vmatpush1.msra.mxu0 0.0
    %1564 = vmatprep.subr.mxu0 0.0
    %1565 = vmatpush1.msra.mxu0 0.0
    %1566 = vmatprep.subr.mxu0 0.0
    %1567 = vmatpush1.msra.mxu0 0.0
    %1568 = vmatprep.subr.mxu0 0.0
    %1569 = vmatpush1.msra.mxu0 0.0
    %1570 = vmatprep.subr.mxu0 0.0
    %1571 = vmatpush1.msra.mxu0 0.0
    %1572 = vmatprep.subr.mxu0 0.0
    %1573 = vmatpush1.msra.mxu0 0.0
    %1574 = vmatprep.subr.mxu0 0.0
    %1575 = vmatpush1.msra.mxu0 0.0
    %1576 = vmatprep.subr.mxu0 0.0
    %1577 = vmatpush1.msra.mxu0 0.0
    %1578 = vmatprep.subr.mxu0 0.0
    %1579 = vmatpush1.msra.mxu0 0.0
    %1580 = vmatprep.subr.mxu0 0.0
    %1581 = vmatpush1.msra.mxu0 0.0
    %1582 = vmatprep.subr.mxu0 0.0
    %1583 = vmatpush1.msra.mxu0 0.0
    %1584 = vmatprep.subr.mxu0 0.0
    %1585 = vmatpush1.msra.mxu0 0.0
    %1586 = vmatprep.subr.mxu0 0.0
    %1587 = vmatpush1.msra.mxu0 0.0
    %1588 = vmatprep.subr.mxu0 0.0
    %1589 = vmatpush1.msra.mxu0 0.0
    %1590 = vmatprep.subr.mxu0 0.0
    %1591 = vmatpush1.msra.mxu0 0.0
    %1592 = vmatprep.subr.mxu0 0.0
    %1593 = vmatpush1.msra.mxu0 0.0
    %1594 = vmatprep.subr.mxu0 0.0
    %1595 = vmatpush1.msra.mxu0 0.0
    %1596 = vmatprep.subr.mxu0 0.0
    %1597 = vmatpush1.msra.mxu0 0.0
    %1598 = vmatprep.subr.mxu0 0.0
    %1599 = vmatpush1.msra.mxu0 0.0
    %1600 = vmatprep.subr.mxu0 0.0
    %1601 = vmatpush1.msra.mxu0 0.0
    %1602 = vmatprep.subr.mxu0 0.0
    %1603 = vmatpush1.msra.mxu0 0.0
    %1604 = vmatprep.subr.mxu0 0.0
    %1605 = vmatpush1.msra.mxu0 0.0
    %1606 = vmatprep.subr.mxu0 0.0
    %1607 = vmatpush1.msra.mxu0 0.0
    %1608 = vmatprep.subr.mxu0 0.0
    %1609 = vmatpush1.msra.mxu0 0.0
    %1610 = vmatprep.subr.mxu0 0.0
    %1611 = vmatpush1.msra.mxu0 0.0
    %1612 = vmatprep.subr.mxu0 0.0
    %1613 = vmatpush1.msra.mxu0 0.0
    %1614 = vmatprep.subr.mxu0 0.0
    %1615 = vmatpush1.msra.mxu0 0.0
    %1616 = vmatprep.subr.mxu0 0.0
    %1617 = vmatpush1.msra.mxu0 0.0
    %1618 = vmatprep.subr.mxu0 0.0
    %1619 = vmatpush1.msra.mxu0 0.0
    %1620 = vmatprep.subr.mxu0 0.0
    %1621 = vmatpush1.msra.mxu0 0.0
    %1622 = vmatprep.mubr.f32.mxu0 0.0
    %1623 = vmatmul.mubr.f32.gmra.mrb[0].mxu0 %v1556
    %v1624 = vpop.f32.mrb[0].mxu0
    %v1625 = vadd.f32 0.0, %v1624
    %v1626 = vpop.f32.mrb[0].mxu0
    %v1627 = vadd.f32 0.0, %v1626
    %1628 = vdwg.mxu0
    %1629 = vmatprep.subr.mxu0 %v47
    %1630 = vmatpush1.msra.mxu0 %v46
    %1631 = vmatprep.subr.mxu0 0.0
    %1632 = vmatpush1.msra.mxu0 0.0
    %1633 = vmatprep.subr.mxu0 0.0
    %1634 = vmatpush1.msra.mxu0 0.0
    %1635 = vmatprep.subr.mxu0 0.0
    %1636 = vmatpush1.msra.mxu0 0.0
    %1637 = vmatprep.subr.mxu0 0.0
    %1638 = vmatpush1.msra.mxu0 0.0
    %1639 = vmatprep.subr.mxu0 0.0
    %1640 = vmatpush1.msra.mxu0 0.0
    %1641 = vmatprep.subr.mxu0 0.0
    %1642 = vmatpush1.msra.mxu0 0.0
    %1643 = vmatprep.subr.mxu0 0.0
    %1644 = vmatpush1.msra.mxu0 0.0
    %1645 = vmatprep.subr.mxu0 0.0
    %1646 = vmatpush1.msra.mxu0 0.0
    %1647 = vmatprep.subr.mxu0 0.0
    %1648 = vmatpush1.msra.mxu0 0.0
    %1649 = vmatprep.subr.mxu0 0.0
    %1650 = vmatpush1.msra.mxu0 0.0
    %1651 = vmatprep.subr.mxu0 0.0
    %1652 = vmatpush1.msra.mxu0 0.0
    %1653 = vmatprep.subr.mxu0 0.0
    %1654 = vmatpush1.msra.mxu0 0.0
    %1655 = vmatprep.subr.mxu0 0.0
    %1656 = vmatpush1.msra.mxu0 0.0
    %1657 = vmatprep.subr.mxu0 0.0
    %1658 = vmatpush1.msra.mxu0 0.0
    %1659 = vmatprep.subr.mxu0 0.0
    %1660 = vmatpush1.msra.mxu0 0.0
    %1661 = vmatprep.subr.mxu0 0.0
    %1662 = vmatpush1.msra.mxu0 0.0
    %1663 = vmatprep.subr.mxu0 0.0
    %1664 = vmatpush1.msra.mxu0 0.0
    %1665 = vmatprep.subr.mxu0 0.0
    %1666 = vmatpush1.msra.mxu0 0.0
    %1667 = vmatprep.subr.mxu0 0.0
    %1668 = vmatpush1.msra.mxu0 0.0
    %1669 = vmatprep.subr.mxu0 0.0
    %1670 = vmatpush1.msra.mxu0 0.0
    %1671 = vmatprep.subr.mxu0 0.0
    %1672 = vmatpush1.msra.mxu0 0.0
    %1673 = vmatprep.subr.mxu0 0.0
    %1674 = vmatpush1.msra.mxu0 0.0
    %1675 = vmatprep.subr.mxu0 0.0
    %1676 = vmatpush1.msra.mxu0 0.0
    %1677 = vmatprep.subr.mxu0 0.0
    %1678 = vmatpush1.msra.mxu0 0.0
    %1679 = vmatprep.subr.mxu0 0.0
    %1680 = vmatpush1.msra.mxu0 0.0
    %1681 = vmatprep.subr.mxu0 0.0
    %1682 = vmatpush1.msra.mxu0 0.0
    %1683 = vmatprep.subr.mxu0 0.0
    %1684 = vmatpush1.msra.mxu0 0.0
    %1685 = vmatprep.subr.mxu0 0.0
    %1686 = vmatpush1.msra.mxu0 0.0
    %1687 = vmatprep.subr.mxu0 0.0
    %1688 = vmatpush1.msra.mxu0 0.0
    %1689 = vmatprep.subr.mxu0 0.0
    %1690 = vmatpush1.msra.mxu0 0.0
    %1691 = vmatprep.subr.mxu0 0.0
    %1692 = vmatpush1.msra.mxu0 0.0
    %1693 = vmatprep.mubr.f32.mxu0 0.0
    %1694 = vmatmul.mubr.f32.gmra.mrb[0].mxu0 %v1556
    %v1695 = vpop.f32.mrb[0].mxu0
    %v1696 = vadd.f32 0.0, %v1695
    %v1697 = vpop.f32.mrb[0].mxu0
    %v1698 = vadd.f32 0.0, %v1697
    %1699 = vdwg.mxu0
    %1700 = vrot.lane.b32.xlu0 %v1625, 111
    %v1701 = vpop.permute.xlu0 %1700
    %1702 = vrot.lane.b32.xlu0 %v1627, 111
    %v1703 = vpop.permute.xlu0 %1702
    %1704 = vrot.lane.b32.xlu0 %v1696, 111
    %v1705 = vpop.permute.xlu0 %1704
    %1706 = vrot.lane.b32.xlu0 %v1698, 111
    %v1707 = vpop.permute.xlu0 %1706
    %vm1708 = vcmp.lt.s32.totalorder %v204, 111
    %v1709 = vsel %vm1708, %v1705, %v1707
    %v1710 = vsel %vm1708, %v1703, %v1705
    %v1711 = vsel %vm1708, %v1701, %v1703
    %v1712 = vsel %vm1708, %v1707, %v1701
    %vm1713 = vmand %vm601, %vm1329
    %vm1714 = vmand %vm1713, %vm1331
    %v1715 = vsel %vm1714, 1, 0
    %v1716 = vlaneseq
    %v1717 = vshrl.u32 %v1716, 7
    %v1718 = vsub.s32 0, %v1717
    %v1719 = vrot.slane %v1715, %v1718
    %v1720 = vlaneseq
    %v1721 = vshrl.u32 %v1720, 7
    %v1722 = vsub.s32 1, %v1721
    %v1723 = vrot.slane %v1715, %v1722
    %v1724 = vlaneseq
    %v1725 = vshrl.u32 %v1724, 7
    %v1726 = vsub.s32 2, %v1725
    %v1727 = vrot.slane %v1715, %v1726
    %v1728 = vlaneseq
    %v1729 = vshrl.u32 %v1728, 7
    %v1730 = vsub.s32 3, %v1729
    %v1731 = vrot.slane %v1715, %v1730
    %vm1732 = vcmp.eq.s32.totalorder %v1719, 1
    %vm1733 = vcmp.eq.s32.totalorder %v1723, 1
    %vm1734 = vcmp.eq.s32.totalorder %v1727, 1
    %vm1735 = vcmp.eq.s32.totalorder %v1731, 1
    %v1736 = vsel %vm1732, %v1711, 0.0
    %v1737 = vsel %vm1733, %v1710, 0.0
    %v1738 = vsel %vm1734, %v1709, 0.0
    %v1739 = vsel %vm1735, %v1712, 0.0
    %v1740 = vadd.f32 %v1549, %v1736
    %v1741 = vadd.f32 %v1550, %v1737
    %v1742 = vadd.f32 %v1551, %v1738
    %v1743 = vadd.f32 %v1552, %v1739
    %v1744 = vld [vmem:[%s4] sm:$0xff]
    %1746 = vset.pattern.permute.xlu0 0
    %1747 = vperm.xlu0 %1746, %v1744
    %v1748 = vpop.permute.xlu0 %1747
    %v1750 = vmul.f32 %v1740, %v1748
    %v1751 = vmul.f32 %v1741, %v1748
    %v1752 = vmul.f32 %v1742, %v1748
    %v1753 = vmul.f32 %v1743, %v1748
    %v1754 = vld [vmem:[%s5] sm:$0xff]
    %1756 = vset.pattern.permute.xlu0 0
    %1757 = vperm.xlu0 %1756, %v1754
    %v1758 = vpop.permute.xlu0 %1757
    %v1760 = vadd.f32 %v1750, %v1758
    %v1761 = vadd.f32 %v1751, %v1758
    %v1762 = vadd.f32 %v1752, %v1758
    %v1763 = vadd.f32 %v1753, %v1758
    %v1764 = vxor.u32 %v1760, 2147483648
    %v1765 = vxor.u32 %v1761, 2147483648
    %v1766 = vxor.u32 %v1762, 2147483648
    %v1767 = vxor.u32 %v1763, 2147483648
    %v1768 = vmul.f32 %v1764, 1.442695
    %v1769 = vpow.pop %v1768
    %v1770 = vmul.f32 %v1765, 1.442695
    %v1771 = vpow.pop %v1770
    %v1772 = vmul.f32 %v1766, 1.442695
    %v1773 = vpow.pop %v1772
    %v1774 = vmul.f32 %v1767, 1.442695
    %v1775 = vpow.pop %v1774
    %v1776 = vadd.f32 %v1769, 1.0
    %v1777 = vadd.f32 %v1771, 1.0
    %v1778 = vadd.f32 %v1773, 1.0
    %v1779 = vadd.f32 %v1775, 1.0
    %v1780 = vrcp.pop %v1776
    %v1781 = vmul.f32 1.0, %v1780
    %v1782 = vrcp.pop %v1777
    %v1783 = vmul.f32 1.0, %v1782
    %v1784 = vrcp.pop %v1778
    %v1785 = vmul.f32 1.0, %v1784
    %v1786 = vrcp.pop %v1779
    %v1787 = vmul.f32 1.0, %v1786
    %v1788 = vmul.f32 %v1760, %v1781
    %v1789 = vmul.f32 %v1761, %v1783
    %v1790 = vmul.f32 %v1762, %v1785
    %v1791 = vmul.f32 %v1763, %v1787
    %v1792 = vld [vmem:[%s6] sm:$0xff]
    %v1794 = vsel %vm49, %v1792, 0
    %1796 = vmatprep.subr.mxu0 %v1789
    %1797 = vmatpush1.msra.mxu0 %v1788
    %1798 = vmatprep.subr.mxu0 0.0
    %1799 = vmatpush1.msra.mxu0 0.0
    %1800 = vmatprep.subr.mxu0 0.0
    %1801 = vmatpush1.msra.mxu0 0.0
    %1802 = vmatprep.subr.mxu0 0.0
    %1803 = vmatpush1.msra.mxu0 0.0
    %1804 = vmatprep.subr.mxu0 0.0
    %1805 = vmatpush1.msra.mxu0 0.0
    %1806 = vmatprep.subr.mxu0 0.0
    %1807 = vmatpush1.msra.mxu0 0.0
    %1808 = vmatprep.subr.mxu0 0.0
    %1809 = vmatpush1.msra.mxu0 0.0
    %1810 = vmatprep.subr.mxu0 0.0
    %1811 = vmatpush1.msra.mxu0 0.0
    %1812 = vmatprep.subr.mxu0 0.0
    %1813 = vmatpush1.msra.mxu0 0.0
    %1814 = vmatprep.subr.mxu0 0.0
    %1815 = vmatpush1.msra.mxu0 0.0
    %1816 = vmatprep.subr.mxu0 0.0
    %1817 = vmatpush1.msra.mxu0 0.0
    %1818 = vmatprep.subr.mxu0 0.0
    %1819 = vmatpush1.msra.mxu0 0.0
    %1820 = vmatprep.subr.mxu0 0.0
    %1821 = vmatpush1.msra.mxu0 0.0
    %1822 = vmatprep.subr.mxu0 0.0
    %1823 = vmatpush1.msra.mxu0 0.0
    %1824 = vmatprep.subr.mxu0 0.0
    %1825 = vmatpush1.msra.mxu0 0.0
    %1826 = vmatprep.subr.mxu0 0.0
    %1827 = vmatpush1.msra.mxu0 0.0
    %1828 = vmatprep.subr.mxu0 0.0
    %1829 = vmatpush1.msra.mxu0 0.0
    %1830 = vmatprep.subr.mxu0 0.0
    %1831 = vmatpush1.msra.mxu0 0.0
    %1832 = vmatprep.subr.mxu0 0.0
    %1833 = vmatpush1.msra.mxu0 0.0
    %1834 = vmatprep.subr.mxu0 0.0
    %1835 = vmatpush1.msra.mxu0 0.0
    %1836 = vmatprep.subr.mxu0 0.0
    %1837 = vmatpush1.msra.mxu0 0.0
    %1838 = vmatprep.subr.mxu0 0.0
    %1839 = vmatpush1.msra.mxu0 0.0
    %1840 = vmatprep.subr.mxu0 0.0
    %1841 = vmatpush1.msra.mxu0 0.0
    %1842 = vmatprep.subr.mxu0 0.0
    %1843 = vmatpush1.msra.mxu0 0.0
    %1844 = vmatprep.subr.mxu0 0.0
    %1845 = vmatpush1.msra.mxu0 0.0
    %1846 = vmatprep.subr.mxu0 0.0
    %1847 = vmatpush1.msra.mxu0 0.0
    %1848 = vmatprep.subr.mxu0 0.0
    %1849 = vmatpush1.msra.mxu0 0.0
    %1850 = vmatprep.subr.mxu0 0.0
    %1851 = vmatpush1.msra.mxu0 0.0
    %1852 = vmatprep.subr.mxu0 0.0
    %1853 = vmatpush1.msra.mxu0 0.0
    %1854 = vmatprep.subr.mxu0 0.0
    %1855 = vmatpush1.msra.mxu0 0.0
    %1856 = vmatprep.subr.mxu0 0.0
    %1857 = vmatpush1.msra.mxu0 0.0
    %1858 = vmatprep.subr.mxu0 0.0
    %1859 = vmatpush1.msra.mxu0 0.0
    %1860 = vmatprep.mubr.f32.mxu0 0.0
    %1861 = vmatmul.mubr.f32.gmra.mrb[0].mxu0 %v1794
    %v1862 = vpop.f32.mrb[0].mxu0
    %v1863 = vadd.f32 0.0, %v1862
    %v1864 = vpop.f32.mrb[0].mxu0
    %v1865 = vadd.f32 0.0, %v1864
    %1866 = vdwg.mxu0
    %1867 = vmatprep.subr.mxu0 %v1791
    %1868 = vmatpush1.msra.mxu0 %v1790
    %1869 = vmatprep.subr.mxu0 0.0
    %1870 = vmatpush1.msra.mxu0 0.0
    %1871 = vmatprep.subr.mxu0 0.0
    %1872 = vmatpush1.msra.mxu0 0.0
    %1873 = vmatprep.subr.mxu0 0.0
    %1874 = vmatpush1.msra.mxu0 0.0
    %1875 = vmatprep.subr.mxu0 0.0
    %1876 = vmatpush1.msra.mxu0 0.0
    %1877 = vmatprep.subr.mxu0 0.0
    %1878 = vmatpush1.msra.mxu0 0.0
    %1879 = vmatprep.subr.mxu0 0.0
    %1880 = vmatpush1.msra.mxu0 0.0
    %1881 = vmatprep.subr.mxu0 0.0
    %1882 = vmatpush1.msra.mxu0 0.0
    %1883 = vmatprep.subr.mxu0 0.0
    %1884 = vmatpush1.msra.mxu0 0.0
    %1885 = vmatprep.subr.mxu0 0.0
    %1886 = vmatpush1.msra.mxu0 0.0
    %1887 = vmatprep.subr.mxu0 0.0
    %1888 = vmatpush1.msra.mxu0 0.0
    %1889 = vmatprep.subr.mxu0 0.0
    %1890 = vmatpush1.msra.mxu0 0.0
    %1891 = vmatprep.subr.mxu0 0.0
    %1892 = vmatpush1.msra.mxu0 0.0
    %1893 = vmatprep.subr.mxu0 0.0
    %1894 = vmatpush1.msra.mxu0 0.0
    %1895 = vmatprep.subr.mxu0 0.0
    %1896 = vmatpush1.msra.mxu0 0.0
    %1897 = vmatprep.subr.mxu0 0.0
    %1898 = vmatpush1.msra.mxu0 0.0
    %1899 = vmatprep.subr.mxu0 0.0
    %1900 = vmatpush1.msra.mxu0 0.0
    %1901 = vmatprep.subr.mxu0 0.0
    %1902 = vmatpush1.msra.mxu0 0.0
    %1903 = vmatprep.subr.mxu0 0.0
    %1904 = vmatpush1.msra.mxu0 0.0
    %1905 = vmatprep.subr.mxu0 0.0
    %1906 = vmatpush1.msra.mxu0 0.0
    %1907 = vmatprep.subr.mxu0 0.0
    %1908 = vmatpush1.msra.mxu0 0.0
    %1909 = vmatprep.subr.mxu0 0.0
    %1910 = vmatpush1.msra.mxu0 0.0
    %1911 = vmatprep.subr.mxu0 0.0
    %1912 = vmatpush1.msra.mxu0 0.0
    %1913 = vmatprep.subr.mxu0 0.0
    %1914 = vmatpush1.msra.mxu0 0.0
    %1915 = vmatprep.subr.mxu0 0.0
    %1916 = vmatpush1.msra.mxu0 0.0
    %1917 = vmatprep.subr.mxu0 0.0
    %1918 = vmatpush1.msra.mxu0 0.0
    %1919 = vmatprep.subr.mxu0 0.0
    %1920 = vmatpush1.msra.mxu0 0.0
    %1921 = vmatprep.subr.mxu0 0.0
    %1922 = vmatpush1.msra.mxu0 0.0
    %1923 = vmatprep.subr.mxu0 0.0
    %1924 = vmatpush1.msra.mxu0 0.0
    %1925 = vmatprep.subr.mxu0 0.0
    %1926 = vmatpush1.msra.mxu0 0.0
    %1927 = vmatprep.subr.mxu0 0.0
    %1928 = vmatpush1.msra.mxu0 0.0
    %1929 = vmatprep.subr.mxu0 0.0
    %1930 = vmatpush1.msra.mxu0 0.0
    %1931 = vmatprep.mubr.f32.mxu0 0.0
    %1932 = vmatmul.mubr.f32.gmra.mrb[0].mxu0 %v1794
    %v1933 = vpop.f32.mrb[0].mxu0
    %v1934 = vadd.f32 0.0, %v1933
    %v1935 = vpop.f32.mrb[0].mxu0
    %v1936 = vadd.f32 0.0, %v1935
    %1937 = vdwg.mxu0
    %1938 = vrot.lane.b32.xlu0 %v1863, 17
    %v1939 = vpop.permute.xlu0 %1938
    %1940 = vrot.lane.b32.xlu0 %v1865, 17
    %v1941 = vpop.permute.xlu0 %1940
    %1942 = vrot.lane.b32.xlu0 %v1934, 17
    %v1943 = vpop.permute.xlu0 %1942
    %1944 = vrot.lane.b32.xlu0 %v1936, 17
    %v1945 = vpop.permute.xlu0 %1944
    %v1946 = vsel %vm205, %v1943, %v1945
    %v1947 = vsel %vm205, %v1941, %v1943
    %v1948 = vsel %vm205, %v1939, %v1941
    %v1949 = vsel %vm205, %v1945, %v1939
    %v1950 = vsel %vm236, %v1949, 0.0
    %v1951 = vsel %vm237, %v1948, 0.0
    %v1952 = vsel %vm238, %v1947, 0.0
    %v1953 = vsel %vm239, %v1946, 0.0
    %s1954 = scalar_lea.vmem %s6, 8
    %v1955 = vld [vmem:[%s1954] sm:$0xff]
    %v1957 = vsel %vm49, %v1955, 0
    %1959 = vmatprep.subr.mxu0 %v1789
    %1960 = vmatpush1.msra.mxu0 %v1788
    %1961 = vmatprep.subr.mxu0 0.0
    %1962 = vmatpush1.msra.mxu0 0.0
    %1963 = vmatprep.subr.mxu0 0.0
    %1964 = vmatpush1.msra.mxu0 0.0
    %1965 = vmatprep.subr.mxu0 0.0
    %1966 = vmatpush1.msra.mxu0 0.0
    %1967 = vmatprep.subr.mxu0 0.0
    %1968 = vmatpush1.msra.mxu0 0.0
    %1969 = vmatprep.subr.mxu0 0.0
    %1970 = vmatpush1.msra.mxu0 0.0
    %1971 = vmatprep.subr.mxu0 0.0
    %1972 = vmatpush1.msra.mxu0 0.0
    %1973 = vmatprep.subr.mxu0 0.0
    %1974 = vmatpush1.msra.mxu0 0.0
    %1975 = vmatprep.subr.mxu0 0.0
    %1976 = vmatpush1.msra.mxu0 0.0
    %1977 = vmatprep.subr.mxu0 0.0
    %1978 = vmatpush1.msra.mxu0 0.0
    %1979 = vmatprep.subr.mxu0 0.0
    %1980 = vmatpush1.msra.mxu0 0.0
    %1981 = vmatprep.subr.mxu0 0.0
    %1982 = vmatpush1.msra.mxu0 0.0
    %1983 = vmatprep.subr.mxu0 0.0
    %1984 = vmatpush1.msra.mxu0 0.0
    %1985 = vmatprep.subr.mxu0 0.0
    %1986 = vmatpush1.msra.mxu0 0.0
    %1987 = vmatprep.subr.mxu0 0.0
    %1988 = vmatpush1.msra.mxu0 0.0
    %1989 = vmatprep.subr.mxu0 0.0
    %1990 = vmatpush1.msra.mxu0 0.0
    %1991 = vmatprep.subr.mxu0 0.0
    %1992 = vmatpush1.msra.mxu0 0.0
    %1993 = vmatprep.subr.mxu0 0.0
    %1994 = vmatpush1.msra.mxu0 0.0
    %1995 = vmatprep.subr.mxu0 0.0
    %1996 = vmatpush1.msra.mxu0 0.0
    %1997 = vmatprep.subr.mxu0 0.0
    %1998 = vmatpush1.msra.mxu0 0.0
    %1999 = vmatprep.subr.mxu0 0.0
    %2000 = vmatpush1.msra.mxu0 0.0
    %2001 = vmatprep.subr.mxu0 0.0
    %2002 = vmatpush1.msra.mxu0 0.0
    %2003 = vmatprep.subr.mxu0 0.0
    %2004 = vmatpush1.msra.mxu0 0.0
    %2005 = vmatprep.subr.mxu0 0.0
    %2006 = vmatpush1.msra.mxu0 0.0
    %2007 = vmatprep.subr.mxu0 0.0
    %2008 = vmatpush1.msra.mxu0 0.0
    %2009 = vmatprep.subr.mxu0 0.0
    %2010 = vmatpush1.msra.mxu0 0.0
    %2011 = vmatprep.subr.mxu0 0.0
    %2012 = vmatpush1.msra.mxu0 0.0
    %2013 = vmatprep.subr.mxu0 0.0
    %2014 = vmatpush1.msra.mxu0 0.0
    %2015 = vmatprep.subr.mxu0 0.0
    %2016 = vmatpush1.msra.mxu0 0.0
    %2017 = vmatprep.subr.mxu0 0.0
    %2018 = vmatpush1.msra.mxu0 0.0
    %2019 = vmatprep.subr.mxu0 0.0
    %2020 = vmatpush1.msra.mxu0 0.0
    %2021 = vmatprep.subr.mxu0 0.0
    %2022 = vmatpush1.msra.mxu0 0.0
    %2023 = vmatprep.mubr.f32.mxu0 0.0
    %2024 = vmatmul.mubr.f32.gmra.mrb[0].mxu0 %v1957
    %v2025 = vpop.f32.mrb[0].mxu0
    %v2026 = vadd.f32 0.0, %v2025
    %v2027 = vpop.f32.mrb[0].mxu0
    %v2028 = vadd.f32 0.0, %v2027
    %2029 = vdwg.mxu0
    %2030 = vmatprep.subr.mxu0 %v1791
    %2031 = vmatpush1.msra.mxu0 %v1790
    %2032 = vmatprep.subr.mxu0 0.0
    %2033 = vmatpush1.msra.mxu0 0.0
    %2034 = vmatprep.subr.mxu0 0.0
    %2035 = vmatpush1.msra.mxu0 0.0
    %2036 = vmatprep.subr.mxu0 0.0
    %2037 = vmatpush1.msra.mxu0 0.0
    %2038 = vmatprep.subr.mxu0 0.0
    %2039 = vmatpush1.msra.mxu0 0.0
    %2040 = vmatprep.subr.mxu0 0.0
    %2041 = vmatpush1.msra.mxu0 0.0
    %2042 = vmatprep.subr.mxu0 0.0
    %2043 = vmatpush1.msra.mxu0 0.0
    %2044 = vmatprep.subr.mxu0 0.0
    %2045 = vmatpush1.msra.mxu0 0.0
    %2046 = vmatprep.subr.mxu0 0.0
    %2047 = vmatpush1.msra.mxu0 0.0
    %2048 = vmatprep.subr.mxu0 0.0
    %2049 = vmatpush1.msra.mxu0 0.0
    %2050 = vmatprep.subr.mxu0 0.0
    %2051 = vmatpush1.msra.mxu0 0.0
    %2052 = vmatprep.subr.mxu0 0.0
    %2053 = vmatpush1.msra.mxu0 0.0
    %2054 = vmatprep.subr.mxu0 0.0
    %2055 = vmatpush1.msra.mxu0 0.0
    %2056 = vmatprep.subr.mxu0 0.0
    %2057 = vmatpush1.msra.mxu0 0.0
    %2058 = vmatprep.subr.mxu0 0.0
    %2059 = vmatpush1.msra.mxu0 0.0
    %2060 = vmatprep.subr.mxu0 0.0
    %2061 = vmatpush1.msra.mxu0 0.0
    %2062 = vmatprep.subr.mxu0 0.0
    %2063 = vmatpush1.msra.mxu0 0.0
    %2064 = vmatprep.subr.mxu0 0.0
    %2065 = vmatpush1.msra.mxu0 0.0
    %2066 = vmatprep.subr.mxu0 0.0
    %2067 = vmatpush1.msra.mxu0 0.0
    %2068 = vmatprep.subr.mxu0 0.0
    %2069 = vmatpush1.msra.mxu0 0.0
    %2070 = vmatprep.subr.mxu0 0.0
    %2071 = vmatpush1.msra.mxu0 0.0
    %2072 = vmatprep.subr.mxu0 0.0
    %2073 = vmatpush1.msra.mxu0 0.0
    %2074 = vmatprep.subr.mxu0 0.0
    %2075 = vmatpush1.msra.mxu0 0.0
    %2076 = vmatprep.subr.mxu0 0.0
    %2077 = vmatpush1.msra.mxu0 0.0
    %2078 = vmatprep.subr.mxu0 0.0
    %2079 = vmatpush1.msra.mxu0 0.0
    %2080 = vmatprep.subr.mxu0 0.0
    %2081 = vmatpush1.msra.mxu0 0.0
    %2082 = vmatprep.subr.mxu0 0.0
    %2083 = vmatpush1.msra.mxu0 0.0
    %2084 = vmatprep.subr.mxu0 0.0
    %2085 = vmatpush1.msra.mxu0 0.0
    %2086 = vmatprep.subr.mxu0 0.0
    %2087 = vmatpush1.msra.mxu0 0.0
    %2088 = vmatprep.subr.mxu0 0.0
    %2089 = vmatpush1.msra.mxu0 0.0
    %2090 = vmatprep.subr.mxu0 0.0
    %2091 = vmatpush1.msra.mxu0 0.0
    %2092 = vmatprep.subr.mxu0 0.0
    %2093 = vmatpush1.msra.mxu0 0.0
    %2094 = vmatprep.mubr.f32.mxu0 0.0
    %2095 = vmatmul.mubr.f32.gmra.mrb[0].mxu0 %v1957
    %v2096 = vpop.f32.mrb[0].mxu0
    %v2097 = vadd.f32 0.0, %v2096
    %v2098 = vpop.f32.mrb[0].mxu0
    %v2099 = vadd.f32 0.0, %v2098
    %2100 = vdwg.mxu0
    %2101 = vrot.lane.b32.xlu0 %v2026, 16
    %v2102 = vpop.permute.xlu0 %2101
    %2103 = vrot.lane.b32.xlu0 %v2028, 16
    %v2104 = vpop.permute.xlu0 %2103
    %2105 = vrot.lane.b32.xlu0 %v2097, 16
    %v2106 = vpop.permute.xlu0 %2105
    %2107 = vrot.lane.b32.xlu0 %v2099, 16
    %v2108 = vpop.permute.xlu0 %2107
    %v2109 = vsel %vm399, %v2106, %v2108
    %v2110 = vsel %vm399, %v2104, %v2106
    %v2111 = vsel %vm399, %v2102, %v2104
    %v2112 = vsel %vm399, %v2108, %v2102
    %v2113 = vsel %vm426, %v2112, 0.0
    %v2114 = vsel %vm427, %v2111, 0.0
    %v2115 = vsel %vm428, %v2110, 0.0
    %v2116 = vsel %vm429, %v2109, 0.0
    %v2117 = vadd.f32 %v1950, %v2113
    %v2118 = vadd.f32 %v1951, %v2114
    %v2119 = vadd.f32 %v1952, %v2115
    %v2120 = vadd.f32 %v1953, %v2116
    %s2121 = scalar_lea.vmem %s6, 16
    %v2122 = vld [vmem:[%s2121] sm:$0xff]
    %v2124 = vsel %vm49, %v2122, 0
    %2126 = vmatprep.subr.mxu0 %v1789
    %2127 = vmatpush1.msra.mxu0 %v1788
    %2128 = vmatprep.subr.mxu0 0.0
    %2129 = vmatpush1.msra.mxu0 0.0
    %2130 = vmatprep.subr.mxu0 0.0
    %2131 = vmatpush1.msra.mxu0 0.0
    %2132 = vmatprep.subr.mxu0 0.0
    %2133 = vmatpush1.msra.mxu0 0.0
    %2134 = vmatprep.subr.mxu0 0.0
    %2135 = vmatpush1.msra.mxu0 0.0
    %2136 = vmatprep.subr.mxu0 0.0
    %2137 = vmatpush1.msra.mxu0 0.0
    %2138 = vmatprep.subr.mxu0 0.0
    %2139 = vmatpush1.msra.mxu0 0.0
    %2140 = vmatprep.subr.mxu0 0.0
    %2141 = vmatpush1.msra.mxu0 0.0
    %2142 = vmatprep.subr.mxu0 0.0
    %2143 = vmatpush1.msra.mxu0 0.0
    %2144 = vmatprep.subr.mxu0 0.0
    %2145 = vmatpush1.msra.mxu0 0.0
    %2146 = vmatprep.subr.mxu0 0.0
    %2147 = vmatpush1.msra.mxu0 0.0
    %2148 = vmatprep.subr.mxu0 0.0
    %2149 = vmatpush1.msra.mxu0 0.0
    %2150 = vmatprep.subr.mxu0 0.0
    %2151 = vmatpush1.msra.mxu0 0.0
    %2152 = vmatprep.subr.mxu0 0.0
    %2153 = vmatpush1.msra.mxu0 0.0
    %2154 = vmatprep.subr.mxu0 0.0
    %2155 = vmatpush1.msra.mxu0 0.0
    %2156 = vmatprep.subr.mxu0 0.0
    %2157 = vmatpush1.msra.mxu0 0.0
    %2158 = vmatprep.subr.mxu0 0.0
    %2159 = vmatpush1.msra.mxu0 0.0
    %2160 = vmatprep.subr.mxu0 0.0
    %2161 = vmatpush1.msra.mxu0 0.0
    %2162 = vmatprep.subr.mxu0 0.0
    %2163 = vmatpush1.msra.mxu0 0.0
    %2164 = vmatprep.subr.mxu0 0.0
    %2165 = vmatpush1.msra.mxu0 0.0
    %2166 = vmatprep.subr.mxu0 0.0
    %2167 = vmatpush1.msra.mxu0 0.0
    %2168 = vmatprep.subr.mxu0 0.0
    %2169 = vmatpush1.msra.mxu0 0.0
    %2170 = vmatprep.subr.mxu0 0.0
    %2171 = vmatpush1.msra.mxu0 0.0
    %2172 = vmatprep.subr.mxu0 0.0
    %2173 = vmatpush1.msra.mxu0 0.0
    %2174 = vmatprep.subr.mxu0 0.0
    %2175 = vmatpush1.msra.mxu0 0.0
    %2176 = vmatprep.subr.mxu0 0.0
    %2177 = vmatpush1.msra.mxu0 0.0
    %2178 = vmatprep.subr.mxu0 0.0
    %2179 = vmatpush1.msra.mxu0 0.0
    %2180 = vmatprep.subr.mxu0 0.0
    %2181 = vmatpush1.msra.mxu0 0.0
    %2182 = vmatprep.subr.mxu0 0.0
    %2183 = vmatpush1.msra.mxu0 0.0
    %2184 = vmatprep.subr.mxu0 0.0
    %2185 = vmatpush1.msra.mxu0 0.0
    %2186 = vmatprep.subr.mxu0 0.0
    %2187 = vmatpush1.msra.mxu0 0.0
    %2188 = vmatprep.subr.mxu0 0.0
    %2189 = vmatpush1.msra.mxu0 0.0
    %2190 = vmatprep.mubr.f32.mxu0 0.0
    %2191 = vmatmul.mubr.f32.gmra.mrb[0].mxu0 %v2124
    %v2192 = vpop.f32.mrb[0].mxu0
    %v2193 = vadd.f32 0.0, %v2192
    %v2194 = vpop.f32.mrb[0].mxu0
    %v2195 = vadd.f32 0.0, %v2194
    %2196 = vdwg.mxu0
    %2197 = vmatprep.subr.mxu0 %v1791
    %2198 = vmatpush1.msra.mxu0 %v1790
    %2199 = vmatprep.subr.mxu0 0.0
    %2200 = vmatpush1.msra.mxu0 0.0
    %2201 = vmatprep.subr.mxu0 0.0
    %2202 = vmatpush1.msra.mxu0 0.0
    %2203 = vmatprep.subr.mxu0 0.0
    %2204 = vmatpush1.msra.mxu0 0.0
    %2205 = vmatprep.subr.mxu0 0.0
    %2206 = vmatpush1.msra.mxu0 0.0
    %2207 = vmatprep.subr.mxu0 0.0
    %2208 = vmatpush1.msra.mxu0 0.0
    %2209 = vmatprep.subr.mxu0 0.0
    %2210 = vmatpush1.msra.mxu0 0.0
    %2211 = vmatprep.subr.mxu0 0.0
    %2212 = vmatpush1.msra.mxu0 0.0
    %2213 = vmatprep.subr.mxu0 0.0
    %2214 = vmatpush1.msra.mxu0 0.0
    %2215 = vmatprep.subr.mxu0 0.0
    %2216 = vmatpush1.msra.mxu0 0.0
    %2217 = vmatprep.subr.mxu0 0.0
    %2218 = vmatpush1.msra.mxu0 0.0
    %2219 = vmatprep.subr.mxu0 0.0
    %2220 = vmatpush1.msra.mxu0 0.0
    %2221 = vmatprep.subr.mxu0 0.0
    %2222 = vmatpush1.msra.mxu0 0.0
    %2223 = vmatprep.subr.mxu0 0.0
    %2224 = vmatpush1.msra.mxu0 0.0
    %2225 = vmatprep.subr.mxu0 0.0
    %2226 = vmatpush1.msra.mxu0 0.0
    %2227 = vmatprep.subr.mxu0 0.0
    %2228 = vmatpush1.msra.mxu0 0.0
    %2229 = vmatprep.subr.mxu0 0.0
    %2230 = vmatpush1.msra.mxu0 0.0
    %2231 = vmatprep.subr.mxu0 0.0
    %2232 = vmatpush1.msra.mxu0 0.0
    %2233 = vmatprep.subr.mxu0 0.0
    %2234 = vmatpush1.msra.mxu0 0.0
    %2235 = vmatprep.subr.mxu0 0.0
    %2236 = vmatpush1.msra.mxu0 0.0
    %2237 = vmatprep.subr.mxu0 0.0
    %2238 = vmatpush1.msra.mxu0 0.0
    %2239 = vmatprep.subr.mxu0 0.0
    %2240 = vmatpush1.msra.mxu0 0.0
    %2241 = vmatprep.subr.mxu0 0.0
    %2242 = vmatpush1.msra.mxu0 0.0
    %2243 = vmatprep.subr.mxu0 0.0
    %2244 = vmatpush1.msra.mxu0 0.0
    %2245 = vmatprep.subr.mxu0 0.0
    %2246 = vmatpush1.msra.mxu0 0.0
    %2247 = vmatprep.subr.mxu0 0.0
    %2248 = vmatpush1.msra.mxu0 0.0
    %2249 = vmatprep.subr.mxu0 0.0
    %2250 = vmatpush1.msra.mxu0 0.0
    %2251 = vmatprep.subr.mxu0 0.0
    %2252 = vmatpush1.msra.mxu0 0.0
    %2253 = vmatprep.subr.mxu0 0.0
    %2254 = vmatpush1.msra.mxu0 0.0
    %2255 = vmatprep.subr.mxu0 0.0
    %2256 = vmatpush1.msra.mxu0 0.0
    %2257 = vmatprep.subr.mxu0 0.0
    %2258 = vmatpush1.msra.mxu0 0.0
    %2259 = vmatprep.subr.mxu0 0.0
    %2260 = vmatpush1.msra.mxu0 0.0
    %2261 = vmatprep.mubr.f32.mxu0 0.0
    %2262 = vmatmul.mubr.f32.gmra.mrb[0].mxu0 %v2124
    %v2263 = vpop.f32.mrb[0].mxu0
    %v2264 = vadd.f32 0.0, %v2263
    %v2265 = vpop.f32.mrb[0].mxu0
    %v2266 = vadd.f32 0.0, %v2265
    %2267 = vdwg.mxu0
    %2268 = vrot.lane.b32.xlu0 %v2193, 1
    %v2269 = vpop.permute.xlu0 %2268
    %2270 = vrot.lane.b32.xlu0 %v2195, 1
    %v2271 = vpop.permute.xlu0 %2270
    %2272 = vrot.lane.b32.xlu0 %v2264, 1
    %v2273 = vpop.permute.xlu0 %2272
    %2274 = vrot.lane.b32.xlu0 %v2266, 1
    %v2275 = vpop.permute.xlu0 %2274
    %v2276 = vsel %vm788, %v2273, %v2275
    %v2277 = vsel %vm788, %v2271, %v2273
    %v2278 = vsel %vm788, %v2269, %v2271
    %v2279 = vsel %vm788, %v2275, %v2269
    %v2280 = vsel %vm814, %v2279, 0.0
    %v2281 = vsel %vm815, %v2278, 0.0
    %v2282 = vsel %vm816, %v2277, 0.0
    %v2283 = vsel %vm817, %v2276, 0.0
    %v2284 = vadd.f32 %v2117, %v2280
    %v2285 = vadd.f32 %v2118, %v2281
    %v2286 = vadd.f32 %v2119, %v2282
    %v2287 = vadd.f32 %v2120, %v2283
    %s2288 = scalar_lea.vmem %s6, 24
    %v2289 = vld [vmem:[%s2288] sm:$0xff]
    %v2291 = vsel %vm49, %v2289, 0
    %2293 = vmatprep.subr.mxu0 %v1789
    %2294 = vmatpush1.msra.mxu0 %v1788
    %2295 = vmatprep.subr.mxu0 0.0
    %2296 = vmatpush1.msra.mxu0 0.0
    %2297 = vmatprep.subr.mxu0 0.0
    %2298 = vmatpush1.msra.mxu0 0.0
    %2299 = vmatprep.subr.mxu0 0.0
    %2300 = vmatpush1.msra.mxu0 0.0
    %2301 = vmatprep.subr.mxu0 0.0
    %2302 = vmatpush1.msra.mxu0 0.0
    %2303 = vmatprep.subr.mxu0 0.0
    %2304 = vmatpush1.msra.mxu0 0.0
    %2305 = vmatprep.subr.mxu0 0.0
    %2306 = vmatpush1.msra.mxu0 0.0
    %2307 = vmatprep.subr.mxu0 0.0
    %2308 = vmatpush1.msra.mxu0 0.0
    %2309 = vmatprep.subr.mxu0 0.0
    %2310 = vmatpush1.msra.mxu0 0.0
    %2311 = vmatprep.subr.mxu0 0.0
    %2312 = vmatpush1.msra.mxu0 0.0
    %2313 = vmatprep.subr.mxu0 0.0
    %2314 = vmatpush1.msra.mxu0 0.0
    %2315 = vmatprep.subr.mxu0 0.0
    %2316 = vmatpush1.msra.mxu0 0.0
    %2317 = vmatprep.subr.mxu0 0.0
    %2318 = vmatpush1.msra.mxu0 0.0
    %2319 = vmatprep.subr.mxu0 0.0
    %2320 = vmatpush1.msra.mxu0 0.0
    %2321 = vmatprep.subr.mxu0 0.0
    %2322 = vmatpush1.msra.mxu0 0.0
    %2323 = vmatprep.subr.mxu0 0.0
    %2324 = vmatpush1.msra.mxu0 0.0
    %2325 = vmatprep.subr.mxu0 0.0
    %2326 = vmatpush1.msra.mxu0 0.0
    %2327 = vmatprep.subr.mxu0 0.0
    %2328 = vmatpush1.msra.mxu0 0.0
    %2329 = vmatprep.subr.mxu0 0.0
    %2330 = vmatpush1.msra.mxu0 0.0
    %2331 = vmatprep.subr.mxu0 0.0
    %2332 = vmatpush1.msra.mxu0 0.0
    %2333 = vmatprep.subr.mxu0 0.0
    %2334 = vmatpush1.msra.mxu0 0.0
    %2335 = vmatprep.subr.mxu0 0.0
    %2336 = vmatpush1.msra.mxu0 0.0
    %2337 = vmatprep.subr.mxu0 0.0
    %2338 = vmatpush1.msra.mxu0 0.0
    %2339 = vmatprep.subr.mxu0 0.0
    %2340 = vmatpush1.msra.mxu0 0.0
    %2341 = vmatprep.subr.mxu0 0.0
    %2342 = vmatpush1.msra.mxu0 0.0
    %2343 = vmatprep.subr.mxu0 0.0
    %2344 = vmatpush1.msra.mxu0 0.0
    %2345 = vmatprep.subr.mxu0 0.0
    %2346 = vmatpush1.msra.mxu0 0.0
    %2347 = vmatprep.subr.mxu0 0.0
    %2348 = vmatpush1.msra.mxu0 0.0
    %2349 = vmatprep.subr.mxu0 0.0
    %2350 = vmatpush1.msra.mxu0 0.0
    %2351 = vmatprep.subr.mxu0 0.0
    %2352 = vmatpush1.msra.mxu0 0.0
    %2353 = vmatprep.subr.mxu0 0.0
    %2354 = vmatpush1.msra.mxu0 0.0
    %2355 = vmatprep.subr.mxu0 0.0
    %2356 = vmatpush1.msra.mxu0 0.0
    %2357 = vmatprep.mubr.f32.mxu0 0.0
    %2358 = vmatmul.mubr.f32.gmra.mrb[0].mxu0 %v2291
    %v2359 = vpop.f32.mrb[0].mxu0
    %v2360 = vadd.f32 0.0, %v2359
    %v2361 = vpop.f32.mrb[0].mxu0
    %v2362 = vadd.f32 0.0, %v2361
    %2363 = vdwg.mxu0
    %2364 = vmatprep.subr.mxu0 %v1791
    %2365 = vmatpush1.msra.mxu0 %v1790
    %2366 = vmatprep.subr.mxu0 0.0
    %2367 = vmatpush1.msra.mxu0 0.0
    %2368 = vmatprep.subr.mxu0 0.0
    %2369 = vmatpush1.msra.mxu0 0.0
    %2370 = vmatprep.subr.mxu0 0.0
    %2371 = vmatpush1.msra.mxu0 0.0
    %2372 = vmatprep.subr.mxu0 0.0
    %2373 = vmatpush1.msra.mxu0 0.0
    %2374 = vmatprep.subr.mxu0 0.0
    %2375 = vmatpush1.msra.mxu0 0.0
    %2376 = vmatprep.subr.mxu0 0.0
    %2377 = vmatpush1.msra.mxu0 0.0
    %2378 = vmatprep.subr.mxu0 0.0
    %2379 = vmatpush1.msra.mxu0 0.0
    %2380 = vmatprep.subr.mxu0 0.0
    %2381 = vmatpush1.msra.mxu0 0.0
    %2382 = vmatprep.subr.mxu0 0.0
    %2383 = vmatpush1.msra.mxu0 0.0
    %2384 = vmatprep.subr.mxu0 0.0
    %2385 = vmatpush1.msra.mxu0 0.0
    %2386 = vmatprep.subr.mxu0 0.0
    %2387 = vmatpush1.msra.mxu0 0.0
    %2388 = vmatprep.subr.mxu0 0.0
    %2389 = vmatpush1.msra.mxu0 0.0
    %2390 = vmatprep.subr.mxu0 0.0
    %2391 = vmatpush1.msra.mxu0 0.0
    %2392 = vmatprep.subr.mxu0 0.0
    %2393 = vmatpush1.msra.mxu0 0.0
    %2394 = vmatprep.subr.mxu0 0.0
    %2395 = vmatpush1.msra.mxu0 0.0
    %2396 = vmatprep.subr.mxu0 0.0
    %2397 = vmatpush1.msra.mxu0 0.0
    %2398 = vmatprep.subr.mxu0 0.0
    %2399 = vmatpush1.msra.mxu0 0.0
    %2400 = vmatprep.subr.mxu0 0.0
    %2401 = vmatpush1.msra.mxu0 0.0
    %2402 = vmatprep.subr.mxu0 0.0
    %2403 = vmatpush1.msra.mxu0 0.0
    %2404 = vmatprep.subr.mxu0 0.0
    %2405 = vmatpush1.msra.mxu0 0.0
    %2406 = vmatprep.subr.mxu0 0.0
    %2407 = vmatpush1.msra.mxu0 0.0
    %2408 = vmatprep.subr.mxu0 0.0
    %2409 = vmatpush1.msra.mxu0 0.0
    %2410 = vmatprep.subr.mxu0 0.0
    %2411 = vmatpush1.msra.mxu0 0.0
    %2412 = vmatprep.subr.mxu0 0.0
    %2413 = vmatpush1.msra.mxu0 0.0
    %2414 = vmatprep.subr.mxu0 0.0
    %2415 = vmatpush1.msra.mxu0 0.0
    %2416 = vmatprep.subr.mxu0 0.0
    %2417 = vmatpush1.msra.mxu0 0.0
    %2418 = vmatprep.subr.mxu0 0.0
    %2419 = vmatpush1.msra.mxu0 0.0
    %2420 = vmatprep.subr.mxu0 0.0
    %2421 = vmatpush1.msra.mxu0 0.0
    %2422 = vmatprep.subr.mxu0 0.0
    %2423 = vmatpush1.msra.mxu0 0.0
    %2424 = vmatprep.subr.mxu0 0.0
    %2425 = vmatpush1.msra.mxu0 0.0
    %2426 = vmatprep.subr.mxu0 0.0
    %2427 = vmatpush1.msra.mxu0 0.0
    %2428 = vmatprep.mubr.f32.mxu0 0.0
    %2429 = vmatmul.mubr.f32.gmra.mrb[0].mxu0 %v2291
    %v2430 = vpop.f32.mrb[0].mxu0
    %v2431 = vadd.f32 0.0, %v2430
    %v2432 = vpop.f32.mrb[0].mxu0
    %v2433 = vadd.f32 0.0, %v2432
    %2434 = vdwg.mxu0
    %v2435 = vadd.f32 %v2284, %v2360
    %v2436 = vadd.f32 %v2285, %v2362
    %v2437 = vadd.f32 %v2286, %v2431
    %v2438 = vadd.f32 %v2287, %v2433
    %v2439 = vld [vmem:[%s7] sm:$0xff]
    %2441 = vset.pattern.permute.xlu0 0
    %2442 = vperm.xlu0 %2441, %v2439
    %v2443 = vpop.permute.xlu0 %2442
    %v2445 = vmul.f32 %v2435, %v2443
    %v2446 = vmul.f32 %v2436, %v2443
    %v2447 = vmul.f32 %v2437, %v2443
    %v2448 = vmul.f32 %v2438, %v2443
    %v2449 = vld [vmem:[%s8] sm:$0xff]
    %2451 = vset.pattern.permute.xlu0 0
    %2452 = vperm.xlu0 %2451, %v2449
    %v2453 = vpop.permute.xlu0 %2452
    %v2455 = vadd.f32 %v2445, %v2453
    %v2456 = vadd.f32 %v2446, %v2453
    %v2457 = vadd.f32 %v2447, %v2453
    %v2458 = vadd.f32 %v2448, %v2453
    %v2459 = vxor.u32 %v2455, 2147483648
    %v2460 = vxor.u32 %v2456, 2147483648
    %v2461 = vxor.u32 %v2457, 2147483648
    %v2462 = vxor.u32 %v2458, 2147483648
    %v2463 = vmul.f32 %v2459, 1.442695
    %v2464 = vpow.pop %v2463
    %v2465 = vmul.f32 %v2460, 1.442695
    %v2466 = vpow.pop %v2465
    %v2467 = vmul.f32 %v2461, 1.442695
    %v2468 = vpow.pop %v2467
    %v2469 = vmul.f32 %v2462, 1.442695
    %v2470 = vpow.pop %v2469
    %v2471 = vadd.f32 %v2464, 1.0
    %v2472 = vadd.f32 %v2466, 1.0
    %v2473 = vadd.f32 %v2468, 1.0
    %v2474 = vadd.f32 %v2470, 1.0
    %v2475 = vrcp.pop %v2471
    %v2476 = vmul.f32 1.0, %v2475
    %v2477 = vrcp.pop %v2472
    %v2478 = vmul.f32 1.0, %v2477
    %v2479 = vrcp.pop %v2473
    %v2480 = vmul.f32 1.0, %v2479
    %v2481 = vrcp.pop %v2474
    %v2482 = vmul.f32 1.0, %v2481
    %v2483 = vmul.f32 %v2455, %v2476
    %v2484 = vmul.f32 %v2456, %v2478
    %v2485 = vmul.f32 %v2457, %v2480
    %v2486 = vmul.f32 %v2458, %v2482
    %v2487 = vld [vmem:[%s9] sm:$0xf]
    %v2489 = vsel %vm49, %v2487, 0
    %2491 = vmatprep.subr.mxu0 %v2484
    %2492 = vmatpush1.msra.mxu0 %v2483
    %2493 = vmatprep.subr.mxu0 0.0
    %2494 = vmatpush1.msra.mxu0 0.0
    %2495 = vmatprep.subr.mxu0 0.0
    %2496 = vmatpush1.msra.mxu0 0.0
    %2497 = vmatprep.subr.mxu0 0.0
    %2498 = vmatpush1.msra.mxu0 0.0
    %2499 = vmatprep.subr.mxu0 0.0
    %2500 = vmatpush1.msra.mxu0 0.0
    %2501 = vmatprep.subr.mxu0 0.0
    %2502 = vmatpush1.msra.mxu0 0.0
    %2503 = vmatprep.subr.mxu0 0.0
    %2504 = vmatpush1.msra.mxu0 0.0
    %2505 = vmatprep.subr.mxu0 0.0
    %2506 = vmatpush1.msra.mxu0 0.0
    %2507 = vmatprep.subr.mxu0 0.0
    %2508 = vmatpush1.msra.mxu0 0.0
    %2509 = vmatprep.subr.mxu0 0.0
    %2510 = vmatpush1.msra.mxu0 0.0
    %2511 = vmatprep.subr.mxu0 0.0
    %2512 = vmatpush1.msra.mxu0 0.0
    %2513 = vmatprep.subr.mxu0 0.0
    %2514 = vmatpush1.msra.mxu0 0.0
    %2515 = vmatprep.subr.mxu0 0.0
    %2516 = vmatpush1.msra.mxu0 0.0
    %2517 = vmatprep.subr.mxu0 0.0
    %2518 = vmatpush1.msra.mxu0 0.0
    %2519 = vmatprep.subr.mxu0 0.0
    %2520 = vmatpush1.msra.mxu0 0.0
    %2521 = vmatprep.subr.mxu0 0.0
    %2522 = vmatpush1.msra.mxu0 0.0
    %2523 = vmatprep.subr.mxu0 0.0
    %2524 = vmatpush1.msra.mxu0 0.0
    %2525 = vmatprep.subr.mxu0 0.0
    %2526 = vmatpush1.msra.mxu0 0.0
    %2527 = vmatprep.subr.mxu0 0.0
    %2528 = vmatpush1.msra.mxu0 0.0
    %2529 = vmatprep.subr.mxu0 0.0
    %2530 = vmatpush1.msra.mxu0 0.0
    %2531 = vmatprep.subr.mxu0 0.0
    %2532 = vmatpush1.msra.mxu0 0.0
    %2533 = vmatprep.subr.mxu0 0.0
    %2534 = vmatpush1.msra.mxu0 0.0
    %2535 = vmatprep.subr.mxu0 0.0
    %2536 = vmatpush1.msra.mxu0 0.0
    %2537 = vmatprep.subr.mxu0 0.0
    %2538 = vmatpush1.msra.mxu0 0.0
    %2539 = vmatprep.subr.mxu0 0.0
    %2540 = vmatpush1.msra.mxu0 0.0
    %2541 = vmatprep.subr.mxu0 0.0
    %2542 = vmatpush1.msra.mxu0 0.0
    %2543 = vmatprep.subr.mxu0 0.0
    %2544 = vmatpush1.msra.mxu0 0.0
    %2545 = vmatprep.subr.mxu0 0.0
    %2546 = vmatpush1.msra.mxu0 0.0
    %2547 = vmatprep.subr.mxu0 0.0
    %2548 = vmatpush1.msra.mxu0 0.0
    %2549 = vmatprep.subr.mxu0 0.0
    %2550 = vmatpush1.msra.mxu0 0.0
    %2551 = vmatprep.subr.mxu0 0.0
    %2552 = vmatpush1.msra.mxu0 0.0
    %2553 = vmatprep.subr.mxu0 0.0
    %2554 = vmatpush1.msra.mxu0 0.0
    %2555 = vmatprep.mubr.f32.mxu0 0.0
    %2556 = vmatmul.mubr.f32.gmra.mrb[0].mxu0 %v2489
    %v2557 = vpop.f32.mrb[0].mxu0
    %v2558 = vadd.f32 0.0, %v2557
    %v2559 = vpop.f32.mrb[0].mxu0
    %v2560 = vadd.f32 0.0, %v2559
    %2561 = vdwg.mxu0
    %2562 = vmatprep.subr.mxu0 %v2486
    %2563 = vmatpush1.msra.mxu0 %v2485
    %2564 = vmatprep.subr.mxu0 0.0
    %2565 = vmatpush1.msra.mxu0 0.0
    %2566 = vmatprep.subr.mxu0 0.0
    %2567 = vmatpush1.msra.mxu0 0.0
    %2568 = vmatprep.subr.mxu0 0.0
    %2569 = vmatpush1.msra.mxu0 0.0
    %2570 = vmatprep.subr.mxu0 0.0
    %2571 = vmatpush1.msra.mxu0 0.0
    %2572 = vmatprep.subr.mxu0 0.0
    %2573 = vmatpush1.msra.mxu0 0.0
    %2574 = vmatprep.subr.mxu0 0.0
    %2575 = vmatpush1.msra.mxu0 0.0
    %2576 = vmatprep.subr.mxu0 0.0
    %2577 = vmatpush1.msra.mxu0 0.0
    %2578 = vmatprep.subr.mxu0 0.0
    %2579 = vmatpush1.msra.mxu0 0.0
    %2580 = vmatprep.subr.mxu0 0.0
    %2581 = vmatpush1.msra.mxu0 0.0
    %2582 = vmatprep.subr.mxu0 0.0
    %2583 = vmatpush1.msra.mxu0 0.0
    %2584 = vmatprep.subr.mxu0 0.0
    %2585 = vmatpush1.msra.mxu0 0.0
    %2586 = vmatprep.subr.mxu0 0.0
    %2587 = vmatpush1.msra.mxu0 0.0
    %2588 = vmatprep.subr.mxu0 0.0
    %2589 = vmatpush1.msra.mxu0 0.0
    %2590 = vmatprep.subr.mxu0 0.0
    %2591 = vmatpush1.msra.mxu0 0.0
    %2592 = vmatprep.subr.mxu0 0.0
    %2593 = vmatpush1.msra.mxu0 0.0
    %2594 = vmatprep.subr.mxu0 0.0
    %2595 = vmatpush1.msra.mxu0 0.0
    %2596 = vmatprep.subr.mxu0 0.0
    %2597 = vmatpush1.msra.mxu0 0.0
    %2598 = vmatprep.subr.mxu0 0.0
    %2599 = vmatpush1.msra.mxu0 0.0
    %2600 = vmatprep.subr.mxu0 0.0
    %2601 = vmatpush1.msra.mxu0 0.0
    %2602 = vmatprep.subr.mxu0 0.0
    %2603 = vmatpush1.msra.mxu0 0.0
    %2604 = vmatprep.subr.mxu0 0.0
    %2605 = vmatpush1.msra.mxu0 0.0
    %2606 = vmatprep.subr.mxu0 0.0
    %2607 = vmatpush1.msra.mxu0 0.0
    %2608 = vmatprep.subr.mxu0 0.0
    %2609 = vmatpush1.msra.mxu0 0.0
    %2610 = vmatprep.subr.mxu0 0.0
    %2611 = vmatpush1.msra.mxu0 0.0
    %2612 = vmatprep.subr.mxu0 0.0
    %2613 = vmatpush1.msra.mxu0 0.0
    %2614 = vmatprep.subr.mxu0 0.0
    %2615 = vmatpush1.msra.mxu0 0.0
    %2616 = vmatprep.subr.mxu0 0.0
    %2617 = vmatpush1.msra.mxu0 0.0
    %2618 = vmatprep.subr.mxu0 0.0
    %2619 = vmatpush1.msra.mxu0 0.0
    %2620 = vmatprep.subr.mxu0 0.0
    %2621 = vmatpush1.msra.mxu0 0.0
    %2622 = vmatprep.subr.mxu0 0.0
    %2623 = vmatpush1.msra.mxu0 0.0
    %2624 = vmatprep.subr.mxu0 0.0
    %2625 = vmatpush1.msra.mxu0 0.0
    %2626 = vmatprep.mubr.f32.mxu0 0.0
    %2627 = vmatmul.mubr.f32.gmra.mrb[0].mxu0 %v2489
    %v2628 = vpop.f32.mrb[0].mxu0
    %v2629 = vadd.f32 0.0, %v2628
    %v2630 = vpop.f32.mrb[0].mxu0
    %v2631 = vadd.f32 0.0, %v2630
    %2632 = vdwg.mxu0
    %v2633 = vld [vmem:[%s10] sm:$0xf]
    %2635 = vset.pattern.permute.xlu0 0
    %2636 = vperm.xlu0 %2635, %v2633
    %v2637 = vpop.permute.xlu0 %2636
    %v2639 = vmul.f32 %v2558, %v2637
    %v2640 = vmul.f32 %v2560, %v2637
    %v2641 = vmul.f32 %v2629, %v2637
    %v2642 = vmul.f32 %v2631, %v2637
    %v2643 = vld [vmem:[%s11] sm:$0xf]
    %2645 = vset.pattern.permute.xlu0 0
    %2646 = vperm.xlu0 %2645, %v2643
    %v2647 = vpop.permute.xlu0 %2646
    %v2649 = vadd.f32 %v2639, %v2647
    %v2650 = vadd.f32 %v2640, %v2647
    %v2651 = vadd.f32 %v2641, %v2647
    %v2652 = vadd.f32 %v2642, %v2647
    %v2653 = vxor.u32 %v2649, 2147483648
    %v2654 = vxor.u32 %v2650, 2147483648
    %v2655 = vxor.u32 %v2651, 2147483648
    %v2656 = vxor.u32 %v2652, 2147483648
    %v2657 = vmul.f32 %v2653, 1.442695
    %v2658 = vpow.pop %v2657
    %v2659 = vmul.f32 %v2654, 1.442695
    %v2660 = vpow.pop %v2659
    %v2661 = vmul.f32 %v2655, 1.442695
    %v2662 = vpow.pop %v2661
    %v2663 = vmul.f32 %v2656, 1.442695
    %v2664 = vpow.pop %v2663
    %v2665 = vadd.f32 %v2658, 1.0
    %v2666 = vadd.f32 %v2660, 1.0
    %v2667 = vadd.f32 %v2662, 1.0
    %v2668 = vadd.f32 %v2664, 1.0
    %v2669 = vrcp.pop %v2665
    %v2670 = vmul.f32 1.0, %v2669
    %v2671 = vrcp.pop %v2666
    %v2672 = vmul.f32 1.0, %v2671
    %v2673 = vrcp.pop %v2667
    %v2674 = vmul.f32 1.0, %v2673
    %v2675 = vrcp.pop %v2668
    %v2676 = vmul.f32 1.0, %v2675
    %v2677 = vmul.f32 %v2649, %v2670
    %v2678 = vmul.f32 %v2650, %v2672
    %v2679 = vmul.f32 %v2651, %v2674
    %v2680 = vmul.f32 %v2652, %v2676
    %v2685 = vcombine.low %v2677, %v2678
    %v2686 = vcombine.low %v2679, %v2680
    %2689 = vst [vmem:[#allocation2] sm:$0xff] %v2685
    %2690 = vst [vmem:[#allocation2 + $0x8] sm:$0xff] %v2686
    %s2691 = scalar_lea.vmem %s6, 32
    %v2692 = vld [vmem:[%s2691] sm:$0xff]
    %v2694 = vsel %vm49, %v2692, 0
    %2696 = vmatprep.subr.mxu0 %v1789
    %2697 = vmatpush1.msra.mxu0 %v1788
    %2698 = vmatprep.subr.mxu0 0.0
    %2699 = vmatpush1.msra.mxu0 0.0
    %2700 = vmatprep.subr.mxu0 0.0
    %2701 = vmatpush1.msra.mxu0 0.0
    %2702 = vmatprep.subr.mxu0 0.0
    %2703 = vmatpush1.msra.mxu0 0.0
    %2704 = vmatprep.subr.mxu0 0.0
    %2705 = vmatpush1.msra.mxu0 0.0
    %2706 = vmatprep.subr.mxu0 0.0
    %2707 = vmatpush1.msra.mxu0 0.0
    %2708 = vmatprep.subr.mxu0 0.0
    %2709 = vmatpush1.msra.mxu0 0.0
    %2710 = vmatprep.subr.mxu0 0.0
    %2711 = vmatpush1.msra.mxu0 0.0
    %2712 = vmatprep.subr.mxu0 0.0
    %2713 = vmatpush1.msra.mxu0 0.0
    %2714 = vmatprep.subr.mxu0 0.0
    %2715 = vmatpush1.msra.mxu0 0.0
    %2716 = vmatprep.subr.mxu0 0.0
    %2717 = vmatpush1.msra.mxu0 0.0
    %2718 = vmatprep.subr.mxu0 0.0
    %2719 = vmatpush1.msra.mxu0 0.0
    %2720 = vmatprep.subr.mxu0 0.0
    %2721 = vmatpush1.msra.mxu0 0.0
    %2722 = vmatprep.subr.mxu0 0.0
    %2723 = vmatpush1.msra.mxu0 0.0
    %2724 = vmatprep.subr.mxu0 0.0
    %2725 = vmatpush1.msra.mxu0 0.0
    %2726 = vmatprep.subr.mxu0 0.0
    %2727 = vmatpush1.msra.mxu0 0.0
    %2728 = vmatprep.subr.mxu0 0.0
    %2729 = vmatpush1.msra.mxu0 0.0
    %2730 = vmatprep.subr.mxu0 0.0
    %2731 = vmatpush1.msra.mxu0 0.0
    %2732 = vmatprep.subr.mxu0 0.0
    %2733 = vmatpush1.msra.mxu0 0.0
    %2734 = vmatprep.subr.mxu0 0.0
    %2735 = vmatpush1.msra.mxu0 0.0
    %2736 = vmatprep.subr.mxu0 0.0
    %2737 = vmatpush1.msra.mxu0 0.0
    %2738 = vmatprep.subr.mxu0 0.0
    %2739 = vmatpush1.msra.mxu0 0.0
    %2740 = vmatprep.subr.mxu0 0.0
    %2741 = vmatpush1.msra.mxu0 0.0
    %2742 = vmatprep.subr.mxu0 0.0
    %2743 = vmatpush1.msra.mxu0 0.0
    %2744 = vmatprep.subr.mxu0 0.0
    %2745 = vmatpush1.msra.mxu0 0.0
    %2746 = vmatprep.subr.mxu0 0.0
    %2747 = vmatpush1.msra.mxu0 0.0
    %2748 = vmatprep.subr.mxu0 0.0
    %2749 = vmatpush1.msra.mxu0 0.0
    %2750 = vmatprep.subr.mxu0 0.0
    %2751 = vmatpush1.msra.mxu0 0.0
    %2752 = vmatprep.subr.mxu0 0.0
    %2753 = vmatpush1.msra.mxu0 0.0
    %2754 = vmatprep.subr.mxu0 0.0
    %2755 = vmatpush1.msra.mxu0 0.0
    %2756 = vmatprep.subr.mxu0 0.0
    %2757 = vmatpush1.msra.mxu0 0.0
    %2758 = vmatprep.subr.mxu0 0.0
    %2759 = vmatpush1.msra.mxu0 0.0
    %2760 = vmatprep.mubr.f32.mxu0 0.0
    %2761 = vmatmul.mubr.f32.gmra.mrb[0].mxu0 %v2694
    %v2762 = vpop.f32.mrb[0].mxu0
    %v2763 = vadd.f32 0.0, %v2762
    %v2764 = vpop.f32.mrb[0].mxu0
    %v2765 = vadd.f32 0.0, %v2764
    %2766 = vdwg.mxu0
    %2767 = vmatprep.subr.mxu0 %v1791
    %2768 = vmatpush1.msra.mxu0 %v1790
    %2769 = vmatprep.subr.mxu0 0.0
    %2770 = vmatpush1.msra.mxu0 0.0
    %2771 = vmatprep.subr.mxu0 0.0
    %2772 = vmatpush1.msra.mxu0 0.0
    %2773 = vmatprep.subr.mxu0 0.0
    %2774 = vmatpush1.msra.mxu0 0.0
    %2775 = vmatprep.subr.mxu0 0.0
    %2776 = vmatpush1.msra.mxu0 0.0
    %2777 = vmatprep.subr.mxu0 0.0
    %2778 = vmatpush1.msra.mxu0 0.0
    %2779 = vmatprep.subr.mxu0 0.0
    %2780 = vmatpush1.msra.mxu0 0.0
    %2781 = vmatprep.subr.mxu0 0.0
    %2782 = vmatpush1.msra.mxu0 0.0
    %2783 = vmatprep.subr.mxu0 0.0
    %2784 = vmatpush1.msra.mxu0 0.0
    %2785 = vmatprep.subr.mxu0 0.0
    %2786 = vmatpush1.msra.mxu0 0.0
    %2787 = vmatprep.subr.mxu0 0.0
    %2788 = vmatpush1.msra.mxu0 0.0
    %2789 = vmatprep.subr.mxu0 0.0
    %2790 = vmatpush1.msra.mxu0 0.0
    %2791 = vmatprep.subr.mxu0 0.0
    %2792 = vmatpush1.msra.mxu0 0.0
    %2793 = vmatprep.subr.mxu0 0.0
    %2794 = vmatpush1.msra.mxu0 0.0
    %2795 = vmatprep.subr.mxu0 0.0
    %2796 = vmatpush1.msra.mxu0 0.0
    %2797 = vmatprep.subr.mxu0 0.0
    %2798 = vmatpush1.msra.mxu0 0.0
    %2799 = vmatprep.subr.mxu0 0.0
    %2800 = vmatpush1.msra.mxu0 0.0
    %2801 = vmatprep.subr.mxu0 0.0
    %2802 = vmatpush1.msra.mxu0 0.0
    %2803 = vmatprep.subr.mxu0 0.0
    %2804 = vmatpush1.msra.mxu0 0.0
    %2805 = vmatprep.subr.mxu0 0.0
    %2806 = vmatpush1.msra.mxu0 0.0
    %2807 = vmatprep.subr.mxu0 0.0
    %2808 = vmatpush1.msra.mxu0 0.0
    %2809 = vmatprep.subr.mxu0 0.0
    %2810 = vmatpush1.msra.mxu0 0.0
    %2811 = vmatprep.subr.mxu0 0.0
    %2812 = vmatpush1.msra.mxu0 0.0
    %2813 = vmatprep.subr.mxu0 0.0
    %2814 = vmatpush1.msra.mxu0 0.0
    %2815 = vmatprep.subr.mxu0 0.0
    %2816 = vmatpush1.msra.mxu0 0.0
    %2817 = vmatprep.subr.mxu0 0.0
    %2818 = vmatpush1.msra.mxu0 0.0
    %2819 = vmatprep.subr.mxu0 0.0
    %2820 = vmatpush1.msra.mxu0 0.0
    %2821 = vmatprep.subr.mxu0 0.0
    %2822 = vmatpush1.msra.mxu0 0.0
    %2823 = vmatprep.subr.mxu0 0.0
    %2824 = vmatpush1.msra.mxu0 0.0
    %2825 = vmatprep.subr.mxu0 0.0
    %2826 = vmatpush1.msra.mxu0 0.0
    %2827 = vmatprep.subr.mxu0 0.0
    %2828 = vmatpush1.msra.mxu0 0.0
    %2829 = vmatprep.subr.mxu0 0.0
    %2830 = vmatpush1.msra.mxu0 0.0
    %2831 = vmatprep.mubr.f32.mxu0 0.0
    %2832 = vmatmul.mubr.f32.gmra.mrb[0].mxu0 %v2694
    %v2833 = vpop.f32.mrb[0].mxu0
    %v2834 = vadd.f32 0.0, %v2833
    %v2835 = vpop.f32.mrb[0].mxu0
    %v2836 = vadd.f32 0.0, %v2835
    %2837 = vdwg.mxu0
    %2838 = vrot.lane.b32.xlu0 %v2763, 16
    %v2839 = vpop.permute.xlu0 %2838
    %2840 = vrot.lane.b32.xlu0 %v2765, 16
    %v2841 = vpop.permute.xlu0 %2840
    %2842 = vrot.lane.b32.xlu0 %v2834, 16
    %v2843 = vpop.permute.xlu0 %2842
    %2844 = vrot.lane.b32.xlu0 %v2836, 16
    %v2845 = vpop.permute.xlu0 %2844
    %v2846 = vsel %vm399, %v2843, %v2845
    %v2847 = vsel %vm399, %v2841, %v2843
    %v2848 = vsel %vm399, %v2839, %v2841
    %v2849 = vsel %vm399, %v2845, %v2839
    %v2850 = vsel %vm426, %v2849, 0.0
    %v2851 = vsel %vm427, %v2848, 0.0
    %v2852 = vsel %vm428, %v2847, 0.0
    %v2853 = vsel %vm429, %v2846, 0.0
    %s2854 = scalar_lea.vmem %s6, 40
    %v2855 = vld [vmem:[%s2854] sm:$0xff]
    %v2857 = vsel %vm49, %v2855, 0
    %2859 = vmatprep.subr.mxu0 %v1789
    %2860 = vmatpush1.msra.mxu0 %v1788
    %2861 = vmatprep.subr.mxu0 0.0
    %2862 = vmatpush1.msra.mxu0 0.0
    %2863 = vmatprep.subr.mxu0 0.0
    %2864 = vmatpush1.msra.mxu0 0.0
    %2865 = vmatprep.subr.mxu0 0.0
    %2866 = vmatpush1.msra.mxu0 0.0
    %2867 = vmatprep.subr.mxu0 0.0
    %2868 = vmatpush1.msra.mxu0 0.0
    %2869 = vmatprep.subr.mxu0 0.0
    %2870 = vmatpush1.msra.mxu0 0.0
    %2871 = vmatprep.subr.mxu0 0.0
    %2872 = vmatpush1.msra.mxu0 0.0
    %2873 = vmatprep.subr.mxu0 0.0
    %2874 = vmatpush1.msra.mxu0 0.0
    %2875 = vmatprep.subr.mxu0 0.0
    %2876 = vmatpush1.msra.mxu0 0.0
    %2877 = vmatprep.subr.mxu0 0.0
    %2878 = vmatpush1.msra.mxu0 0.0
    %2879 = vmatprep.subr.mxu0 0.0
    %2880 = vmatpush1.msra.mxu0 0.0
    %2881 = vmatprep.subr.mxu0 0.0
    %2882 = vmatpush1.msra.mxu0 0.0
    %2883 = vmatprep.subr.mxu0 0.0
    %2884 = vmatpush1.msra.mxu0 0.0
    %2885 = vmatprep.subr.mxu0 0.0
    %2886 = vmatpush1.msra.mxu0 0.0
    %2887 = vmatprep.subr.mxu0 0.0
    %2888 = vmatpush1.msra.mxu0 0.0
    %2889 = vmatprep.subr.mxu0 0.0
    %2890 = vmatpush1.msra.mxu0 0.0
    %2891 = vmatprep.subr.mxu0 0.0
    %2892 = vmatpush1.msra.mxu0 0.0
    %2893 = vmatprep.subr.mxu0 0.0
    %2894 = vmatpush1.msra.mxu0 0.0
    %2895 = vmatprep.subr.mxu0 0.0
    %2896 = vmatpush1.msra.mxu0 0.0
    %2897 = vmatprep.subr.mxu0 0.0
    %2898 = vmatpush1.msra.mxu0 0.0
    %2899 = vmatprep.subr.mxu0 0.0
    %2900 = vmatpush1.msra.mxu0 0.0
    %2901 = vmatprep.subr.mxu0 0.0
    %2902 = vmatpush1.msra.mxu0 0.0
    %2903 = vmatprep.subr.mxu0 0.0
    %2904 = vmatpush1.msra.mxu0 0.0
    %2905 = vmatprep.subr.mxu0 0.0
    %2906 = vmatpush1.msra.mxu0 0.0
    %2907 = vmatprep.subr.mxu0 0.0
    %2908 = vmatpush1.msra.mxu0 0.0
    %2909 = vmatprep.subr.mxu0 0.0
    %2910 = vmatpush1.msra.mxu0 0.0
    %2911 = vmatprep.subr.mxu0 0.0
    %2912 = vmatpush1.msra.mxu0 0.0
    %2913 = vmatprep.subr.mxu0 0.0
    %2914 = vmatpush1.msra.mxu0 0.0
    %2915 = vmatprep.subr.mxu0 0.0
    %2916 = vmatpush1.msra.mxu0 0.0
    %2917 = vmatprep.subr.mxu0 0.0
    %2918 = vmatpush1.msra.mxu0 0.0
    %2919 = vmatprep.subr.mxu0 0.0
    %2920 = vmatpush1.msra.mxu0 0.0
    %2921 = vmatprep.subr.mxu0 0.0
    %2922 = vmatpush1.msra.mxu0 0.0
    %2923 = vmatprep.mubr.f32.mxu0 0.0
    %2924 = vmatmul.mubr.f32.gmra.mrb[0].mxu0 %v2857
    %v2925 = vpop.f32.mrb[0].mxu0
    %v2926 = vadd.f32 0.0, %v2925
    %v2927 = vpop.f32.mrb[0].mxu0
    %v2928 = vadd.f32 0.0, %v2927
    %2929 = vdwg.mxu0
    %2930 = vmatprep.subr.mxu0 %v1791
    %2931 = vmatpush1.msra.mxu0 %v1790
    %2932 = vmatprep.subr.mxu0 0.0
    %2933 = vmatpush1.msra.mxu0 0.0
    %2934 = vmatprep.subr.mxu0 0.0
    %2935 = vmatpush1.msra.mxu0 0.0
    %2936 = vmatprep.subr.mxu0 0.0
    %2937 = vmatpush1.msra.mxu0 0.0
    %2938 = vmatprep.subr.mxu0 0.0
    %2939 = vmatpush1.msra.mxu0 0.0
    %2940 = vmatprep.subr.mxu0 0.0
    %2941 = vmatpush1.msra.mxu0 0.0
    %2942 = vmatprep.subr.mxu0 0.0
    %2943 = vmatpush1.msra.mxu0 0.0
    %2944 = vmatprep.subr.mxu0 0.0
    %2945 = vmatpush1.msra.mxu0 0.0
    %2946 = vmatprep.subr.mxu0 0.0
    %2947 = vmatpush1.msra.mxu0 0.0
    %2948 = vmatprep.subr.mxu0 0.0
    %2949 = vmatpush1.msra.mxu0 0.0
    %2950 = vmatprep.subr.mxu0 0.0
    %2951 = vmatpush1.msra.mxu0 0.0
    %2952 = vmatprep.subr.mxu0 0.0
    %2953 = vmatpush1.msra.mxu0 0.0
    %2954 = vmatprep.subr.mxu0 0.0
    %2955 = vmatpush1.msra.mxu0 0.0
    %2956 = vmatprep.subr.mxu0 0.0
    %2957 = vmatpush1.msra.mxu0 0.0
    %2958 = vmatprep.subr.mxu0 0.0
    %2959 = vmatpush1.msra.mxu0 0.0
    %2960 = vmatprep.subr.mxu0 0.0
    %2961 = vmatpush1.msra.mxu0 0.0
    %2962 = vmatprep.subr.mxu0 0.0
    %2963 = vmatpush1.msra.mxu0 0.0
    %2964 = vmatprep.subr.mxu0 0.0
    %2965 = vmatpush1.msra.mxu0 0.0
    %2966 = vmatprep.subr.mxu0 0.0
    %2967 = vmatpush1.msra.mxu0 0.0
    %2968 = vmatprep.subr.mxu0 0.0
    %2969 = vmatpush1.msra.mxu0 0.0
    %2970 = vmatprep.subr.mxu0 0.0
    %2971 = vmatpush1.msra.mxu0 0.0
    %2972 = vmatprep.subr.mxu0 0.0
    %2973 = vmatpush1.msra.mxu0 0.0
    %2974 = vmatprep.subr.mxu0 0.0
    %2975 = vmatpush1.msra.mxu0 0.0
    %2976 = vmatprep.subr.mxu0 0.0
    %2977 = vmatpush1.msra.mxu0 0.0
    %2978 = vmatprep.subr.mxu0 0.0
    %2979 = vmatpush1.msra.mxu0 0.0
    %2980 = vmatprep.subr.mxu0 0.0
    %2981 = vmatpush1.msra.mxu0 0.0
    %2982 = vmatprep.subr.mxu0 0.0
    %2983 = vmatpush1.msra.mxu0 0.0
    %2984 = vmatprep.subr.mxu0 0.0
    %2985 = vmatpush1.msra.mxu0 0.0
    %2986 = vmatprep.subr.mxu0 0.0
    %2987 = vmatpush1.msra.mxu0 0.0
    %2988 = vmatprep.subr.mxu0 0.0
    %2989 = vmatpush1.msra.mxu0 0.0
    %2990 = vmatprep.subr.mxu0 0.0
    %2991 = vmatpush1.msra.mxu0 0.0
    %2992 = vmatprep.subr.mxu0 0.0
    %2993 = vmatpush1.msra.mxu0 0.0
    %2994 = vmatprep.mubr.f32.mxu0 0.0
    %2995 = vmatmul.mubr.f32.gmra.mrb[0].mxu0 %v2857
    %v2996 = vpop.f32.mrb[0].mxu0
    %v2997 = vadd.f32 0.0, %v2996
    %v2998 = vpop.f32.mrb[0].mxu0
    %v2999 = vadd.f32 0.0, %v2998
    %3000 = vdwg.mxu0
    %3001 = vrot.lane.b32.xlu0 %v2926, 15
    %v3002 = vpop.permute.xlu0 %3001
    %3003 = vrot.lane.b32.xlu0 %v2928, 15
    %v3004 = vpop.permute.xlu0 %3003
    %3005 = vrot.lane.b32.xlu0 %v2997, 15
    %v3006 = vpop.permute.xlu0 %3005
    %3007 = vrot.lane.b32.xlu0 %v2999, 15
    %v3008 = vpop.permute.xlu0 %3007
    %v3009 = vsel %vm593, %v3006, %v3008
    %v3010 = vsel %vm593, %v3004, %v3006
    %v3011 = vsel %vm593, %v3002, %v3004
    %v3012 = vsel %vm593, %v3008, %v3002
    %v3013 = vsel %vm621, %v3012, 0.0
    %v3014 = vsel %vm622, %v3011, 0.0
    %v3015 = vsel %vm623, %v3010, 0.0
    %v3016 = vsel %vm624, %v3009, 0.0
    %v3017 = vadd.f32 %v2850, %v3013
    %v3018 = vadd.f32 %v2851, %v3014
    %v3019 = vadd.f32 %v2852, %v3015
    %v3020 = vadd.f32 %v2853, %v3016
    %s3021 = scalar_lea.vmem %s6, 48
    %v3022 = vld [vmem:[%s3021] sm:$0xff]
    %v3024 = vsel %vm49, %v3022, 0
    %3026 = vmatprep.subr.mxu0 %v1789
    %3027 = vmatpush1.msra.mxu0 %v1788
    %3028 = vmatprep.subr.mxu0 0.0
    %3029 = vmatpush1.msra.mxu0 0.0
    %3030 = vmatprep.subr.mxu0 0.0
    %3031 = vmatpush1.msra.mxu0 0.0
    %3032 = vmatprep.subr.mxu0 0.0
    %3033 = vmatpush1.msra.mxu0 0.0
    %3034 = vmatprep.subr.mxu0 0.0
    %3035 = vmatpush1.msra.mxu0 0.0
    %3036 = vmatprep.subr.mxu0 0.0
    %3037 = vmatpush1.msra.mxu0 0.0
    %3038 = vmatprep.subr.mxu0 0.0
    %3039 = vmatpush1.msra.mxu0 0.0
    %3040 = vmatprep.subr.mxu0 0.0
    %3041 = vmatpush1.msra.mxu0 0.0
    %3042 = vmatprep.subr.mxu0 0.0
    %3043 = vmatpush1.msra.mxu0 0.0
    %3044 = vmatprep.subr.mxu0 0.0
    %3045 = vmatpush1.msra.mxu0 0.0
    %3046 = vmatprep.subr.mxu0 0.0
    %3047 = vmatpush1.msra.mxu0 0.0
    %3048 = vmatprep.subr.mxu0 0.0
    %3049 = vmatpush1.msra.mxu0 0.0
    %3050 = vmatprep.subr.mxu0 0.0
    %3051 = vmatpush1.msra.mxu0 0.0
    %3052 = vmatprep.subr.mxu0 0.0
    %3053 = vmatpush1.msra.mxu0 0.0
    %3054 = vmatprep.subr.mxu0 0.0
    %3055 = vmatpush1.msra.mxu0 0.0
    %3056 = vmatprep.subr.mxu0 0.0
    %3057 = vmatpush1.msra.mxu0 0.0
    %3058 = vmatprep.subr.mxu0 0.0
    %3059 = vmatpush1.msra.mxu0 0.0
    %3060 = vmatprep.subr.mxu0 0.0
    %3061 = vmatpush1.msra.mxu0 0.0
    %3062 = vmatprep.subr.mxu0 0.0
    %3063 = vmatpush1.msra.mxu0 0.0
    %3064 = vmatprep.subr.mxu0 0.0
    %3065 = vmatpush1.msra.mxu0 0.0
    %3066 = vmatprep.subr.mxu0 0.0
    %3067 = vmatpush1.msra.mxu0 0.0
    %3068 = vmatprep.subr.mxu0 0.0
    %3069 = vmatpush1.msra.mxu0 0.0
    %3070 = vmatprep.subr.mxu0 0.0
    %3071 = vmatpush1.msra.mxu0 0.0
    %3072 = vmatprep.subr.mxu0 0.0
    %3073 = vmatpush1.msra.mxu0 0.0
    %3074 = vmatprep.subr.mxu0 0.0
    %3075 = vmatpush1.msra.mxu0 0.0
    %3076 = vmatprep.subr.mxu0 0.0
    %3077 = vmatpush1.msra.mxu0 0.0
    %3078 = vmatprep.subr.mxu0 0.0
    %3079 = vmatpush1.msra.mxu0 0.0
    %3080 = vmatprep.subr.mxu0 0.0
    %3081 = vmatpush1.msra.mxu0 0.0
    %3082 = vmatprep.subr.mxu0 0.0
    %3083 = vmatpush1.msra.mxu0 0.0
    %3084 = vmatprep.subr.mxu0 0.0
    %3085 = vmatpush1.msra.mxu0 0.0
    %3086 = vmatprep.subr.mxu0 0.0
    %3087 = vmatpush1.msra.mxu0 0.0
    %3088 = vmatprep.subr.mxu0 0.0
    %3089 = vmatpush1.msra.mxu0 0.0
    %3090 = vmatprep.mubr.f32.mxu0 0.0
    %3091 = vmatmul.mubr.f32.gmra.mrb[0].mxu0 %v3024
    %v3092 = vpop.f32.mrb[0].mxu0
    %v3093 = vadd.f32 0.0, %v3092
    %v3094 = vpop.f32.mrb[0].mxu0
    %v3095 = vadd.f32 0.0, %v3094
    %3096 = vdwg.mxu0
    %3097 = vmatprep.subr.mxu0 %v1791
    %3098 = vmatpush1.msra.mxu0 %v1790
    %3099 = vmatprep.subr.mxu0 0.0
    %3100 = vmatpush1.msra.mxu0 0.0
    %3101 = vmatprep.subr.mxu0 0.0
    %3102 = vmatpush1.msra.mxu0 0.0
    %3103 = vmatprep.subr.mxu0 0.0
    %3104 = vmatpush1.msra.mxu0 0.0
    %3105 = vmatprep.subr.mxu0 0.0
    %3106 = vmatpush1.msra.mxu0 0.0
    %3107 = vmatprep.subr.mxu0 0.0
    %3108 = vmatpush1.msra.mxu0 0.0
    %3109 = vmatprep.subr.mxu0 0.0
    %3110 = vmatpush1.msra.mxu0 0.0
    %3111 = vmatprep.subr.mxu0 0.0
    %3112 = vmatpush1.msra.mxu0 0.0
    %3113 = vmatprep.subr.mxu0 0.0
    %3114 = vmatpush1.msra.mxu0 0.0
    %3115 = vmatprep.subr.mxu0 0.0
    %3116 = vmatpush1.msra.mxu0 0.0
    %3117 = vmatprep.subr.mxu0 0.0
    %3118 = vmatpush1.msra.mxu0 0.0
    %3119 = vmatprep.subr.mxu0 0.0
    %3120 = vmatpush1.msra.mxu0 0.0
    %3121 = vmatprep.subr.mxu0 0.0
    %3122 = vmatpush1.msra.mxu0 0.0
    %3123 = vmatprep.subr.mxu0 0.0
    %3124 = vmatpush1.msra.mxu0 0.0
    %3125 = vmatprep.subr.mxu0 0.0
    %3126 = vmatpush1.msra.mxu0 0.0
    %3127 = vmatprep.subr.mxu0 0.0
    %3128 = vmatpush1.msra.mxu0 0.0
    %3129 = vmatprep.subr.mxu0 0.0
    %3130 = vmatpush1.msra.mxu0 0.0
    %3131 = vmatprep.subr.mxu0 0.0
    %3132 = vmatpush1.msra.mxu0 0.0
    %3133 = vmatprep.subr.mxu0 0.0
    %3134 = vmatpush1.msra.mxu0 0.0
    %3135 = vmatprep.subr.mxu0 0.0
    %3136 = vmatpush1.msra.mxu0 0.0
    %3137 = vmatprep.subr.mxu0 0.0
    %3138 = vmatpush1.msra.mxu0 0.0
    %3139 = vmatprep.subr.mxu0 0.0
    %3140 = vmatpush1.msra.mxu0 0.0
    %3141 = vmatprep.subr.mxu0 0.0
    %3142 = vmatpush1.msra.mxu0 0.0
    %3143 = vmatprep.subr.mxu0 0.0
    %3144 = vmatpush1.msra.mxu0 0.0
    %3145 = vmatprep.subr.mxu0 0.0
    %3146 = vmatpush1.msra.mxu0 0.0
    %3147 = vmatprep.subr.mxu0 0.0
    %3148 = vmatpush1.msra.mxu0 0.0
    %3149 = vmatprep.subr.mxu0 0.0
    %3150 = vmatpush1.msra.mxu0 0.0
    %3151 = vmatprep.subr.mxu0 0.0
    %3152 = vmatpush1.msra.mxu0 0.0
    %3153 = vmatprep.subr.mxu0 0.0
    %3154 = vmatpush1.msra.mxu0 0.0
    %3155 = vmatprep.subr.mxu0 0.0
    %3156 = vmatpush1.msra.mxu0 0.0
    %3157 = vmatprep.subr.mxu0 0.0
    %3158 = vmatpush1.msra.mxu0 0.0
    %3159 = vmatprep.subr.mxu0 0.0
    %3160 = vmatpush1.msra.mxu0 0.0
    %3161 = vmatprep.mubr.f32.mxu0 0.0
    %3162 = vmatmul.mubr.f32.gmra.mrb[0].mxu0 %v3024
    %v3163 = vpop.f32.mrb[0].mxu0
    %v3164 = vadd.f32 0.0, %v3163
    %v3165 = vpop.f32.mrb[0].mxu0
    %v3166 = vadd.f32 0.0, %v3165
    %3167 = vdwg.mxu0
    %v3168 = vadd.f32 %v3017, %v3093
    %v3169 = vadd.f32 %v3018, %v3095
    %v3170 = vadd.f32 %v3019, %v3164
    %v3171 = vadd.f32 %v3020, %v3166
    %s3172 = scalar_lea.vmem %s6, 56
    %v3173 = vld [vmem:[%s3172] sm:$0xff]
    %v3175 = vsel %vm49, %v3173, 0
    %3177 = vmatprep.subr.mxu0 %v1789
    %3178 = vmatpush1.msra.mxu0 %v1788
    %3179 = vmatprep.subr.mxu0 0.0
    %3180 = vmatpush1.msra.mxu0 0.0
    %3181 = vmatprep.subr.mxu0 0.0
    %3182 = vmatpush1.msra.mxu0 0.0
    %3183 = vmatprep.subr.mxu0 0.0
    %3184 = vmatpush1.msra.mxu0 0.0
    %3185 = vmatprep.subr.mxu0 0.0
    %3186 = vmatpush1.msra.mxu0 0.0
    %3187 = vmatprep.subr.mxu0 0.0
    %3188 = vmatpush1.msra.mxu0 0.0
    %3189 = vmatprep.subr.mxu0 0.0
    %3190 = vmatpush1.msra.mxu0 0.0
    %3191 = vmatprep.subr.mxu0 0.0
    %3192 = vmatpush1.msra.mxu0 0.0
    %3193 = vmatprep.subr.mxu0 0.0
    %3194 = vmatpush1.msra.mxu0 0.0
    %3195 = vmatprep.subr.mxu0 0.0
    %3196 = vmatpush1.msra.mxu0 0.0
    %3197 = vmatprep.subr.mxu0 0.0
    %3198 = vmatpush1.msra.mxu0 0.0
    %3199 = vmatprep.subr.mxu0 0.0
    %3200 = vmatpush1.msra.mxu0 0.0
    %3201 = vmatprep.subr.mxu0 0.0
    %3202 = vmatpush1.msra.mxu0 0.0
    %3203 = vmatprep.subr.mxu0 0.0
    %3204 = vmatpush1.msra.mxu0 0.0
    %3205 = vmatprep.subr.mxu0 0.0
    %3206 = vmatpush1.msra.mxu0 0.0
    %3207 = vmatprep.subr.mxu0 0.0
    %3208 = vmatpush1.msra.mxu0 0.0
    %3209 = vmatprep.subr.mxu0 0.0
    %3210 = vmatpush1.msra.mxu0 0.0
    %3211 = vmatprep.subr.mxu0 0.0
    %3212 = vmatpush1.msra.mxu0 0.0
    %3213 = vmatprep.subr.mxu0 0.0
    %3214 = vmatpush1.msra.mxu0 0.0
    %3215 = vmatprep.subr.mxu0 0.0
    %3216 = vmatpush1.msra.mxu0 0.0
    %3217 = vmatprep.subr.mxu0 0.0
    %3218 = vmatpush1.msra.mxu0 0.0
    %3219 = vmatprep.subr.mxu0 0.0
    %3220 = vmatpush1.msra.mxu0 0.0
    %3221 = vmatprep.subr.mxu0 0.0
    %3222 = vmatpush1.msra.mxu0 0.0
    %3223 = vmatprep.subr.mxu0 0.0
    %3224 = vmatpush1.msra.mxu0 0.0
    %3225 = vmatprep.subr.mxu0 0.0
    %3226 = vmatpush1.msra.mxu0 0.0
    %3227 = vmatprep.subr.mxu0 0.0
    %3228 = vmatpush1.msra.mxu0 0.0
    %3229 = vmatprep.subr.mxu0 0.0
    %3230 = vmatpush1.msra.mxu0 0.0
    %3231 = vmatprep.subr.mxu0 0.0
    %3232 = vmatpush1.msra.mxu0 0.0
    %3233 = vmatprep.subr.mxu0 0.0
    %3234 = vmatpush1.msra.mxu0 0.0
    %3235 = vmatprep.subr.mxu0 0.0
    %3236 = vmatpush1.msra.mxu0 0.0
    %3237 = vmatprep.subr.mxu0 0.0
    %3238 = vmatpush1.msra.mxu0 0.0
    %3239 = vmatprep.subr.mxu0 0.0
    %3240 = vmatpush1.msra.mxu0 0.0
    %3241 = vmatprep.mubr.f32.mxu0 0.0
    %3242 = vmatmul.mubr.f32.gmra.mrb[0].mxu0 %v3175
    %v3243 = vpop.f32.mrb[0].mxu0
    %v3244 = vadd.f32 0.0, %v3243
    %v3245 = vpop.f32.mrb[0].mxu0
    %v3246 = vadd.f32 0.0, %v3245
    %3247 = vdwg.mxu0
    %3248 = vmatprep.subr.mxu0 %v1791
    %3249 = vmatpush1.msra.mxu0 %v1790
    %3250 = vmatprep.subr.mxu0 0.0
    %3251 = vmatpush1.msra.mxu0 0.0
    %3252 = vmatprep.subr.mxu0 0.0
    %3253 = vmatpush1.msra.mxu0 0.0
    %3254 = vmatprep.subr.mxu0 0.0
    %3255 = vmatpush1.msra.mxu0 0.0
    %3256 = vmatprep.subr.mxu0 0.0
    %3257 = vmatpush1.msra.mxu0 0.0
    %3258 = vmatprep.subr.mxu0 0.0
    %3259 = vmatpush1.msra.mxu0 0.0
    %3260 = vmatprep.subr.mxu0 0.0
    %3261 = vmatpush1.msra.mxu0 0.0
    %3262 = vmatprep.subr.mxu0 0.0
    %3263 = vmatpush1.msra.mxu0 0.0
    %3264 = vmatprep.subr.mxu0 0.0
    %3265 = vmatpush1.msra.mxu0 0.0
    %3266 = vmatprep.subr.mxu0 0.0
    %3267 = vmatpush1.msra.mxu0 0.0
    %3268 = vmatprep.subr.mxu0 0.0
    %3269 = vmatpush1.msra.mxu0 0.0
    %3270 = vmatprep.subr.mxu0 0.0
    %3271 = vmatpush1.msra.mxu0 0.0
    %3272 = vmatprep.subr.mxu0 0.0
    %3273 = vmatpush1.msra.mxu0 0.0
    %3274 = vmatprep.subr.mxu0 0.0
    %3275 = vmatpush1.msra.mxu0 0.0
    %3276 = vmatprep.subr.mxu0 0.0
    %3277 = vmatpush1.msra.mxu0 0.0
    %3278 = vmatprep.subr.mxu0 0.0
    %3279 = vmatpush1.msra.mxu0 0.0
    %3280 = vmatprep.subr.mxu0 0.0
    %3281 = vmatpush1.msra.mxu0 0.0
    %3282 = vmatprep.subr.mxu0 0.0
    %3283 = vmatpush1.msra.mxu0 0.0
    %3284 = vmatprep.subr.mxu0 0.0
    %3285 = vmatpush1.msra.mxu0 0.0
    %3286 = vmatprep.subr.mxu0 0.0
    %3287 = vmatpush1.msra.mxu0 0.0
    %3288 = vmatprep.subr.mxu0 0.0
    %3289 = vmatpush1.msra.mxu0 0.0
    %3290 = vmatprep.subr.mxu0 0.0
    %3291 = vmatpush1.msra.mxu0 0.0
    %3292 = vmatprep.subr.mxu0 0.0
    %3293 = vmatpush1.msra.mxu0 0.0
    %3294 = vmatprep.subr.mxu0 0.0
    %3295 = vmatpush1.msra.mxu0 0.0
    %3296 = vmatprep.subr.mxu0 0.0
    %3297 = vmatpush1.msra.mxu0 0.0
    %3298 = vmatprep.subr.mxu0 0.0
    %3299 = vmatpush1.msra.mxu0 0.0
    %3300 = vmatprep.subr.mxu0 0.0
    %3301 = vmatpush1.msra.mxu0 0.0
    %3302 = vmatprep.subr.mxu0 0.0
    %3303 = vmatpush1.msra.mxu0 0.0
    %3304 = vmatprep.subr.mxu0 0.0
    %3305 = vmatpush1.msra.mxu0 0.0
    %3306 = vmatprep.subr.mxu0 0.0
    %3307 = vmatpush1.msra.mxu0 0.0
    %3308 = vmatprep.subr.mxu0 0.0
    %3309 = vmatpush1.msra.mxu0 0.0
    %3310 = vmatprep.subr.mxu0 0.0
    %3311 = vmatpush1.msra.mxu0 0.0
    %3312 = vmatprep.mubr.f32.mxu0 0.0
    %3313 = vmatmul.mubr.f32.gmra.mrb[0].mxu0 %v3175
    %v3314 = vpop.f32.mrb[0].mxu0
    %v3315 = vadd.f32 0.0, %v3314
    %v3316 = vpop.f32.mrb[0].mxu0
    %v3317 = vadd.f32 0.0, %v3316
    %3318 = vdwg.mxu0
    %3319 = vrot.lane.b32.xlu0 %v3244, 127
    %v3320 = vpop.permute.xlu0 %3319
    %3321 = vrot.lane.b32.xlu0 %v3246, 127
    %v3322 = vpop.permute.xlu0 %3321
    %3323 = vrot.lane.b32.xlu0 %v3315, 127
    %v3324 = vpop.permute.xlu0 %3323
    %3325 = vrot.lane.b32.xlu0 %v3317, 127
    %v3326 = vpop.permute.xlu0 %3325
    %v3327 = vsel %vm1132, %v3324, %v3326
    %v3328 = vsel %vm1132, %v3322, %v3324
    %v3329 = vsel %vm1132, %v3320, %v3322
    %v3330 = vsel %vm1132, %v3326, %v3320
    %v3331 = vsel %vm1156, %v3329, 0.0
    %v3332 = vsel %vm1157, %v3328, 0.0
    %v3333 = vsel %vm1158, %v3327, 0.0
    %v3334 = vsel %vm1159, %v3330, 0.0
    %v3335 = vadd.f32 %v3168, %v3331
    %v3336 = vadd.f32 %v3169, %v3332
    %v3337 = vadd.f32 %v3170, %v3333
    %v3338 = vadd.f32 %v3171, %v3334
    %v3339 = vld [vmem:[%s7] sm:$0xff]
    %3341 = vset.pattern.permute.xlu0 0
    %3342 = vperm.xlu0 %3341, %v3339
    %v3343 = vpop.permute.xlu0 %3342
    %v3345 = vmul.f32 %v3335, %v3343
    %v3346 = vmul.f32 %v3336, %v3343
    %v3347 = vmul.f32 %v3337, %v3343
    %v3348 = vmul.f32 %v3338, %v3343
    %v3349 = vld [vmem:[%s8] sm:$0xff]
    %3351 = vset.pattern.permute.xlu0 0
    %3352 = vperm.xlu0 %3351, %v3349
    %v3353 = vpop.permute.xlu0 %3352
    %v3355 = vadd.f32 %v3345, %v3353
    %v3356 = vadd.f32 %v3346, %v3353
    %v3357 = vadd.f32 %v3347, %v3353
    %v3358 = vadd.f32 %v3348, %v3353
    %v3359 = vxor.u32 %v3355, 2147483648
    %v3360 = vxor.u32 %v3356, 2147483648
    %v3361 = vxor.u32 %v3357, 2147483648
    %v3362 = vxor.u32 %v3358, 2147483648
    %v3363 = vmul.f32 %v3359, 1.442695
    %v3364 = vpow.pop %v3363
    %v3365 = vmul.f32 %v3360, 1.442695
    %v3366 = vpow.pop %v3365
    %v3367 = vmul.f32 %v3361, 1.442695
    %v3368 = vpow.pop %v3367
    %v3369 = vmul.f32 %v3362, 1.442695
    %v3370 = vpow.pop %v3369
    %v3371 = vadd.f32 %v3364, 1.0
    %v3372 = vadd.f32 %v3366, 1.0
    %v3373 = vadd.f32 %v3368, 1.0
    %v3374 = vadd.f32 %v3370, 1.0
    %v3375 = vrcp.pop %v3371
    %v3376 = vmul.f32 1.0, %v3375
    %v3377 = vrcp.pop %v3372
    %v3378 = vmul.f32 1.0, %v3377
    %v3379 = vrcp.pop %v3373
    %v3380 = vmul.f32 1.0, %v3379
    %v3381 = vrcp.pop %v3374
    %v3382 = vmul.f32 1.0, %v3381
    %v3383 = vmul.f32 %v3355, %v3376
    %v3384 = vmul.f32 %v3356, %v3378
    %v3385 = vmul.f32 %v3357, %v3380
    %v3386 = vmul.f32 %v3358, %v3382
    %v3387 = vld [vmem:[%s9] sm:$0xf]
    %v3389 = vsel %vm49, %v3387, 0
    %3391 = vmatprep.subr.mxu0 %v3384
    %3392 = vmatpush1.msra.mxu0 %v3383
    %3393 = vmatprep.subr.mxu0 0.0
    %3394 = vmatpush1.msra.mxu0 0.0
    %3395 = vmatprep.subr.mxu0 0.0
    %3396 = vmatpush1.msra.mxu0 0.0
    %3397 = vmatprep.subr.mxu0 0.0
    %3398 = vmatpush1.msra.mxu0 0.0
    %3399 = vmatprep.subr.mxu0 0.0
    %3400 = vmatpush1.msra.mxu0 0.0
    %3401 = vmatprep.subr.mxu0 0.0
    %3402 = vmatpush1.msra.mxu0 0.0
    %3403 = vmatprep.subr.mxu0 0.0
    %3404 = vmatpush1.msra.mxu0 0.0
    %3405 = vmatprep.subr.mxu0 0.0
    %3406 = vmatpush1.msra.mxu0 0.0
    %3407 = vmatprep.subr.mxu0 0.0
    %3408 = vmatpush1.msra.mxu0 0.0
    %3409 = vmatprep.subr.mxu0 0.0
    %3410 = vmatpush1.msra.mxu0 0.0
    %3411 = vmatprep.subr.mxu0 0.0
    %3412 = vmatpush1.msra.mxu0 0.0
    %3413 = vmatprep.subr.mxu0 0.0
    %3414 = vmatpush1.msra.mxu0 0.0
    %3415 = vmatprep.subr.mxu0 0.0
    %3416 = vmatpush1.msra.mxu0 0.0
    %3417 = vmatprep.subr.mxu0 0.0
    %3418 = vmatpush1.msra.mxu0 0.0
    %3419 = vmatprep.subr.mxu0 0.0
    %3420 = vmatpush1.msra.mxu0 0.0
    %3421 = vmatprep.subr.mxu0 0.0
    %3422 = vmatpush1.msra.mxu0 0.0
    %3423 = vmatprep.subr.mxu0 0.0
    %3424 = vmatpush1.msra.mxu0 0.0
    %3425 = vmatprep.subr.mxu0 0.0
    %3426 = vmatpush1.msra.mxu0 0.0
    %3427 = vmatprep.subr.mxu0 0.0
    %3428 = vmatpush1.msra.mxu0 0.0
    %3429 = vmatprep.subr.mxu0 0.0
    %3430 = vmatpush1.msra.mxu0 0.0
    %3431 = vmatprep.subr.mxu0 0.0
    %3432 = vmatpush1.msra.mxu0 0.0
    %3433 = vmatprep.subr.mxu0 0.0
    %3434 = vmatpush1.msra.mxu0 0.0
    %3435 = vmatprep.subr.mxu0 0.0
    %3436 = vmatpush1.msra.mxu0 0.0
    %3437 = vmatprep.subr.mxu0 0.0
    %3438 = vmatpush1.msra.mxu0 0.0
    %3439 = vmatprep.subr.mxu0 0.0
    %3440 = vmatpush1.msra.mxu0 0.0
    %3441 = vmatprep.subr.mxu0 0.0
    %3442 = vmatpush1.msra.mxu0 0.0
    %3443 = vmatprep.subr.mxu0 0.0
    %3444 = vmatpush1.msra.mxu0 0.0
    %3445 = vmatprep.subr.mxu0 0.0
    %3446 = vmatpush1.msra.mxu0 0.0
    %3447 = vmatprep.subr.mxu0 0.0
    %3448 = vmatpush1.msra.mxu0 0.0
    %3449 = vmatprep.subr.mxu0 0.0
    %3450 = vmatpush1.msra.mxu0 0.0
    %3451 = vmatprep.subr.mxu0 0.0
    %3452 = vmatpush1.msra.mxu0 0.0
    %3453 = vmatprep.subr.mxu0 0.0
    %3454 = vmatpush1.msra.mxu0 0.0
    %3455 = vmatprep.mubr.f32.mxu0 0.0
    %3456 = vmatmul.mubr.f32.gmra.mrb[0].mxu0 %v3389
    %v3457 = vpop.f32.mrb[0].mxu0
    %v3458 = vadd.f32 0.0, %v3457
    %v3459 = vpop.f32.mrb[0].mxu0
    %v3460 = vadd.f32 0.0, %v3459
    %3461 = vdwg.mxu0
    %3462 = vmatprep.subr.mxu0 %v3386
    %3463 = vmatpush1.msra.mxu0 %v3385
    %3464 = vmatprep.subr.mxu0 0.0
    %3465 = vmatpush1.msra.mxu0 0.0
    %3466 = vmatprep.subr.mxu0 0.0
    %3467 = vmatpush1.msra.mxu0 0.0
    %3468 = vmatprep.subr.mxu0 0.0
    %3469 = vmatpush1.msra.mxu0 0.0
    %3470 = vmatprep.subr.mxu0 0.0
    %3471 = vmatpush1.msra.mxu0 0.0
    %3472 = vmatprep.subr.mxu0 0.0
    %3473 = vmatpush1.msra.mxu0 0.0
    %3474 = vmatprep.subr.mxu0 0.0
    %3475 = vmatpush1.msra.mxu0 0.0
    %3476 = vmatprep.subr.mxu0 0.0
    %3477 = vmatpush1.msra.mxu0 0.0
    %3478 = vmatprep.subr.mxu0 0.0
    %3479 = vmatpush1.msra.mxu0 0.0
    %3480 = vmatprep.subr.mxu0 0.0
    %3481 = vmatpush1.msra.mxu0 0.0
    %3482 = vmatprep.subr.mxu0 0.0
    %3483 = vmatpush1.msra.mxu0 0.0
    %3484 = vmatprep.subr.mxu0 0.0
    %3485 = vmatpush1.msra.mxu0 0.0
    %3486 = vmatprep.subr.mxu0 0.0
    %3487 = vmatpush1.msra.mxu0 0.0
    %3488 = vmatprep.subr.mxu0 0.0
    %3489 = vmatpush1.msra.mxu0 0.0
    %3490 = vmatprep.subr.mxu0 0.0
    %3491 = vmatpush1.msra.mxu0 0.0
    %3492 = vmatprep.subr.mxu0 0.0
    %3493 = vmatpush1.msra.mxu0 0.0
    %3494 = vmatprep.subr.mxu0 0.0
    %3495 = vmatpush1.msra.mxu0 0.0
    %3496 = vmatprep.subr.mxu0 0.0
    %3497 = vmatpush1.msra.mxu0 0.0
    %3498 = vmatprep.subr.mxu0 0.0
    %3499 = vmatpush1.msra.mxu0 0.0
    %3500 = vmatprep.subr.mxu0 0.0
    %3501 = vmatpush1.msra.mxu0 0.0
    %3502 = vmatprep.subr.mxu0 0.0
    %3503 = vmatpush1.msra.mxu0 0.0
    %3504 = vmatprep.subr.mxu0 0.0
    %3505 = vmatpush1.msra.mxu0 0.0
    %3506 = vmatprep.subr.mxu0 0.0
    %3507 = vmatpush1.msra.mxu0 0.0
    %3508 = vmatprep.subr.mxu0 0.0
    %3509 = vmatpush1.msra.mxu0 0.0
    %3510 = vmatprep.subr.mxu0 0.0
    %3511 = vmatpush1.msra.mxu0 0.0
    %3512 = vmatprep.subr.mxu0 0.0
    %3513 = vmatpush1.msra.mxu0 0.0
    %3514 = vmatprep.subr.mxu0 0.0
    %3515 = vmatpush1.msra.mxu0 0.0
    %3516 = vmatprep.subr.mxu0 0.0
    %3517 = vmatpush1.msra.mxu0 0.0
    %3518 = vmatprep.subr.mxu0 0.0
    %3519 = vmatpush1.msra.mxu0 0.0
    %3520 = vmatprep.subr.mxu0 0.0
    %3521 = vmatpush1.msra.mxu0 0.0
    %3522 = vmatprep.subr.mxu0 0.0
    %3523 = vmatpush1.msra.mxu0 0.0
    %3524 = vmatprep.subr.mxu0 0.0
    %3525 = vmatpush1.msra.mxu0 0.0
    %3526 = vmatprep.mubr.f32.mxu0 0.0
    %3527 = vmatmul.mubr.f32.gmra.mrb[0].mxu0 %v3389
    %v3528 = vpop.f32.mrb[0].mxu0
    %v3529 = vadd.f32 0.0, %v3528
    %v3530 = vpop.f32.mrb[0].mxu0
    %v3531 = vadd.f32 0.0, %v3530
    %3532 = vdwg.mxu0
    %v3533 = vld [vmem:[%s10] sm:$0xf]
    %3535 = vset.pattern.permute.xlu0 0
    %3536 = vperm.xlu0 %3535, %v3533
    %v3537 = vpop.permute.xlu0 %3536
    %v3539 = vmul.f32 %v3458, %v3537
    %v3540 = vmul.f32 %v3460, %v3537
    %v3541 = vmul.f32 %v3529, %v3537
    %v3542 = vmul.f32 %v3531, %v3537
    %v3543 = vld [vmem:[%s11] sm:$0xf]
    %3545 = vset.pattern.permute.xlu0 0
    %3546 = vperm.xlu0 %3545, %v3543
    %v3547 = vpop.permute.xlu0 %3546
    %v3549 = vadd.f32 %v3539, %v3547
    %v3550 = vadd.f32 %v3540, %v3547
    %v3551 = vadd.f32 %v3541, %v3547
    %v3552 = vadd.f32 %v3542, %v3547
    %v3553 = vxor.u32 %v3549, 2147483648
    %v3554 = vxor.u32 %v3550, 2147483648
    %v3555 = vxor.u32 %v3551, 2147483648
    %v3556 = vxor.u32 %v3552, 2147483648
    %v3557 = vmul.f32 %v3553, 1.442695
    %v3558 = vpow.pop %v3557
    %v3559 = vmul.f32 %v3554, 1.442695
    %v3560 = vpow.pop %v3559
    %v3561 = vmul.f32 %v3555, 1.442695
    %v3562 = vpow.pop %v3561
    %v3563 = vmul.f32 %v3556, 1.442695
    %v3564 = vpow.pop %v3563
    %v3565 = vadd.f32 %v3558, 1.0
    %v3566 = vadd.f32 %v3560, 1.0
    %v3567 = vadd.f32 %v3562, 1.0
    %v3568 = vadd.f32 %v3564, 1.0
    %v3569 = vrcp.pop %v3565
    %v3570 = vmul.f32 1.0, %v3569
    %v3571 = vrcp.pop %v3566
    %v3572 = vmul.f32 1.0, %v3571
    %v3573 = vrcp.pop %v3567
    %v3574 = vmul.f32 1.0, %v3573
    %v3575 = vrcp.pop %v3568
    %v3576 = vmul.f32 1.0, %v3575
    %v3577 = vmul.f32 %v3549, %v3570
    %v3578 = vmul.f32 %v3550, %v3572
    %v3579 = vmul.f32 %v3551, %v3574
    %v3580 = vmul.f32 %v3552, %v3576
    %v3585 = vcombine.low %v3577, %v3578
    %v3586 = vcombine.low %v3579, %v3580
    %s3589 = scalar_lea.vmem [#allocation2], 16
    %3590 = vst [vmem:[%s3589] sm:$0xff] %v3585
    %3591 = vst [vmem:[%s3589 + $0x8] sm:$0xff] %v3586
    %s3592 = scalar_lea.vmem %s6, 64
    %v3593 = vld [vmem:[%s3592] sm:$0xff]
    %v3595 = vsel %vm49, %v3593, 0
    %3597 = vmatprep.subr.mxu0 %v1789
    %3598 = vmatpush1.msra.mxu0 %v1788
    %3599 = vmatprep.subr.mxu0 0.0
    %3600 = vmatpush1.msra.mxu0 0.0
    %3601 = vmatprep.subr.mxu0 0.0
    %3602 = vmatpush1.msra.mxu0 0.0
    %3603 = vmatprep.subr.mxu0 0.0
    %3604 = vmatpush1.msra.mxu0 0.0
    %3605 = vmatprep.subr.mxu0 0.0
    %3606 = vmatpush1.msra.mxu0 0.0
    %3607 = vmatprep.subr.mxu0 0.0
    %3608 = vmatpush1.msra.mxu0 0.0
    %3609 = vmatprep.subr.mxu0 0.0
    %3610 = vmatpush1.msra.mxu0 0.0
    %3611 = vmatprep.subr.mxu0 0.0
    %3612 = vmatpush1.msra.mxu0 0.0
    %3613 = vmatprep.subr.mxu0 0.0
    %3614 = vmatpush1.msra.mxu0 0.0
    %3615 = vmatprep.subr.mxu0 0.0
    %3616 = vmatpush1.msra.mxu0 0.0
    %3617 = vmatprep.subr.mxu0 0.0
    %3618 = vmatpush1.msra.mxu0 0.0
    %3619 = vmatprep.subr.mxu0 0.0
    %3620 = vmatpush1.msra.mxu0 0.0
    %3621 = vmatprep.subr.mxu0 0.0
    %3622 = vmatpush1.msra.mxu0 0.0
    %3623 = vmatprep.subr.mxu0 0.0
    %3624 = vmatpush1.msra.mxu0 0.0
    %3625 = vmatprep.subr.mxu0 0.0
    %3626 = vmatpush1.msra.mxu0 0.0
    %3627 = vmatprep.subr.mxu0 0.0
    %3628 = vmatpush1.msra.mxu0 0.0
    %3629 = vmatprep.subr.mxu0 0.0
    %3630 = vmatpush1.msra.mxu0 0.0
    %3631 = vmatprep.subr.mxu0 0.0
    %3632 = vmatpush1.msra.mxu0 0.0
    %3633 = vmatprep.subr.mxu0 0.0
    %3634 = vmatpush1.msra.mxu0 0.0
    %3635 = vmatprep.subr.mxu0 0.0
    %3636 = vmatpush1.msra.mxu0 0.0
    %3637 = vmatprep.subr.mxu0 0.0
    %3638 = vmatpush1.msra.mxu0 0.0
    %3639 = vmatprep.subr.mxu0 0.0
    %3640 = vmatpush1.msra.mxu0 0.0
    %3641 = vmatprep.subr.mxu0 0.0
    %3642 = vmatpush1.msra.mxu0 0.0
    %3643 = vmatprep.subr.mxu0 0.0
    %3644 = vmatpush1.msra.mxu0 0.0
    %3645 = vmatprep.subr.mxu0 0.0
    %3646 = vmatpush1.msra.mxu0 0.0
    %3647 = vmatprep.subr.mxu0 0.0
    %3648 = vmatpush1.msra.mxu0 0.0
    %3649 = vmatprep.subr.mxu0 0.0
    %3650 = vmatpush1.msra.mxu0 0.0
    %3651 = vmatprep.subr.mxu0 0.0
    %3652 = vmatpush1.msra.mxu0 0.0
    %3653 = vmatprep.subr.mxu0 0.0
    %3654 = vmatpush1.msra.mxu0 0.0
    %3655 = vmatprep.subr.mxu0 0.0
    %3656 = vmatpush1.msra.mxu0 0.0
    %3657 = vmatprep.subr.mxu0 0.0
    %3658 = vmatpush1.msra.mxu0 0.0
    %3659 = vmatprep.subr.mxu0 0.0
    %3660 = vmatpush1.msra.mxu0 0.0
    %3661 = vmatprep.mubr.f32.mxu0 0.0
    %3662 = vmatmul.mubr.f32.gmra.mrb[0].mxu0 %v3595
    %v3663 = vpop.f32.mrb[0].mxu0
    %v3664 = vadd.f32 0.0, %v3663
    %v3665 = vpop.f32.mrb[0].mxu0
    %v3666 = vadd.f32 0.0, %v3665
    %3667 = vdwg.mxu0
    %3668 = vmatprep.subr.mxu0 %v1791
    %3669 = vmatpush1.msra.mxu0 %v1790
    %3670 = vmatprep.subr.mxu0 0.0
    %3671 = vmatpush1.msra.mxu0 0.0
    %3672 = vmatprep.subr.mxu0 0.0
    %3673 = vmatpush1.msra.mxu0 0.0
    %3674 = vmatprep.subr.mxu0 0.0
    %3675 = vmatpush1.msra.mxu0 0.0
    %3676 = vmatprep.subr.mxu0 0.0
    %3677 = vmatpush1.msra.mxu0 0.0
    %3678 = vmatprep.subr.mxu0 0.0
    %3679 = vmatpush1.msra.mxu0 0.0
    %3680 = vmatprep.subr.mxu0 0.0
    %3681 = vmatpush1.msra.mxu0 0.0
    %3682 = vmatprep.subr.mxu0 0.0
    %3683 = vmatpush1.msra.mxu0 0.0
    %3684 = vmatprep.subr.mxu0 0.0
    %3685 = vmatpush1.msra.mxu0 0.0
    %3686 = vmatprep.subr.mxu0 0.0
    %3687 = vmatpush1.msra.mxu0 0.0
    %3688 = vmatprep.subr.mxu0 0.0
    %3689 = vmatpush1.msra.mxu0 0.0
    %3690 = vmatprep.subr.mxu0 0.0
    %3691 = vmatpush1.msra.mxu0 0.0
    %3692 = vmatprep.subr.mxu0 0.0
    %3693 = vmatpush1.msra.mxu0 0.0
    %3694 = vmatprep.subr.mxu0 0.0
    %3695 = vmatpush1.msra.mxu0 0.0
    %3696 = vmatprep.subr.mxu0 0.0
    %3697 = vmatpush1.msra.mxu0 0.0
    %3698 = vmatprep.subr.mxu0 0.0
    %3699 = vmatpush1.msra.mxu0 0.0
    %3700 = vmatprep.subr.mxu0 0.0
    %3701 = vmatpush1.msra.mxu0 0.0
    %3702 = vmatprep.subr.mxu0 0.0
    %3703 = vmatpush1.msra.mxu0 0.0
    %3704 = vmatprep.subr.mxu0 0.0
    %3705 = vmatpush1.msra.mxu0 0.0
    %3706 = vmatprep.subr.mxu0 0.0
    %3707 = vmatpush1.msra.mxu0 0.0
    %3708 = vmatprep.subr.mxu0 0.0
    %3709 = vmatpush1.msra.mxu0 0.0
    %3710 = vmatprep.subr.mxu0 0.0
    %3711 = vmatpush1.msra.mxu0 0.0
    %3712 = vmatprep.subr.mxu0 0.0
    %3713 = vmatpush1.msra.mxu0 0.0
    %3714 = vmatprep.subr.mxu0 0.0
    %3715 = vmatpush1.msra.mxu0 0.0
    %3716 = vmatprep.subr.mxu0 0.0
    %3717 = vmatpush1.msra.mxu0 0.0
    %3718 = vmatprep.subr.mxu0 0.0
    %3719 = vmatpush1.msra.mxu0 0.0
    %3720 = vmatprep.subr.mxu0 0.0
    %3721 = vmatpush1.msra.mxu0 0.0
    %3722 = vmatprep.subr.mxu0 0.0
    %3723 = vmatpush1.msra.mxu0 0.0
    %3724 = vmatprep.subr.mxu0 0.0
    %3725 = vmatpush1.msra.mxu0 0.0
    %3726 = vmatprep.subr.mxu0 0.0
    %3727 = vmatpush1.msra.mxu0 0.0
    %3728 = vmatprep.subr.mxu0 0.0
    %3729 = vmatpush1.msra.mxu0 0.0
    %3730 = vmatprep.subr.mxu0 0.0
    %3731 = vmatpush1.msra.mxu0 0.0
    %3732 = vmatprep.mubr.f32.mxu0 0.0
    %3733 = vmatmul.mubr.f32.gmra.mrb[0].mxu0 %v3595
    %v3734 = vpop.f32.mrb[0].mxu0
    %v3735 = vadd.f32 0.0, %v3734
    %v3736 = vpop.f32.mrb[0].mxu0
    %v3737 = vadd.f32 0.0, %v3736
    %3738 = vdwg.mxu0
    %3739 = vrot.lane.b32.xlu0 %v3664, 1
    %v3740 = vpop.permute.xlu0 %3739
    %3741 = vrot.lane.b32.xlu0 %v3666, 1
    %v3742 = vpop.permute.xlu0 %3741
    %3743 = vrot.lane.b32.xlu0 %v3735, 1
    %v3744 = vpop.permute.xlu0 %3743
    %3745 = vrot.lane.b32.xlu0 %v3737, 1
    %v3746 = vpop.permute.xlu0 %3745
    %v3747 = vsel %vm788, %v3744, %v3746
    %v3748 = vsel %vm788, %v3742, %v3744
    %v3749 = vsel %vm788, %v3740, %v3742
    %v3750 = vsel %vm788, %v3746, %v3740
    %v3751 = vsel %vm814, %v3750, 0.0
    %v3752 = vsel %vm815, %v3749, 0.0
    %v3753 = vsel %vm816, %v3748, 0.0
    %v3754 = vsel %vm817, %v3747, 0.0
    %s3755 = scalar_lea.vmem %s6, 72
    %v3756 = vld [vmem:[%s3755] sm:$0xff]
    %v3758 = vsel %vm49, %v3756, 0
    %3760 = vmatprep.subr.mxu0 %v1789
    %3761 = vmatpush1.msra.mxu0 %v1788
    %3762 = vmatprep.subr.mxu0 0.0
    %3763 = vmatpush1.msra.mxu0 0.0
    %3764 = vmatprep.subr.mxu0 0.0
    %3765 = vmatpush1.msra.mxu0 0.0
    %3766 = vmatprep.subr.mxu0 0.0
    %3767 = vmatpush1.msra.mxu0 0.0
    %3768 = vmatprep.subr.mxu0 0.0
    %3769 = vmatpush1.msra.mxu0 0.0
    %3770 = vmatprep.subr.mxu0 0.0
    %3771 = vmatpush1.msra.mxu0 0.0
    %3772 = vmatprep.subr.mxu0 0.0
    %3773 = vmatpush1.msra.mxu0 0.0
    %3774 = vmatprep.subr.mxu0 0.0
    %3775 = vmatpush1.msra.mxu0 0.0
    %3776 = vmatprep.subr.mxu0 0.0
    %3777 = vmatpush1.msra.mxu0 0.0
    %3778 = vmatprep.subr.mxu0 0.0
    %3779 = vmatpush1.msra.mxu0 0.0
    %3780 = vmatprep.subr.mxu0 0.0
    %3781 = vmatpush1.msra.mxu0 0.0
    %3782 = vmatprep.subr.mxu0 0.0
    %3783 = vmatpush1.msra.mxu0 0.0
    %3784 = vmatprep.subr.mxu0 0.0
    %3785 = vmatpush1.msra.mxu0 0.0
    %3786 = vmatprep.subr.mxu0 0.0
    %3787 = vmatpush1.msra.mxu0 0.0
    %3788 = vmatprep.subr.mxu0 0.0
    %3789 = vmatpush1.msra.mxu0 0.0
    %3790 = vmatprep.subr.mxu0 0.0
    %3791 = vmatpush1.msra.mxu0 0.0
    %3792 = vmatprep.subr.mxu0 0.0
    %3793 = vmatpush1.msra.mxu0 0.0
    %3794 = vmatprep.subr.mxu0 0.0
    %3795 = vmatpush1.msra.mxu0 0.0
    %3796 = vmatprep.subr.mxu0 0.0
    %3797 = vmatpush1.msra.mxu0 0.0
    %3798 = vmatprep.subr.mxu0 0.0
    %3799 = vmatpush1.msra.mxu0 0.0
    %3800 = vmatprep.subr.mxu0 0.0
    %3801 = vmatpush1.msra.mxu0 0.0
    %3802 = vmatprep.subr.mxu0 0.0
    %3803 = vmatpush1.msra.mxu0 0.0
    %3804 = vmatprep.subr.mxu0 0.0
    %3805 = vmatpush1.msra.mxu0 0.0
    %3806 = vmatprep.subr.mxu0 0.0
    %3807 = vmatpush1.msra.mxu0 0.0
    %3808 = vmatprep.subr.mxu0 0.0
    %3809 = vmatpush1.msra.mxu0 0.0
    %3810 = vmatprep.subr.mxu0 0.0
    %3811 = vmatpush1.msra.mxu0 0.0
    %3812 = vmatprep.subr.mxu0 0.0
    %3813 = vmatpush1.msra.mxu0 0.0
    %3814 = vmatprep.subr.mxu0 0.0
    %3815 = vmatpush1.msra.mxu0 0.0
    %3816 = vmatprep.subr.mxu0 0.0
    %3817 = vmatpush1.msra.mxu0 0.0
    %3818 = vmatprep.subr.mxu0 0.0
    %3819 = vmatpush1.msra.mxu0 0.0
    %3820 = vmatprep.subr.mxu0 0.0
    %3821 = vmatpush1.msra.mxu0 0.0
    %3822 = vmatprep.subr.mxu0 0.0
    %3823 = vmatpush1.msra.mxu0 0.0
    %3824 = vmatprep.mubr.f32.mxu0 0.0
    %3825 = vmatmul.mubr.f32.gmra.mrb[0].mxu0 %v3758
    %v3826 = vpop.f32.mrb[0].mxu0
    %v3827 = vadd.f32 0.0, %v3826
    %v3828 = vpop.f32.mrb[0].mxu0
    %v3829 = vadd.f32 0.0, %v3828
    %3830 = vdwg.mxu0
    %3831 = vmatprep.subr.mxu0 %v1791
    %3832 = vmatpush1.msra.mxu0 %v1790
    %3833 = vmatprep.subr.mxu0 0.0
    %3834 = vmatpush1.msra.mxu0 0.0
    %3835 = vmatprep.subr.mxu0 0.0
    %3836 = vmatpush1.msra.mxu0 0.0
    %3837 = vmatprep.subr.mxu0 0.0
    %3838 = vmatpush1.msra.mxu0 0.0
    %3839 = vmatprep.subr.mxu0 0.0
    %3840 = vmatpush1.msra.mxu0 0.0
    %3841 = vmatprep.subr.mxu0 0.0
    %3842 = vmatpush1.msra.mxu0 0.0
    %3843 = vmatprep.subr.mxu0 0.0
    %3844 = vmatpush1.msra.mxu0 0.0
    %3845 = vmatprep.subr.mxu0 0.0
    %3846 = vmatpush1.msra.mxu0 0.0
    %3847 = vmatprep.subr.mxu0 0.0
    %3848 = vmatpush1.msra.mxu0 0.0
    %3849 = vmatprep.subr.mxu0 0.0
    %3850 = vmatpush1.msra.mxu0 0.0
    %3851 = vmatprep.subr.mxu0 0.0
    %3852 = vmatpush1.msra.mxu0 0.0
    %3853 = vmatprep.subr.mxu0 0.0
    %3854 = vmatpush1.msra.mxu0 0.0
    %3855 = vmatprep.subr.mxu0 0.0
    %3856 = vmatpush1.msra.mxu0 0.0
    %3857 = vmatprep.subr.mxu0 0.0
    %3858 = vmatpush1.msra.mxu0 0.0
    %3859 = vmatprep.subr.mxu0 0.0
    %3860 = vmatpush1.msra.mxu0 0.0
    %3861 = vmatprep.subr.mxu0 0.0
    %3862 = vmatpush1.msra.mxu0 0.0
    %3863 = vmatprep.subr.mxu0 0.0
    %3864 = vmatpush1.msra.mxu0 0.0
    %3865 = vmatprep.subr.mxu0 0.0
    %3866 = vmatpush1.msra.mxu0 0.0
    %3867 = vmatprep.subr.mxu0 0.0
    %3868 = vmatpush1.msra.mxu0 0.0
    %3869 = vmatprep.subr.mxu0 0.0
    %3870 = vmatpush1.msra.mxu0 0.0
    %3871 = vmatprep.subr.mxu0 0.0
    %3872 = vmatpush1.msra.mxu0 0.0
    %3873 = vmatprep.subr.mxu0 0.0
    %3874 = vmatpush1.msra.mxu0 0.0
    %3875 = vmatprep.subr.mxu0 0.0
    %3876 = vmatpush1.msra.mxu0 0.0
    %3877 = vmatprep.subr.mxu0 0.0
    %3878 = vmatpush1.msra.mxu0 0.0
    %3879 = vmatprep.subr.mxu0 0.0
    %3880 = vmatpush1.msra.mxu0 0.0
    %3881 = vmatprep.subr.mxu0 0.0
    %3882 = vmatpush1.msra.mxu0 0.0
    %3883 = vmatprep.subr.mxu0 0.0
    %3884 = vmatpush1.msra.mxu0 0.0
    %3885 = vmatprep.subr.mxu0 0.0
    %3886 = vmatpush1.msra.mxu0 0.0
    %3887 = vmatprep.subr.mxu0 0.0
    %3888 = vmatpush1.msra.mxu0 0.0
    %3889 = vmatprep.subr.mxu0 0.0
    %3890 = vmatpush1.msra.mxu0 0.0
    %3891 = vmatprep.subr.mxu0 0.0
    %3892 = vmatpush1.msra.mxu0 0.0
    %3893 = vmatprep.subr.mxu0 0.0
    %3894 = vmatpush1.msra.mxu0 0.0
    %3895 = vmatprep.mubr.f32.mxu0 0.0
    %3896 = vmatmul.mubr.f32.gmra.mrb[0].mxu0 %v3758
    %v3897 = vpop.f32.mrb[0].mxu0
    %v3898 = vadd.f32 0.0, %v3897
    %v3899 = vpop.f32.mrb[0].mxu0
    %v3900 = vadd.f32 0.0, %v3899
    %3901 = vdwg.mxu0
    %v3902 = vadd.f32 %v3751, %v3827
    %v3903 = vadd.f32 %v3752, %v3829
    %v3904 = vadd.f32 %v3753, %v3898
    %v3905 = vadd.f32 %v3754, %v3900
    %s3906 = scalar_lea.vmem %s6, 80
    %v3907 = vld [vmem:[%s3906] sm:$0xff]
    %v3909 = vsel %vm49, %v3907, 0
    %3911 = vmatprep.subr.mxu0 %v1789
    %3912 = vmatpush1.msra.mxu0 %v1788
    %3913 = vmatprep.subr.mxu0 0.0
    %3914 = vmatpush1.msra.mxu0 0.0
    %3915 = vmatprep.subr.mxu0 0.0
    %3916 = vmatpush1.msra.mxu0 0.0
    %3917 = vmatprep.subr.mxu0 0.0
    %3918 = vmatpush1.msra.mxu0 0.0
    %3919 = vmatprep.subr.mxu0 0.0
    %3920 = vmatpush1.msra.mxu0 0.0
    %3921 = vmatprep.subr.mxu0 0.0
    %3922 = vmatpush1.msra.mxu0 0.0
    %3923 = vmatprep.subr.mxu0 0.0
    %3924 = vmatpush1.msra.mxu0 0.0
    %3925 = vmatprep.subr.mxu0 0.0
    %3926 = vmatpush1.msra.mxu0 0.0
    %3927 = vmatprep.subr.mxu0 0.0
    %3928 = vmatpush1.msra.mxu0 0.0
    %3929 = vmatprep.subr.mxu0 0.0
    %3930 = vmatpush1.msra.mxu0 0.0
    %3931 = vmatprep.subr.mxu0 0.0
    %3932 = vmatpush1.msra.mxu0 0.0
    %3933 = vmatprep.subr.mxu0 0.0
    %3934 = vmatpush1.msra.mxu0 0.0
    %3935 = vmatprep.subr.mxu0 0.0
    %3936 = vmatpush1.msra.mxu0 0.0
    %3937 = vmatprep.subr.mxu0 0.0
    %3938 = vmatpush1.msra.mxu0 0.0
    %3939 = vmatprep.subr.mxu0 0.0
    %3940 = vmatpush1.msra.mxu0 0.0
    %3941 = vmatprep.subr.mxu0 0.0
    %3942 = vmatpush1.msra.mxu0 0.0
    %3943 = vmatprep.subr.mxu0 0.0
    %3944 = vmatpush1.msra.mxu0 0.0
    %3945 = vmatprep.subr.mxu0 0.0
    %3946 = vmatpush1.msra.mxu0 0.0
    %3947 = vmatprep.subr.mxu0 0.0
    %3948 = vmatpush1.msra.mxu0 0.0
    %3949 = vmatprep.subr.mxu0 0.0
    %3950 = vmatpush1.msra.mxu0 0.0
    %3951 = vmatprep.subr.mxu0 0.0
    %3952 = vmatpush1.msra.mxu0 0.0
    %3953 = vmatprep.subr.mxu0 0.0
    %3954 = vmatpush1.msra.mxu0 0.0
    %3955 = vmatprep.subr.mxu0 0.0
    %3956 = vmatpush1.msra.mxu0 0.0
    %3957 = vmatprep.subr.mxu0 0.0
    %3958 = vmatpush1.msra.mxu0 0.0
    %3959 = vmatprep.subr.mxu0 0.0
    %3960 = vmatpush1.msra.mxu0 0.0
    %3961 = vmatprep.subr.mxu0 0.0
    %3962 = vmatpush1.msra.mxu0 0.0
    %3963 = vmatprep.subr.mxu0 0.0
    %3964 = vmatpush1.msra.mxu0 0.0
    %3965 = vmatprep.subr.mxu0 0.0
    %3966 = vmatpush1.msra.mxu0 0.0
    %3967 = vmatprep.subr.mxu0 0.0
    %3968 = vmatpush1.msra.mxu0 0.0
    %3969 = vmatprep.subr.mxu0 0.0
    %3970 = vmatpush1.msra.mxu0 0.0
    %3971 = vmatprep.subr.mxu0 0.0
    %3972 = vmatpush1.msra.mxu0 0.0
    %3973 = vmatprep.subr.mxu0 0.0
    %3974 = vmatpush1.msra.mxu0 0.0
    %3975 = vmatprep.mubr.f32.mxu0 0.0
    %3976 = vmatmul.mubr.f32.gmra.mrb[0].mxu0 %v3909
    %v3977 = vpop.f32.mrb[0].mxu0
    %v3978 = vadd.f32 0.0, %v3977
    %v3979 = vpop.f32.mrb[0].mxu0
    %v3980 = vadd.f32 0.0, %v3979
    %3981 = vdwg.mxu0
    %3982 = vmatprep.subr.mxu0 %v1791
    %3983 = vmatpush1.msra.mxu0 %v1790
    %3984 = vmatprep.subr.mxu0 0.0
    %3985 = vmatpush1.msra.mxu0 0.0
    %3986 = vmatprep.subr.mxu0 0.0
    %3987 = vmatpush1.msra.mxu0 0.0
    %3988 = vmatprep.subr.mxu0 0.0
    %3989 = vmatpush1.msra.mxu0 0.0
    %3990 = vmatprep.subr.mxu0 0.0
    %3991 = vmatpush1.msra.mxu0 0.0
    %3992 = vmatprep.subr.mxu0 0.0
    %3993 = vmatpush1.msra.mxu0 0.0
    %3994 = vmatprep.subr.mxu0 0.0
    %3995 = vmatpush1.msra.mxu0 0.0
    %3996 = vmatprep.subr.mxu0 0.0
    %3997 = vmatpush1.msra.mxu0 0.0
    %3998 = vmatprep.subr.mxu0 0.0
    %3999 = vmatpush1.msra.mxu0 0.0
    %4000 = vmatprep.subr.mxu0 0.0
    %4001 = vmatpush1.msra.mxu0 0.0
    %4002 = vmatprep.subr.mxu0 0.0
    %4003 = vmatpush1.msra.mxu0 0.0
    %4004 = vmatprep.subr.mxu0 0.0
    %4005 = vmatpush1.msra.mxu0 0.0
    %4006 = vmatprep.subr.mxu0 0.0
    %4007 = vmatpush1.msra.mxu0 0.0
    %4008 = vmatprep.subr.mxu0 0.0
    %4009 = vmatpush1.msra.mxu0 0.0
    %4010 = vmatprep.subr.mxu0 0.0
    %4011 = vmatpush1.msra.mxu0 0.0
    %4012 = vmatprep.subr.mxu0 0.0
    %4013 = vmatpush1.msra.mxu0 0.0
    %4014 = vmatprep.subr.mxu0 0.0
    %4015 = vmatpush1.msra.mxu0 0.0
    %4016 = vmatprep.subr.mxu0 0.0
    %4017 = vmatpush1.msra.mxu0 0.0
    %4018 = vmatprep.subr.mxu0 0.0
    %4019 = vmatpush1.msra.mxu0 0.0
    %4020 = vmatprep.subr.mxu0 0.0
    %4021 = vmatpush1.msra.mxu0 0.0
    %4022 = vmatprep.subr.mxu0 0.0
    %4023 = vmatpush1.msra.mxu0 0.0
    %4024 = vmatprep.subr.mxu0 0.0
    %4025 = vmatpush1.msra.mxu0 0.0
    %4026 = vmatprep.subr.mxu0 0.0
    %4027 = vmatpush1.msra.mxu0 0.0
    %4028 = vmatprep.subr.mxu0 0.0
    %4029 = vmatpush1.msra.mxu0 0.0
    %4030 = vmatprep.subr.mxu0 0.0
    %4031 = vmatpush1.msra.mxu0 0.0
    %4032 = vmatprep.subr.mxu0 0.0
    %4033 = vmatpush1.msra.mxu0 0.0
    %4034 = vmatprep.subr.mxu0 0.0
    %4035 = vmatpush1.msra.mxu0 0.0
    %4036 = vmatprep.subr.mxu0 0.0
    %4037 = vmatpush1.msra.mxu0 0.0
    %4038 = vmatprep.subr.mxu0 0.0
    %4039 = vmatpush1.msra.mxu0 0.0
    %4040 = vmatprep.subr.mxu0 0.0
    %4041 = vmatpush1.msra.mxu0 0.0
    %4042 = vmatprep.subr.mxu0 0.0
    %4043 = vmatpush1.msra.mxu0 0.0
    %4044 = vmatprep.subr.mxu0 0.0
    %4045 = vmatpush1.msra.mxu0 0.0
    %4046 = vmatprep.mubr.f32.mxu0 0.0
    %4047 = vmatmul.mubr.f32.gmra.mrb[0].mxu0 %v3909
    %v4048 = vpop.f32.mrb[0].mxu0
    %v4049 = vadd.f32 0.0, %v4048
    %v4050 = vpop.f32.mrb[0].mxu0
    %v4051 = vadd.f32 0.0, %v4050
    %4052 = vdwg.mxu0
    %4053 = vrot.lane.b32.xlu0 %v3978, 113
    %v4054 = vpop.permute.xlu0 %4053
    %4055 = vrot.lane.b32.xlu0 %v3980, 113
    %v4056 = vpop.permute.xlu0 %4055
    %4057 = vrot.lane.b32.xlu0 %v4049, 113
    %v4058 = vpop.permute.xlu0 %4057
    %4059 = vrot.lane.b32.xlu0 %v4051, 113
    %v4060 = vpop.permute.xlu0 %4059
    %v4061 = vsel %vm1323, %v4058, %v4060
    %v4062 = vsel %vm1323, %v4056, %v4058
    %v4063 = vsel %vm1323, %v4054, %v4056
    %v4064 = vsel %vm1323, %v4060, %v4054
    %v4065 = vsel %vm1350, %v4063, 0.0
    %v4066 = vsel %vm1351, %v4062, 0.0
    %v4067 = vsel %vm1352, %v4061, 0.0
    %v4068 = vsel %vm1353, %v4064, 0.0
    %v4069 = vadd.f32 %v3902, %v4065
    %v4070 = vadd.f32 %v3903, %v4066
    %v4071 = vadd.f32 %v3904, %v4067
    %v4072 = vadd.f32 %v3905, %v4068
    %s4073 = scalar_lea.vmem %s6, 88
    %v4074 = vld [vmem:[%s4073] sm:$0xff]
    %v4076 = vsel %vm49, %v4074, 0
    %4078 = vmatprep.subr.mxu0 %v1789
    %4079 = vmatpush1.msra.mxu0 %v1788
    %4080 = vmatprep.subr.mxu0 0.0
    %4081 = vmatpush1.msra.mxu0 0.0
    %4082 = vmatprep.subr.mxu0 0.0
    %4083 = vmatpush1.msra.mxu0 0.0
    %4084 = vmatprep.subr.mxu0 0.0
    %4085 = vmatpush1.msra.mxu0 0.0
    %4086 = vmatprep.subr.mxu0 0.0
    %4087 = vmatpush1.msra.mxu0 0.0
    %4088 = vmatprep.subr.mxu0 0.0
    %4089 = vmatpush1.msra.mxu0 0.0
    %4090 = vmatprep.subr.mxu0 0.0
    %4091 = vmatpush1.msra.mxu0 0.0
    %4092 = vmatprep.subr.mxu0 0.0
    %4093 = vmatpush1.msra.mxu0 0.0
    %4094 = vmatprep.subr.mxu0 0.0
    %4095 = vmatpush1.msra.mxu0 0.0
    %4096 = vmatprep.subr.mxu0 0.0
    %4097 = vmatpush1.msra.mxu0 0.0
    %4098 = vmatprep.subr.mxu0 0.0
    %4099 = vmatpush1.msra.mxu0 0.0
    %4100 = vmatprep.subr.mxu0 0.0
    %4101 = vmatpush1.msra.mxu0 0.0
    %4102 = vmatprep.subr.mxu0 0.0
    %4103 = vmatpush1.msra.mxu0 0.0
    %4104 = vmatprep.subr.mxu0 0.0
    %4105 = vmatpush1.msra.mxu0 0.0
    %4106 = vmatprep.subr.mxu0 0.0
    %4107 = vmatpush1.msra.mxu0 0.0
    %4108 = vmatprep.subr.mxu0 0.0
    %4109 = vmatpush1.msra.mxu0 0.0
    %4110 = vmatprep.subr.mxu0 0.0
    %4111 = vmatpush1.msra.mxu0 0.0
    %4112 = vmatprep.subr.mxu0 0.0
    %4113 = vmatpush1.msra.mxu0 0.0
    %4114 = vmatprep.subr.mxu0 0.0
    %4115 = vmatpush1.msra.mxu0 0.0
    %4116 = vmatprep.subr.mxu0 0.0
    %4117 = vmatpush1.msra.mxu0 0.0
    %4118 = vmatprep.subr.mxu0 0.0
    %4119 = vmatpush1.msra.mxu0 0.0
    %4120 = vmatprep.subr.mxu0 0.0
    %4121 = vmatpush1.msra.mxu0 0.0
    %4122 = vmatprep.subr.mxu0 0.0
    %4123 = vmatpush1.msra.mxu0 0.0
    %4124 = vmatprep.subr.mxu0 0.0
    %4125 = vmatpush1.msra.mxu0 0.0
    %4126 = vmatprep.subr.mxu0 0.0
    %4127 = vmatpush1.msra.mxu0 0.0
    %4128 = vmatprep.subr.mxu0 0.0
    %4129 = vmatpush1.msra.mxu0 0.0
    %4130 = vmatprep.subr.mxu0 0.0
    %4131 = vmatpush1.msra.mxu0 0.0
    %4132 = vmatprep.subr.mxu0 0.0
    %4133 = vmatpush1.msra.mxu0 0.0
    %4134 = vmatprep.subr.mxu0 0.0
    %4135 = vmatpush1.msra.mxu0 0.0
    %4136 = vmatprep.subr.mxu0 0.0
    %4137 = vmatpush1.msra.mxu0 0.0
    %4138 = vmatprep.subr.mxu0 0.0
    %4139 = vmatpush1.msra.mxu0 0.0
    %4140 = vmatprep.subr.mxu0 0.0
    %4141 = vmatpush1.msra.mxu0 0.0
    %4142 = vmatprep.mubr.f32.mxu0 0.0
    %4143 = vmatmul.mubr.f32.gmra.mrb[0].mxu0 %v4076
    %v4144 = vpop.f32.mrb[0].mxu0
    %v4145 = vadd.f32 0.0, %v4144
    %v4146 = vpop.f32.mrb[0].mxu0
    %v4147 = vadd.f32 0.0, %v4146
    %4148 = vdwg.mxu0
    %4149 = vmatprep.subr.mxu0 %v1791
    %4150 = vmatpush1.msra.mxu0 %v1790
    %4151 = vmatprep.subr.mxu0 0.0
    %4152 = vmatpush1.msra.mxu0 0.0
    %4153 = vmatprep.subr.mxu0 0.0
    %4154 = vmatpush1.msra.mxu0 0.0
    %4155 = vmatprep.subr.mxu0 0.0
    %4156 = vmatpush1.msra.mxu0 0.0
    %4157 = vmatprep.subr.mxu0 0.0
    %4158 = vmatpush1.msra.mxu0 0.0
    %4159 = vmatprep.subr.mxu0 0.0
    %4160 = vmatpush1.msra.mxu0 0.0
    %4161 = vmatprep.subr.mxu0 0.0
    %4162 = vmatpush1.msra.mxu0 0.0
    %4163 = vmatprep.subr.mxu0 0.0
    %4164 = vmatpush1.msra.mxu0 0.0
    %4165 = vmatprep.subr.mxu0 0.0
    %4166 = vmatpush1.msra.mxu0 0.0
    %4167 = vmatprep.subr.mxu0 0.0
    %4168 = vmatpush1.msra.mxu0 0.0
    %4169 = vmatprep.subr.mxu0 0.0
    %4170 = vmatpush1.msra.mxu0 0.0
    %4171 = vmatprep.subr.mxu0 0.0
    %4172 = vmatpush1.msra.mxu0 0.0
    %4173 = vmatprep.subr.mxu0 0.0
    %4174 = vmatpush1.msra.mxu0 0.0
    %4175 = vmatprep.subr.mxu0 0.0
    %4176 = vmatpush1.msra.mxu0 0.0
    %4177 = vmatprep.subr.mxu0 0.0
    %4178 = vmatpush1.msra.mxu0 0.0
    %4179 = vmatprep.subr.mxu0 0.0
    %4180 = vmatpush1.msra.mxu0 0.0
    %4181 = vmatprep.subr.mxu0 0.0
    %4182 = vmatpush1.msra.mxu0 0.0
    %4183 = vmatprep.subr.mxu0 0.0
    %4184 = vmatpush1.msra.mxu0 0.0
    %4185 = vmatprep.subr.mxu0 0.0
    %4186 = vmatpush1.msra.mxu0 0.0
    %4187 = vmatprep.subr.mxu0 0.0
    %4188 = vmatpush1.msra.mxu0 0.0
    %4189 = vmatprep.subr.mxu0 0.0
    %4190 = vmatpush1.msra.mxu0 0.0
    %4191 = vmatprep.subr.mxu0 0.0
    %4192 = vmatpush1.msra.mxu0 0.0
    %4193 = vmatprep.subr.mxu0 0.0
    %4194 = vmatpush1.msra.mxu0 0.0
    %4195 = vmatprep.subr.mxu0 0.0
    %4196 = vmatpush1.msra.mxu0 0.0
    %4197 = vmatprep.subr.mxu0 0.0
    %4198 = vmatpush1.msra.mxu0 0.0
    %4199 = vmatprep.subr.mxu0 0.0
    %4200 = vmatpush1.msra.mxu0 0.0
    %4201 = vmatprep.subr.mxu0 0.0
    %4202 = vmatpush1.msra.mxu0 0.0
    %4203 = vmatprep.subr.mxu0 0.0
    %4204 = vmatpush1.msra.mxu0 0.0
    %4205 = vmatprep.subr.mxu0 0.0
    %4206 = vmatpush1.msra.mxu0 0.0
    %4207 = vmatprep.subr.mxu0 0.0
    %4208 = vmatpush1.msra.mxu0 0.0
    %4209 = vmatprep.subr.mxu0 0.0
    %4210 = vmatpush1.msra.mxu0 0.0
    %4211 = vmatprep.subr.mxu0 0.0
    %4212 = vmatpush1.msra.mxu0 0.0
    %4213 = vmatprep.mubr.f32.mxu0 0.0
    %4214 = vmatmul.mubr.f32.gmra.mrb[0].mxu0 %v4076
    %v4215 = vpop.f32.mrb[0].mxu0
    %v4216 = vadd.f32 0.0, %v4215
    %v4217 = vpop.f32.mrb[0].mxu0
    %v4218 = vadd.f32 0.0, %v4217
    %4219 = vdwg.mxu0
    %4220 = vrot.lane.b32.xlu0 %v4145, 112
    %v4221 = vpop.permute.xlu0 %4220
    %4222 = vrot.lane.b32.xlu0 %v4147, 112
    %v4223 = vpop.permute.xlu0 %4222
    %4224 = vrot.lane.b32.xlu0 %v4216, 112
    %v4225 = vpop.permute.xlu0 %4224
    %4226 = vrot.lane.b32.xlu0 %v4218, 112
    %v4227 = vpop.permute.xlu0 %4226
    %v4228 = vsel %vm1517, %v4225, %v4227
    %v4229 = vsel %vm1517, %v4223, %v4225
    %v4230 = vsel %vm1517, %v4221, %v4223
    %v4231 = vsel %vm1517, %v4227, %v4221
    %v4232 = vsel %vm1541, %v4230, 0.0
    %v4233 = vsel %vm1542, %v4229, 0.0
    %v4234 = vsel %vm1543, %v4228, 0.0
    %v4235 = vsel %vm1544, %v4231, 0.0
    %v4236 = vadd.f32 %v4069, %v4232
    %v4237 = vadd.f32 %v4070, %v4233
    %v4238 = vadd.f32 %v4071, %v4234
    %v4239 = vadd.f32 %v4072, %v4235
    %v4240 = vld [vmem:[%s7] sm:$0xff]
    %4242 = vset.pattern.permute.xlu0 0
    %4243 = vperm.xlu0 %4242, %v4240
    %v4244 = vpop.permute.xlu0 %4243
    %v4246 = vmul.f32 %v4236, %v4244
    %v4247 = vmul.f32 %v4237, %v4244
    %v4248 = vmul.f32 %v4238, %v4244
    %v4249 = vmul.f32 %v4239, %v4244
    %v4250 = vld [vmem:[%s8] sm:$0xff]
    %4252 = vset.pattern.permute.xlu0 0
    %4253 = vperm.xlu0 %4252, %v4250
    %v4254 = vpop.permute.xlu0 %4253
    %v4256 = vadd.f32 %v4246, %v4254
    %v4257 = vadd.f32 %v4247, %v4254
    %v4258 = vadd.f32 %v4248, %v4254
    %v4259 = vadd.f32 %v4249, %v4254
    %v4260 = vxor.u32 %v4256, 2147483648
    %v4261 = vxor.u32 %v4257, 2147483648
    %v4262 = vxor.u32 %v4258, 2147483648
    %v4263 = vxor.u32 %v4259, 2147483648
    %v4264 = vmul.f32 %v4260, 1.442695
    %v4265 = vpow.pop %v4264
    %v4266 = vmul.f32 %v4261, 1.442695
    %v4267 = vpow.pop %v4266
    %v4268 = vmul.f32 %v4262, 1.442695
    %v4269 = vpow.pop %v4268
    %v4270 = vmul.f32 %v4263, 1.442695
    %v4271 = vpow.pop %v4270
    %v4272 = vadd.f32 %v4265, 1.0
    %v4273 = vadd.f32 %v4267, 1.0
    %v4274 = vadd.f32 %v4269, 1.0
    %v4275 = vadd.f32 %v4271, 1.0
    %v4276 = vrcp.pop %v4272
    %v4277 = vmul.f32 1.0, %v4276
    %v4278 = vrcp.pop %v4273
    %v4279 = vmul.f32 1.0, %v4278
    %v4280 = vrcp.pop %v4274
    %v4281 = vmul.f32 1.0, %v4280
    %v4282 = vrcp.pop %v4275
    %v4283 = vmul.f32 1.0, %v4282
    %v4284 = vmul.f32 %v4256, %v4277
    %v4285 = vmul.f32 %v4257, %v4279
    %v4286 = vmul.f32 %v4258, %v4281
    %v4287 = vmul.f32 %v4259, %v4283
    %v4288 = vld [vmem:[%s9] sm:$0xf]
    %v4290 = vsel %vm49, %v4288, 0
    %4292 = vmatprep.subr.mxu0 %v4285
    %4293 = vmatpush1.msra.mxu0 %v4284
    %4294 = vmatprep.subr.mxu0 0.0
    %4295 = vmatpush1.msra.mxu0 0.0
    %4296 = vmatprep.subr.mxu0 0.0
    %4297 = vmatpush1.msra.mxu0 0.0
    %4298 = vmatprep.subr.mxu0 0.0
    %4299 = vmatpush1.msra.mxu0 0.0
    %4300 = vmatprep.subr.mxu0 0.0
    %4301 = vmatpush1.msra.mxu0 0.0
    %4302 = vmatprep.subr.mxu0 0.0
    %4303 = vmatpush1.msra.mxu0 0.0
    %4304 = vmatprep.subr.mxu0 0.0
    %4305 = vmatpush1.msra.mxu0 0.0
    %4306 = vmatprep.subr.mxu0 0.0
    %4307 = vmatpush1.msra.mxu0 0.0
    %4308 = vmatprep.subr.mxu0 0.0
    %4309 = vmatpush1.msra.mxu0 0.0
    %4310 = vmatprep.subr.mxu0 0.0
    %4311 = vmatpush1.msra.mxu0 0.0
    %4312 = vmatprep.subr.mxu0 0.0
    %4313 = vmatpush1.msra.mxu0 0.0
    %4314 = vmatprep.subr.mxu0 0.0
    %4315 = vmatpush1.msra.mxu0 0.0
    %4316 = vmatprep.subr.mxu0 0.0
    %4317 = vmatpush1.msra.mxu0 0.0
    %4318 = vmatprep.subr.mxu0 0.0
    %4319 = vmatpush1.msra.mxu0 0.0
    %4320 = vmatprep.subr.mxu0 0.0
    %4321 = vmatpush1.msra.mxu0 0.0
    %4322 = vmatprep.subr.mxu0 0.0
    %4323 = vmatpush1.msra.mxu0 0.0
    %4324 = vmatprep.subr.mxu0 0.0
    %4325 = vmatpush1.msra.mxu0 0.0
    %4326 = vmatprep.subr.mxu0 0.0
    %4327 = vmatpush1.msra.mxu0 0.0
    %4328 = vmatprep.subr.mxu0 0.0
    %4329 = vmatpush1.msra.mxu0 0.0
    %4330 = vmatprep.subr.mxu0 0.0
    %4331 = vmatpush1.msra.mxu0 0.0
    %4332 = vmatprep.subr.mxu0 0.0
    %4333 = vmatpush1.msra.mxu0 0.0
    %4334 = vmatprep.subr.mxu0 0.0
    %4335 = vmatpush1.msra.mxu0 0.0
    %4336 = vmatprep.subr.mxu0 0.0
    %4337 = vmatpush1.msra.mxu0 0.0
    %4338 = vmatprep.subr.mxu0 0.0
    %4339 = vmatpush1.msra.mxu0 0.0
    %4340 = vmatprep.subr.mxu0 0.0
    %4341 = vmatpush1.msra.mxu0 0.0
    %4342 = vmatprep.subr.mxu0 0.0
    %4343 = vmatpush1.msra.mxu0 0.0
    %4344 = vmatprep.subr.mxu0 0.0
    %4345 = vmatpush1.msra.mxu0 0.0
    %4346 = vmatprep.subr.mxu0 0.0
    %4347 = vmatpush1.msra.mxu0 0.0
    %4348 = vmatprep.subr.mxu0 0.0
    %4349 = vmatpush1.msra.mxu0 0.0
    %4350 = vmatprep.subr.mxu0 0.0
    %4351 = vmatpush1.msra.mxu0 0.0
    %4352 = vmatprep.subr.mxu0 0.0
    %4353 = vmatpush1.msra.mxu0 0.0
    %4354 = vmatprep.subr.mxu0 0.0
    %4355 = vmatpush1.msra.mxu0 0.0
    %4356 = vmatprep.mubr.f32.mxu0 0.0
    %4357 = vmatmul.mubr.f32.gmra.mrb[0].mxu0 %v4290
    %v4358 = vpop.f32.mrb[0].mxu0
    %v4359 = vadd.f32 0.0, %v4358
    %v4360 = vpop.f32.mrb[0].mxu0
    %v4361 = vadd.f32 0.0, %v4360
    %4362 = vdwg.mxu0
    %4363 = vmatprep.subr.mxu0 %v4287
    %4364 = vmatpush1.msra.mxu0 %v4286
    %4365 = vmatprep.subr.mxu0 0.0
    %4366 = vmatpush1.msra.mxu0 0.0
    %4367 = vmatprep.subr.mxu0 0.0
    %4368 = vmatpush1.msra.mxu0 0.0
    %4369 = vmatprep.subr.mxu0 0.0
    %4370 = vmatpush1.msra.mxu0 0.0
    %4371 = vmatprep.subr.mxu0 0.0
    %4372 = vmatpush1.msra.mxu0 0.0
    %4373 = vmatprep.subr.mxu0 0.0
    %4374 = vmatpush1.msra.mxu0 0.0
    %4375 = vmatprep.subr.mxu0 0.0
    %4376 = vmatpush1.msra.mxu0 0.0
    %4377 = vmatprep.subr.mxu0 0.0
    %4378 = vmatpush1.msra.mxu0 0.0
    %4379 = vmatprep.subr.mxu0 0.0
    %4380 = vmatpush1.msra.mxu0 0.0
    %4381 = vmatprep.subr.mxu0 0.0
    %4382 = vmatpush1.msra.mxu0 0.0
    %4383 = vmatprep.subr.mxu0 0.0
    %4384 = vmatpush1.msra.mxu0 0.0
    %4385 = vmatprep.subr.mxu0 0.0
    %4386 = vmatpush1.msra.mxu0 0.0
    %4387 = vmatprep.subr.mxu0 0.0
    %4388 = vmatpush1.msra.mxu0 0.0
    %4389 = vmatprep.subr.mxu0 0.0
    %4390 = vmatpush1.msra.mxu0 0.0
    %4391 = vmatprep.subr.mxu0 0.0
    %4392 = vmatpush1.msra.mxu0 0.0
    %4393 = vmatprep.subr.mxu0 0.0
    %4394 = vmatpush1.msra.mxu0 0.0
    %4395 = vmatprep.subr.mxu0 0.0
    %4396 = vmatpush1.msra.mxu0 0.0
    %4397 = vmatprep.subr.mxu0 0.0
    %4398 = vmatpush1.msra.mxu0 0.0
    %4399 = vmatprep.subr.mxu0 0.0
    %4400 = vmatpush1.msra.mxu0 0.0
    %4401 = vmatprep.subr.mxu0 0.0
    %4402 = vmatpush1.msra.mxu0 0.0
    %4403 = vmatprep.subr.mxu0 0.0
    %4404 = vmatpush1.msra.mxu0 0.0
    %4405 = vmatprep.subr.mxu0 0.0
    %4406 = vmatpush1.msra.mxu0 0.0
    %4407 = vmatprep.subr.mxu0 0.0
    %4408 = vmatpush1.msra.mxu0 0.0
    %4409 = vmatprep.subr.mxu0 0.0
    %4410 = vmatpush1.msra.mxu0 0.0
    %4411 = vmatprep.subr.mxu0 0.0
    %4412 = vmatpush1.msra.mxu0 0.0
    %4413 = vmatprep.subr.mxu0 0.0
    %4414 = vmatpush1.msra.mxu0 0.0
    %4415 = vmatprep.subr.mxu0 0.0
    %4416 = vmatpush1.msra.mxu0 0.0
    %4417 = vmatprep.subr.mxu0 0.0
    %4418 = vmatpush1.msra.mxu0 0.0
    %4419 = vmatprep.subr.mxu0 0.0
    %4420 = vmatpush1.msra.mxu0 0.0
    %4421 = vmatprep.subr.mxu0 0.0
    %4422 = vmatpush1.msra.mxu0 0.0
    %4423 = vmatprep.subr.mxu0 0.0
    %4424 = vmatpush1.msra.mxu0 0.0
    %4425 = vmatprep.subr.mxu0 0.0
    %4426 = vmatpush1.msra.mxu0 0.0
    %4427 = vmatprep.mubr.f32.mxu0 0.0
    %4428 = vmatmul.mubr.f32.gmra.mrb[0].mxu0 %v4290
    %v4429 = vpop.f32.mrb[0].mxu0
    %v4430 = vadd.f32 0.0, %v4429
    %v4431 = vpop.f32.mrb[0].mxu0
    %v4432 = vadd.f32 0.0, %v4431
    %4433 = vdwg.mxu0
    %v4434 = vld [vmem:[%s10] sm:$0xf]
    %4436 = vset.pattern.permute.xlu0 0
    %4437 = vperm.xlu0 %4436, %v4434
    %v4438 = vpop.permute.xlu0 %4437
    %v4440 = vmul.f32 %v4359, %v4438
    %v4441 = vmul.f32 %v4361, %v4438
    %v4442 = vmul.f32 %v4430, %v4438
    %v4443 = vmul.f32 %v4432, %v4438
    %v4444 = vld [vmem:[%s11] sm:$0xf]
    %4446 = vset.pattern.permute.xlu0 0
    %4447 = vperm.xlu0 %4446, %v4444
    %v4448 = vpop.permute.xlu0 %4447
    %v4450 = vadd.f32 %v4440, %v4448
    %v4451 = vadd.f32 %v4441, %v4448
    %v4452 = vadd.f32 %v4442, %v4448
    %v4453 = vadd.f32 %v4443, %v4448
    %v4454 = vxor.u32 %v4450, 2147483648
    %v4455 = vxor.u32 %v4451, 2147483648
    %v4456 = vxor.u32 %v4452, 2147483648
    %v4457 = vxor.u32 %v4453, 2147483648
    %v4458 = vmul.f32 %v4454, 1.442695
    %v4459 = vpow.pop %v4458
    %v4460 = vmul.f32 %v4455, 1.442695
    %v4461 = vpow.pop %v4460
    %v4462 = vmul.f32 %v4456, 1.442695
    %v4463 = vpow.pop %v4462
    %v4464 = vmul.f32 %v4457, 1.442695
    %v4465 = vpow.pop %v4464
    %v4466 = vadd.f32 %v4459, 1.0
    %v4467 = vadd.f32 %v4461, 1.0
    %v4468 = vadd.f32 %v4463, 1.0
    %v4469 = vadd.f32 %v4465, 1.0
    %v4470 = vrcp.pop %v4466
    %v4471 = vmul.f32 1.0, %v4470
    %v4472 = vrcp.pop %v4467
    %v4473 = vmul.f32 1.0, %v4472
    %v4474 = vrcp.pop %v4468
    %v4475 = vmul.f32 1.0, %v4474
    %v4476 = vrcp.pop %v4469
    %v4477 = vmul.f32 1.0, %v4476
    %v4478 = vmul.f32 %v4450, %v4471
    %v4479 = vmul.f32 %v4451, %v4473
    %v4480 = vmul.f32 %v4452, %v4475
    %v4481 = vmul.f32 %v4453, %v4477
    %v4486 = vcombine.low %v4478, %v4479
    %v4487 = vcombine.low %v4480, %v4481
    %s4490 = scalar_lea.vmem [#allocation2], 32
    %4491 = vst [vmem:[%s4490] sm:$0xff] %v4486
    %4492 = vst [vmem:[%s4490 + $0x8] sm:$0xff] %v4487
    %s4493 = scalar_lea.vmem %s6, 96
    %v4494 = vld [vmem:[%s4493] sm:$0xff]
    %s4495 = scalar_lea.vmem %s6, 104
    %v4496 = vld [vmem:[%s4495] sm:$0xff]
    %v4498 = vsel %vm49, %v4496, 0
    %4500 = vmatprep.subr.mxu0 %v1789
    %4501 = vmatpush1.msra.mxu0 %v1788
    %4502 = vmatprep.subr.mxu0 0.0
    %4503 = vmatpush1.msra.mxu0 0.0
    %4504 = vmatprep.subr.mxu0 0.0
    %4505 = vmatpush1.msra.mxu0 0.0
    %4506 = vmatprep.subr.mxu0 0.0
    %4507 = vmatpush1.msra.mxu0 0.0
    %4508 = vmatprep.subr.mxu0 0.0
    %4509 = vmatpush1.msra.mxu0 0.0
    %4510 = vmatprep.subr.mxu0 0.0
    %4511 = vmatpush1.msra.mxu0 0.0
    %4512 = vmatprep.subr.mxu0 0.0
    %4513 = vmatpush1.msra.mxu0 0.0
    %4514 = vmatprep.subr.mxu0 0.0
    %4515 = vmatpush1.msra.mxu0 0.0
    %4516 = vmatprep.subr.mxu0 0.0
    %4517 = vmatpush1.msra.mxu0 0.0
    %4518 = vmatprep.subr.mxu0 0.0
    %4519 = vmatpush1.msra.mxu0 0.0
    %4520 = vmatprep.subr.mxu0 0.0
    %4521 = vmatpush1.msra.mxu0 0.0
    %4522 = vmatprep.subr.mxu0 0.0
    %4523 = vmatpush1.msra.mxu0 0.0
    %4524 = vmatprep.subr.mxu0 0.0
    %4525 = vmatpush1.msra.mxu0 0.0
    %4526 = vmatprep.subr.mxu0 0.0
    %4527 = vmatpush1.msra.mxu0 0.0
    %4528 = vmatprep.subr.mxu0 0.0
    %4529 = vmatpush1.msra.mxu0 0.0
    %4530 = vmatprep.subr.mxu0 0.0
    %4531 = vmatpush1.msra.mxu0 0.0
    %4532 = vmatprep.subr.mxu0 0.0
    %4533 = vmatpush1.msra.mxu0 0.0
    %4534 = vmatprep.subr.mxu0 0.0
    %4535 = vmatpush1.msra.mxu0 0.0
    %4536 = vmatprep.subr.mxu0 0.0
    %4537 = vmatpush1.msra.mxu0 0.0
    %4538 = vmatprep.subr.mxu0 0.0
    %4539 = vmatpush1.msra.mxu0 0.0
    %4540 = vmatprep.subr.mxu0 0.0
    %4541 = vmatpush1.msra.mxu0 0.0
    %4542 = vmatprep.subr.mxu0 0.0
    %4543 = vmatpush1.msra.mxu0 0.0
    %4544 = vmatprep.subr.mxu0 0.0
    %4545 = vmatpush1.msra.mxu0 0.0
    %4546 = vmatprep.subr.mxu0 0.0
    %4547 = vmatpush1.msra.mxu0 0.0
    %4548 = vmatprep.subr.mxu0 0.0
    %4549 = vmatpush1.msra.mxu0 0.0
    %4550 = vmatprep.subr.mxu0 0.0
    %4551 = vmatpush1.msra.mxu0 0.0
    %4552 = vmatprep.subr.mxu0 0.0
    %4553 = vmatpush1.msra.mxu0 0.0
    %4554 = vmatprep.subr.mxu0 0.0
    %4555 = vmatpush1.msra.mxu0 0.0
    %4556 = vmatprep.subr.mxu0 0.0
    %4557 = vmatpush1.msra.mxu0 0.0
    %4558 = vmatprep.subr.mxu0 0.0
    %4559 = vmatpush1.msra.mxu0 0.0
    %4560 = vmatprep.subr.mxu0 0.0
    %4561 = vmatpush1.msra.mxu0 0.0
    %4562 = vmatprep.subr.mxu0 0.0
    %4563 = vmatpush1.msra.mxu0 0.0
    %4564 = vmatprep.mubr.f32.mxu0 0.0
    %4565 = vmatmul.mubr.f32.gmra.mrb[0].mxu0 %v4498
    %v4566 = vpop.f32.mrb[0].mxu0
    %v4567 = vadd.f32 0.0, %v4566
    %v4568 = vpop.f32.mrb[0].mxu0
    %v4569 = vadd.f32 0.0, %v4568
    %4570 = vdwg.mxu0
    %4571 = vmatprep.subr.mxu0 %v1791
    %4572 = vmatpush1.msra.mxu0 %v1790
    %4573 = vmatprep.subr.mxu0 0.0
    %4574 = vmatpush1.msra.mxu0 0.0
    %4575 = vmatprep.subr.mxu0 0.0
    %4576 = vmatpush1.msra.mxu0 0.0
    %4577 = vmatprep.subr.mxu0 0.0
    %4578 = vmatpush1.msra.mxu0 0.0
    %4579 = vmatprep.subr.mxu0 0.0
    %4580 = vmatpush1.msra.mxu0 0.0
    %4581 = vmatprep.subr.mxu0 0.0
    %4582 = vmatpush1.msra.mxu0 0.0
    %4583 = vmatprep.subr.mxu0 0.0
    %4584 = vmatpush1.msra.mxu0 0.0
    %4585 = vmatprep.subr.mxu0 0.0
    %4586 = vmatpush1.msra.mxu0 0.0
    %4587 = vmatprep.subr.mxu0 0.0
    %4588 = vmatpush1.msra.mxu0 0.0
    %4589 = vmatprep.subr.mxu0 0.0
    %4590 = vmatpush1.msra.mxu0 0.0
    %4591 = vmatprep.subr.mxu0 0.0
    %4592 = vmatpush1.msra.mxu0 0.0
    %4593 = vmatprep.subr.mxu0 0.0
    %4594 = vmatpush1.msra.mxu0 0.0
    %4595 = vmatprep.subr.mxu0 0.0
    %4596 = vmatpush1.msra.mxu0 0.0
    %4597 = vmatprep.subr.mxu0 0.0
    %4598 = vmatpush1.msra.mxu0 0.0
    %4599 = vmatprep.subr.mxu0 0.0
    %4600 = vmatpush1.msra.mxu0 0.0
    %4601 = vmatprep.subr.mxu0 0.0
    %4602 = vmatpush1.msra.mxu0 0.0
    %4603 = vmatprep.subr.mxu0 0.0
    %4604 = vmatpush1.msra.mxu0 0.0
    %4605 = vmatprep.subr.mxu0 0.0
    %4606 = vmatpush1.msra.mxu0 0.0
    %4607 = vmatprep.subr.mxu0 0.0
    %4608 = vmatpush1.msra.mxu0 0.0
    %4609 = vmatprep.subr.mxu0 0.0
    %4610 = vmatpush1.msra.mxu0 0.0
    %4611 = vmatprep.subr.mxu0 0.0
    %4612 = vmatpush1.msra.mxu0 0.0
    %4613 = vmatprep.subr.mxu0 0.0
    %4614 = vmatpush1.msra.mxu0 0.0
    %4615 = vmatprep.subr.mxu0 0.0
    %4616 = vmatpush1.msra.mxu0 0.0
    %4617 = vmatprep.subr.mxu0 0.0
    %4618 = vmatpush1.msra.mxu0 0.0
    %4619 = vmatprep.subr.mxu0 0.0
    %4620 = vmatpush1.msra.mxu0 0.0
    %4621 = vmatprep.subr.mxu0 0.0
    %4622 = vmatpush1.msra.mxu0 0.0
    %4623 = vmatprep.subr.mxu0 0.0
    %4624 = vmatpush1.msra.mxu0 0.0
    %4625 = vmatprep.subr.mxu0 0.0
    %4626 = vmatpush1.msra.mxu0 0.0
    %4627 = vmatprep.subr.mxu0 0.0
    %4628 = vmatpush1.msra.mxu0 0.0
    %4629 = vmatprep.subr.mxu0 0.0
    %4630 = vmatpush1.msra.mxu0 0.0
    %4631 = vmatprep.subr.mxu0 0.0
    %4632 = vmatpush1.msra.mxu0 0.0
    %4633 = vmatprep.subr.mxu0 0.0
    %4634 = vmatpush1.msra.mxu0 0.0
    %4635 = vmatprep.mubr.f32.mxu0 0.0
    %4636 = vmatmul.mubr.f32.gmra.mrb[0].mxu0 %v4498
    %v4637 = vpop.f32.mrb[0].mxu0
    %v4638 = vadd.f32 0.0, %v4637
    %v4639 = vpop.f32.mrb[0].mxu0
    %v4640 = vadd.f32 0.0, %v4639
    %4641 = vdwg.mxu0
    %4642 = vrot.lane.b32.xlu0 %v4567, 127
    %v4643 = vpop.permute.xlu0 %4642
    %4644 = vrot.lane.b32.xlu0 %v4569, 127
    %v4645 = vpop.permute.xlu0 %4644
    %4646 = vrot.lane.b32.xlu0 %v4638, 127
    %v4647 = vpop.permute.xlu0 %4646
    %4648 = vrot.lane.b32.xlu0 %v4640, 127
    %v4649 = vpop.permute.xlu0 %4648
    %v4650 = vsel %vm1132, %v4647, %v4649
    %v4651 = vsel %vm1132, %v4645, %v4647
    %v4652 = vsel %vm1132, %v4643, %v4645
    %v4653 = vsel %vm1132, %v4649, %v4643
    %v4654 = vsel %vm1156, %v4652, 0.0
    %v4655 = vsel %vm1157, %v4651, 0.0
    %v4656 = vsel %vm1158, %v4650, 0.0
    %v4657 = vsel %vm1159, %v4653, 0.0
    %v4659 = vsel %vm49, %v4494, 0
    %4661 = vmatprep.subr.mxu0 %v1789
    %4662 = vmatpush1.msra.mxu0 %v1788
    %4663 = vmatprep.subr.mxu0 0.0
    %4664 = vmatpush1.msra.mxu0 0.0
    %4665 = vmatprep.subr.mxu0 0.0
    %4666 = vmatpush1.msra.mxu0 0.0
    %4667 = vmatprep.subr.mxu0 0.0
    %4668 = vmatpush1.msra.mxu0 0.0
    %4669 = vmatprep.subr.mxu0 0.0
    %4670 = vmatpush1.msra.mxu0 0.0
    %4671 = vmatprep.subr.mxu0 0.0
    %4672 = vmatpush1.msra.mxu0 0.0
    %4673 = vmatprep.subr.mxu0 0.0
    %4674 = vmatpush1.msra.mxu0 0.0
    %4675 = vmatprep.subr.mxu0 0.0
    %4676 = vmatpush1.msra.mxu0 0.0
    %4677 = vmatprep.subr.mxu0 0.0
    %4678 = vmatpush1.msra.mxu0 0.0
    %4679 = vmatprep.subr.mxu0 0.0
    %4680 = vmatpush1.msra.mxu0 0.0
    %4681 = vmatprep.subr.mxu0 0.0
    %4682 = vmatpush1.msra.mxu0 0.0
    %4683 = vmatprep.subr.mxu0 0.0
    %4684 = vmatpush1.msra.mxu0 0.0
    %4685 = vmatprep.subr.mxu0 0.0
    %4686 = vmatpush1.msra.mxu0 0.0
    %4687 = vmatprep.subr.mxu0 0.0
    %4688 = vmatpush1.msra.mxu0 0.0
    %4689 = vmatprep.subr.mxu0 0.0
    %4690 = vmatpush1.msra.mxu0 0.0
    %4691 = vmatprep.subr.mxu0 0.0
    %4692 = vmatpush1.msra.mxu0 0.0
    %4693 = vmatprep.subr.mxu0 0.0
    %4694 = vmatpush1.msra.mxu0 0.0
    %4695 = vmatprep.subr.mxu0 0.0
    %4696 = vmatpush1.msra.mxu0 0.0
    %4697 = vmatprep.subr.mxu0 0.0
    %4698 = vmatpush1.msra.mxu0 0.0
    %4699 = vmatprep.subr.mxu0 0.0
    %4700 = vmatpush1.msra.mxu0 0.0
    %4701 = vmatprep.subr.mxu0 0.0
    %4702 = vmatpush1.msra.mxu0 0.0
    %4703 = vmatprep.subr.mxu0 0.0
    %4704 = vmatpush1.msra.mxu0 0.0
    %4705 = vmatprep.subr.mxu0 0.0
    %4706 = vmatpush1.msra.mxu0 0.0
    %4707 = vmatprep.subr.mxu0 0.0
    %4708 = vmatpush1.msra.mxu0 0.0
    %4709 = vmatprep.subr.mxu0 0.0
    %4710 = vmatpush1.msra.mxu0 0.0
    %4711 = vmatprep.subr.mxu0 0.0
    %4712 = vmatpush1.msra.mxu0 0.0
    %4713 = vmatprep.subr.mxu0 0.0
    %4714 = vmatpush1.msra.mxu0 0.0
    %4715 = vmatprep.subr.mxu0 0.0
    %4716 = vmatpush1.msra.mxu0 0.0
    %4717 = vmatprep.subr.mxu0 0.0
    %4718 = vmatpush1.msra.mxu0 0.0
    %4719 = vmatprep.subr.mxu0 0.0
    %4720 = vmatpush1.msra.mxu0 0.0
    %4721 = vmatprep.subr.mxu0 0.0
    %4722 = vmatpush1.msra.mxu0 0.0
    %4723 = vmatprep.subr.mxu0 0.0
    %4724 = vmatpush1.msra.mxu0 0.0
    %4725 = vmatprep.mubr.f32.mxu0 0.0
    %4726 = vmatmul.mubr.f32.gmra.mrb[0].mxu0 %v4659
    %v4727 = vpop.f32.mrb[0].mxu0
    %v4728 = vadd.f32 %v4654, %v4727
    %v4729 = vpop.f32.mrb[0].mxu0
    %v4730 = vadd.f32 %v4655, %v4729
    %4731 = vdwg.mxu0
    %4732 = vmatprep.subr.mxu0 %v1791
    %4733 = vmatpush1.msra.mxu0 %v1790
    %4734 = vmatprep.subr.mxu0 0.0
    %4735 = vmatpush1.msra.mxu0 0.0
    %4736 = vmatprep.subr.mxu0 0.0
    %4737 = vmatpush1.msra.mxu0 0.0
    %4738 = vmatprep.subr.mxu0 0.0
    %4739 = vmatpush1.msra.mxu0 0.0
    %4740 = vmatprep.subr.mxu0 0.0
    %4741 = vmatpush1.msra.mxu0 0.0
    %4742 = vmatprep.subr.mxu0 0.0
    %4743 = vmatpush1.msra.mxu0 0.0
    %4744 = vmatprep.subr.mxu0 0.0
    %4745 = vmatpush1.msra.mxu0 0.0
    %4746 = vmatprep.subr.mxu0 0.0
    %4747 = vmatpush1.msra.mxu0 0.0
    %4748 = vmatprep.subr.mxu0 0.0
    %4749 = vmatpush1.msra.mxu0 0.0
    %4750 = vmatprep.subr.mxu0 0.0
    %4751 = vmatpush1.msra.mxu0 0.0
    %4752 = vmatprep.subr.mxu0 0.0
    %4753 = vmatpush1.msra.mxu0 0.0
    %4754 = vmatprep.subr.mxu0 0.0
    %4755 = vmatpush1.msra.mxu0 0.0
    %4756 = vmatprep.subr.mxu0 0.0
    %4757 = vmatpush1.msra.mxu0 0.0
    %4758 = vmatprep.subr.mxu0 0.0
    %4759 = vmatpush1.msra.mxu0 0.0
    %4760 = vmatprep.subr.mxu0 0.0
    %4761 = vmatpush1.msra.mxu0 0.0
    %4762 = vmatprep.subr.mxu0 0.0
    %4763 = vmatpush1.msra.mxu0 0.0
    %4764 = vmatprep.subr.mxu0 0.0
    %4765 = vmatpush1.msra.mxu0 0.0
    %4766 = vmatprep.subr.mxu0 0.0
    %4767 = vmatpush1.msra.mxu0 0.0
    %4768 = vmatprep.subr.mxu0 0.0
    %4769 = vmatpush1.msra.mxu0 0.0
    %4770 = vmatprep.subr.mxu0 0.0
    %4771 = vmatpush1.msra.mxu0 0.0
    %4772 = vmatprep.subr.mxu0 0.0
    %4773 = vmatpush1.msra.mxu0 0.0
    %4774 = vmatprep.subr.mxu0 0.0
    %4775 = vmatpush1.msra.mxu0 0.0
    %4776 = vmatprep.subr.mxu0 0.0
    %4777 = vmatpush1.msra.mxu0 0.0
    %4778 = vmatprep.subr.mxu0 0.0
    %4779 = vmatpush1.msra.mxu0 0.0
    %4780 = vmatprep.subr.mxu0 0.0
    %4781 = vmatpush1.msra.mxu0 0.0
    %4782 = vmatprep.subr.mxu0 0.0
    %4783 = vmatpush1.msra.mxu0 0.0
    %4784 = vmatprep.subr.mxu0 0.0
    %4785 = vmatpush1.msra.mxu0 0.0
    %4786 = vmatprep.subr.mxu0 0.0
    %4787 = vmatpush1.msra.mxu0 0.0
    %4788 = vmatprep.subr.mxu0 0.0
    %4789 = vmatpush1.msra.mxu0 0.0
    %4790 = vmatprep.subr.mxu0 0.0
    %4791 = vmatpush1.msra.mxu0 0.0
    %4792 = vmatprep.subr.mxu0 0.0
    %4793 = vmatpush1.msra.mxu0 0.0
    %4794 = vmatprep.subr.mxu0 0.0
    %4795 = vmatpush1.msra.mxu0 0.0
    %4796 = vmatprep.mubr.f32.mxu0 0.0
    %4797 = vmatmul.mubr.f32.gmra.mrb[0].mxu0 %v4659
    %v4798 = vpop.f32.mrb[0].mxu0
    %v4799 = vadd.f32 %v4656, %v4798
    %v4800 = vpop.f32.mrb[0].mxu0
    %v4801 = vadd.f32 %v4657, %v4800
    %4802 = vdwg.mxu0
    %s4803 = scalar_lea.vmem %s6, 112
    %v4804 = vld [vmem:[%s4803] sm:$0xff]
    %v4806 = vsel %vm49, %v4804, 0
    %4808 = vmatprep.subr.mxu0 %v1789
    %4809 = vmatpush1.msra.mxu0 %v1788
    %4810 = vmatprep.subr.mxu0 0.0
    %4811 = vmatpush1.msra.mxu0 0.0
    %4812 = vmatprep.subr.mxu0 0.0
    %4813 = vmatpush1.msra.mxu0 0.0
    %4814 = vmatprep.subr.mxu0 0.0
    %4815 = vmatpush1.msra.mxu0 0.0
    %4816 = vmatprep.subr.mxu0 0.0
    %4817 = vmatpush1.msra.mxu0 0.0
    %4818 = vmatprep.subr.mxu0 0.0
    %4819 = vmatpush1.msra.mxu0 0.0
    %4820 = vmatprep.subr.mxu0 0.0
    %4821 = vmatpush1.msra.mxu0 0.0
    %4822 = vmatprep.subr.mxu0 0.0
    %4823 = vmatpush1.msra.mxu0 0.0
    %4824 = vmatprep.subr.mxu0 0.0
    %4825 = vmatpush1.msra.mxu0 0.0
    %4826 = vmatprep.subr.mxu0 0.0
    %4827 = vmatpush1.msra.mxu0 0.0
    %4828 = vmatprep.subr.mxu0 0.0
    %4829 = vmatpush1.msra.mxu0 0.0
    %4830 = vmatprep.subr.mxu0 0.0
    %4831 = vmatpush1.msra.mxu0 0.0
    %4832 = vmatprep.subr.mxu0 0.0
    %4833 = vmatpush1.msra.mxu0 0.0
    %4834 = vmatprep.subr.mxu0 0.0
    %4835 = vmatpush1.msra.mxu0 0.0
    %4836 = vmatprep.subr.mxu0 0.0
    %4837 = vmatpush1.msra.mxu0 0.0
    %4838 = vmatprep.subr.mxu0 0.0
    %4839 = vmatpush1.msra.mxu0 0.0
    %4840 = vmatprep.subr.mxu0 0.0
    %4841 = vmatpush1.msra.mxu0 0.0
    %4842 = vmatprep.subr.mxu0 0.0
    %4843 = vmatpush1.msra.mxu0 0.0
    %4844 = vmatprep.subr.mxu0 0.0
    %4845 = vmatpush1.msra.mxu0 0.0
    %4846 = vmatprep.subr.mxu0 0.0
    %4847 = vmatpush1.msra.mxu0 0.0
    %4848 = vmatprep.subr.mxu0 0.0
    %4849 = vmatpush1.msra.mxu0 0.0
    %4850 = vmatprep.subr.mxu0 0.0
    %4851 = vmatpush1.msra.mxu0 0.0
    %4852 = vmatprep.subr.mxu0 0.0
    %4853 = vmatpush1.msra.mxu0 0.0
    %4854 = vmatprep.subr.mxu0 0.0
    %4855 = vmatpush1.msra.mxu0 0.0
    %4856 = vmatprep.subr.mxu0 0.0
    %4857 = vmatpush1.msra.mxu0 0.0
    %4858 = vmatprep.subr.mxu0 0.0
    %4859 = vmatpush1.msra.mxu0 0.0
    %4860 = vmatprep.subr.mxu0 0.0
    %4861 = vmatpush1.msra.mxu0 0.0
    %4862 = vmatprep.subr.mxu0 0.0
    %4863 = vmatpush1.msra.mxu0 0.0
    %4864 = vmatprep.subr.mxu0 0.0
    %4865 = vmatpush1.msra.mxu0 0.0
    %4866 = vmatprep.subr.mxu0 0.0
    %4867 = vmatpush1.msra.mxu0 0.0
    %4868 = vmatprep.subr.mxu0 0.0
    %4869 = vmatpush1.msra.mxu0 0.0
    %4870 = vmatprep.subr.mxu0 0.0
    %4871 = vmatpush1.msra.mxu0 0.0
    %4872 = vmatprep.mubr.f32.mxu0 0.0
    %4873 = vmatmul.mubr.f32.gmra.mrb[0].mxu0 %v4806
    %v4874 = vpop.f32.mrb[0].mxu0
    %v4875 = vadd.f32 0.0, %v4874
    %v4876 = vpop.f32.mrb[0].mxu0
    %v4877 = vadd.f32 0.0, %v4876
    %4878 = vdwg.mxu0
    %4879 = vmatprep.subr.mxu0 %v1791
    %4880 = vmatpush1.msra.mxu0 %v1790
    %4881 = vmatprep.subr.mxu0 0.0
    %4882 = vmatpush1.msra.mxu0 0.0
    %4883 = vmatprep.subr.mxu0 0.0
    %4884 = vmatpush1.msra.mxu0 0.0
    %4885 = vmatprep.subr.mxu0 0.0
    %4886 = vmatpush1.msra.mxu0 0.0
    %4887 = vmatprep.subr.mxu0 0.0
    %4888 = vmatpush1.msra.mxu0 0.0
    %4889 = vmatprep.subr.mxu0 0.0
    %4890 = vmatpush1.msra.mxu0 0.0
    %4891 = vmatprep.subr.mxu0 0.0
    %4892 = vmatpush1.msra.mxu0 0.0
    %4893 = vmatprep.subr.mxu0 0.0
    %4894 = vmatpush1.msra.mxu0 0.0
    %4895 = vmatprep.subr.mxu0 0.0
    %4896 = vmatpush1.msra.mxu0 0.0
    %4897 = vmatprep.subr.mxu0 0.0
    %4898 = vmatpush1.msra.mxu0 0.0
    %4899 = vmatprep.subr.mxu0 0.0
    %4900 = vmatpush1.msra.mxu0 0.0
    %4901 = vmatprep.subr.mxu0 0.0
    %4902 = vmatpush1.msra.mxu0 0.0
    %4903 = vmatprep.subr.mxu0 0.0
    %4904 = vmatpush1.msra.mxu0 0.0
    %4905 = vmatprep.subr.mxu0 0.0
    %4906 = vmatpush1.msra.mxu0 0.0
    %4907 = vmatprep.subr.mxu0 0.0
    %4908 = vmatpush1.msra.mxu0 0.0
    %4909 = vmatprep.subr.mxu0 0.0
    %4910 = vmatpush1.msra.mxu0 0.0
    %4911 = vmatprep.subr.mxu0 0.0
    %4912 = vmatpush1.msra.mxu0 0.0
    %4913 = vmatprep.subr.mxu0 0.0
    %4914 = vmatpush1.msra.mxu0 0.0
    %4915 = vmatprep.subr.mxu0 0.0
    %4916 = vmatpush1.msra.mxu0 0.0
    %4917 = vmatprep.subr.mxu0 0.0
    %4918 = vmatpush1.msra.mxu0 0.0
    %4919 = vmatprep.subr.mxu0 0.0
    %4920 = vmatpush1.msra.mxu0 0.0
    %4921 = vmatprep.subr.mxu0 0.0
    %4922 = vmatpush1.msra.mxu0 0.0
    %4923 = vmatprep.subr.mxu0 0.0
    %4924 = vmatpush1.msra.mxu0 0.0
    %4925 = vmatprep.subr.mxu0 0.0
    %4926 = vmatpush1.msra.mxu0 0.0
    %4927 = vmatprep.subr.mxu0 0.0
    %4928 = vmatpush1.msra.mxu0 0.0
    %4929 = vmatprep.subr.mxu0 0.0
    %4930 = vmatpush1.msra.mxu0 0.0
    %4931 = vmatprep.subr.mxu0 0.0
    %4932 = vmatpush1.msra.mxu0 0.0
    %4933 = vmatprep.subr.mxu0 0.0
    %4934 = vmatpush1.msra.mxu0 0.0
    %4935 = vmatprep.subr.mxu0 0.0
    %4936 = vmatpush1.msra.mxu0 0.0
    %4937 = vmatprep.subr.mxu0 0.0
    %4938 = vmatpush1.msra.mxu0 0.0
    %4939 = vmatprep.subr.mxu0 0.0
    %4940 = vmatpush1.msra.mxu0 0.0
    %4941 = vmatprep.subr.mxu0 0.0
    %4942 = vmatpush1.msra.mxu0 0.0
    %4943 = vmatprep.mubr.f32.mxu0 0.0
    %4944 = vmatmul.mubr.f32.gmra.mrb[0].mxu0 %v4806
    %v4945 = vpop.f32.mrb[0].mxu0
    %v4946 = vadd.f32 0.0, %v4945
    %v4947 = vpop.f32.mrb[0].mxu0
    %v4948 = vadd.f32 0.0, %v4947
    %4949 = vdwg.mxu0
    %4950 = vrot.lane.b32.xlu0 %v4875, 112
    %v4951 = vpop.permute.xlu0 %4950
    %4952 = vrot.lane.b32.xlu0 %v4877, 112
    %v4953 = vpop.permute.xlu0 %4952
    %4954 = vrot.lane.b32.xlu0 %v4946, 112
    %v4955 = vpop.permute.xlu0 %4954
    %4956 = vrot.lane.b32.xlu0 %v4948, 112
    %v4957 = vpop.permute.xlu0 %4956
    %v4958 = vsel %vm1517, %v4955, %v4957
    %v4959 = vsel %vm1517, %v4953, %v4955
    %v4960 = vsel %vm1517, %v4951, %v4953
    %v4961 = vsel %vm1517, %v4957, %v4951
    %v4962 = vsel %vm1541, %v4960, 0.0
    %v4963 = vsel %vm1542, %v4959, 0.0
    %v4964 = vsel %vm1543, %v4958, 0.0
    %v4965 = vsel %vm1544, %v4961, 0.0
    %v4966 = vadd.f32 %v4728, %v4962
    %v4967 = vadd.f32 %v4730, %v4963
    %v4968 = vadd.f32 %v4799, %v4964
    %v4969 = vadd.f32 %v4801, %v4965
    %s4970 = scalar_lea.vmem %s6, 120
    %v4971 = vld [vmem:[%s4970] sm:$0xff]
    %v4973 = vsel %vm49, %v4971, 0
    %4975 = vmatprep.subr.mxu0 %v1789
    %4976 = vmatpush1.msra.mxu0 %v1788
    %4977 = vmatprep.subr.mxu0 0.0
    %4978 = vmatpush1.msra.mxu0 0.0
    %4979 = vmatprep.subr.mxu0 0.0
    %4980 = vmatpush1.msra.mxu0 0.0
    %4981 = vmatprep.subr.mxu0 0.0
    %4982 = vmatpush1.msra.mxu0 0.0
    %4983 = vmatprep.subr.mxu0 0.0
    %4984 = vmatpush1.msra.mxu0 0.0
    %4985 = vmatprep.subr.mxu0 0.0
    %4986 = vmatpush1.msra.mxu0 0.0
    %4987 = vmatprep.subr.mxu0 0.0
    %4988 = vmatpush1.msra.mxu0 0.0
    %4989 = vmatprep.subr.mxu0 0.0
    %4990 = vmatpush1.msra.mxu0 0.0
    %4991 = vmatprep.subr.mxu0 0.0
    %4992 = vmatpush1.msra.mxu0 0.0
    %4993 = vmatprep.subr.mxu0 0.0
    %4994 = vmatpush1.msra.mxu0 0.0
    %4995 = vmatprep.subr.mxu0 0.0
    %4996 = vmatpush1.msra.mxu0 0.0
    %4997 = vmatprep.subr.mxu0 0.0
    %4998 = vmatpush1.msra.mxu0 0.0
    %4999 = vmatprep.subr.mxu0 0.0
    %5000 = vmatpush1.msra.mxu0 0.0
    %5001 = vmatprep.subr.mxu0 0.0
    %5002 = vmatpush1.msra.mxu0 0.0
    %5003 = vmatprep.subr.mxu0 0.0
    %5004 = vmatpush1.msra.mxu0 0.0
    %5005 = vmatprep.subr.mxu0 0.0
    %5006 = vmatpush1.msra.mxu0 0.0
    %5007 = vmatprep.subr.mxu0 0.0
    %5008 = vmatpush1.msra.mxu0 0.0
    %5009 = vmatprep.subr.mxu0 0.0
    %5010 = vmatpush1.msra.mxu0 0.0
    %5011 = vmatprep.subr.mxu0 0.0
    %5012 = vmatpush1.msra.mxu0 0.0
    %5013 = vmatprep.subr.mxu0 0.0
    %5014 = vmatpush1.msra.mxu0 0.0
    %5015 = vmatprep.subr.mxu0 0.0
    %5016 = vmatpush1.msra.mxu0 0.0
    %5017 = vmatprep.subr.mxu0 0.0
    %5018 = vmatpush1.msra.mxu0 0.0
    %5019 = vmatprep.subr.mxu0 0.0
    %5020 = vmatpush1.msra.mxu0 0.0
    %5021 = vmatprep.subr.mxu0 0.0
    %5022 = vmatpush1.msra.mxu0 0.0
    %5023 = vmatprep.subr.mxu0 0.0
    %5024 = vmatpush1.msra.mxu0 0.0
    %5025 = vmatprep.subr.mxu0 0.0
    %5026 = vmatpush1.msra.mxu0 0.0
    %5027 = vmatprep.subr.mxu0 0.0
    %5028 = vmatpush1.msra.mxu0 0.0
    %5029 = vmatprep.subr.mxu0 0.0
    %5030 = vmatpush1.msra.mxu0 0.0
    %5031 = vmatprep.subr.mxu0 0.0
    %5032 = vmatpush1.msra.mxu0 0.0
    %5033 = vmatprep.subr.mxu0 0.0
    %5034 = vmatpush1.msra.mxu0 0.0
    %5035 = vmatprep.subr.mxu0 0.0
    %5036 = vmatpush1.msra.mxu0 0.0
    %5037 = vmatprep.subr.mxu0 0.0
    %5038 = vmatpush1.msra.mxu0 0.0
    %5039 = vmatprep.mubr.f32.mxu0 0.0
    %5040 = vmatmul.mubr.f32.gmra.mrb[0].mxu0 %v4973
    %v5041 = vpop.f32.mrb[0].mxu0
    %v5042 = vadd.f32 0.0, %v5041
    %v5043 = vpop.f32.mrb[0].mxu0
    %v5044 = vadd.f32 0.0, %v5043
    %5045 = vdwg.mxu0
    %5046 = vmatprep.subr.mxu0 %v1791
    %5047 = vmatpush1.msra.mxu0 %v1790
    %5048 = vmatprep.subr.mxu0 0.0
    %5049 = vmatpush1.msra.mxu0 0.0
    %5050 = vmatprep.subr.mxu0 0.0
    %5051 = vmatpush1.msra.mxu0 0.0
    %5052 = vmatprep.subr.mxu0 0.0
    %5053 = vmatpush1.msra.mxu0 0.0
    %5054 = vmatprep.subr.mxu0 0.0
    %5055 = vmatpush1.msra.mxu0 0.0
    %5056 = vmatprep.subr.mxu0 0.0
    %5057 = vmatpush1.msra.mxu0 0.0
    %5058 = vmatprep.subr.mxu0 0.0
    %5059 = vmatpush1.msra.mxu0 0.0
    %5060 = vmatprep.subr.mxu0 0.0
    %5061 = vmatpush1.msra.mxu0 0.0
    %5062 = vmatprep.subr.mxu0 0.0
    %5063 = vmatpush1.msra.mxu0 0.0
    %5064 = vmatprep.subr.mxu0 0.0
    %5065 = vmatpush1.msra.mxu0 0.0
    %5066 = vmatprep.subr.mxu0 0.0
    %5067 = vmatpush1.msra.mxu0 0.0
    %5068 = vmatprep.subr.mxu0 0.0
    %5069 = vmatpush1.msra.mxu0 0.0
    %5070 = vmatprep.subr.mxu0 0.0
    %5071 = vmatpush1.msra.mxu0 0.0
    %5072 = vmatprep.subr.mxu0 0.0
    %5073 = vmatpush1.msra.mxu0 0.0
    %5074 = vmatprep.subr.mxu0 0.0
    %5075 = vmatpush1.msra.mxu0 0.0
    %5076 = vmatprep.subr.mxu0 0.0
    %5077 = vmatpush1.msra.mxu0 0.0
    %5078 = vmatprep.subr.mxu0 0.0
    %5079 = vmatpush1.msra.mxu0 0.0
    %5080 = vmatprep.subr.mxu0 0.0
    %5081 = vmatpush1.msra.mxu0 0.0
    %5082 = vmatprep.subr.mxu0 0.0
    %5083 = vmatpush1.msra.mxu0 0.0
    %5084 = vmatprep.subr.mxu0 0.0
    %5085 = vmatpush1.msra.mxu0 0.0
    %5086 = vmatprep.subr.mxu0 0.0
    %5087 = vmatpush1.msra.mxu0 0.0
    %5088 = vmatprep.subr.mxu0 0.0
    %5089 = vmatpush1.msra.mxu0 0.0
    %5090 = vmatprep.subr.mxu0 0.0
    %5091 = vmatpush1.msra.mxu0 0.0
    %5092 = vmatprep.subr.mxu0 0.0
    %5093 = vmatpush1.msra.mxu0 0.0
    %5094 = vmatprep.subr.mxu0 0.0
    %5095 = vmatpush1.msra.mxu0 0.0
    %5096 = vmatprep.subr.mxu0 0.0
    %5097 = vmatpush1.msra.mxu0 0.0
    %5098 = vmatprep.subr.mxu0 0.0
    %5099 = vmatpush1.msra.mxu0 0.0
    %5100 = vmatprep.subr.mxu0 0.0
    %5101 = vmatpush1.msra.mxu0 0.0
    %5102 = vmatprep.subr.mxu0 0.0
    %5103 = vmatpush1.msra.mxu0 0.0
    %5104 = vmatprep.subr.mxu0 0.0
    %5105 = vmatpush1.msra.mxu0 0.0
    %5106 = vmatprep.subr.mxu0 0.0
    %5107 = vmatpush1.msra.mxu0 0.0
    %5108 = vmatprep.subr.mxu0 0.0
    %5109 = vmatpush1.msra.mxu0 0.0
    %5110 = vmatprep.mubr.f32.mxu0 0.0
    %5111 = vmatmul.mubr.f32.gmra.mrb[0].mxu0 %v4973
    %v5112 = vpop.f32.mrb[0].mxu0
    %v5113 = vadd.f32 0.0, %v5112
    %v5114 = vpop.f32.mrb[0].mxu0
    %v5115 = vadd.f32 0.0, %v5114
    %5116 = vdwg.mxu0
    %5117 = vrot.lane.b32.xlu0 %v5042, 111
    %v5118 = vpop.permute.xlu0 %5117
    %5119 = vrot.lane.b32.xlu0 %v5044, 111
    %v5120 = vpop.permute.xlu0 %5119
    %5121 = vrot.lane.b32.xlu0 %v5113, 111
    %v5122 = vpop.permute.xlu0 %5121
    %5123 = vrot.lane.b32.xlu0 %v5115, 111
    %v5124 = vpop.permute.xlu0 %5123
    %v5125 = vsel %vm1708, %v5122, %v5124
    %v5126 = vsel %vm1708, %v5120, %v5122
    %v5127 = vsel %vm1708, %v5118, %v5120
    %v5128 = vsel %vm1708, %v5124, %v5118
    %v5129 = vsel %vm1732, %v5127, 0.0
    %v5130 = vsel %vm1733, %v5126, 0.0
    %v5131 = vsel %vm1734, %v5125, 0.0
    %v5132 = vsel %vm1735, %v5128, 0.0
    %v5133 = vadd.f32 %v4966, %v5129
    %v5134 = vadd.f32 %v4967, %v5130
    %v5135 = vadd.f32 %v4968, %v5131
    %v5136 = vadd.f32 %v4969, %v5132
    %v5137 = vld [vmem:[%s7] sm:$0xff]
    %5139 = vset.pattern.permute.xlu0 0
    %5140 = vperm.xlu0 %5139, %v5137
    %v5141 = vpop.permute.xlu0 %5140
    %v5143 = vmul.f32 %v5133, %v5141
    %v5144 = vmul.f32 %v5134, %v5141
    %v5145 = vmul.f32 %v5135, %v5141
    %v5146 = vmul.f32 %v5136, %v5141
    %v5147 = vld [vmem:[%s8] sm:$0xff]
    %5149 = vset.pattern.permute.xlu0 0
    %5150 = vperm.xlu0 %5149, %v5147
    %v5151 = vpop.permute.xlu0 %5150
    %v5153 = vadd.f32 %v5143, %v5151
    %v5154 = vadd.f32 %v5144, %v5151
    %v5155 = vadd.f32 %v5145, %v5151
    %v5156 = vadd.f32 %v5146, %v5151
    %v5157 = vxor.u32 %v5153, 2147483648
    %v5158 = vxor.u32 %v5154, 2147483648
    %v5159 = vxor.u32 %v5155, 2147483648
    %v5160 = vxor.u32 %v5156, 2147483648
    %v5161 = vmul.f32 %v5157, 1.442695
    %v5162 = vpow.pop %v5161
    %v5163 = vmul.f32 %v5158, 1.442695
    %v5164 = vpow.pop %v5163
    %v5165 = vmul.f32 %v5159, 1.442695
    %v5166 = vpow.pop %v5165
    %v5167 = vmul.f32 %v5160, 1.442695
    %v5168 = vpow.pop %v5167
    %v5169 = vadd.f32 %v5162, 1.0
    %v5170 = vadd.f32 %v5164, 1.0
    %v5171 = vadd.f32 %v5166, 1.0
    %v5172 = vadd.f32 %v5168, 1.0
    %v5173 = vrcp.pop %v5169
    %v5174 = vmul.f32 1.0, %v5173
    %v5175 = vrcp.pop %v5170
    %v5176 = vmul.f32 1.0, %v5175
    %v5177 = vrcp.pop %v5171
    %v5178 = vmul.f32 1.0, %v5177
    %v5179 = vrcp.pop %v5172
    %v5180 = vmul.f32 1.0, %v5179
    %v5181 = vmul.f32 %v5153, %v5174
    %v5182 = vmul.f32 %v5154, %v5176
    %v5183 = vmul.f32 %v5155, %v5178
    %v5184 = vmul.f32 %v5156, %v5180
    %v5185 = vld [vmem:[%s9] sm:$0xf]
    %v5187 = vsel %vm49, %v5185, 0
    %5189 = vmatprep.subr.mxu0 %v5182
    %5190 = vmatpush1.msra.mxu0 %v5181
    %5191 = vmatprep.subr.mxu0 0.0
    %5192 = vmatpush1.msra.mxu0 0.0
    %5193 = vmatprep.subr.mxu0 0.0
    %5194 = vmatpush1.msra.mxu0 0.0
    %5195 = vmatprep.subr.mxu0 0.0
    %5196 = vmatpush1.msra.mxu0 0.0
    %5197 = vmatprep.subr.mxu0 0.0
    %5198 = vmatpush1.msra.mxu0 0.0
    %5199 = vmatprep.subr.mxu0 0.0
    %5200 = vmatpush1.msra.mxu0 0.0
    %5201 = vmatprep.subr.mxu0 0.0
    %5202 = vmatpush1.msra.mxu0 0.0
    %5203 = vmatprep.subr.mxu0 0.0
    %5204 = vmatpush1.msra.mxu0 0.0
    %5205 = vmatprep.subr.mxu0 0.0
    %5206 = vmatpush1.msra.mxu0 0.0
    %5207 = vmatprep.subr.mxu0 0.0
    %5208 = vmatpush1.msra.mxu0 0.0
    %5209 = vmatprep.subr.mxu0 0.0
    %5210 = vmatpush1.msra.mxu0 0.0
    %5211 = vmatprep.subr.mxu0 0.0
    %5212 = vmatpush1.msra.mxu0 0.0
    %5213 = vmatprep.subr.mxu0 0.0
    %5214 = vmatpush1.msra.mxu0 0.0
    %5215 = vmatprep.subr.mxu0 0.0
    %5216 = vmatpush1.msra.mxu0 0.0
    %5217 = vmatprep.subr.mxu0 0.0
    %5218 = vmatpush1.msra.mxu0 0.0
    %5219 = vmatprep.subr.mxu0 0.0
    %5220 = vmatpush1.msra.mxu0 0.0
    %5221 = vmatprep.subr.mxu0 0.0
    %5222 = vmatpush1.msra.mxu0 0.0
    %5223 = vmatprep.subr.mxu0 0.0
    %5224 = vmatpush1.msra.mxu0 0.0
    %5225 = vmatprep.subr.mxu0 0.0
    %5226 = vmatpush1.msra.mxu0 0.0
    %5227 = vmatprep.subr.mxu0 0.0
    %5228 = vmatpush1.msra.mxu0 0.0
    %5229 = vmatprep.subr.mxu0 0.0
    %5230 = vmatpush1.msra.mxu0 0.0
    %5231 = vmatprep.subr.mxu0 0.0
    %5232 = vmatpush1.msra.mxu0 0.0
    %5233 = vmatprep.subr.mxu0 0.0
    %5234 = vmatpush1.msra.mxu0 0.0
    %5235 = vmatprep.subr.mxu0 0.0
    %5236 = vmatpush1.msra.mxu0 0.0
    %5237 = vmatprep.subr.mxu0 0.0
    %5238 = vmatpush1.msra.mxu0 0.0
    %5239 = vmatprep.subr.mxu0 0.0
    %5240 = vmatpush1.msra.mxu0 0.0
    %5241 = vmatprep.subr.mxu0 0.0
    %5242 = vmatpush1.msra.mxu0 0.0
    %5243 = vmatprep.subr.mxu0 0.0
    %5244 = vmatpush1.msra.mxu0 0.0
    %5245 = vmatprep.subr.mxu0 0.0
    %5246 = vmatpush1.msra.mxu0 0.0
    %5247 = vmatprep.subr.mxu0 0.0
    %5248 = vmatpush1.msra.mxu0 0.0
    %5249 = vmatprep.subr.mxu0 0.0
    %5250 = vmatpush1.msra.mxu0 0.0
    %5251 = vmatprep.subr.mxu0 0.0
    %5252 = vmatpush1.msra.mxu0 0.0
    %5253 = vmatprep.mubr.f32.mxu0 0.0
    %5254 = vmatmul.mubr.f32.gmra.mrb[0].mxu0 %v5187
    %v5255 = vpop.f32.mrb[0].mxu0
    %v5256 = vadd.f32 0.0, %v5255
    %v5257 = vpop.f32.mrb[0].mxu0
    %v5258 = vadd.f32 0.0, %v5257
    %5259 = vdwg.mxu0
    %5260 = vmatprep.subr.mxu0 %v5184
    %5261 = vmatpush1.msra.mxu0 %v5183
    %5262 = vmatprep.subr.mxu0 0.0
    %5263 = vmatpush1.msra.mxu0 0.0
    %5264 = vmatprep.subr.mxu0 0.0
    %5265 = vmatpush1.msra.mxu0 0.0
    %5266 = vmatprep.subr.mxu0 0.0
    %5267 = vmatpush1.msra.mxu0 0.0
    %5268 = vmatprep.subr.mxu0 0.0
    %5269 = vmatpush1.msra.mxu0 0.0
    %5270 = vmatprep.subr.mxu0 0.0
    %5271 = vmatpush1.msra.mxu0 0.0
    %5272 = vmatprep.subr.mxu0 0.0
    %5273 = vmatpush1.msra.mxu0 0.0
    %5274 = vmatprep.subr.mxu0 0.0
    %5275 = vmatpush1.msra.mxu0 0.0
    %5276 = vmatprep.subr.mxu0 0.0
    %5277 = vmatpush1.msra.mxu0 0.0
    %5278 = vmatprep.subr.mxu0 0.0
    %5279 = vmatpush1.msra.mxu0 0.0
    %5280 = vmatprep.subr.mxu0 0.0
    %5281 = vmatpush1.msra.mxu0 0.0
    %5282 = vmatprep.subr.mxu0 0.0
    %5283 = vmatpush1.msra.mxu0 0.0
    %5284 = vmatprep.subr.mxu0 0.0
    %5285 = vmatpush1.msra.mxu0 0.0
    %5286 = vmatprep.subr.mxu0 0.0
    %5287 = vmatpush1.msra.mxu0 0.0
    %5288 = vmatprep.subr.mxu0 0.0
    %5289 = vmatpush1.msra.mxu0 0.0
    %5290 = vmatprep.subr.mxu0 0.0
    %5291 = vmatpush1.msra.mxu0 0.0
    %5292 = vmatprep.subr.mxu0 0.0
    %5293 = vmatpush1.msra.mxu0 0.0
    %5294 = vmatprep.subr.mxu0 0.0
    %5295 = vmatpush1.msra.mxu0 0.0
    %5296 = vmatprep.subr.mxu0 0.0
    %5297 = vmatpush1.msra.mxu0 0.0
    %5298 = vmatprep.subr.mxu0 0.0
    %5299 = vmatpush1.msra.mxu0 0.0
    %5300 = vmatprep.subr.mxu0 0.0
    %5301 = vmatpush1.msra.mxu0 0.0
    %5302 = vmatprep.subr.mxu0 0.0
    %5303 = vmatpush1.msra.mxu0 0.0
    %5304 = vmatprep.subr.mxu0 0.0
    %5305 = vmatpush1.msra.mxu0 0.0
    %5306 = vmatprep.subr.mxu0 0.0
    %5307 = vmatpush1.msra.mxu0 0.0
    %5308 = vmatprep.subr.mxu0 0.0
    %5309 = vmatpush1.msra.mxu0 0.0
    %5310 = vmatprep.subr.mxu0 0.0
    %5311 = vmatpush1.msra.mxu0 0.0
    %5312 = vmatprep.subr.mxu0 0.0
    %5313 = vmatpush1.msra.mxu0 0.0
    %5314 = vmatprep.subr.mxu0 0.0
    %5315 = vmatpush1.msra.mxu0 0.0
    %5316 = vmatprep.subr.mxu0 0.0
    %5317 = vmatpush1.msra.mxu0 0.0
    %5318 = vmatprep.subr.mxu0 0.0
    %5319 = vmatpush1.msra.mxu0 0.0
    %5320 = vmatprep.subr.mxu0 0.0
    %5321 = vmatpush1.msra.mxu0 0.0
    %5322 = vmatprep.subr.mxu0 0.0
    %5323 = vmatpush1.msra.mxu0 0.0
    %5324 = vmatprep.mubr.f32.mxu0 0.0
    %5325 = vmatmul.mubr.f32.gmra.mrb[0].mxu0 %v5187
    %v5326 = vpop.f32.mrb[0].mxu0
    %v5327 = vadd.f32 0.0, %v5326
    %v5328 = vpop.f32.mrb[0].mxu0
    %v5329 = vadd.f32 0.0, %v5328
    %5330 = vdwg.mxu0
    %v5331 = vld [vmem:[%s10] sm:$0xf]
    %5333 = vset.pattern.permute.xlu0 0
    %5334 = vperm.xlu0 %5333, %v5331
    %v5335 = vpop.permute.xlu0 %5334
    %v5337 = vmul.f32 %v5256, %v5335
    %v5338 = vmul.f32 %v5258, %v5335
    %v5339 = vmul.f32 %v5327, %v5335
    %v5340 = vmul.f32 %v5329, %v5335
    %v5341 = vld [vmem:[%s11] sm:$0xf]
    %5343 = vset.pattern.permute.xlu0 0
    %5344 = vperm.xlu0 %5343, %v5341
    %v5345 = vpop.permute.xlu0 %5344
    %v5347 = vadd.f32 %v5337, %v5345
    %v5348 = vadd.f32 %v5338, %v5345
    %v5349 = vadd.f32 %v5339, %v5345
    %v5350 = vadd.f32 %v5340, %v5345
    %v5351 = vxor.u32 %v5347, 2147483648
    %v5352 = vxor.u32 %v5348, 2147483648
    %v5353 = vxor.u32 %v5349, 2147483648
    %v5354 = vxor.u32 %v5350, 2147483648
    %v5355 = vmul.f32 %v5351, 1.442695
    %v5356 = vpow.pop %v5355
    %v5357 = vmul.f32 %v5352, 1.442695
    %v5358 = vpow.pop %v5357
    %v5359 = vmul.f32 %v5353, 1.442695
    %v5360 = vpow.pop %v5359
    %v5361 = vmul.f32 %v5354, 1.442695
    %v5362 = vpow.pop %v5361
    %v5363 = vadd.f32 %v5356, 1.0
    %v5364 = vadd.f32 %v5358, 1.0
    %v5365 = vadd.f32 %v5360, 1.0
    %v5366 = vadd.f32 %v5362, 1.0
    %v5367 = vrcp.pop %v5363
    %v5368 = vmul.f32 1.0, %v5367
    %v5369 = vrcp.pop %v5364
    %v5370 = vmul.f32 1.0, %v5369
    %v5371 = vrcp.pop %v5365
    %v5372 = vmul.f32 1.0, %v5371
    %v5373 = vrcp.pop %v5366
    %v5374 = vmul.f32 1.0, %v5373
    %v5375 = vmul.f32 %v5347, %v5368
    %v5376 = vmul.f32 %v5348, %v5370
    %v5377 = vmul.f32 %v5349, %v5372
    %v5378 = vmul.f32 %v5350, %v5374
    %v5383 = vcombine.low %v5375, %v5376
    %v5384 = vcombine.low %v5377, %v5378
    %s5387 = scalar_lea.vmem [#allocation2], 48
    %5388 = vst [vmem:[%s5387] sm:$0xff] %v5383
    %5389 = vst [vmem:[%s5387 + $0x8] sm:$0xff] %v5384
    // Predicated region
    $region50: #{tpu_custom_call.1} parent=1 // pred_check
      _
    $region51: #{tpu_custom_call.1} parent=1 // pred_check_branch
      %5391 = sbr.rel (0) target = $region53
    $region52: #{tpu_custom_call.1} parent=1 // pred_region
      %s5393 = ssub.s32 1024, 1024
      %5394 = vsyncadd [#allocation3], %s5393
      %s5395 = sshll.u32 [#allocation2], 4
      %s5396 = int_to_ptr.vmem [resolvable:$true] %s5395
      %5401 = dma.vmem_to_hbm [thread:$0]  %s5396, 1024, %s12, [#allocation3], 256, 256, 16
    $region53: #{tpu_custom_call.1} parent=1 // pred_fallthru
      _
    // Predicated region
    $region54: #{tpu_custom_call.1} parent=1 // pred_check
      _
    $region55: #{tpu_custom_call.1} parent=1 // pred_check_branch
      %5403 = sbr.rel (0) target = $region57
    $region56: #{tpu_custom_call.1} parent=1 // pred_region
      %5404 = dma.done [#allocation3], 1024
    $region57: #{tpu_custom_call.1} parent=1 // pred_fallthru
      _
    %5405 = vsyncpa [#allocation3], 1

</llo_original>
